<compile_context>
chip_gen: v6e
topology: v6e:2x2x1
jax: 0.10.0
libtpu: 0.0.40
codegen_flags: <defaults>
</compile_context>

<pallas_src>
import functools

import jax
import jax.numpy as jnp
from jax import lax
from jax.experimental import pallas as pl
from jax.experimental.pallas import tpu as pltpu


# ---------------------------------------------------------------------------
# Pallas kernels
# ---------------------------------------------------------------------------

def _apply_act(y, act):
    if act == "relu":
        return jnp.maximum(y, 0.0)
    if act == "tanh":
        return jnp.tanh(y)
    return y


def _linear_kernel(x_ref, w_ref, scale_ref, shift_ref, o_ref, *, act):
    y = jnp.dot(x_ref[...], w_ref[...], preferred_element_type=jnp.float32)
    y = y * scale_ref[...] + shift_ref[...]
    o_ref[...] = _apply_act(y, act)


def _linear_residual_kernel(x_ref, w_ref, scale_ref, shift_ref, res_ref, o_ref, *, act):
    y = jnp.dot(x_ref[...], w_ref[...], preferred_element_type=jnp.float32)
    y = y * scale_ref[...] + shift_ref[...] + res_ref[...]
    o_ref[...] = _apply_act(y, act)


def _dsconv_kernel(p_ref, wdw_ref, wpw_ref, scale_ref, shift_ref, o_ref):
    """Depthwise 3x3 (9 shifted multiply-accumulates) + pointwise 1x1 + BN + ReLU."""
    wdw = wdw_ref[...]                                   # (9, C)
    acc = p_ref[0] * wdw[0:1, :]
    for k in range(1, 9):
        acc = acc + p_ref[k] * wdw[k:k + 1, :]
    y = jnp.dot(acc, wpw_ref[...], preferred_element_type=jnp.float32)
    y = y * scale_ref[...] + shift_ref[...]
    o_ref[...] = jnp.maximum(y, 0.0)


def _se_kernel(x_ref, res_ref, w1_ref, w2_ref, o_ref):
    """Squeeze-excite gate, fused with the ResBlock residual add + ReLU."""
    x = x_ref[...]                                       # (B, 64, C)
    m = jnp.mean(x, axis=1)                              # (B, C) global average pool
    h = jnp.dot(m, w1_ref[...], preferred_element_type=jnp.float32)
    h = jnp.maximum(h, 0.0)
    g = jnp.dot(h, w2_ref[...], preferred_element_type=jnp.float32)
    g = 1.0 / (1.0 + jnp.exp(-g))                        # sigmoid
    y = x * g[:, None, :] + res_ref[...]
    o_ref[...] = jnp.maximum(y, 0.0)


def _policy_fc_kernel(x_ref, w_ref, b_ref, o_ref, acc_ref):
    """K-tiled x @ W accumulation; bias + softmax fused into the last grid step."""
    k = pl.program_id(0)

    @pl.when(k == 0)
    def _():
        acc_ref[...] = jnp.zeros_like(acc_ref)

    acc_ref[...] += jnp.dot(x_ref[...], w_ref[...], preferred_element_type=jnp.float32)

    @pl.when(k == pl.num_programs(0) - 1)
    def _():
        logits = acc_ref[...] + b_ref[...]
        m = jnp.max(logits, axis=1, keepdims=True)
        e = jnp.exp(logits - m)
        o_ref[...] = e / jnp.sum(e, axis=1, keepdims=True)   # == exp(log_softmax)


# ---------------------------------------------------------------------------
# Pallas-call wrappers
# ---------------------------------------------------------------------------

def _pick_tm(m):
    for tm in (256, 128, 64, 32, 16, 8):
        if m % tm == 0:
            return tm
    return m


def fused_linear(x, w, scale, shift, *, act="none", residual=None):
    m, k = x.shape
    _, n = w.shape
    tm = _pick_tm(m)
    scale = scale.reshape(1, n)
    shift = shift.reshape(1, n)
    in_specs = [
        pl.BlockSpec((tm, k), lambda i: (i, 0)),
        pl.BlockSpec((k, n), lambda i: (0, 0)),
        pl.BlockSpec((1, n), lambda i: (0, 0)),
        pl.BlockSpec((1, n), lambda i: (0, 0)),
    ]
    args = [x, w, scale, shift]
    if residual is None:
        kernel = functools.partial(_linear_kernel, act=act)
    else:
        in_specs.append(pl.BlockSpec((tm, n), lambda i: (i, 0)))
        args.append(residual)
        kernel = functools.partial(_linear_residual_kernel, act=act)
    return pl.pallas_call(
        kernel,
        out_shape=jax.ShapeDtypeStruct((m, n), jnp.float32),
        grid=(m // tm,),
        in_specs=in_specs,
        out_specs=pl.BlockSpec((tm, n), lambda i: (i, 0)),
        compiler_params=pltpu.CompilerParams(dimension_semantics=("parallel",)),
    )(*args)


def _im2col3x3(x_nhwc):
    b, h, w, c = x_nhwc.shape
    xp = jnp.pad(x_nhwc, ((0, 0), (1, 1), (1, 1), (0, 0)))
    cols = [xp[:, kh:kh + h, kw:kw + w, :] for kh in range(3) for kw in range(3)]
    return jnp.stack(cols, axis=3).reshape(b * h * w, 9 * c)      # (B*64, 9*C)


def _shifts3x3(x_nhwc):
    b, h, w, c = x_nhwc.shape
    xp = jnp.pad(x_nhwc, ((0, 0), (1, 1), (1, 1), (0, 0)))
    cols = [xp[:, kh:kh + h, kw:kw + w, :].reshape(b * h * w, c)
            for kh in range(3) for kw in range(3)]
    return jnp.stack(cols, axis=0)                                # (9, B*64, C)


def ds_conv(x_flat, batch, wdw, wpw, scale, shift):
    r, c = x_flat.shape
    patches = _shifts3x3(x_flat.reshape(batch, 8, 8, c))
    return pl.pallas_call(
        _dsconv_kernel,
        out_shape=jax.ShapeDtypeStruct((r, c), jnp.float32),
        in_specs=[
            pl.BlockSpec((9, r, c), lambda: (0, 0, 0)),
            pl.BlockSpec((9, c), lambda: (0, 0)),
            pl.BlockSpec((c, c), lambda: (0, 0)),
            pl.BlockSpec((1, c), lambda: (0, 0)),
            pl.BlockSpec((1, c), lambda: (0, 0)),
        ],
        out_specs=pl.BlockSpec((r, c), lambda: (0, 0)),
    )(patches, wdw, wpw, scale.reshape(1, c), shift.reshape(1, c))


def se_residual_relu(x_flat, res_flat, batch, w1t, w2t):
    r, c = x_flat.shape
    x3 = x_flat.reshape(batch, 64, c)
    r3 = res_flat.reshape(batch, 64, c)
    out = pl.pallas_call(
        _se_kernel,
        out_shape=jax.ShapeDtypeStruct((batch, 64, c), jnp.float32),
        in_specs=[
            pl.BlockSpec((batch, 64, c), lambda: (0, 0, 0)),
            pl.BlockSpec((batch, 64, c), lambda: (0, 0, 0)),
            pl.BlockSpec(w1t.shape, lambda: (0, 0)),
            pl.BlockSpec(w2t.shape, lambda: (0, 0)),
        ],
        out_specs=pl.BlockSpec((batch, 64, c), lambda: (0, 0, 0)),
    )(x3, r3, w1t, w2t)
    return out.reshape(r, c)


def policy_fc_softmax(x, w, b, *, tk=256):
    bsz, kdim = x.shape
    _, n = w.shape
    nk = kdim // tk
    return pl.pallas_call(
        _policy_fc_kernel,
        out_shape=jax.ShapeDtypeStruct((bsz, n), jnp.float32),
        grid=(nk,),
        in_specs=[
            pl.BlockSpec((bsz, tk), lambda k: (0, k)),
            pl.BlockSpec((tk, n), lambda k: (k, 0)),
            pl.BlockSpec((1, n), lambda k: (0, 0)),
        ],
        out_specs=pl.BlockSpec((bsz, n), lambda k: (0, 0)),
        scratch_shapes=[pltpu.VMEM((bsz, n), jnp.float32)],
        compiler_params=pltpu.CompilerParams(dimension_semantics=("arbitrary",)),
        cost_estimate=pl.CostEstimate(
            flops=2 * bsz * kdim * n,
            transcendentals=bsz * n,
            bytes_accessed=4 * (bsz * kdim + kdim * n + bsz * n),
        ),
    )(x, w, b)


# ---------------------------------------------------------------------------
# Full ChessNet forward (Pallas path)
# ---------------------------------------------------------------------------

def chessnet_forward(params, s):
    s = s.astype(jnp.float32).reshape(-1, 22, 8, 8)
    batch = s.shape[0]
    x = jnp.transpose(s, (0, 2, 3, 1))                   # NHWC: channels on lanes
    cb = params["conv"]

    # --- ConvBlock ---------------------------------------------------------
    residual = fused_linear(x.reshape(batch * 64, 22), cb["res_w"],
                            cb["res_scale"], cb["res_shift"], act="none")
    h = fused_linear(_im2col3x3(x), cb["w1"], cb["s1"], cb["t1"], act="relu")
    h = fused_linear(_im2col3x3(h.reshape(batch, 8, 8, 256)), cb["w2"],
                     cb["s2"], cb["t2"], act="relu", residual=residual)

    # --- 10 x ResBlock (scanned: each kernel compiles once) -----------------
    def res_body(carry, rb):
        res = carry
        t = ds_conv(carry, batch, rb["dw1"], rb["pw1"], rb["s1"], rb["t1"])
        t = ds_conv(t, batch, rb["dw2"], rb["pw2"], rb["s2"], rb["t2"])
        t = se_residual_relu(t, res, batch, rb["se_w1t"], rb["se_w2t"])
        return t, None

    h, _ = lax.scan(res_body, h, params["res"])

    # --- OutBlock ------------------------------------------------------------
    ob = params["out"]
    v = fused_linear(h, ob["vconv_w"], ob["vscale"], ob["vshift"], act="relu")   # (B*64, 1)
    v = v.reshape(batch, 64)
    v = fused_linear(v, ob["fc1_wT"], jnp.ones((1, 64), jnp.float32), ob["fc1_b"], act="relu")
    v = fused_linear(v, ob["fc2_wT"], jnp.ones((1, 1), jnp.float32), ob["fc2_b"], act="tanh")

    p = fused_linear(h, ob["pconv_w"], ob["pscale"], ob["pshift"], act="relu")   # (B*64, 128)
    p = p.reshape(batch, 64 * 128)                       # (hw, c)-major flatten
    policy = policy_fc_softmax(p, ob["fc_wT"], ob["fc_b"])
    return policy, v


# ---------------------------------------------------------------------------
# Parameter construction (PyTorch layouts) and conversion to kernel layouts
# ---------------------------------------------------------------------------

def _bn_params(key, c):
    k1, k2, k3, k4 = jax.random.split(key, 4)
    return dict(
        gamma=1.0 + 0.1 * jax.random.normal(k1, (c,), jnp.float32),
        beta=0.1 * jax.random.normal(k2, (c,), jnp.float32),
        mean=0.1 * jax.random.normal(k3, (c,), jnp.float32),
        var=jax.random.uniform(k4, (c,), jnp.float32, 0.5, 1.5),
    )


def init_raw_params(key):
    keys = iter(jax.random.split(key, 256))
    nk = lambda: next(keys)
    w = lambda shape, fan: jax.random.normal(nk(), shape, jnp.float32) / jnp.sqrt(float(fan))
    b = lambda n: 0.05 * jax.random.normal(nk(), (n,), jnp.float32)

    conv = dict(
        conv1_w=w((256, 22, 3, 3), 22 * 9), conv1_b=b(256), bn1=_bn_params(nk(), 256),
        conv2_w=w((256, 256, 3, 3), 256 * 9), conv2_b=b(256), bn2=_bn_params(nk(), 256),
        res_w=w((256, 22, 1, 1), 22), res_b=b(256),
    )
    blocks = []
    for _ in range(10):
        blocks.append(dict(
            dw1_w=w((256, 1, 3, 3), 9), pw1_w=w((256, 256, 1, 1), 256), bn1=_bn_params(nk(), 256),
            dw2_w=w((256, 1, 3, 3), 9), pw2_w=w((256, 256, 1, 1), 256), bn2=_bn_params(nk(), 256),
            se_w1=w((16, 256), 256), se_w2=w((256, 16), 16),
        ))
    out = dict(
        vconv_w=w((1, 256, 1, 1), 256), vconv_b=b(1), vbn=_bn_params(nk(), 1),
        fc1_w=w((64, 64), 64), fc1_b=b(64), fc2_w=w((1, 64), 64), fc2_b=b(1),
        pconv_w=w((128, 256, 1, 1), 256), pconv_b=b(128), pbn=_bn_params(nk(), 128),
        fc_w=w((4672, 8192), 8192), fc_b=b(4672),
    )
    return dict(conv=conv, res=blocks, out=out)


def _fold_bn(bn, conv_bias=None, eps=1e-5):
    scale = bn["gamma"] / jnp.sqrt(bn["var"] + eps)
    shift = bn["beta"] - bn["mean"] * scale
    if conv_bias is not None:
        shift = shift + conv_bias * scale
    return scale.reshape(1, -1), shift.reshape(1, -1)


def _conv3x3_to_mat(w):   # (O, I, 3, 3) -> (9*I, O), rows ordered (kh, kw, ci)
    o, i = w.shape[0], w.shape[1]
    return jnp.transpose(w, (2, 3, 1, 0)).reshape(9 * i, o)


def _conv1x1_to_mat(w):   # (O, I, 1, 1) -> (I, O)
    return jnp.transpose(w[:, :, 0, 0], (1, 0))


def _dw_to_mat(w):        # (C, 1, 3, 3) -> (9, C)
    return jnp.transpose(w[:, 0], (1, 2, 0)).reshape(9, w.shape[0])


def convert_params(raw):
    cb = raw["conv"]
    s1, t1 = _fold_bn(cb["bn1"], cb["conv1_b"])
    s2, t2 = _fold_bn(cb["bn2"], cb["conv2_b"])
    conv = dict(
        w1=_conv3x3_to_mat(cb["conv1_w"]), s1=s1, t1=t1,
        w2=_conv3x3_to_mat(cb["conv2_w"]), s2=s2, t2=t2,
        res_w=_conv1x1_to_mat(cb["res_w"]),
        res_scale=jnp.ones((1, 256), jnp.float32),
        res_shift=cb["res_b"].reshape(1, 256),
    )
    blocks = []
    for rb in raw["res"]:
        sa, ta = _fold_bn(rb["bn1"])
        sb, tb = _fold_bn(rb["bn2"])
        blocks.append(dict(
            dw1=_dw_to_mat(rb["dw1_w"]), pw1=_conv1x1_to_mat(rb["pw1_w"]), s1=sa, t1=ta,
            dw2=_dw_to_mat(rb["dw2_w"]), pw2=_conv1x1_to_mat(rb["pw2_w"]), s2=sb, t2=tb,
            se_w1t=jnp.transpose(rb["se_w1"]), se_w2t=jnp.transpose(rb["se_w2"]),
        ))
    res_stacked = jax.tree_util.tree_map(lambda *a: jnp.stack(a, axis=0), *blocks)

    ob = raw["out"]
    vs, vt = _fold_bn(ob["vbn"], ob["vconv_b"])
    ps, pt = _fold_bn(ob["pbn"], ob["pconv_b"])
    # Reorder the policy-FC weight from torch's (c*64+hw) input order to our (hw*128+c).
    fc_w = jnp.transpose(ob["fc_w"].reshape(4672, 128, 64), (2, 1, 0)).reshape(8192, 4672)
    out = dict(
        vconv_w=_conv1x1_to_mat(ob["vconv_w"]), vscale=vs, vshift=vt,
        fc1_wT=jnp.transpose(ob["fc1_w"]), fc1_b=ob["fc1_b"].reshape(1, 64),
        fc2_wT=jnp.transpose(ob["fc2_w"]), fc2_b=ob["fc2_b"].reshape(1, 1),
        pconv_w=_conv1x1_to_mat(ob["pconv_w"]), pscale=ps, pshift=pt,
        fc_wT=fc_w, fc_b=ob["fc_b"].reshape(1, 4672),
    )
    return dict(conv=conv, res=res_stacked, out=out)


# ---------------------------------------------------------------------------
# Pure-JAX (XLA) reference, used only to verify the Pallas path
# ---------------------------------------------------------------------------

def reference_forward(raw, s):
    prec = lax.Precision.HIGHEST

    def conv(x, w, b=None, pad=0, groups=1):
        y = lax.conv_general_dilated(
            x, w, (1, 1), [(pad, pad), (pad, pad)],
            dimension_numbers=("NCHW", "OIHW", "NCHW"),
            feature_group_count=groups, precision=prec)
        if b is not None:
            y = y + b[None, :, None, None]
        return y

    def bn(x, p):
        inv = p["gamma"] / jnp.sqrt(p["var"] + 1e-5)
        return x * inv[None, :, None, None] + (p["beta"] - p["mean"] * inv)[None, :, None, None]

    relu = jax.nn.relu
    x = s.astype(jnp.float32).reshape(-1, 22, 8, 8)
    cb = raw["conv"]
    residual = conv(x, cb["res_w"], cb["res_b"])
    h = relu(bn(conv(x, cb["conv1_w"], cb["conv1_b"], pad=1), cb["bn1"]))
    h = bn(conv(h, cb["conv2_w"], cb["conv2_b"], pad=1), cb["bn2"])
    h = relu(h + residual)
    for rb in raw["res"]:
        res = h
        t = conv(h, rb["dw1_w"], pad=1, groups=256)
        t = relu(bn(conv(t, rb["pw1_w"]), rb["bn1"]))
        t = conv(t, rb["dw2_w"], pad=1, groups=256)
        t = relu(bn(conv(t, rb["pw2_w"]), rb["bn2"]))
        y = jnp.mean(t, axis=(2, 3))
        y = relu(jnp.dot(y, rb["se_w1"].T, precision=prec))
        y = jax.nn.sigmoid(jnp.dot(y, rb["se_w2"].T, precision=prec))
        t = t * y[:, :, None, None]
        h = relu(t + res)
    ob = raw["out"]
    v = relu(bn(conv(h, ob["vconv_w"], ob["vconv_b"]), ob["vbn"]))
    v = v.reshape(v.shape[0], 64)
    v = relu(jnp.dot(v, ob["fc1_w"].T, precision=prec) + ob["fc1_b"])
    v = jnp.tanh(jnp.dot(v, ob["fc2_w"].T, precision=prec) + ob["fc2_b"])
    p = relu(bn(conv(h, ob["pconv_w"], ob["pconv_b"]), ob["pbn"]))
    p = p.reshape(p.shape[0], 8 * 8 * 128)
    p = jnp.dot(p, ob["fc_w"].T, precision=prec) + ob["fc_b"]
    p = jax.nn.softmax(p, axis=1)
    return p, v


# ---------------------------------------------------------------------------

if __name__ == "__main__":
    key = jax.random.PRNGKey(0)
    k_params, k_input = jax.random.split(key)
    batch = 2

    raw = init_raw_params(k_params)
    params = convert_params(raw)
    s = jax.random.normal(k_input, (batch, 22, 8, 8), dtype=jnp.float32)

    policy, value = jax.jit(chessnet_forward)(params, s)
    policy, value = jax.block_until_ready((policy, value))

    pol_ref, val_ref = jax.jit(reference_forward)(raw, s)
    pol_ref, val_ref = jax.block_until_ready((pol_ref, val_ref))

    assert policy.shape == (batch, 8 * 8 * 73) and value.shape == (batch, 1)
    assert bool(jnp.all(jnp.isfinite(policy))) and bool(jnp.all(jnp.isfinite(value)))
    assert bool(jnp.allclose(jnp.sum(policy, axis=1), 1.0, atol=1e-3))
    assert bool(jnp.allclose(policy, pol_ref, rtol=5e-2, atol=1e-6))
    assert bool(jnp.allclose(value, val_ref, rtol=5e-2, atol=1e-2))

    print("KERNEL_OK")
</pallas_src>

<mosaic_0001>
module attributes {stable_mosaic.version = 11 : i64} {
  func.func @_linear_kernel(%arg0: i32, %arg1: memref<128x22xf32, #tpu.memory_space<vmem>>, %arg2: memref<22x256xf32, #tpu.memory_space<vmem>>, %arg3: memref<1x256xf32, #tpu.memory_space<vmem>>, %arg4: memref<1x256xf32, #tpu.memory_space<vmem>>, %arg5: memref<128x256xf32, #tpu.memory_space<vmem>>) attributes {dimension_semantics = [#tpu.dimension_semantics<parallel>], iteration_bounds = array<i64: 1>, scalar_prefetch = 0 : i64, scratch_operands = 0 : i64, tpu.core_type = #tpu.core_type<tc>, window_params = [{transform_indices = @transform_0, window_bounds = array<i64: 128, 22>}, {pipeline_mode = #tpu.pipeline_mode<synchronous>, transform_indices = @transform_1, window_bounds = array<i64: 22, 256>}, {pipeline_mode = #tpu.pipeline_mode<synchronous>, transform_indices = @transform_2, window_bounds = array<i64: 1, 256>}, {pipeline_mode = #tpu.pipeline_mode<synchronous>, transform_indices = @transform_3, window_bounds = array<i64: 1, 256>}, {transform_indices = @transform_4, window_bounds = array<i64: 128, 256>}]} {
    %c0 = arith.constant 0 : index
    %c0_0 = arith.constant 0 : index
    %0 = vector.load %arg1[%c0, %c0_0] : memref<128x22xf32, #tpu.memory_space<vmem>>, vector<128x22xf32>
    %c0_1 = arith.constant 0 : index
    %c0_2 = arith.constant 0 : index
    %1 = vector.load %arg2[%c0_1, %c0_2] : memref<22x256xf32, #tpu.memory_space<vmem>>, vector<22x256xf32>
    %cst = arith.constant dense<0.000000e+00> : vector<128x256xf32>
    %2 = tpu.matmul %0, %1, %cst {dimension_numbers = #tpu.dot_dimension_numbers<[1], [0], [0], [1], [0, 0, 1, 1], [], []>} : vector<128x22xf32>, vector<22x256xf32>, vector<128x256xf32> -> vector<128x256xf32>
    %c0_3 = arith.constant 0 : index
    %c0_4 = arith.constant 0 : index
    %3 = vector.load %arg3[%c0_3, %c0_4] : memref<1x256xf32, #tpu.memory_space<vmem>>, vector<1x256xf32>
    %4 = vector.broadcast %3 : vector<1x256xf32> to vector<128x256xf32>
    %5 = arith.mulf %2, %4 : vector<128x256xf32>
    %c0_5 = arith.constant 0 : index
    %c0_6 = arith.constant 0 : index
    %6 = vector.load %arg4[%c0_5, %c0_6] : memref<1x256xf32, #tpu.memory_space<vmem>>, vector<1x256xf32>
    %7 = vector.broadcast %6 : vector<1x256xf32> to vector<128x256xf32>
    %8 = arith.addf %5, %7 : vector<128x256xf32>
    %c0_7 = arith.constant 0 : index
    %c0_8 = arith.constant 0 : index
    %9 = vector.load %arg5[%c0_7, %c0_8] : memref<128x256xf32, #tpu.memory_space<vmem>>, vector<128x256xf32>
    tpu.vector_store %arg5[%c0_7, %c0_8], %8 {strides = array<i32>} : memref<128x256xf32, #tpu.memory_space<vmem>>, vector<128x256xf32>,
    return
  }
  func.func @transform_0(%arg0: i32) -> (i32, i32) {
    %c0_i32 = arith.constant 0 : i32
    %c0_i32_0 = arith.constant 0 : i32
    return %arg0, %c0_i32 : i32, i32
  }
  func.func @transform_1(%arg0: i32) -> (i32, i32) {
    %c0_i32 = arith.constant 0 : i32
    %c0_i32_0 = arith.constant 0 : i32
    %c0_i32_1 = arith.constant 0 : i32
    return %c0_i32, %c0_i32_0 : i32, i32
  }
  func.func @transform_2(%arg0: i32) -> (i32, i32) {
    %c0_i32 = arith.constant 0 : i32
    %c0_i32_0 = arith.constant 0 : i32
    %c0_i32_1 = arith.constant 0 : i32
    return %c0_i32, %c0_i32_0 : i32, i32
  }
  func.func @transform_3(%arg0: i32) -> (i32, i32) {
    %c0_i32 = arith.constant 0 : i32
    %c0_i32_0 = arith.constant 0 : i32
    %c0_i32_1 = arith.constant 0 : i32
    return %c0_i32, %c0_i32_0 : i32, i32
  }
  func.func @transform_4(%arg0: i32) -> (i32, i32) {
    %c0_i32 = arith.constant 0 : i32
    %c0_i32_0 = arith.constant 0 : i32
    return %arg0, %c0_i32 : i32, i32
  }
}

module attributes {stable_mosaic.version = 11 : i64} {
  func.func @_linear_kernel(%arg0: i32, %arg1: memref<128x198xf32, #tpu.memory_space<vmem>>, %arg2: memref<198x256xf32, #tpu.memory_space<vmem>>, %arg3: memref<1x256xf32, #tpu.memory_space<vmem>>, %arg4: memref<1x256xf32, #tpu.memory_space<vmem>>, %arg5: memref<128x256xf32, #tpu.memory_space<vmem>>) attributes {dimension_semantics = [#tpu.dimension_semantics<parallel>], iteration_bounds = array<i64: 1>, scalar_prefetch = 0 : i64, scratch_operands = 0 : i64, tpu.core_type = #tpu.core_type<tc>, window_params = [{transform_indices = @transform_0, window_bounds = array<i64: 128, 198>}, {pipeline_mode = #tpu.pipeline_mode<synchronous>, transform_indices = @transform_1, window_bounds = array<i64: 198, 256>}, {pipeline_mode = #tpu.pipeline_mode<synchronous>, transform_indices = @transform_2, window_bounds = array<i64: 1, 256>}, {pipeline_mode = #tpu.pipeline_mode<synchronous>, transform_indices = @transform_3, window_bounds = array<i64: 1, 256>}, {transform_indices = @transform_4, window_bounds = array<i64: 128, 256>}]} {
    %c0 = arith.constant 0 : index
    %c0_0 = arith.constant 0 : index
    %0 = vector.load %arg1[%c0, %c0_0] : memref<128x198xf32, #tpu.memory_space<vmem>>, vector<128x198xf32>
    %c0_1 = arith.constant 0 : index
    %c0_2 = arith.constant 0 : index
    %1 = vector.load %arg2[%c0_1, %c0_2] : memref<198x256xf32, #tpu.memory_space<vmem>>, vector<198x256xf32>
    %cst = arith.constant dense<0.000000e+00> : vector<128x256xf32>
    %2 = tpu.matmul %0, %1, %cst {dimension_numbers = #tpu.dot_dimension_numbers<[1], [0], [0], [1], [0, 0, 1, 1], [], []>} : vector<128x198xf32>, vector<198x256xf32>, vector<128x256xf32> -> vector<128x256xf32>
    %c0_3 = arith.constant 0 : index
    %c0_4 = arith.constant 0 : index
    %3 = vector.load %arg3[%c0_3, %c0_4] : memref<1x256xf32, #tpu.memory_space<vmem>>, vector<1x256xf32>
    %4 = vector.broadcast %3 : vector<1x256xf32> to vector<128x256xf32>
    %5 = arith.mulf %2, %4 : vector<128x256xf32>
    %c0_5 = arith.constant 0 : index
    %c0_6 = arith.constant 0 : index
    %6 = vector.load %arg4[%c0_5, %c0_6] : memref<1x256xf32, #tpu.memory_space<vmem>>, vector<1x256xf32>
    %7 = vector.broadcast %6 : vector<1x256xf32> to vector<128x256xf32>
    %8 = arith.addf %5, %7 : vector<128x256xf32>
    %cst_7 = arith.constant 0.000000e+00 : f32
    %9 = vector.broadcast %cst_7 : f32 to vector<128x256xf32>
    %10 = arith.maximumf %8, %9 : vector<128x256xf32>
    %c0_8 = arith.constant 0 : index
    %c0_9 = arith.constant 0 : index
    %11 = vector.load %arg5[%c0_8, %c0_9] : memref<128x256xf32, #tpu.memory_space<vmem>>, vector<128x256xf32>
    tpu.vector_store %arg5[%c0_8, %c0_9], %10 {strides = array<i32>} : memref<128x256xf32, #tpu.memory_space<vmem>>, vector<128x256xf32>,
    return
  }
  func.func @transform_0(%arg0: i32) -> (i32, i32) {
    %c0_i32 = arith.constant 0 : i32
    %c0_i32_0 = arith.constant 0 : i32
    return %arg0, %c0_i32 : i32, i32
  }
  func.func @transform_1(%arg0: i32) -> (i32, i32) {
    %c0_i32 = arith.constant 0 : i32
    %c0_i32_0 = arith.constant 0 : i32
    %c0_i32_1 = arith.constant 0 : i32
    return %c0_i32, %c0_i32_0 : i32, i32
  }
  func.func @transform_2(%arg0: i32) -> (i32, i32) {
    %c0_i32 = arith.constant 0 : i32
    %c0_i32_0 = arith.constant 0 : i32
    %c0_i32_1 = arith.constant 0 : i32
    return %c0_i32, %c0_i32_0 : i32, i32
  }
  func.func @transform_3(%arg0: i32) -> (i32, i32) {
    %c0_i32 = arith.constant 0 : i32
    %c0_i32_0 = arith.constant 0 : i32
    %c0_i32_1 = arith.constant 0 : i32
    return %c0_i32, %c0_i32_0 : i32, i32
  }
  func.func @transform_4(%arg0: i32) -> (i32, i32) {
    %c0_i32 = arith.constant 0 : i32
    %c0_i32_0 = arith.constant 0 : i32
    return %arg0, %c0_i32 : i32, i32
  }
}

module attributes {stable_mosaic.version = 11 : i64} {
  func.func @_linear_residual_kernel(%arg0: i32, %arg1: memref<128x2304xf32, #tpu.memory_space<vmem>>, %arg2: memref<2304x256xf32, #tpu.memory_space<vmem>>, %arg3: memref<1x256xf32, #tpu.memory_space<vmem>>, %arg4: memref<1x256xf32, #tpu.memory_space<vmem>>, %arg5: memref<128x256xf32, #tpu.memory_space<vmem>>, %arg6: memref<128x256xf32, #tpu.memory_space<vmem>>) attributes {dimension_semantics = [#tpu.dimension_semantics<parallel>], iteration_bounds = array<i64: 1>, scalar_prefetch = 0 : i64, scratch_operands = 0 : i64, tpu.core_type = #tpu.core_type<tc>, window_params = [{transform_indices = @transform_0, window_bounds = array<i64: 128, 2304>}, {pipeline_mode = #tpu.pipeline_mode<synchronous>, transform_indices = @transform_1, window_bounds = array<i64: 2304, 256>}, {pipeline_mode = #tpu.pipeline_mode<synchronous>, transform_indices = @transform_2, window_bounds = array<i64: 1, 256>}, {pipeline_mode = #tpu.pipeline_mode<synchronous>, transform_indices = @transform_3, window_bounds = array<i64: 1, 256>}, {transform_indices = @transform_4, window_bounds = array<i64: 128, 256>}, {transform_indices = @transform_5, window_bounds = array<i64: 128, 256>}]} {
    %c0 = arith.constant 0 : index
    %c0_0 = arith.constant 0 : index
    %0 = vector.load %arg1[%c0, %c0_0] : memref<128x2304xf32, #tpu.memory_space<vmem>>, vector<128x2304xf32>
    %c0_1 = arith.constant 0 : index
    %c0_2 = arith.constant 0 : index
    %1 = vector.load %arg2[%c0_1, %c0_2] : memref<2304x256xf32, #tpu.memory_space<vmem>>, vector<2304x256xf32>
    %cst = arith.constant dense<0.000000e+00> : vector<128x256xf32>
    %2 = tpu.matmul %0, %1, %cst {dimension_numbers = #tpu.dot_dimension_numbers<[1], [0], [0], [1], [0, 0, 1, 1], [], []>} : vector<128x2304xf32>, vector<2304x256xf32>, vector<128x256xf32> -> vector<128x256xf32>
    %c0_3 = arith.constant 0 : index
    %c0_4 = arith.constant 0 : index
    %3 = vector.load %arg3[%c0_3, %c0_4] : memref<1x256xf32, #tpu.memory_space<vmem>>, vector<1x256xf32>
    %4 = vector.broadcast %3 : vector<1x256xf32> to vector<128x256xf32>
    %5 = arith.mulf %2, %4 : vector<128x256xf32>
    %c0_5 = arith.constant 0 : index
    %c0_6 = arith.constant 0 : index
    %6 = vector.load %arg4[%c0_5, %c0_6] : memref<1x256xf32, #tpu.memory_space<vmem>>, vector<1x256xf32>
    %7 = vector.broadcast %6 : vector<1x256xf32> to vector<128x256xf32>
    %8 = arith.addf %5, %7 : vector<128x256xf32>
    %c0_7 = arith.constant 0 : index
    %c0_8 = arith.constant 0 : index
    %9 = vector.load %arg5[%c0_7, %c0_8] : memref<128x256xf32, #tpu.memory_space<vmem>>, vector<128x256xf32>
    %10 = arith.addf %8, %9 : vector<128x256xf32>
    %cst_9 = arith.constant 0.000000e+00 : f32
    %11 = vector.broadcast %cst_9 : f32 to vector<128x256xf32>
    %12 = arith.maximumf %10, %11 : vector<128x256xf32>
    %c0_10 = arith.constant 0 : index
    %c0_11 = arith.constant 0 : index
    %13 = vector.load %arg6[%c0_10, %c0_11] : memref<128x256xf32, #tpu.memory_space<vmem>>, vector<128x256xf32>
    tpu.vector_store %arg6[%c0_10, %c0_11], %12 {strides = array<i32>} : memref<128x256xf32, #tpu.memory_space<vmem>>, vector<128x256xf32>,
    return
  }
  func.func @transform_0(%arg0: i32) -> (i32, i32) {
    %c0_i32 = arith.constant 0 : i32
    %c0_i32_0 = arith.constant 0 : i32
    return %arg0, %c0_i32 : i32, i32
  }
  func.func @transform_1(%arg0: i32) -> (i32, i32) {
    %c0_i32 = arith.constant 0 : i32
    %c0_i32_0 = arith.constant 0 : i32
    %c0_i32_1 = arith.constant 0 : i32
    return %c0_i32, %c0_i32_0 : i32, i32
  }
  func.func @transform_2(%arg0: i32) -> (i32, i32) {
    %c0_i32 = arith.constant 0 : i32
    %c0_i32_0 = arith.constant 0 : i32
    %c0_i32_1 = arith.constant 0 : i32
    return %c0_i32, %c0_i32_0 : i32, i32
  }
  func.func @transform_3(%arg0: i32) -> (i32, i32) {
    %c0_i32 = arith.constant 0 : i32
    %c0_i32_0 = arith.constant 0 : i32
    %c0_i32_1 = arith.constant 0 : i32
    return %c0_i32, %c0_i32_0 : i32, i32
  }
  func.func @transform_4(%arg0: i32) -> (i32, i32) {
    %c0_i32 = arith.constant 0 : i32
    %c0_i32_0 = arith.constant 0 : i32
    return %arg0, %c0_i32 : i32, i32
  }
  func.func @transform_5(%arg0: i32) -> (i32, i32) {
    %c0_i32 = arith.constant 0 : i32
    %c0_i32_0 = arith.constant 0 : i32
    return %arg0, %c0_i32 : i32, i32
  }
}

module attributes {stable_mosaic.version = 11 : i64} {
  func.func @_linear_kernel(%arg0: i32, %arg1: memref<128x256xf32, #tpu.memory_space<vmem>>, %arg2: memref<256x1xf32, #tpu.memory_space<vmem>>, %arg3: memref<1x1xf32, #tpu.memory_space<vmem>>, %arg4: memref<1x1xf32, #tpu.memory_space<vmem>>, %arg5: memref<128x1xf32, #tpu.memory_space<vmem>>) attributes {dimension_semantics = [#tpu.dimension_semantics<parallel>], iteration_bounds = array<i64: 1>, scalar_prefetch = 0 : i64, scratch_operands = 0 : i64, tpu.core_type = #tpu.core_type<tc>, window_params = [{transform_indices = @transform_0, window_bounds = array<i64: 128, 256>}, {pipeline_mode = #tpu.pipeline_mode<synchronous>, transform_indices = @transform_1, window_bounds = array<i64: 256, 1>}, {pipeline_mode = #tpu.pipeline_mode<synchronous>, transform_indices = @transform_2, window_bounds = array<i64: 1, 1>}, {pipeline_mode = #tpu.pipeline_mode<synchronous>, transform_indices = @transform_3, window_bounds = array<i64: 1, 1>}, {transform_indices = @transform_4, window_bounds = array<i64: 128, 1>}]} {
    %c0 = arith.constant 0 : index
    %c0_0 = arith.constant 0 : index
    %0 = vector.load %arg1[%c0, %c0_0] : memref<128x256xf32, #tpu.memory_space<vmem>>, vector<128x256xf32>
    %c0_1 = arith.constant 0 : index
    %c0_2 = arith.constant 0 : index
    %1 = vector.load %arg2[%c0_1, %c0_2] : memref<256x1xf32, #tpu.memory_space<vmem>>, vector<256x1xf32>
    %cst = arith.constant dense<0.000000e+00> : vector<128x1xf32>
    %2 = tpu.matmul %0, %1, %cst {dimension_numbers = #tpu.dot_dimension_numbers<[1], [0], [0], [1], [0, 0, 1, 1], [], []>} : vector<128x256xf32>, vector<256x1xf32>, vector<128x1xf32> -> vector<128x1xf32>
    %c0_3 = arith.constant 0 : index
    %c0_4 = arith.constant 0 : index
    %3 = vector.load %arg3[%c0_3, %c0_4] : memref<1x1xf32, #tpu.memory_space<vmem>>, vector<1x1xf32>
    %4 = vector.broadcast %3 : vector<1x1xf32> to vector<128x1xf32>
    %5 = arith.mulf %2, %4 : vector<128x1xf32>
    %c0_5 = arith.constant 0 : index
    %c0_6 = arith.constant 0 : index
    %6 = vector.load %arg4[%c0_5, %c0_6] : memref<1x1xf32, #tpu.memory_space<vmem>>, vector<1x1xf32>
    %7 = vector.broadcast %6 : vector<1x1xf32> to vector<128x1xf32>
    %8 = arith.addf %5, %7 : vector<128x1xf32>
    %cst_7 = arith.constant 0.000000e+00 : f32
    %9 = vector.broadcast %cst_7 : f32 to vector<128x1xf32>
    %10 = arith.maximumf %8, %9 : vector<128x1xf32>
    %c0_8 = arith.constant 0 : index
    %c0_9 = arith.constant 0 : index
    %11 = vector.load %arg5[%c0_8, %c0_9] : memref<128x1xf32, #tpu.memory_space<vmem>>, vector<128x1xf32>
    tpu.vector_store %arg5[%c0_8, %c0_9], %10 {strides = array<i32>} : memref<128x1xf32, #tpu.memory_space<vmem>>, vector<128x1xf32>,
    return
  }
  func.func @transform_0(%arg0: i32) -> (i32, i32) {
    %c0_i32 = arith.constant 0 : i32
    %c0_i32_0 = arith.constant 0 : i32
    return %arg0, %c0_i32 : i32, i32
  }
  func.func @transform_1(%arg0: i32) -> (i32, i32) {
    %c0_i32 = arith.constant 0 : i32
    %c0_i32_0 = arith.constant 0 : i32
    %c0_i32_1 = arith.constant 0 : i32
    return %c0_i32, %c0_i32_0 : i32, i32
  }
  func.func @transform_2(%arg0: i32) -> (i32, i32) {
    %c0_i32 = arith.constant 0 : i32
    %c0_i32_0 = arith.constant 0 : i32
    %c0_i32_1 = arith.constant 0 : i32
    return %c0_i32, %c0_i32_0 : i32, i32
  }
  func.func @transform_3(%arg0: i32) -> (i32, i32) {
    %c0_i32 = arith.constant 0 : i32
    %c0_i32_0 = arith.constant 0 : i32
    %c0_i32_1 = arith.constant 0 : i32
    return %c0_i32, %c0_i32_0 : i32, i32
  }
  func.func @transform_4(%arg0: i32) -> (i32, i32) {
    %c0_i32 = arith.constant 0 : i32
    %c0_i32_0 = arith.constant 0 : i32
    return %arg0, %c0_i32 : i32, i32
  }
}

module attributes {stable_mosaic.version = 11 : i64} {
  func.func @_dsconv_kernel(%arg0: memref<9x128x256xf32, #tpu.memory_space<vmem>>, %arg1: memref<9x256xf32, #tpu.memory_space<vmem>>, %arg2: memref<256x256xf32, #tpu.memory_space<vmem>>, %arg3: memref<1x256xf32, #tpu.memory_space<vmem>>, %arg4: memref<1x256xf32, #tpu.memory_space<vmem>>, %arg5: memref<128x256xf32, #tpu.memory_space<vmem>>) attributes {dimension_semantics = [], scalar_prefetch = 0 : i64, scratch_operands = 0 : i64, tpu.core_type = #tpu.core_type<tc>} {
    %c0 = arith.constant 0 : index
    %c0_0 = arith.constant 0 : index
    %0 = vector.load %arg1[%c0, %c0_0] : memref<9x256xf32, #tpu.memory_space<vmem>>, vector<9x256xf32>
    %c0_1 = arith.constant 0 : index
    %c0_2 = arith.constant 0 : index
    %c0_3 = arith.constant 0 : index
    %1 = vector.load %arg0[%c0_1, %c0_2, %c0_3] : memref<9x128x256xf32, #tpu.memory_space<vmem>>, vector<1x128x256xf32>
    %2 = vector.shape_cast %1 : vector<1x128x256xf32> to vector<128x256xf32>
    %3 = vector.extract_strided_slice %0 {offsets = [0, 0], sizes = [1, 256], strides = [1, 1]} : vector<9x256xf32> to vector<1x256xf32>
    %4 = vector.broadcast %3 : vector<1x256xf32> to vector<128x256xf32>
    %5 = arith.mulf %2, %4 : vector<128x256xf32>
    %c1 = arith.constant 1 : index
    %c0_4 = arith.constant 0 : index
    %c0_5 = arith.constant 0 : index
    %6 = vector.load %arg0[%c1, %c0_4, %c0_5] : memref<9x128x256xf32, #tpu.memory_space<vmem>>, vector<1x128x256xf32>
    %7 = vector.shape_cast %6 : vector<1x128x256xf32> to vector<128x256xf32>
    %8 = vector.extract_strided_slice %0 {offsets = [1, 0], sizes = [1, 256], strides = [1, 1]} : vector<9x256xf32> to vector<1x256xf32>
    %9 = vector.broadcast %8 : vector<1x256xf32> to vector<128x256xf32>
    %10 = arith.mulf %7, %9 : vector<128x256xf32>
    %11 = arith.addf %5, %10 : vector<128x256xf32>
    %c2 = arith.constant 2 : index
    %c0_6 = arith.constant 0 : index
    %c0_7 = arith.constant 0 : index
    %12 = vector.load %arg0[%c2, %c0_6, %c0_7] : memref<9x128x256xf32, #tpu.memory_space<vmem>>, vector<1x128x256xf32>
    %13 = vector.shape_cast %12 : vector<1x128x256xf32> to vector<128x256xf32>
    %14 = vector.extract_strided_slice %0 {offsets = [2, 0], sizes = [1, 256], strides = [1, 1]} : vector<9x256xf32> to vector<1x256xf32>
    %15 = vector.broadcast %14 : vector<1x256xf32> to vector<128x256xf32>
    %16 = arith.mulf %13, %15 : vector<128x256xf32>
    %17 = arith.addf %11, %16 : vector<128x256xf32>
    %c3 = arith.constant 3 : index
    %c0_8 = arith.constant 0 : index
    %c0_9 = arith.constant 0 : index
    %18 = vector.load %arg0[%c3, %c0_8, %c0_9] : memref<9x128x256xf32, #tpu.memory_space<vmem>>, vector<1x128x256xf32>
    %19 = vector.shape_cast %18 : vector<1x128x256xf32> to vector<128x256xf32>
    %20 = vector.extract_strided_slice %0 {offsets = [3, 0], sizes = [1, 256], strides = [1, 1]} : vector<9x256xf32> to vector<1x256xf32>
    %21 = vector.broadcast %20 : vector<1x256xf32> to vector<128x256xf32>
    %22 = arith.mulf %19, %21 : vector<128x256xf32>
    %23 = arith.addf %17, %22 : vector<128x256xf32>
    %c4 = arith.constant 4 : index
    %c0_10 = arith.constant 0 : index
    %c0_11 = arith.constant 0 : index
    %24 = vector.load %arg0[%c4, %c0_10, %c0_11] : memref<9x128x256xf32, #tpu.memory_space<vmem>>, vector<1x128x256xf32>
    %25 = vector.shape_cast %24 : vector<1x128x256xf32> to vector<128x256xf32>
    %26 = vector.extract_strided_slice %0 {offsets = [4, 0], sizes = [1, 256], strides = [1, 1]} : vector<9x256xf32> to vector<1x256xf32>
    %27 = vector.broadcast %26 : vector<1x256xf32> to vector<128x256xf32>
    %28 = arith.mulf %25, %27 : vector<128x256xf32>
    %29 = arith.addf %23, %28 : vector<128x256xf32>
    %c5 = arith.constant 5 : index
    %c0_12 = arith.constant 0 : index
    %c0_13 = arith.constant 0 : index
    %30 = vector.load %arg0[%c5, %c0_12, %c0_13] : memref<9x128x256xf32, #tpu.memory_space<vmem>>, vector<1x128x256xf32>
    %31 = vector.shape_cast %30 : vector<1x128x256xf32> to vector<128x256xf32>
    %32 = vector.extract_strided_slice %0 {offsets = [5, 0], sizes = [1, 256], strides = [1, 1]} : vector<9x256xf32> to vector<1x256xf32>
    %33 = vector.broadcast %32 : vector<1x256xf32> to vector<128x256xf32>
    %34 = arith.mulf %31, %33 : vector<128x256xf32>
    %35 = arith.addf %29, %34 : vector<128x256xf32>
    %c6 = arith.constant 6 : index
    %c0_14 = arith.constant 0 : index
    %c0_15 = arith.constant 0 : index
    %36 = vector.load %arg0[%c6, %c0_14, %c0_15] : memref<9x128x256xf32, #tpu.memory_space<vmem>>, vector<1x128x256xf32>
    %37 = vector.shape_cast %36 : vector<1x128x256xf32> to vector<128x256xf32>
    %38 = vector.extract_strided_slice %0 {offsets = [6, 0], sizes = [1, 256], strides = [1, 1]} : vector<9x256xf32> to vector<1x256xf32>
    %39 = vector.broadcast %38 : vector<1x256xf32> to vector<128x256xf32>
    %40 = arith.mulf %37, %39 : vector<128x256xf32>
    %41 = arith.addf %35, %40 : vector<128x256xf32>
    %c7 = arith.constant 7 : index
    %c0_16 = arith.constant 0 : index
    %c0_17 = arith.constant 0 : index
    %42 = vector.load %arg0[%c7, %c0_16, %c0_17] : memref<9x128x256xf32, #tpu.memory_space<vmem>>, vector<1x128x256xf32>
    %43 = vector.shape_cast %42 : vector<1x128x256xf32> to vector<128x256xf32>
    %44 = vector.extract_strided_slice %0 {offsets = [7, 0], sizes = [1, 256], strides = [1, 1]} : vector<9x256xf32> to vector<1x256xf32>
    %45 = vector.broadcast %44 : vector<1x256xf32> to vector<128x256xf32>
    %46 = arith.mulf %43, %45 : vector<128x256xf32>
    %47 = arith.addf %41, %46 : vector<128x256xf32>
    %c8 = arith.constant 8 : index
    %c0_18 = arith.constant 0 : index
    %c0_19 = arith.constant 0 : index
    %48 = vector.load %arg0[%c8, %c0_18, %c0_19] : memref<9x128x256xf32, #tpu.memory_space<vmem>>, vector<1x128x256xf32>
    %49 = vector.shape_cast %48 : vector<1x128x256xf32> to vector<128x256xf32>
    %50 = vector.extract_strided_slice %0 {offsets = [8, 0], sizes = [1, 256], strides = [1, 1]} : vector<9x256xf32> to vector<1x256xf32>
    %51 = vector.broadcast %50 : vector<1x256xf32> to vector<128x256xf32>
    %52 = arith.mulf %49, %51 : vector<128x256xf32>
    %53 = arith.addf %47, %52 : vector<128x256xf32>
    %c0_20 = arith.constant 0 : index
    %c0_21 = arith.constant 0 : index
    %54 = vector.load %arg2[%c0_20, %c0_21] : memref<256x256xf32, #tpu.memory_space<vmem>>, vector<256x256xf32>
    %cst = arith.constant dense<0.000000e+00> : vector<128x256xf32>
    %55 = tpu.matmul %53, %54, %cst {dimension_numbers = #tpu.dot_dimension_numbers<[1], [0], [0], [1], [0, 0, 1, 1], [], []>} : vector<128x256xf32>, vector<256x256xf32>, vector<128x256xf32> -> vector<128x256xf32>
    %c0_22 = arith.constant 0 : index
    %c0_23 = arith.constant 0 : index
    %56 = vector.load %arg3[%c0_22, %c0_23] : memref<1x256xf32, #tpu.memory_space<vmem>>, vector<1x256xf32>
    %57 = vector.broadcast %56 : vector<1x256xf32> to vector<128x256xf32>
    %58 = arith.mulf %55, %57 : vector<128x256xf32>
    %c0_24 = arith.constant 0 : index
    %c0_25 = arith.constant 0 : index
    %59 = vector.load %arg4[%c0_24, %c0_25] : memref<1x256xf32, #tpu.memory_space<vmem>>, vector<1x256xf32>
    %60 = vector.broadcast %59 : vector<1x256xf32> to vector<128x256xf32>
    %61 = arith.addf %58, %60 : vector<128x256xf32>
    %cst_26 = arith.constant 0.000000e+00 : f32
    %62 = vector.broadcast %cst_26 : f32 to vector<128x256xf32>
    %63 = arith.maximumf %61, %62 : vector<128x256xf32>
    %c0_27 = arith.constant 0 : index
    %c0_28 = arith.constant 0 : index
    %64 = vector.load %arg5[%c0_27, %c0_28] : memref<128x256xf32, #tpu.memory_space<vmem>>, vector<128x256xf32>
    tpu.vector_store %arg5[%c0_27, %c0_28], %63 {strides = array<i32>} : memref<128x256xf32, #tpu.memory_space<vmem>>, vector<128x256xf32>,
    return
  }
}

module attributes {stable_mosaic.version = 11 : i64} {
  func.func @_se_kernel(%arg0: memref<2x64x256xf32, #tpu.memory_space<vmem>>, %arg1: memref<2x64x256xf32, #tpu.memory_space<vmem>>, %arg2: memref<256x16xf32, #tpu.memory_space<vmem>>, %arg3: memref<16x256xf32, #tpu.memory_space<vmem>>, %arg4: memref<2x64x256xf32, #tpu.memory_space<vmem>>) attributes {dimension_semantics = [], scalar_prefetch = 0 : i64, scratch_operands = 0 : i64, tpu.core_type = #tpu.core_type<tc>} {
    %c0 = arith.constant 0 : index
    %c0_0 = arith.constant 0 : index
    %c0_1 = arith.constant 0 : index
    %0 = vector.load %arg0[%c0, %c0_0, %c0_1] : memref<2x64x256xf32, #tpu.memory_space<vmem>>, vector<2x64x256xf32>
    %cst = arith.constant dense<0.000000e+00> : vector<2x256xf32>
    %1 = vector.multi_reduction <add>, %0, %cst [1] : vector<2x64x256xf32> to vector<2x256xf32>
    %cst_2 = arith.constant 6.400000e+01 : f32
    %2 = vector.broadcast %cst_2 : f32 to vector<2x256xf32>
    %3 = arith.divf %1, %2 : vector<2x256xf32>
    %c0_3 = arith.constant 0 : index
    %c0_4 = arith.constant 0 : index
    %4 = vector.load %arg2[%c0_3, %c0_4] : memref<256x16xf32, #tpu.memory_space<vmem>>, vector<256x16xf32>
    %cst_5 = arith.constant dense<0.000000e+00> : vector<2x16xf32>
    %5 = tpu.matmul %3, %4, %cst_5 {dimension_numbers = #tpu.dot_dimension_numbers<[1], [0], [0], [1], [0, 0, 1, 1], [], []>} : vector<2x256xf32>, vector<256x16xf32>, vector<2x16xf32> -> vector<2x16xf32>
    %cst_6 = arith.constant 0.000000e+00 : f32
    %6 = vector.broadcast %cst_6 : f32 to vector<2x16xf32>
    %7 = arith.maximumf %5, %6 : vector<2x16xf32>
    %c0_7 = arith.constant 0 : index
    %c0_8 = arith.constant 0 : index
    %8 = vector.load %arg3[%c0_7, %c0_8] : memref<16x256xf32, #tpu.memory_space<vmem>>, vector<16x256xf32>
    %cst_9 = arith.constant dense<0.000000e+00> : vector<2x256xf32>
    %9 = tpu.matmul %7, %8, %cst_9 {dimension_numbers = #tpu.dot_dimension_numbers<[1], [0], [0], [1], [0, 0, 1, 1], [], []>} : vector<2x16xf32>, vector<16x256xf32>, vector<2x256xf32> -> vector<2x256xf32>
    %cst_10 = arith.constant 0.000000e+00 : f32
    %10 = vector.broadcast %cst_10 : f32 to vector<2x256xf32>
    %11 = arith.subf %10, %9 : vector<2x256xf32>
    %12 = math.exp %11 : vector<2x256xf32>
    %cst_11 = arith.constant 1.000000e+00 : f32
    %13 = vector.broadcast %cst_11 : f32 to vector<2x256xf32>
    %14 = arith.addf %13, %12 : vector<2x256xf32>
    %cst_12 = arith.constant 1.000000e+00 : f32
    %15 = vector.broadcast %cst_12 : f32 to vector<2x256xf32>
    %16 = arith.divf %15, %14 : vector<2x256xf32>
    %17 = vector.shape_cast %16 : vector<2x256xf32> to vector<2x1x256xf32>
    %18 = vector.broadcast %17 : vector<2x1x256xf32> to vector<2x64x256xf32>
    %19 = arith.mulf %0, %18 : vector<2x64x256xf32>
    %c0_13 = arith.constant 0 : index
    %c0_14 = arith.constant 0 : index
    %c0_15 = arith.constant 0 : index
    %20 = vector.load %arg1[%c0_13, %c0_14, %c0_15] : memref<2x64x256xf32, #tpu.memory_space<vmem>>, vector<2x64x256xf32>
    %21 = arith.addf %19, %20 : vector<2x64x256xf32>
    %cst_16 = arith.constant 0.000000e+00 : f32
    %22 = vector.broadcast %cst_16 : f32 to vector<2x64x256xf32>
    %23 = arith.maximumf %21, %22 : vector<2x64x256xf32>
    %c0_17 = arith.constant 0 : index
    %c0_18 = arith.constant 0 : index
    %c0_19 = arith.constant 0 : index
    %24 = vector.load %arg4[%c0_17, %c0_18, %c0_19] : memref<2x64x256xf32, #tpu.memory_space<vmem>>, vector<2x64x256xf32>
    tpu.vector_store %arg4[%c0_17, %c0_18, %c0_19], %23 {strides = array<i32>} : memref<2x64x256xf32, #tpu.memory_space<vmem>>, vector<2x64x256xf32>,
    return
  }
}

module attributes {stable_mosaic.version = 11 : i64} {
  func.func @_linear_kernel(%arg0: i32, %arg1: memref<128x256xf32, #tpu.memory_space<vmem>>, %arg2: memref<256x128xf32, #tpu.memory_space<vmem>>, %arg3: memref<1x128xf32, #tpu.memory_space<vmem>>, %arg4: memref<1x128xf32, #tpu.memory_space<vmem>>, %arg5: memref<128x128xf32, #tpu.memory_space<vmem>>) attributes {dimension_semantics = [#tpu.dimension_semantics<parallel>], iteration_bounds = array<i64: 1>, scalar_prefetch = 0 : i64, scratch_operands = 0 : i64, tpu.core_type = #tpu.core_type<tc>, window_params = [{transform_indices = @transform_0, window_bounds = array<i64: 128, 256>}, {pipeline_mode = #tpu.pipeline_mode<synchronous>, transform_indices = @transform_1, window_bounds = array<i64: 256, 128>}, {pipeline_mode = #tpu.pipeline_mode<synchronous>, transform_indices = @transform_2, window_bounds = array<i64: 1, 128>}, {pipeline_mode = #tpu.pipeline_mode<synchronous>, transform_indices = @transform_3, window_bounds = array<i64: 1, 128>}, {transform_indices = @transform_4, window_bounds = array<i64: 128, 128>}]} {
    %c0 = arith.constant 0 : index
    %c0_0 = arith.constant 0 : index
    %0 = vector.load %arg1[%c0, %c0_0] : memref<128x256xf32, #tpu.memory_space<vmem>>, vector<128x256xf32>
    %c0_1 = arith.constant 0 : index
    %c0_2 = arith.constant 0 : index
    %1 = vector.load %arg2[%c0_1, %c0_2] : memref<256x128xf32, #tpu.memory_space<vmem>>, vector<256x128xf32>
    %cst = arith.constant dense<0.000000e+00> : vector<128x128xf32>
    %2 = tpu.matmul %0, %1, %cst {dimension_numbers = #tpu.dot_dimension_numbers<[1], [0], [0], [1], [0, 0, 1, 1], [], []>} : vector<128x256xf32>, vector<256x128xf32>, vector<128x128xf32> -> vector<128x128xf32>
    %c0_3 = arith.constant 0 : index
    %c0_4 = arith.constant 0 : index
    %3 = vector.load %arg3[%c0_3, %c0_4] : memref<1x128xf32, #tpu.memory_space<vmem>>, vector<1x128xf32>
    %4 = vector.broadcast %3 : vector<1x128xf32> to vector<128x128xf32>
    %5 = arith.mulf %2, %4 : vector<128x128xf32>
    %c0_5 = arith.constant 0 : index
    %c0_6 = arith.constant 0 : index
    %6 = vector.load %arg4[%c0_5, %c0_6] : memref<1x128xf32, #tpu.memory_space<vmem>>, vector<1x128xf32>
    %7 = vector.broadcast %6 : vector<1x128xf32> to vector<128x128xf32>
    %8 = arith.addf %5, %7 : vector<128x128xf32>
    %cst_7 = arith.constant 0.000000e+00 : f32
    %9 = vector.broadcast %cst_7 : f32 to vector<128x128xf32>
    %10 = arith.maximumf %8, %9 : vector<128x128xf32>
    %c0_8 = arith.constant 0 : index
    %c0_9 = arith.constant 0 : index
    %11 = vector.load %arg5[%c0_8, %c0_9] : memref<128x128xf32, #tpu.memory_space<vmem>>, vector<128x128xf32>
    tpu.vector_store %arg5[%c0_8, %c0_9], %10 {strides = array<i32>} : memref<128x128xf32, #tpu.memory_space<vmem>>, vector<128x128xf32>,
    return
  }
  func.func @transform_0(%arg0: i32) -> (i32, i32) {
    %c0_i32 = arith.constant 0 : i32
    %c0_i32_0 = arith.constant 0 : i32
    return %arg0, %c0_i32 : i32, i32
  }
  func.func @transform_1(%arg0: i32) -> (i32, i32) {
    %c0_i32 = arith.constant 0 : i32
    %c0_i32_0 = arith.constant 0 : i32
    %c0_i32_1 = arith.constant 0 : i32
    return %c0_i32, %c0_i32_0 : i32, i32
  }
  func.func @transform_2(%arg0: i32) -> (i32, i32) {
    %c0_i32 = arith.constant 0 : i32
    %c0_i32_0 = arith.constant 0 : i32
    %c0_i32_1 = arith.constant 0 : i32
    return %c0_i32, %c0_i32_0 : i32, i32
  }
  func.func @transform_3(%arg0: i32) -> (i32, i32) {
    %c0_i32 = arith.constant 0 : i32
    %c0_i32_0 = arith.constant 0 : i32
    %c0_i32_1 = arith.constant 0 : i32
    return %c0_i32, %c0_i32_0 : i32, i32
  }
  func.func @transform_4(%arg0: i32) -> (i32, i32) {
    %c0_i32 = arith.constant 0 : i32
    %c0_i32_0 = arith.constant 0 : i32
    return %arg0, %c0_i32 : i32, i32
  }
}

module attributes {stable_mosaic.version = 11 : i64} {
  func.func @_linear_kernel(%arg0: i32, %arg1: memref<2x64xf32, #tpu.memory_space<vmem>>, %arg2: memref<64x64xf32, #tpu.memory_space<vmem>>, %arg3: memref<1x64xf32, #tpu.memory_space<vmem>>, %arg4: memref<1x64xf32, #tpu.memory_space<vmem>>, %arg5: memref<2x64xf32, #tpu.memory_space<vmem>>) attributes {dimension_semantics = [#tpu.dimension_semantics<parallel>], iteration_bounds = array<i64: 1>, scalar_prefetch = 0 : i64, scratch_operands = 0 : i64, tpu.core_type = #tpu.core_type<tc>, window_params = [{transform_indices = @transform_0, window_bounds = array<i64: 2, 64>}, {pipeline_mode = #tpu.pipeline_mode<synchronous>, transform_indices = @transform_1, window_bounds = array<i64: 64, 64>}, {pipeline_mode = #tpu.pipeline_mode<synchronous>, transform_indices = @transform_2, window_bounds = array<i64: 1, 64>}, {pipeline_mode = #tpu.pipeline_mode<synchronous>, transform_indices = @transform_3, window_bounds = array<i64: 1, 64>}, {transform_indices = @transform_4, window_bounds = array<i64: 2, 64>}]} {
    %c0 = arith.constant 0 : index
    %c0_0 = arith.constant 0 : index
    %0 = vector.load %arg1[%c0, %c0_0] : memref<2x64xf32, #tpu.memory_space<vmem>>, vector<2x64xf32>
    %c0_1 = arith.constant 0 : index
    %c0_2 = arith.constant 0 : index
    %1 = vector.load %arg2[%c0_1, %c0_2] : memref<64x64xf32, #tpu.memory_space<vmem>>, vector<64x64xf32>
    %cst = arith.constant dense<0.000000e+00> : vector<2x64xf32>
    %2 = tpu.matmul %0, %1, %cst {dimension_numbers = #tpu.dot_dimension_numbers<[1], [0], [0], [1], [0, 0, 1, 1], [], []>} : vector<2x64xf32>, vector<64x64xf32>, vector<2x64xf32> -> vector<2x64xf32>
    %c0_3 = arith.constant 0 : index
    %c0_4 = arith.constant 0 : index
    %3 = vector.load %arg3[%c0_3, %c0_4] : memref<1x64xf32, #tpu.memory_space<vmem>>, vector<1x64xf32>
    %4 = vector.broadcast %3 : vector<1x64xf32> to vector<2x64xf32>
    %5 = arith.mulf %2, %4 : vector<2x64xf32>
    %c0_5 = arith.constant 0 : index
    %c0_6 = arith.constant 0 : index
    %6 = vector.load %arg4[%c0_5, %c0_6] : memref<1x64xf32, #tpu.memory_space<vmem>>, vector<1x64xf32>
    %7 = vector.broadcast %6 : vector<1x64xf32> to vector<2x64xf32>
    %8 = arith.addf %5, %7 : vector<2x64xf32>
    %cst_7 = arith.constant 0.000000e+00 : f32
    %9 = vector.broadcast %cst_7 : f32 to vector<2x64xf32>
    %10 = arith.maximumf %8, %9 : vector<2x64xf32>
    %c0_8 = arith.constant 0 : index
    %c0_9 = arith.constant 0 : index
    %11 = vector.load %arg5[%c0_8, %c0_9] : memref<2x64xf32, #tpu.memory_space<vmem>>, vector<2x64xf32>
    tpu.vector_store %arg5[%c0_8, %c0_9], %10 {strides = array<i32>} : memref<2x64xf32, #tpu.memory_space<vmem>>, vector<2x64xf32>,
    return
  }
  func.func @transform_0(%arg0: i32) -> (i32, i32) {
    %c0_i32 = arith.constant 0 : i32
    %c0_i32_0 = arith.constant 0 : i32
    return %arg0, %c0_i32 : i32, i32
  }
  func.func @transform_1(%arg0: i32) -> (i32, i32) {
    %c0_i32 = arith.constant 0 : i32
    %c0_i32_0 = arith.constant 0 : i32
    %c0_i32_1 = arith.constant 0 : i32
    return %c0_i32, %c0_i32_0 : i32, i32
  }
  func.func @transform_2(%arg0: i32) -> (i32, i32) {
    %c0_i32 = arith.constant 0 : i32
    %c0_i32_0 = arith.constant 0 : i32
    %c0_i32_1 = arith.constant 0 : i32
    return %c0_i32, %c0_i32_0 : i32, i32
  }
  func.func @transform_3(%arg0: i32) -> (i32, i32) {
    %c0_i32 = arith.constant 0 : i32
    %c0_i32_0 = arith.constant 0 : i32
    %c0_i32_1 = arith.constant 0 : i32
    return %c0_i32, %c0_i32_0 : i32, i32
  }
  func.func @transform_4(%arg0: i32) -> (i32, i32) {
    %c0_i32 = arith.constant 0 : i32
    %c0_i32_0 = arith.constant 0 : i32
    return %arg0, %c0_i32 : i32, i32
  }
}

module attributes {stable_mosaic.version = 11 : i64} {
  func.func @_linear_kernel(%arg0: i32, %arg1: memref<2x64xf32, #tpu.memory_space<vmem>>, %arg2: memref<64x1xf32, #tpu.memory_space<vmem>>, %arg3: memref<1x1xf32, #tpu.memory_space<vmem>>, %arg4: memref<1x1xf32, #tpu.memory_space<vmem>>, %arg5: memref<2x1xf32, #tpu.memory_space<vmem>>) attributes {dimension_semantics = [#tpu.dimension_semantics<parallel>], iteration_bounds = array<i64: 1>, scalar_prefetch = 0 : i64, scratch_operands = 0 : i64, tpu.core_type = #tpu.core_type<tc>, window_params = [{transform_indices = @transform_0, window_bounds = array<i64: 2, 64>}, {pipeline_mode = #tpu.pipeline_mode<synchronous>, transform_indices = @transform_1, window_bounds = array<i64: 64, 1>}, {pipeline_mode = #tpu.pipeline_mode<synchronous>, transform_indices = @transform_2, window_bounds = array<i64: 1, 1>}, {pipeline_mode = #tpu.pipeline_mode<synchronous>, transform_indices = @transform_3, window_bounds = array<i64: 1, 1>}, {transform_indices = @transform_4, window_bounds = array<i64: 2, 1>}]} {
    %c0 = arith.constant 0 : index
    %c0_0 = arith.constant 0 : index
    %0 = vector.load %arg1[%c0, %c0_0] : memref<2x64xf32, #tpu.memory_space<vmem>>, vector<2x64xf32>
    %c0_1 = arith.constant 0 : index
    %c0_2 = arith.constant 0 : index
    %1 = vector.load %arg2[%c0_1, %c0_2] : memref<64x1xf32, #tpu.memory_space<vmem>>, vector<64x1xf32>
    %cst = arith.constant dense<0.000000e+00> : vector<2x1xf32>
    %2 = tpu.matmul %0, %1, %cst {dimension_numbers = #tpu.dot_dimension_numbers<[1], [0], [0], [1], [0, 0, 1, 1], [], []>} : vector<2x64xf32>, vector<64x1xf32>, vector<2x1xf32> -> vector<2x1xf32>
    %c0_3 = arith.constant 0 : index
    %c0_4 = arith.constant 0 : index
    %3 = vector.load %arg3[%c0_3, %c0_4] : memref<1x1xf32, #tpu.memory_space<vmem>>, vector<1x1xf32>
    %4 = vector.broadcast %3 : vector<1x1xf32> to vector<2x1xf32>
    %5 = arith.mulf %2, %4 : vector<2x1xf32>
    %c0_5 = arith.constant 0 : index
    %c0_6 = arith.constant 0 : index
    %6 = vector.load %arg4[%c0_5, %c0_6] : memref<1x1xf32, #tpu.memory_space<vmem>>, vector<1x1xf32>
    %7 = vector.broadcast %6 : vector<1x1xf32> to vector<2x1xf32>
    %8 = arith.addf %5, %7 : vector<2x1xf32>
    %9 = math.tanh %8 : vector<2x1xf32>
    %c0_7 = arith.constant 0 : index
    %c0_8 = arith.constant 0 : index
    %10 = vector.load %arg5[%c0_7, %c0_8] : memref<2x1xf32, #tpu.memory_space<vmem>>, vector<2x1xf32>
    tpu.vector_store %arg5[%c0_7, %c0_8], %9 {strides = array<i32>} : memref<2x1xf32, #tpu.memory_space<vmem>>, vector<2x1xf32>,
    return
  }
  func.func @transform_0(%arg0: i32) -> (i32, i32) {
    %c0_i32 = arith.constant 0 : i32
    %c0_i32_0 = arith.constant 0 : i32
    return %arg0, %c0_i32 : i32, i32
  }
  func.func @transform_1(%arg0: i32) -> (i32, i32) {
    %c0_i32 = arith.constant 0 : i32
    %c0_i32_0 = arith.constant 0 : i32
    %c0_i32_1 = arith.constant 0 : i32
    return %c0_i32, %c0_i32_0 : i32, i32
  }
  func.func @transform_2(%arg0: i32) -> (i32, i32) {
    %c0_i32 = arith.constant 0 : i32
    %c0_i32_0 = arith.constant 0 : i32
    %c0_i32_1 = arith.constant 0 : i32
    return %c0_i32, %c0_i32_0 : i32, i32
  }
  func.func @transform_3(%arg0: i32) -> (i32, i32) {
    %c0_i32 = arith.constant 0 : i32
    %c0_i32_0 = arith.constant 0 : i32
    %c0_i32_1 = arith.constant 0 : i32
    return %c0_i32, %c0_i32_0 : i32, i32
  }
  func.func @transform_4(%arg0: i32) -> (i32, i32) {
    %c0_i32 = arith.constant 0 : i32
    %c0_i32_0 = arith.constant 0 : i32
    return %arg0, %c0_i32 : i32, i32
  }
}

module attributes {stable_mosaic.version = 11 : i64} {
  func.func @_policy_fc_kernel(%arg0: i32, %arg1: memref<2x256xf32, #tpu.memory_space<vmem>>, %arg2: memref<256x4672xf32, #tpu.memory_space<vmem>>, %arg3: memref<1x4672xf32, #tpu.memory_space<vmem>>, %arg4: memref<2x4672xf32, #tpu.memory_space<vmem>>, %arg5: memref<2x4672xf32, #tpu.memory_space<vmem>>) attributes {dimension_semantics = [#tpu.dimension_semantics<arbitrary>], iteration_bounds = array<i64: 32>, scalar_prefetch = 0 : i64, scratch_operands = 1 : i64, tpu.core_type = #tpu.core_type<tc>, window_params = [{transform_indices = @transform_0, window_bounds = array<i64: 2, 256>}, {transform_indices = @transform_1, window_bounds = array<i64: 256, 4672>}, {pipeline_mode = #tpu.pipeline_mode<synchronous>, transform_indices = @transform_2, window_bounds = array<i64: 1, 4672>}, {pipeline_mode = #tpu.pipeline_mode<synchronous>, transform_indices = @transform_3, window_bounds = array<i64: 2, 4672>}]} {
    %c0_i32 = arith.constant 0 : i32
    %0 = arith.cmpi eq, %arg0, %c0_i32 : i32
    %1 = arith.extui %0 : i1 to i32
    %c0_i32_0 = arith.constant 0 : i32
    %2 = arith.cmpi ne, %1, %c0_i32_0 : i32
    scf.if %2 {
      %cst_9 = arith.constant 0.000000e+00 : f32
      %12 = vector.broadcast %cst_9 : f32 to vector<2x4672xf32>
      %c0_10 = arith.constant 0 : index
      %c0_11 = arith.constant 0 : index
      %13 = vector.load %arg5[%c0_10, %c0_11] : memref<2x4672xf32, #tpu.memory_space<vmem>>, vector<2x4672xf32>
      tpu.vector_store %arg5[%c0_10, %c0_11], %12 {strides = array<i32>} : memref<2x4672xf32, #tpu.memory_space<vmem>>, vector<2x4672xf32>,
    } else {
    }
    %c0 = arith.constant 0 : index
    %c0_1 = arith.constant 0 : index
    %3 = vector.load %arg5[%c0, %c0_1] : memref<2x4672xf32, #tpu.memory_space<vmem>>, vector<2x4672xf32>
    %c0_2 = arith.constant 0 : index
    %c0_3 = arith.constant 0 : index
    %4 = vector.load %arg1[%c0_2, %c0_3] : memref<2x256xf32, #tpu.memory_space<vmem>>, vector<2x256xf32>
    %c0_4 = arith.constant 0 : index
    %c0_5 = arith.constant 0 : index
    %5 = vector.load %arg2[%c0_4, %c0_5] : memref<256x4672xf32, #tpu.memory_space<vmem>>, vector<256x4672xf32>
    %cst = arith.constant dense<0.000000e+00> : vector<2x4672xf32>
    %6 = tpu.matmul %4, %5, %cst {dimension_numbers = #tpu.dot_dimension_numbers<[1], [0], [0], [1], [0, 0, 1, 1], [], []>} : vector<2x256xf32>, vector<256x4672xf32>, vector<2x4672xf32> -> vector<2x4672xf32>
    %7 = arith.addf %3, %6 : vector<2x4672xf32>
    %c0_6 = arith.constant 0 : index
    %c0_7 = arith.constant 0 : index
    %8 = vector.load %arg5[%c0_6, %c0_7] : memref<2x4672xf32, #tpu.memory_space<vmem>>, vector<2x4672xf32>
    tpu.vector_store %arg5[%c0_6, %c0_7], %7 {strides = array<i32>} : memref<2x4672xf32, #tpu.memory_space<vmem>>, vector<2x4672xf32>,
    %c31_i32 = arith.constant 31 : i32
    %9 = arith.cmpi eq, %arg0, %c31_i32 : i32
    %10 = arith.extui %9 : i1 to i32
    %c0_i32_8 = arith.constant 0 : i32
    %11 = arith.cmpi ne, %10, %c0_i32_8 : i32
    scf.if %11 {
      %c0_9 = arith.constant 0 : index
      %c0_10 = arith.constant 0 : index
      %12 = vector.load %arg5[%c0_9, %c0_10] : memref<2x4672xf32, #tpu.memory_space<vmem>>, vector<2x4672xf32>
      %c0_11 = arith.constant 0 : index
      %c0_12 = arith.constant 0 : index
      %13 = vector.load %arg3[%c0_11, %c0_12] : memref<1x4672xf32, #tpu.memory_space<vmem>>, vector<1x4672xf32>
      %14 = vector.broadcast %13 : vector<1x4672xf32> to vector<2x4672xf32>
      %15 = arith.addf %12, %14 : vector<2x4672xf32>
      %cst_13 = arith.constant dense<0xFF800000> : vector<2xf32>
      %16 = vector.multi_reduction <maximumf>, %15, %cst_13 [1] : vector<2x4672xf32> to vector<2xf32>
      %17 = vector.shape_cast %16 : vector<2xf32> to vector<2x1xf32>
      %18 = vector.broadcast %17 : vector<2x1xf32> to vector<2x4672xf32>
      %19 = arith.subf %15, %18 : vector<2x4672xf32>
      %20 = math.exp %19 : vector<2x4672xf32>
      %cst_14 = arith.constant dense<0.000000e+00> : vector<2xf32>
      %21 = vector.multi_reduction <add>, %20, %cst_14 [1] : vector<2x4672xf32> to vector<2xf32>
      %22 = vector.shape_cast %21 : vector<2xf32> to vector<2x1xf32>
      %23 = vector.broadcast %22 : vector<2x1xf32> to vector<2x4672xf32>
      %24 = arith.divf %20, %23 : vector<2x4672xf32>
      %c0_15 = arith.constant 0 : index
      %c0_16 = arith.constant 0 : index
      %25 = vector.load %arg4[%c0_15, %c0_16] : memref<2x4672xf32, #tpu.memory_space<vmem>>, vector<2x4672xf32>
      tpu.vector_store %arg4[%c0_15, %c0_16], %24 {strides = array<i32>} : memref<2x4672xf32, #tpu.memory_space<vmem>>, vector<2x4672xf32>,
    } else {
    }
    return
  }
  func.func @transform_0(%arg0: i32) -> (i32, i32) {
    %c0_i32 = arith.constant 0 : i32
    %c0_i32_0 = arith.constant 0 : i32
    return %c0_i32, %arg0 : i32, i32
  }
  func.func @transform_1(%arg0: i32) -> (i32, i32) {
    %c0_i32 = arith.constant 0 : i32
    %c0_i32_0 = arith.constant 0 : i32
    return %arg0, %c0_i32 : i32, i32
  }
  func.func @transform_2(%arg0: i32) -> (i32, i32) {
    %c0_i32 = arith.constant 0 : i32
    %c0_i32_0 = arith.constant 0 : i32
    %c0_i32_1 = arith.constant 0 : i32
    return %c0_i32, %c0_i32_0 : i32, i32
  }
  func.func @transform_3(%arg0: i32) -> (i32, i32) {
    %c0_i32 = arith.constant 0 : i32
    %c0_i32_0 = arith.constant 0 : i32
    %c0_i32_1 = arith.constant 0 : i32
    return %c0_i32, %c0_i32_0 : i32, i32
  }
}

</mosaic_0001>

<llo_original>
// kernel: chessnet_forward.8
$region0: #{chessnet_forward.8}
  #allocation0 [shape = 'u32[]', space=smem, size = 0x4, offset = 0x4, fixed_abs, tag = 'smem constant byte address 0x4 - core index']
  #allocation1 [shape = 'u32[144,128]{1,0:T(1,128)}', space=vmem, size = 0x12000, scoped, tag = 'internal scratch']
  %s0 = inlined_call_operand.hbm [shape: f32[128,22], index: 0, kind: input, shape index: {}]
  %s1 = inlined_call_operand.hbm [shape: f32[22,256], index: 1, kind: input, shape index: {}]
  %s2 = inlined_call_operand.hbm [shape: f32[1,256], index: 2, kind: input, shape index: {}]
  %s3 = inlined_call_operand.hbm [shape: f32[1,256], index: 3, kind: input, shape index: {}]
  %s4 = inlined_call_operand.vmem [shape: f32[128,256], index: 4, kind: output, shape index: {}]
  %s5 = sld [smem:[#allocation0]]
  $region42: #{chessnet_forward.8} parent=0
    _
  %s7 = ssub.s32 1, %s5
  %s8 = scalar_select 0, %s7, %s5
  $region1: #{chessnet_forward.8} parent=0
    #allocation2 [shape = 'u8[65536]{0}', space=vmem, size = 0x10000, scoped, tag = 'input window, operand 0, single buffered']
    #allocation3 [shape = 's32[1]{0}', space=sflag, size = 0x4, scoped, tag = 'scoped memory for chessnet_forward.8']
    #allocation4 [shape = 'u8[24576]{0}', space=vmem, size = 0x6000, scoped, tag = 'input window, operand 1, single buffered']
    #allocation5 [shape = 's32[1]{0}', space=sflag, size = 0x4, scoped, tag = 'scoped memory for chessnet_forward.8']
    #allocation6 [shape = 'u8[1024]{0}', space=vmem, size = 0x400, scoped, tag = 'input window, operand 2, single buffered']
    #allocation7 [shape = 'u8[1024]{0}', space=vmem, size = 0x400, scoped, tag = 'input window, operand 3, single buffered']
    #allocation8 [shape = 's32[1]{0}', space=sflag, size = 0x4, scoped, tag = 'scoped memory for chessnet_forward.8']
    %9 = vsyncpa [#allocation3], 0
    %10 = vsyncpa [#allocation5], 0
    %11 = vsyncpa [#allocation8], 0
    // Predicated region
    $region2: #{chessnet_forward.8} parent=1 // pred_check
      _
    $region3: #{chessnet_forward.8} parent=1 // pred_check_branch
      %13 = sbr.rel (0) target = $region5
    $region4: #{chessnet_forward.8} parent=1 // pred_region
      %s15 = ssub.s32 2048, 2048
      %16 = vsyncadd [#allocation3], %s15
      %s17 = sshll.u32 [#allocation2], 4
      %s18 = int_to_ptr.vmem [resolvable:$true] %s17
      %23 = dma.hbm_to_vmem [thread:$0]  %s0, 2048, %s18, [#allocation3], 128, 128, 8
    $region5: #{chessnet_forward.8} parent=1 // pred_fallthru
      _
    // Predicated region
    $region6: #{chessnet_forward.8} parent=1 // pred_check
      _
    $region7: #{chessnet_forward.8} parent=1 // pred_check_branch
      %25 = sbr.rel (0) target = $region9
    $region8: #{chessnet_forward.8} parent=1 // pred_region
      %s27 = ssub.s32 768, 768
      %28 = vsyncadd [#allocation5], %s27
      %s29 = sshll.u32 [#allocation4], 4
      %s30 = int_to_ptr.vmem [resolvable:$true] %s29
      %35 = dma.hbm_to_vmem [thread:$0]  %s1, 768, %s30, [#allocation5], 256, 256, 16
    $region9: #{chessnet_forward.8} parent=1 // pred_fallthru
      _
    // Predicated region
    $region10: #{chessnet_forward.8} parent=1 // pred_check
      _
    $region11: #{chessnet_forward.8} parent=1 // pred_check_branch
      %37 = sbr.rel (0) target = $region13
    $region12: #{chessnet_forward.8} parent=1 // pred_region
      %s39 = ssub.s32 32, 32
      %40 = vsyncadd [#allocation5], %s39
      %s42 = sshll.u32 [#allocation6], 4
      %s43 = int_to_ptr.vmem [resolvable:$true] %s42
      %45 = dma.hbm_to_vmem [thread:$0]  %s2, 32, %s43, [#allocation5]
    $region13: #{chessnet_forward.8} parent=1 // pred_fallthru
      _
    // Predicated region
    $region14: #{chessnet_forward.8} parent=1 // pred_check
      _
    $region15: #{chessnet_forward.8} parent=1 // pred_check_branch
      %47 = sbr.rel (0) target = $region17
    $region16: #{chessnet_forward.8} parent=1 // pred_region
      %s49 = ssub.s32 32, 32
      %50 = vsyncadd [#allocation8], %s49
      %s52 = sshll.u32 [#allocation7], 4
      %s53 = int_to_ptr.vmem [resolvable:$true] %s52
      %55 = dma.hbm_to_vmem [thread:$0]  %s3, 32, %s53, [#allocation8]
    $region17: #{chessnet_forward.8} parent=1 // pred_fallthru
      _
    // Predicated region
    $region18: #{chessnet_forward.8} parent=1 // pred_check
      _
    $region19: #{chessnet_forward.8} parent=1 // pred_check_branch
      %57 = sbr.rel (0) target = $region21
    $region20: #{chessnet_forward.8} parent=1 // pred_region
      %58 = dma.done [#allocation3], 2048
    $region21: #{chessnet_forward.8} parent=1 // pred_fallthru
      _
    // Predicated region
    $region22: #{chessnet_forward.8} parent=1 // pred_check
      _
    $region23: #{chessnet_forward.8} parent=1 // pred_check_branch
      %60 = sbr.rel (0) target = $region25
    $region24: #{chessnet_forward.8} parent=1 // pred_region
      %61 = dma.done [#allocation5], 768
    $region25: #{chessnet_forward.8} parent=1 // pred_fallthru
      _
    // Predicated region
    $region26: #{chessnet_forward.8} parent=1 // pred_check
      _
    $region27: #{chessnet_forward.8} parent=1 // pred_check_branch
      %63 = sbr.rel (0) target = $region29
    $region28: #{chessnet_forward.8} parent=1 // pred_region
      %64 = dma.done [#allocation5], 32
    $region29: #{chessnet_forward.8} parent=1 // pred_fallthru
      _
    // Predicated region
    $region30: #{chessnet_forward.8} parent=1 // pred_check
      _
    $region31: #{chessnet_forward.8} parent=1 // pred_check_branch
      %66 = sbr.rel (0) target = $region33
    $region32: #{chessnet_forward.8} parent=1 // pred_region
      %67 = dma.done [#allocation8], 32
    $region33: #{chessnet_forward.8} parent=1 // pred_fallthru
      _
    %v68 = vld [vmem:[#allocation2] sm:$0xff]
    %v69 = vld [vmem:[#allocation2 + $0x8] sm:$0xff]
    %v70 = vld [vmem:[#allocation2 + $0x10] sm:$0xff]
    %v71 = vld [vmem:[#allocation2 + $0x18] sm:$0xff]
    %v72 = vld [vmem:[#allocation2 + $0x20] sm:$0xff]
    %v73 = vld [vmem:[#allocation2 + $0x28] sm:$0xff]
    %v74 = vld [vmem:[#allocation2 + $0x30] sm:$0xff]
    %v75 = vld [vmem:[#allocation2 + $0x38] sm:$0xff]
    %v76 = vld [vmem:[#allocation2 + $0x40] sm:$0xff]
    %v77 = vld [vmem:[#allocation2 + $0x48] sm:$0xff]
    %v78 = vld [vmem:[#allocation2 + $0x50] sm:$0xff]
    %v79 = vld [vmem:[#allocation2 + $0x58] sm:$0xff]
    %v80 = vld [vmem:[#allocation2 + $0x60] sm:$0xff]
    %v81 = vld [vmem:[#allocation2 + $0x68] sm:$0xff]
    %v82 = vld [vmem:[#allocation2 + $0x70] sm:$0xff]
    %v83 = vld [vmem:[#allocation2 + $0x78] sm:$0xff]
    %v84 = vld [vmem:[#allocation4] sm:$0xff]
    %v85 = vld [vmem:[#allocation4 + $0x8] sm:$0xff]
    %v86 = vld [vmem:[#allocation4 + $0x10] sm:$0xff]
    %v87 = vld [vmem:[#allocation4 + $0x18] sm:$0xff]
    %v88 = vld [vmem:[#allocation4 + $0x20] sm:$0x3f]
    %v89 = vld [vmem:[#allocation4 + $0x28] sm:$0x3f]
    %vm90 = vcmask 179200
    %v92 = vsel %vm90, %v68, 0
    %v95 = vsel %vm90, %v69, 0
    %v98 = vsel %vm90, %v70, 0
    %v101 = vsel %vm90, %v71, 0
    %v104 = vsel %vm90, %v72, 0
    %v107 = vsel %vm90, %v73, 0
    %v110 = vsel %vm90, %v74, 0
    %v113 = vsel %vm90, %v75, 0
    %v116 = vsel %vm90, %v76, 0
    %v119 = vsel %vm90, %v77, 0
    %v122 = vsel %vm90, %v78, 0
    %v125 = vsel %vm90, %v79, 0
    %v128 = vsel %vm90, %v80, 0
    %v131 = vsel %vm90, %v81, 0
    %v134 = vsel %vm90, %v82, 0
    %v137 = vsel %vm90, %v83, 0
    %vm139 = vcmask 1045504
    %v141 = vsel %vm139, %v88, 0
    %v144 = vsel %vm139, %v89, 0
    %146 = vmatprep.subr.mxu0 0.0
    %147 = vmatpush1.msra.mxu0 0.0
    %148 = vmatprep.subr.mxu0 0.0
    %149 = vmatpush1.msra.mxu0 0.0
    %150 = vmatprep.subr.mxu0 0.0
    %151 = vmatpush1.msra.mxu0 0.0
    %152 = vmatprep.subr.mxu0 0.0
    %153 = vmatpush1.msra.mxu0 0.0
    %154 = vmatprep.subr.mxu0 0.0
    %155 = vmatpush1.msra.mxu0 0.0
    %156 = vmatprep.subr.mxu0 0.0
    %157 = vmatpush1.msra.mxu0 0.0
    %158 = vmatprep.subr.mxu0 0.0
    %159 = vmatpush1.msra.mxu0 0.0
    %160 = vmatprep.subr.mxu0 0.0
    %161 = vmatpush1.msra.mxu0 0.0
    %162 = vmatprep.subr.mxu0 0.0
    %163 = vmatpush1.msra.mxu0 0.0
    %164 = vmatprep.subr.mxu0 0.0
    %165 = vmatpush1.msra.mxu0 0.0
    %166 = vmatprep.subr.mxu0 0.0
    %167 = vmatpush1.msra.mxu0 0.0
    %168 = vmatprep.subr.mxu0 0.0
    %169 = vmatpush1.msra.mxu0 0.0
    %170 = vmatprep.subr.mxu0 0.0
    %171 = vmatpush1.msra.mxu0 0.0
    %172 = vmatprep.subr.mxu0 %v144
    %173 = vmatpush1.msra.mxu0 %v141
    %174 = vmatprep.subr.mxu0 %v87
    %175 = vmatpush1.msra.mxu0 %v86
    %176 = vmatprep.subr.mxu0 %v85
    %177 = vmatpush1.msra.mxu0 %v84
    %178 = vmatprep.subr.mxu0 0.0
    %179 = vmatpush2.msra.mxu0 0.0
    %180 = vmatprep.subr.mxu0 0.0
    %181 = vmatpush2.msra.mxu0 0.0
    %182 = vmatprep.subr.mxu0 0.0
    %183 = vmatpush2.msra.mxu0 0.0
    %184 = vmatprep.subr.mxu0 0.0
    %185 = vmatpush2.msra.mxu0 0.0
    %186 = vmatprep.subr.mxu0 0.0
    %187 = vmatpush2.msra.mxu0 0.0
    %188 = vmatprep.subr.mxu0 0.0
    %189 = vmatpush2.msra.mxu0 0.0
    %190 = vmatprep.subr.mxu0 0.0
    %191 = vmatpush2.msra.mxu0 0.0
    %192 = vmatprep.subr.mxu0 0.0
    %193 = vmatpush2.msra.mxu0 0.0
    %194 = vmatprep.subr.mxu0 0.0
    %195 = vmatpush2.msra.mxu0 0.0
    %196 = vmatprep.subr.mxu0 0.0
    %197 = vmatpush2.msra.mxu0 0.0
    %198 = vmatprep.subr.mxu0 0.0
    %199 = vmatpush2.msra.mxu0 0.0
    %200 = vmatprep.subr.mxu0 0.0
    %201 = vmatpush2.msra.mxu0 0.0
    %202 = vmatprep.subr.mxu0 0.0
    %203 = vmatpush2.msra.mxu0 0.0
    %204 = vmatprep.subr.mxu0 0.0
    %205 = vmatpush2.msra.mxu0 0.0
    %206 = vmatprep.subr.mxu0 0.0
    %207 = vmatpush2.msra.mxu0 0.0
    %208 = vmatprep.subr.mxu0 0.0
    %209 = vmatpush2.msra.mxu0 0.0
    %210 = vmatprep.mubr.f32.mxu0 0.0
    %211 = vmatmul.mubr.f32.gmra.mxu0 %v92
    %v212 = vpop.f32.mrf.mxu0
    %v213 = vadd.f32 0.0, %v212
    %v214 = vpop.f32.mrf.mxu0
    %v215 = vadd.f32 0.0, %v214
    %216 = vmatprep.mubr.f32.mxu0 0.0
    %217 = vmatmul.mubr.f32.gmra.mxu0 %v95
    %v218 = vpop.f32.mrf.mxu0
    %v219 = vadd.f32 0.0, %v218
    %v220 = vpop.f32.mrf.mxu0
    %v221 = vadd.f32 0.0, %v220
    %222 = vmatprep.mubr.f32.mxu0 0.0
    %223 = vmatmul.mubr.f32.gmra.mxu0 %v98
    %v224 = vpop.f32.mrf.mxu0
    %v225 = vadd.f32 0.0, %v224
    %v226 = vpop.f32.mrf.mxu0
    %v227 = vadd.f32 0.0, %v226
    %228 = vmatprep.mubr.f32.mxu0 0.0
    %229 = vmatmul.mubr.f32.gmra.mxu0 %v101
    %v230 = vpop.f32.mrf.mxu0
    %v231 = vadd.f32 0.0, %v230
    %v232 = vpop.f32.mrf.mxu0
    %v233 = vadd.f32 0.0, %v232
    %234 = vmatprep.mubr.f32.mxu0 0.0
    %235 = vmatmul.mubr.f32.gmra.mxu0 %v104
    %v236 = vpop.f32.mrf.mxu0
    %v237 = vadd.f32 0.0, %v236
    %v238 = vpop.f32.mrf.mxu0
    %v239 = vadd.f32 0.0, %v238
    %240 = vmatprep.mubr.f32.mxu0 0.0
    %241 = vmatmul.mubr.f32.gmra.mxu0 %v107
    %v242 = vpop.f32.mrf.mxu0
    %v243 = vadd.f32 0.0, %v242
    %v244 = vpop.f32.mrf.mxu0
    %v245 = vadd.f32 0.0, %v244
    %246 = vmatprep.mubr.f32.mxu0 0.0
    %247 = vmatmul.mubr.f32.gmra.mxu0 %v110
    %v248 = vpop.f32.mrf.mxu0
    %v249 = vadd.f32 0.0, %v248
    %v250 = vpop.f32.mrf.mxu0
    %v251 = vadd.f32 0.0, %v250
    %252 = vmatprep.mubr.f32.mxu0 0.0
    %253 = vmatmul.mubr.f32.gmra.mxu0 %v113
    %v254 = vpop.f32.mrf.mxu0
    %v255 = vadd.f32 0.0, %v254
    %v256 = vpop.f32.mrf.mxu0
    %v257 = vadd.f32 0.0, %v256
    %258 = vmatprep.mubr.f32.mxu0 0.0
    %259 = vmatmul.mubr.f32.gmra.mxu0 %v116
    %v260 = vpop.f32.mrf.mxu0
    %v261 = vadd.f32 0.0, %v260
    %v262 = vpop.f32.mrf.mxu0
    %v263 = vadd.f32 0.0, %v262
    %264 = vmatprep.mubr.f32.mxu0 0.0
    %265 = vmatmul.mubr.f32.gmra.mxu0 %v119
    %v266 = vpop.f32.mrf.mxu0
    %v267 = vadd.f32 0.0, %v266
    %v268 = vpop.f32.mrf.mxu0
    %v269 = vadd.f32 0.0, %v268
    %270 = vmatprep.mubr.f32.mxu0 0.0
    %271 = vmatmul.mubr.f32.gmra.mxu0 %v122
    %v272 = vpop.f32.mrf.mxu0
    %v273 = vadd.f32 0.0, %v272
    %v274 = vpop.f32.mrf.mxu0
    %v275 = vadd.f32 0.0, %v274
    %276 = vmatprep.mubr.f32.mxu0 0.0
    %277 = vmatmul.mubr.f32.gmra.mxu0 %v125
    %v278 = vpop.f32.mrf.mxu0
    %v279 = vadd.f32 0.0, %v278
    %v280 = vpop.f32.mrf.mxu0
    %v281 = vadd.f32 0.0, %v280
    %282 = vmatprep.mubr.f32.mxu0 0.0
    %283 = vmatmul.mubr.f32.gmra.mxu0 %v128
    %v284 = vpop.f32.mrf.mxu0
    %v285 = vadd.f32 0.0, %v284
    %v286 = vpop.f32.mrf.mxu0
    %v287 = vadd.f32 0.0, %v286
    %288 = vmatprep.mubr.f32.mxu0 0.0
    %289 = vmatmul.mubr.f32.gmra.mxu0 %v131
    %v290 = vpop.f32.mrf.mxu0
    %v291 = vadd.f32 0.0, %v290
    %v292 = vpop.f32.mrf.mxu0
    %v293 = vadd.f32 0.0, %v292
    %294 = vmatprep.mubr.f32.mxu0 0.0
    %295 = vmatmul.mubr.f32.gmra.mxu0 %v134
    %v296 = vpop.f32.mrf.mxu0
    %v297 = vadd.f32 0.0, %v296
    %v298 = vpop.f32.mrf.mxu0
    %v299 = vadd.f32 0.0, %v298
    %300 = vmatprep.mubr.f32.mxu0 0.0
    %301 = vmatmul.mubr.f32.gmra.mxu0 %v137
    %v302 = vpop.f32.mrf.mxu0
    %v303 = vadd.f32 0.0, %v302
    %v304 = vpop.f32.mrf.mxu0
    %v305 = vadd.f32 0.0, %v304
    %306 = vdwg.mxu0
    %v307 = vld [vmem:[#allocation6] sm:$0x3]
    %v309 = vlaneseq
    %v310 = vshrl.u32 %v309, 7
    %v311 = vsub.s32 0, %v310
    %v312 = vrot.slane %v307, %v311
    %v313 = vlaneseq
    %v314 = vshrl.u32 %v313, 7
    %v315 = vsub.s32 1, %v314
    %v316 = vrot.slane %v307, %v315
    %v319 = vmul.f32 %v213, %v312
    %v320 = vmul.f32 %v215, %v316
    %v321 = vmul.f32 %v219, %v312
    %v322 = vmul.f32 %v221, %v316
    %v323 = vmul.f32 %v225, %v312
    %v324 = vmul.f32 %v227, %v316
    %v325 = vmul.f32 %v231, %v312
    %v326 = vmul.f32 %v233, %v316
    %v327 = vmul.f32 %v237, %v312
    %v328 = vmul.f32 %v239, %v316
    %v329 = vmul.f32 %v243, %v312
    %v330 = vmul.f32 %v245, %v316
    %v331 = vmul.f32 %v249, %v312
    %v332 = vmul.f32 %v251, %v316
    %v333 = vmul.f32 %v255, %v312
    %v334 = vmul.f32 %v257, %v316
    %v335 = vmul.f32 %v261, %v312
    %v336 = vmul.f32 %v263, %v316
    %v337 = vmul.f32 %v267, %v312
    %v338 = vmul.f32 %v269, %v316
    %v339 = vmul.f32 %v273, %v312
    %v340 = vmul.f32 %v275, %v316
    %v341 = vmul.f32 %v279, %v312
    %v342 = vmul.f32 %v281, %v316
    %v343 = vmul.f32 %v285, %v312
    %v344 = vmul.f32 %v287, %v316
    %v345 = vmul.f32 %v291, %v312
    %v346 = vmul.f32 %v293, %v316
    %v347 = vmul.f32 %v297, %v312
    %v348 = vmul.f32 %v299, %v316
    %v349 = vmul.f32 %v303, %v312
    %v350 = vmul.f32 %v305, %v316
    %v351 = vld [vmem:[#allocation7] sm:$0x3]
    %v353 = vlaneseq
    %v354 = vshrl.u32 %v353, 7
    %v355 = vsub.s32 0, %v354
    %v356 = vrot.slane %v351, %v355
    %v357 = vlaneseq
    %v358 = vshrl.u32 %v357, 7
    %v359 = vsub.s32 1, %v358
    %v360 = vrot.slane %v351, %v359
    %v363 = vadd.f32 %v319, %v356
    %v364 = vadd.f32 %v320, %v360
    %v365 = vadd.f32 %v321, %v356
    %v366 = vadd.f32 %v322, %v360
    %v367 = vadd.f32 %v323, %v356
    %v368 = vadd.f32 %v324, %v360
    %v369 = vadd.f32 %v325, %v356
    %v370 = vadd.f32 %v326, %v360
    %v371 = vadd.f32 %v327, %v356
    %v372 = vadd.f32 %v328, %v360
    %v373 = vadd.f32 %v329, %v356
    %v374 = vadd.f32 %v330, %v360
    %v375 = vadd.f32 %v331, %v356
    %v376 = vadd.f32 %v332, %v360
    %v377 = vadd.f32 %v333, %v356
    %v378 = vadd.f32 %v334, %v360
    %v379 = vadd.f32 %v335, %v356
    %v380 = vadd.f32 %v336, %v360
    %v381 = vadd.f32 %v337, %v356
    %v382 = vadd.f32 %v338, %v360
    %v383 = vadd.f32 %v339, %v356
    %v384 = vadd.f32 %v340, %v360
    %v385 = vadd.f32 %v341, %v356
    %v386 = vadd.f32 %v342, %v360
    %v387 = vadd.f32 %v343, %v356
    %v388 = vadd.f32 %v344, %v360
    %v389 = vadd.f32 %v345, %v356
    %v390 = vadd.f32 %v346, %v360
    %v391 = vadd.f32 %v347, %v356
    %v392 = vadd.f32 %v348, %v360
    %v393 = vadd.f32 %v349, %v356
    %v394 = vadd.f32 %v350, %v360
    %395 = vst [vmem:[%s4] sm:$0xff] %v363
    %396 = vst [vmem:[%s4 + $0x8] sm:$0xff] %v364
    %397 = vst [vmem:[%s4 + $0x10] sm:$0xff] %v365
    %398 = vst [vmem:[%s4 + $0x18] sm:$0xff] %v366
    %399 = vst [vmem:[%s4 + $0x20] sm:$0xff] %v367
    %400 = vst [vmem:[%s4 + $0x28] sm:$0xff] %v368
    %401 = vst [vmem:[%s4 + $0x30] sm:$0xff] %v369
    %402 = vst [vmem:[%s4 + $0x38] sm:$0xff] %v370
    %403 = vst [vmem:[%s4 + $0x40] sm:$0xff] %v371
    %404 = vst [vmem:[%s4 + $0x48] sm:$0xff] %v372
    %405 = vst [vmem:[%s4 + $0x50] sm:$0xff] %v373
    %406 = vst [vmem:[%s4 + $0x58] sm:$0xff] %v374
    %407 = vst [vmem:[%s4 + $0x60] sm:$0xff] %v375
    %408 = vst [vmem:[%s4 + $0x68] sm:$0xff] %v376
    %409 = vst [vmem:[%s4 + $0x70] sm:$0xff] %v377
    %410 = vst [vmem:[%s4 + $0x78] sm:$0xff] %v378
    %411 = vst [vmem:[%s4 + $0x80] sm:$0xff] %v379
    %412 = vst [vmem:[%s4 + $0x88] sm:$0xff] %v380
    %413 = vst [vmem:[%s4 + $0x90] sm:$0xff] %v381
    %414 = vst [vmem:[%s4 + $0x98] sm:$0xff] %v382
    %415 = vst [vmem:[%s4 + $0xa0] sm:$0xff] %v383
    %416 = vst [vmem:[%s4 + $0xa8] sm:$0xff] %v384
    %417 = vst [vmem:[%s4 + $0xb0] sm:$0xff] %v385
    %418 = vst [vmem:[%s4 + $0xb8] sm:$0xff] %v386
    %419 = vst [vmem:[%s4 + $0xc0] sm:$0xff] %v387
    %420 = vst [vmem:[%s4 + $0xc8] sm:$0xff] %v388
    %421 = vst [vmem:[%s4 + $0xd0] sm:$0xff] %v389
    %422 = vst [vmem:[%s4 + $0xd8] sm:$0xff] %v390
    %423 = vst [vmem:[%s4 + $0xe0] sm:$0xff] %v391
    %424 = vst [vmem:[%s4 + $0xe8] sm:$0xff] %v392
    %425 = vst [vmem:[%s4 + $0xf0] sm:$0xff] %v393
    %426 = vst [vmem:[%s4 + $0xf8] sm:$0xff] %v394
    // Predicated region
    $region34: #{chessnet_forward.8} parent=1 // pred_check
      _
    $region35: #{chessnet_forward.8} parent=1 // pred_check_branch
      %428 = sbr.rel (0) target = $region37
    $region36: #{chessnet_forward.8} parent=1 // pred_region
      _
    $region37: #{chessnet_forward.8} parent=1 // pred_fallthru
      _
    // Predicated region
    $region38: #{chessnet_forward.8} parent=1 // pred_check
      _
    $region39: #{chessnet_forward.8} parent=1 // pred_check_branch
      %430 = sbr.rel (0) target = $region41
    $region40: #{chessnet_forward.8} parent=1 // pred_region
      _
    $region41: #{chessnet_forward.8} parent=1 // pred_fallthru
      _
    %431 = vsyncpa [#allocation3], 1
    %432 = vsyncpa [#allocation5], 1
    %433 = vsyncpa [#allocation8], 1

// kernel: chessnet_forward.9
$region0: #{chessnet_forward.9}
  #allocation0 [shape = 'u32[]', space=smem, size = 0x4, offset = 0x4, fixed_abs, tag = 'smem constant byte address 0x4 - core index']
  #allocation1 [shape = 'u32[144,128]{1,0:T(1,128)}', space=vmem, size = 0x12000, scoped, tag = 'internal scratch']
  %s0 = inlined_call_operand.vmem [shape: f32[128,198], index: 0, kind: input, shape index: {}]
  %s1 = inlined_call_operand.vmem [shape: f32[198,256], index: 1, kind: input, shape index: {}]
  %s2 = inlined_call_operand.vmem [shape: f32[1,256], index: 2, kind: input, shape index: {}]
  %s3 = inlined_call_operand.vmem [shape: f32[1,256], index: 3, kind: input, shape index: {}]
  %s4 = inlined_call_operand.vmem [shape: f32[128,256], index: 4, kind: output, shape index: {}]
  %s5 = sld [smem:[#allocation0]]
  $region26: #{chessnet_forward.9} parent=0
    _
  %s7 = ssub.s32 1, %s5
  %s8 = scalar_select 0, %s7, %s5
  // Predicated region
  $region2: #{chessnet_forward.9} parent=0 // pred_check
    _
  $region3: #{chessnet_forward.9} parent=0 // pred_check_branch
    %10 = sbr.rel (0) target = $region5
  $region4: #{chessnet_forward.9} parent=0 // pred_region
    _
  $region5: #{chessnet_forward.9} parent=0 // pred_fallthru
    _
  // Predicated region
  $region6: #{chessnet_forward.9} parent=0 // pred_check
    _
  $region7: #{chessnet_forward.9} parent=0 // pred_check_branch
    %12 = sbr.rel (0) target = $region9
  $region8: #{chessnet_forward.9} parent=0 // pred_region
    _
  $region9: #{chessnet_forward.9} parent=0 // pred_fallthru
    _
  // Predicated region
  $region10: #{chessnet_forward.9} parent=0 // pred_check
    _
  $region11: #{chessnet_forward.9} parent=0 // pred_check_branch
    %14 = sbr.rel (0) target = $region13
  $region12: #{chessnet_forward.9} parent=0 // pred_region
    _
  $region13: #{chessnet_forward.9} parent=0 // pred_fallthru
    _
  // Predicated region
  $region14: #{chessnet_forward.9} parent=0 // pred_check
    _
  $region15: #{chessnet_forward.9} parent=0 // pred_check_branch
    %16 = sbr.rel (0) target = $region17
  $region16: #{chessnet_forward.9} parent=0 // pred_region
    _
  $region17: #{chessnet_forward.9} parent=0 // pred_fallthru
    _
  %v17 = vld [vmem:[%s0] sm:$0xff]
  %v18 = vld [vmem:[%s0 + $0x8] sm:$0xff]
  %v19 = vld [vmem:[%s0 + $0x10] sm:$0xff]
  %v20 = vld [vmem:[%s0 + $0x18] sm:$0xff]
  %v21 = vld [vmem:[%s0 + $0x20] sm:$0xff]
  %v22 = vld [vmem:[%s0 + $0x28] sm:$0xff]
  %v23 = vld [vmem:[%s0 + $0x30] sm:$0xff]
  %v24 = vld [vmem:[%s0 + $0x38] sm:$0xff]
  %v25 = vld [vmem:[%s0 + $0x40] sm:$0xff]
  %v26 = vld [vmem:[%s0 + $0x48] sm:$0xff]
  %v27 = vld [vmem:[%s0 + $0x50] sm:$0xff]
  %v28 = vld [vmem:[%s0 + $0x58] sm:$0xff]
  %v29 = vld [vmem:[%s0 + $0x60] sm:$0xff]
  %v30 = vld [vmem:[%s0 + $0x68] sm:$0xff]
  %v31 = vld [vmem:[%s0 + $0x70] sm:$0xff]
  %v32 = vld [vmem:[%s0 + $0x78] sm:$0xff]
  %v33 = vld [vmem:[%s0 + $0x80] sm:$0xff]
  %v34 = vld [vmem:[%s0 + $0x88] sm:$0xff]
  %v35 = vld [vmem:[%s0 + $0x90] sm:$0xff]
  %v36 = vld [vmem:[%s0 + $0x98] sm:$0xff]
  %v37 = vld [vmem:[%s0 + $0xa0] sm:$0xff]
  %v38 = vld [vmem:[%s0 + $0xa8] sm:$0xff]
  %v39 = vld [vmem:[%s0 + $0xb0] sm:$0xff]
  %v40 = vld [vmem:[%s0 + $0xb8] sm:$0xff]
  %v41 = vld [vmem:[%s0 + $0xc0] sm:$0xff]
  %v42 = vld [vmem:[%s0 + $0xc8] sm:$0xff]
  %v43 = vld [vmem:[%s0 + $0xd0] sm:$0xff]
  %v44 = vld [vmem:[%s0 + $0xd8] sm:$0xff]
  %v45 = vld [vmem:[%s0 + $0xe0] sm:$0xff]
  %v46 = vld [vmem:[%s0 + $0xe8] sm:$0xff]
  %v47 = vld [vmem:[%s0 + $0xf0] sm:$0xff]
  %v48 = vld [vmem:[%s0 + $0xf8] sm:$0xff]
  %v49 = vld [vmem:[%s1] sm:$0xff]
  %v50 = vld [vmem:[%s1 + $0x8] sm:$0xff]
  %v51 = vld [vmem:[%s1 + $0x10] sm:$0xff]
  %v52 = vld [vmem:[%s1 + $0x18] sm:$0xff]
  %v53 = vld [vmem:[%s1 + $0x20] sm:$0xff]
  %v54 = vld [vmem:[%s1 + $0x28] sm:$0xff]
  %v55 = vld [vmem:[%s1 + $0x30] sm:$0xff]
  %v56 = vld [vmem:[%s1 + $0x38] sm:$0xff]
  %v57 = vld [vmem:[%s1 + $0x40] sm:$0xff]
  %v58 = vld [vmem:[%s1 + $0x48] sm:$0xff]
  %v59 = vld [vmem:[%s1 + $0x50] sm:$0xff]
  %v60 = vld [vmem:[%s1 + $0x58] sm:$0xff]
  %v61 = vld [vmem:[%s1 + $0x60] sm:$0xff]
  %v62 = vld [vmem:[%s1 + $0x68] sm:$0xff]
  %v63 = vld [vmem:[%s1 + $0x70] sm:$0xff]
  %v64 = vld [vmem:[%s1 + $0x78] sm:$0xff]
  %v65 = vld [vmem:[%s1 + $0x80] sm:$0xff]
  %v66 = vld [vmem:[%s1 + $0x88] sm:$0xff]
  %v67 = vld [vmem:[%s1 + $0x90] sm:$0xff]
  %v68 = vld [vmem:[%s1 + $0x98] sm:$0xff]
  %v69 = vld [vmem:[%s1 + $0xa0] sm:$0xff]
  %v70 = vld [vmem:[%s1 + $0xa8] sm:$0xff]
  %v71 = vld [vmem:[%s1 + $0xb0] sm:$0xff]
  %v72 = vld [vmem:[%s1 + $0xb8] sm:$0xff]
  %v73 = vld [vmem:[%s1 + $0xc0] sm:$0xff]
  %v74 = vld [vmem:[%s1 + $0xc8] sm:$0xff]
  %v75 = vld [vmem:[%s1 + $0xd0] sm:$0xff]
  %v76 = vld [vmem:[%s1 + $0xd8] sm:$0xff]
  %v77 = vld [vmem:[%s1 + $0xe0] sm:$0xff]
  %v78 = vld [vmem:[%s1 + $0xe8] sm:$0xff]
  %v79 = vld [vmem:[%s1 + $0xf0] sm:$0xff]
  %v80 = vld [vmem:[%s1 + $0xf8] sm:$0xff]
  %v81 = vld [vmem:[%s1 + $0x100] sm:$0xff]
  %v82 = vld [vmem:[%s1 + $0x108] sm:$0xff]
  %v83 = vld [vmem:[%s1 + $0x110] sm:$0xff]
  %v84 = vld [vmem:[%s1 + $0x118] sm:$0xff]
  %v85 = vld [vmem:[%s1 + $0x120] sm:$0xff]
  %v86 = vld [vmem:[%s1 + $0x128] sm:$0xff]
  %v87 = vld [vmem:[%s1 + $0x130] sm:$0xff]
  %v88 = vld [vmem:[%s1 + $0x138] sm:$0xff]
  %v89 = vld [vmem:[%s1 + $0x140] sm:$0xff]
  %v90 = vld [vmem:[%s1 + $0x148] sm:$0xff]
  %v91 = vld [vmem:[%s1 + $0x150] sm:$0xff]
  %v92 = vld [vmem:[%s1 + $0x158] sm:$0xff]
  %v93 = vld [vmem:[%s1 + $0x160] sm:$0xff]
  %v94 = vld [vmem:[%s1 + $0x168] sm:$0xff]
  %v95 = vld [vmem:[%s1 + $0x170] sm:$0xff]
  %v96 = vld [vmem:[%s1 + $0x178] sm:$0xff]
  %v97 = vld [vmem:[%s1 + $0x180] sm:$0x3f]
  %v98 = vld [vmem:[%s1 + $0x188] sm:$0x3f]
  %vm99 = vcmask 572416
  %v101 = vsel %vm99, %v18, 0
  %v104 = vsel %vm99, %v20, 0
  %v107 = vsel %vm99, %v22, 0
  %v110 = vsel %vm99, %v24, 0
  %v113 = vsel %vm99, %v26, 0
  %v116 = vsel %vm99, %v28, 0
  %v119 = vsel %vm99, %v30, 0
  %v122 = vsel %vm99, %v32, 0
  %v125 = vsel %vm99, %v34, 0
  %v128 = vsel %vm99, %v36, 0
  %v131 = vsel %vm99, %v38, 0
  %v134 = vsel %vm99, %v40, 0
  %v137 = vsel %vm99, %v42, 0
  %v140 = vsel %vm99, %v44, 0
  %v143 = vsel %vm99, %v46, 0
  %v146 = vsel %vm99, %v48, 0
  %vm148 = vcmask 1045504
  %v150 = vsel %vm148, %v97, 0
  %v153 = vsel %vm148, %v98, 0
  %155 = vmatprep.subr.mxu0 %v80
  %156 = vmatpush1.msra.mxu0 %v79
  %157 = vmatprep.subr.mxu0 %v78
  %158 = vmatpush1.msra.mxu0 %v77
  %159 = vmatprep.subr.mxu0 %v76
  %160 = vmatpush1.msra.mxu0 %v75
  %161 = vmatprep.subr.mxu0 %v74
  %162 = vmatpush1.msra.mxu0 %v73
  %163 = vmatprep.subr.mxu0 %v72
  %164 = vmatpush1.msra.mxu0 %v71
  %165 = vmatprep.subr.mxu0 %v70
  %166 = vmatpush1.msra.mxu0 %v69
  %167 = vmatprep.subr.mxu0 %v68
  %168 = vmatpush1.msra.mxu0 %v67
  %169 = vmatprep.subr.mxu0 %v66
  %170 = vmatpush1.msra.mxu0 %v65
  %171 = vmatprep.subr.mxu0 %v64
  %172 = vmatpush1.msra.mxu0 %v63
  %173 = vmatprep.subr.mxu0 %v62
  %174 = vmatpush1.msra.mxu0 %v61
  %175 = vmatprep.subr.mxu0 %v60
  %176 = vmatpush1.msra.mxu0 %v59
  %177 = vmatprep.subr.mxu0 %v58
  %178 = vmatpush1.msra.mxu0 %v57
  %179 = vmatprep.subr.mxu0 %v56
  %180 = vmatpush1.msra.mxu0 %v55
  %181 = vmatprep.subr.mxu0 %v54
  %182 = vmatpush1.msra.mxu0 %v53
  %183 = vmatprep.subr.mxu0 %v52
  %184 = vmatpush1.msra.mxu0 %v51
  %185 = vmatprep.subr.mxu0 %v50
  %186 = vmatpush1.msra.mxu0 %v49
  %187 = vmatprep.subr.mxu0 0.0
  %188 = vmatpush2.msra.mxu0 0.0
  %189 = vmatprep.subr.mxu0 0.0
  %190 = vmatpush2.msra.mxu0 0.0
  %191 = vmatprep.subr.mxu0 0.0
  %192 = vmatpush2.msra.mxu0 0.0
  %193 = vmatprep.subr.mxu0 0.0
  %194 = vmatpush2.msra.mxu0 0.0
  %195 = vmatprep.subr.mxu0 0.0
  %196 = vmatpush2.msra.mxu0 0.0
  %197 = vmatprep.subr.mxu0 0.0
  %198 = vmatpush2.msra.mxu0 0.0
  %199 = vmatprep.subr.mxu0 0.0
  %200 = vmatpush2.msra.mxu0 0.0
  %201 = vmatprep.subr.mxu0 %v153
  %202 = vmatpush2.msra.mxu0 %v150
  %203 = vmatprep.subr.mxu0 %v96
  %204 = vmatpush2.msra.mxu0 %v95
  %205 = vmatprep.subr.mxu0 %v94
  %206 = vmatpush2.msra.mxu0 %v93
  %207 = vmatprep.subr.mxu0 %v92
  %208 = vmatpush2.msra.mxu0 %v91
  %209 = vmatprep.subr.mxu0 %v90
  %210 = vmatpush2.msra.mxu0 %v89
  %211 = vmatprep.subr.mxu0 %v88
  %212 = vmatpush2.msra.mxu0 %v87
  %213 = vmatprep.subr.mxu0 %v86
  %214 = vmatpush2.msra.mxu0 %v85
  %215 = vmatprep.subr.mxu0 %v84
  %216 = vmatpush2.msra.mxu0 %v83
  %217 = vmatprep.subr.mxu0 %v82
  %218 = vmatpush2.msra.mxu0 %v81
  %219 = vmatprep.mubr.f32.mxu0 %v101
  %220 = vmatmul.mubr.f32.gmra.mxu0 %v17
  %v221 = vpop.f32.mrf.mxu0
  %v222 = vadd.f32 0.0, %v221
  %v223 = vpop.f32.mrf.mxu0
  %v224 = vadd.f32 0.0, %v223
  %225 = vmatprep.mubr.f32.mxu0 %v104
  %226 = vmatmul.mubr.f32.gmra.mxu0 %v19
  %v227 = vpop.f32.mrf.mxu0
  %v228 = vadd.f32 0.0, %v227
  %v229 = vpop.f32.mrf.mxu0
  %v230 = vadd.f32 0.0, %v229
  %231 = vmatprep.mubr.f32.mxu0 %v107
  %232 = vmatmul.mubr.f32.gmra.mxu0 %v21
  %v233 = vpop.f32.mrf.mxu0
  %v234 = vadd.f32 0.0, %v233
  %v235 = vpop.f32.mrf.mxu0
  %v236 = vadd.f32 0.0, %v235
  %237 = vmatprep.mubr.f32.mxu0 %v110
  %238 = vmatmul.mubr.f32.gmra.mxu0 %v23
  %v239 = vpop.f32.mrf.mxu0
  %v240 = vadd.f32 0.0, %v239
  %v241 = vpop.f32.mrf.mxu0
  %v242 = vadd.f32 0.0, %v241
  %243 = vmatprep.mubr.f32.mxu0 %v113
  %244 = vmatmul.mubr.f32.gmra.mxu0 %v25
  %v245 = vpop.f32.mrf.mxu0
  %v246 = vadd.f32 0.0, %v245
  %v247 = vpop.f32.mrf.mxu0
  %v248 = vadd.f32 0.0, %v247
  %249 = vmatprep.mubr.f32.mxu0 %v116
  %250 = vmatmul.mubr.f32.gmra.mxu0 %v27
  %v251 = vpop.f32.mrf.mxu0
  %v252 = vadd.f32 0.0, %v251
  %v253 = vpop.f32.mrf.mxu0
  %v254 = vadd.f32 0.0, %v253
  %255 = vmatprep.mubr.f32.mxu0 %v119
  %256 = vmatmul.mubr.f32.gmra.mxu0 %v29
  %v257 = vpop.f32.mrf.mxu0
  %v258 = vadd.f32 0.0, %v257
  %v259 = vpop.f32.mrf.mxu0
  %v260 = vadd.f32 0.0, %v259
  %261 = vmatprep.mubr.f32.mxu0 %v122
  %262 = vmatmul.mubr.f32.gmra.mxu0 %v31
  %v263 = vpop.f32.mrf.mxu0
  %v264 = vadd.f32 0.0, %v263
  %v265 = vpop.f32.mrf.mxu0
  %v266 = vadd.f32 0.0, %v265
  %267 = vmatprep.mubr.f32.mxu0 %v125
  %268 = vmatmul.mubr.f32.gmra.mxu0 %v33
  %v269 = vpop.f32.mrf.mxu0
  %v270 = vadd.f32 0.0, %v269
  %v271 = vpop.f32.mrf.mxu0
  %v272 = vadd.f32 0.0, %v271
  %273 = vmatprep.mubr.f32.mxu0 %v128
  %274 = vmatmul.mubr.f32.gmra.mxu0 %v35
  %v275 = vpop.f32.mrf.mxu0
  %v276 = vadd.f32 0.0, %v275
  %v277 = vpop.f32.mrf.mxu0
  %v278 = vadd.f32 0.0, %v277
  %279 = vmatprep.mubr.f32.mxu0 %v131
  %280 = vmatmul.mubr.f32.gmra.mxu0 %v37
  %v281 = vpop.f32.mrf.mxu0
  %v282 = vadd.f32 0.0, %v281
  %v283 = vpop.f32.mrf.mxu0
  %v284 = vadd.f32 0.0, %v283
  %285 = vmatprep.mubr.f32.mxu0 %v134
  %286 = vmatmul.mubr.f32.gmra.mxu0 %v39
  %v287 = vpop.f32.mrf.mxu0
  %v288 = vadd.f32 0.0, %v287
  %v289 = vpop.f32.mrf.mxu0
  %v290 = vadd.f32 0.0, %v289
  %291 = vmatprep.mubr.f32.mxu0 %v137
  %292 = vmatmul.mubr.f32.gmra.mxu0 %v41
  %v293 = vpop.f32.mrf.mxu0
  %v294 = vadd.f32 0.0, %v293
  %v295 = vpop.f32.mrf.mxu0
  %v296 = vadd.f32 0.0, %v295
  %297 = vmatprep.mubr.f32.mxu0 %v140
  %298 = vmatmul.mubr.f32.gmra.mxu0 %v43
  %v299 = vpop.f32.mrf.mxu0
  %v300 = vadd.f32 0.0, %v299
  %v301 = vpop.f32.mrf.mxu0
  %v302 = vadd.f32 0.0, %v301
  %303 = vmatprep.mubr.f32.mxu0 %v143
  %304 = vmatmul.mubr.f32.gmra.mxu0 %v45
  %v305 = vpop.f32.mrf.mxu0
  %v306 = vadd.f32 0.0, %v305
  %v307 = vpop.f32.mrf.mxu0
  %v308 = vadd.f32 0.0, %v307
  %309 = vmatprep.mubr.f32.mxu0 %v146
  %310 = vmatmul.mubr.f32.gmra.mxu0 %v47
  %v311 = vpop.f32.mrf.mxu0
  %v312 = vadd.f32 0.0, %v311
  %v313 = vpop.f32.mrf.mxu0
  %v314 = vadd.f32 0.0, %v313
  %315 = vdwg.mxu0
  %v316 = vld [vmem:[%s2] sm:$0x3]
  %v318 = vlaneseq
  %v319 = vshrl.u32 %v318, 7
  %v320 = vsub.s32 0, %v319
  %v321 = vrot.slane %v316, %v320
  %v322 = vlaneseq
  %v323 = vshrl.u32 %v322, 7
  %v324 = vsub.s32 1, %v323
  %v325 = vrot.slane %v316, %v324
  %v328 = vmul.f32 %v222, %v321
  %v329 = vmul.f32 %v224, %v325
  %v330 = vmul.f32 %v228, %v321
  %v331 = vmul.f32 %v230, %v325
  %v332 = vmul.f32 %v234, %v321
  %v333 = vmul.f32 %v236, %v325
  %v334 = vmul.f32 %v240, %v321
  %v335 = vmul.f32 %v242, %v325
  %v336 = vmul.f32 %v246, %v321
  %v337 = vmul.f32 %v248, %v325
  %v338 = vmul.f32 %v252, %v321
  %v339 = vmul.f32 %v254, %v325
  %v340 = vmul.f32 %v258, %v321
  %v341 = vmul.f32 %v260, %v325
  %v342 = vmul.f32 %v264, %v321
  %v343 = vmul.f32 %v266, %v325
  %v344 = vmul.f32 %v270, %v321
  %v345 = vmul.f32 %v272, %v325
  %v346 = vmul.f32 %v276, %v321
  %v347 = vmul.f32 %v278, %v325
  %v348 = vmul.f32 %v282, %v321
  %v349 = vmul.f32 %v284, %v325
  %v350 = vmul.f32 %v288, %v321
  %v351 = vmul.f32 %v290, %v325
  %v352 = vmul.f32 %v294, %v321
  %v353 = vmul.f32 %v296, %v325
  %v354 = vmul.f32 %v300, %v321
  %v355 = vmul.f32 %v302, %v325
  %v356 = vmul.f32 %v306, %v321
  %v357 = vmul.f32 %v308, %v325
  %v358 = vmul.f32 %v312, %v321
  %v359 = vmul.f32 %v314, %v325
  %v360 = vld [vmem:[%s3] sm:$0x3]
  %v362 = vlaneseq
  %v363 = vshrl.u32 %v362, 7
  %v364 = vsub.s32 0, %v363
  %v365 = vrot.slane %v360, %v364
  %v366 = vlaneseq
  %v367 = vshrl.u32 %v366, 7
  %v368 = vsub.s32 1, %v367
  %v369 = vrot.slane %v360, %v368
  %v372 = vadd.f32 %v328, %v365
  %v373 = vadd.f32 %v329, %v369
  %v374 = vadd.f32 %v330, %v365
  %v375 = vadd.f32 %v331, %v369
  %v376 = vadd.f32 %v332, %v365
  %v377 = vadd.f32 %v333, %v369
  %v378 = vadd.f32 %v334, %v365
  %v379 = vadd.f32 %v335, %v369
  %v380 = vadd.f32 %v336, %v365
  %v381 = vadd.f32 %v337, %v369
  %v382 = vadd.f32 %v338, %v365
  %v383 = vadd.f32 %v339, %v369
  %v384 = vadd.f32 %v340, %v365
  %v385 = vadd.f32 %v341, %v369
  %v386 = vadd.f32 %v342, %v365
  %v387 = vadd.f32 %v343, %v369
  %v388 = vadd.f32 %v344, %v365
  %v389 = vadd.f32 %v345, %v369
  %v390 = vadd.f32 %v346, %v365
  %v391 = vadd.f32 %v347, %v369
  %v392 = vadd.f32 %v348, %v365
  %v393 = vadd.f32 %v349, %v369
  %v394 = vadd.f32 %v350, %v365
  %v395 = vadd.f32 %v351, %v369
  %v396 = vadd.f32 %v352, %v365
  %v397 = vadd.f32 %v353, %v369
  %v398 = vadd.f32 %v354, %v365
  %v399 = vadd.f32 %v355, %v369
  %v400 = vadd.f32 %v356, %v365
  %v401 = vadd.f32 %v357, %v369
  %v402 = vadd.f32 %v358, %v365
  %v403 = vadd.f32 %v359, %v369
  %v404 = vmax.f32 %v372, 0.0
  %v405 = vmax.f32 %v373, 0.0
  %v406 = vmax.f32 %v374, 0.0
  %v407 = vmax.f32 %v375, 0.0
  %v408 = vmax.f32 %v376, 0.0
  %v409 = vmax.f32 %v377, 0.0
  %v410 = vmax.f32 %v378, 0.0
  %v411 = vmax.f32 %v379, 0.0
  %v412 = vmax.f32 %v380, 0.0
  %v413 = vmax.f32 %v381, 0.0
  %v414 = vmax.f32 %v382, 0.0
  %v415 = vmax.f32 %v383, 0.0
  %v416 = vmax.f32 %v384, 0.0
  %v417 = vmax.f32 %v385, 0.0
  %v418 = vmax.f32 %v386, 0.0
  %v419 = vmax.f32 %v387, 0.0
  %v420 = vmax.f32 %v388, 0.0
  %v421 = vmax.f32 %v389, 0.0
  %v422 = vmax.f32 %v390, 0.0
  %v423 = vmax.f32 %v391, 0.0
  %v424 = vmax.f32 %v392, 0.0
  %v425 = vmax.f32 %v393, 0.0
  %v426 = vmax.f32 %v394, 0.0
  %v427 = vmax.f32 %v395, 0.0
  %v428 = vmax.f32 %v396, 0.0
  %v429 = vmax.f32 %v397, 0.0
  %v430 = vmax.f32 %v398, 0.0
  %v431 = vmax.f32 %v399, 0.0
  %v432 = vmax.f32 %v400, 0.0
  %v433 = vmax.f32 %v401, 0.0
  %v434 = vmax.f32 %v402, 0.0
  %v435 = vmax.f32 %v403, 0.0
  %436 = vst [vmem:[%s4] sm:$0xff] %v404
  %437 = vst [vmem:[%s4 + $0x8] sm:$0xff] %v405
  %438 = vst [vmem:[%s4 + $0x10] sm:$0xff] %v406
  %439 = vst [vmem:[%s4 + $0x18] sm:$0xff] %v407
  %440 = vst [vmem:[%s4 + $0x20] sm:$0xff] %v408
  %441 = vst [vmem:[%s4 + $0x28] sm:$0xff] %v409
  %442 = vst [vmem:[%s4 + $0x30] sm:$0xff] %v410
  %443 = vst [vmem:[%s4 + $0x38] sm:$0xff] %v411
  %444 = vst [vmem:[%s4 + $0x40] sm:$0xff] %v412
  %445 = vst [vmem:[%s4 + $0x48] sm:$0xff] %v413
  %446 = vst [vmem:[%s4 + $0x50] sm:$0xff] %v414
  %447 = vst [vmem:[%s4 + $0x58] sm:$0xff] %v415
  %448 = vst [vmem:[%s4 + $0x60] sm:$0xff] %v416
  %449 = vst [vmem:[%s4 + $0x68] sm:$0xff] %v417
  %450 = vst [vmem:[%s4 + $0x70] sm:$0xff] %v418
  %451 = vst [vmem:[%s4 + $0x78] sm:$0xff] %v419
  %452 = vst [vmem:[%s4 + $0x80] sm:$0xff] %v420
  %453 = vst [vmem:[%s4 + $0x88] sm:$0xff] %v421
  %454 = vst [vmem:[%s4 + $0x90] sm:$0xff] %v422
  %455 = vst [vmem:[%s4 + $0x98] sm:$0xff] %v423
  %456 = vst [vmem:[%s4 + $0xa0] sm:$0xff] %v424
  %457 = vst [vmem:[%s4 + $0xa8] sm:$0xff] %v425
  %458 = vst [vmem:[%s4 + $0xb0] sm:$0xff] %v426
  %459 = vst [vmem:[%s4 + $0xb8] sm:$0xff] %v427
  %460 = vst [vmem:[%s4 + $0xc0] sm:$0xff] %v428
  %461 = vst [vmem:[%s4 + $0xc8] sm:$0xff] %v429
  %462 = vst [vmem:[%s4 + $0xd0] sm:$0xff] %v430
  %463 = vst [vmem:[%s4 + $0xd8] sm:$0xff] %v431
  %464 = vst [vmem:[%s4 + $0xe0] sm:$0xff] %v432
  %465 = vst [vmem:[%s4 + $0xe8] sm:$0xff] %v433
  %466 = vst [vmem:[%s4 + $0xf0] sm:$0xff] %v434
  %467 = vst [vmem:[%s4 + $0xf8] sm:$0xff] %v435
  // Predicated region
  $region18: #{chessnet_forward.9} parent=0 // pred_check
    _
  $region19: #{chessnet_forward.9} parent=0 // pred_check_branch
    %469 = sbr.rel (0) target = $region21
  $region20: #{chessnet_forward.9} parent=0 // pred_region
    _
  $region21: #{chessnet_forward.9} parent=0 // pred_fallthru
    _
  // Predicated region
  $region22: #{chessnet_forward.9} parent=0 // pred_check
    _
  $region23: #{chessnet_forward.9} parent=0 // pred_check_branch
    %471 = sbr.rel (0) target = $region25
  $region24: #{chessnet_forward.9} parent=0 // pred_region
    _
  $region25: #{chessnet_forward.9} parent=0 // pred_fallthru
    _

// kernel: chessnet_forward.11
$region0: #{chessnet_forward.11}
  #allocation0 [shape = 'u32[]', space=smem, size = 0x4, offset = 0x4, fixed_abs, tag = 'smem constant byte address 0x4 - core index']
  #allocation1 [shape = 'u32[144,128]{1,0:T(1,128)}', space=vmem, size = 0x12000, scoped, tag = 'internal scratch']
  #allocation2 [shape = 'f32[1,1]{1,0:T(1,128)S(1)}', space=vmem, size = 0x200, scoped, tag = 'scoped memory for chessnet_forward.11']
  #allocation3 [shape = 'f32[1,1]{1,0:T(1,128)S(1)}', space=vmem, size = 0x200, scoped, tag = 'scoped memory for chessnet_forward.11']
  %s0 = inlined_call_operand.vmem [shape: f32[128,256], index: 0, kind: input, shape index: {}]
  %s1 = inlined_call_operand.vmem [shape: f32[256,1], index: 1, kind: input, shape index: {}]
  %s2 = inlined_call_operand.<no memory space> [shape: f32[1,1], index: 2, kind: input, shape index: {}]
  %s3 = inlined_call_operand.<no memory space> [shape: f32[1,1], index: 3, kind: input, shape index: {}]
  %s4 = inlined_call_operand.vmem [shape: f32[128,1], index: 4, kind: output, shape index: {}]
  %s5 = sld [smem:[#allocation0]]
  $region26: #{chessnet_forward.11} parent=0
    _
  %s7 = ssub.s32 1, %s5
  %s8 = scalar_select 0, %s7, %s5
  %v9 = vstv %s2
  %10 = vst [vmem:[#allocation2] sm:$0x1] %v9
  %v11 = vstv %s3
  %12 = vst [vmem:[#allocation3] sm:$0x1] %v11
  // Predicated region
  $region2: #{chessnet_forward.11} parent=0 // pred_check
    _
  $region3: #{chessnet_forward.11} parent=0 // pred_check_branch
    %14 = sbr.rel (0) target = $region5
  $region4: #{chessnet_forward.11} parent=0 // pred_region
    _
  $region5: #{chessnet_forward.11} parent=0 // pred_fallthru
    _
  // Predicated region
  $region6: #{chessnet_forward.11} parent=0 // pred_check
    _
  $region7: #{chessnet_forward.11} parent=0 // pred_check_branch
    %16 = sbr.rel (0) target = $region9
  $region8: #{chessnet_forward.11} parent=0 // pred_region
    _
  $region9: #{chessnet_forward.11} parent=0 // pred_fallthru
    _
  // Predicated region
  $region10: #{chessnet_forward.11} parent=0 // pred_check
    _
  $region11: #{chessnet_forward.11} parent=0 // pred_check_branch
    %18 = sbr.rel (0) target = $region13
  $region12: #{chessnet_forward.11} parent=0 // pred_region
    _
  $region13: #{chessnet_forward.11} parent=0 // pred_fallthru
    _
  // Predicated region
  $region14: #{chessnet_forward.11} parent=0 // pred_check
    _
  $region15: #{chessnet_forward.11} parent=0 // pred_check_branch
    %20 = sbr.rel (0) target = $region17
  $region16: #{chessnet_forward.11} parent=0 // pred_region
    _
  $region17: #{chessnet_forward.11} parent=0 // pred_fallthru
    _
  %v21 = vld [vmem:[%s0] sm:$0xff]
  %v22 = vld [vmem:[%s0 + $0x8] sm:$0xff]
  %v23 = vld [vmem:[%s0 + $0x10] sm:$0xff]
  %v24 = vld [vmem:[%s0 + $0x18] sm:$0xff]
  %v25 = vld [vmem:[%s0 + $0x20] sm:$0xff]
  %v26 = vld [vmem:[%s0 + $0x28] sm:$0xff]
  %v27 = vld [vmem:[%s0 + $0x30] sm:$0xff]
  %v28 = vld [vmem:[%s0 + $0x38] sm:$0xff]
  %v29 = vld [vmem:[%s0 + $0x40] sm:$0xff]
  %v30 = vld [vmem:[%s0 + $0x48] sm:$0xff]
  %v31 = vld [vmem:[%s0 + $0x50] sm:$0xff]
  %v32 = vld [vmem:[%s0 + $0x58] sm:$0xff]
  %v33 = vld [vmem:[%s0 + $0x60] sm:$0xff]
  %v34 = vld [vmem:[%s0 + $0x68] sm:$0xff]
  %v35 = vld [vmem:[%s0 + $0x70] sm:$0xff]
  %v36 = vld [vmem:[%s0 + $0x78] sm:$0xff]
  %v37 = vld [vmem:[%s0 + $0x80] sm:$0xff]
  %v38 = vld [vmem:[%s0 + $0x88] sm:$0xff]
  %v39 = vld [vmem:[%s0 + $0x90] sm:$0xff]
  %v40 = vld [vmem:[%s0 + $0x98] sm:$0xff]
  %v41 = vld [vmem:[%s0 + $0xa0] sm:$0xff]
  %v42 = vld [vmem:[%s0 + $0xa8] sm:$0xff]
  %v43 = vld [vmem:[%s0 + $0xb0] sm:$0xff]
  %v44 = vld [vmem:[%s0 + $0xb8] sm:$0xff]
  %v45 = vld [vmem:[%s0 + $0xc0] sm:$0xff]
  %v46 = vld [vmem:[%s0 + $0xc8] sm:$0xff]
  %v47 = vld [vmem:[%s0 + $0xd0] sm:$0xff]
  %v48 = vld [vmem:[%s0 + $0xd8] sm:$0xff]
  %v49 = vld [vmem:[%s0 + $0xe0] sm:$0xff]
  %v50 = vld [vmem:[%s0 + $0xe8] sm:$0xff]
  %v51 = vld [vmem:[%s0 + $0xf0] sm:$0xff]
  %v52 = vld [vmem:[%s0 + $0xf8] sm:$0xff]
  %v53 = vld [vmem:[%s1] sm:$0xff]
  %v54 = vld [vmem:[%s1 + $0x8] sm:$0xff]
  %v55 = vld [vmem:[%s1 + $0x10] sm:$0xff]
  %v56 = vld [vmem:[%s1 + $0x18] sm:$0xff]
  %v57 = vld [vmem:[%s1 + $0x20] sm:$0xff]
  %v58 = vld [vmem:[%s1 + $0x28] sm:$0xff]
  %v59 = vld [vmem:[%s1 + $0x30] sm:$0xff]
  %v60 = vld [vmem:[%s1 + $0x38] sm:$0xff]
  %v61 = vld [vmem:[%s1 + $0x40] sm:$0xff]
  %v62 = vld [vmem:[%s1 + $0x48] sm:$0xff]
  %v63 = vld [vmem:[%s1 + $0x50] sm:$0xff]
  %v64 = vld [vmem:[%s1 + $0x58] sm:$0xff]
  %v65 = vld [vmem:[%s1 + $0x60] sm:$0xff]
  %v66 = vld [vmem:[%s1 + $0x68] sm:$0xff]
  %v67 = vld [vmem:[%s1 + $0x70] sm:$0xff]
  %v68 = vld [vmem:[%s1 + $0x78] sm:$0xff]
  %v69 = vld [vmem:[%s1 + $0x80] sm:$0xff]
  %v70 = vld [vmem:[%s1 + $0x88] sm:$0xff]
  %v71 = vld [vmem:[%s1 + $0x90] sm:$0xff]
  %v72 = vld [vmem:[%s1 + $0x98] sm:$0xff]
  %v73 = vld [vmem:[%s1 + $0xa0] sm:$0xff]
  %v74 = vld [vmem:[%s1 + $0xa8] sm:$0xff]
  %v75 = vld [vmem:[%s1 + $0xb0] sm:$0xff]
  %v76 = vld [vmem:[%s1 + $0xb8] sm:$0xff]
  %v77 = vld [vmem:[%s1 + $0xc0] sm:$0xff]
  %v78 = vld [vmem:[%s1 + $0xc8] sm:$0xff]
  %v79 = vld [vmem:[%s1 + $0xd0] sm:$0xff]
  %v80 = vld [vmem:[%s1 + $0xd8] sm:$0xff]
  %v81 = vld [vmem:[%s1 + $0xe0] sm:$0xff]
  %v82 = vld [vmem:[%s1 + $0xe8] sm:$0xff]
  %v83 = vld [vmem:[%s1 + $0xf0] sm:$0xff]
  %v84 = vld [vmem:[%s1 + $0xf8] sm:$0xff]
  %85 = vmatprep.subr.mxu0 0.0
  %86 = vmatpush1.msra.mxu0 %v68
  %87 = vmatprep.subr.mxu0 0.0
  %88 = vmatpush1.msra.mxu0 %v67
  %89 = vmatprep.subr.mxu0 0.0
  %90 = vmatpush1.msra.mxu0 %v66
  %91 = vmatprep.subr.mxu0 0.0
  %92 = vmatpush1.msra.mxu0 %v65
  %93 = vmatprep.subr.mxu0 0.0
  %94 = vmatpush1.msra.mxu0 %v64
  %95 = vmatprep.subr.mxu0 0.0
  %96 = vmatpush1.msra.mxu0 %v63
  %97 = vmatprep.subr.mxu0 0.0
  %98 = vmatpush1.msra.mxu0 %v62
  %99 = vmatprep.subr.mxu0 0.0
  %100 = vmatpush1.msra.mxu0 %v61
  %101 = vmatprep.subr.mxu0 0.0
  %102 = vmatpush1.msra.mxu0 %v60
  %103 = vmatprep.subr.mxu0 0.0
  %104 = vmatpush1.msra.mxu0 %v59
  %105 = vmatprep.subr.mxu0 0.0
  %106 = vmatpush1.msra.mxu0 %v58
  %107 = vmatprep.subr.mxu0 0.0
  %108 = vmatpush1.msra.mxu0 %v57
  %109 = vmatprep.subr.mxu0 0.0
  %110 = vmatpush1.msra.mxu0 %v56
  %111 = vmatprep.subr.mxu0 0.0
  %112 = vmatpush1.msra.mxu0 %v55
  %113 = vmatprep.subr.mxu0 0.0
  %114 = vmatpush1.msra.mxu0 %v54
  %115 = vmatprep.subr.mxu0 0.0
  %116 = vmatpush1.msra.mxu0 %v53
  %117 = vmatprep.subr.mxu0 0.0
  %118 = vmatpush2.msra.mxu0 %v84
  %119 = vmatprep.subr.mxu0 0.0
  %120 = vmatpush2.msra.mxu0 %v83
  %121 = vmatprep.subr.mxu0 0.0
  %122 = vmatpush2.msra.mxu0 %v82
  %123 = vmatprep.subr.mxu0 0.0
  %124 = vmatpush2.msra.mxu0 %v81
  %125 = vmatprep.subr.mxu0 0.0
  %126 = vmatpush2.msra.mxu0 %v80
  %127 = vmatprep.subr.mxu0 0.0
  %128 = vmatpush2.msra.mxu0 %v79
  %129 = vmatprep.subr.mxu0 0.0
  %130 = vmatpush2.msra.mxu0 %v78
  %131 = vmatprep.subr.mxu0 0.0
  %132 = vmatpush2.msra.mxu0 %v77
  %133 = vmatprep.subr.mxu0 0.0
  %134 = vmatpush2.msra.mxu0 %v76
  %135 = vmatprep.subr.mxu0 0.0
  %136 = vmatpush2.msra.mxu0 %v75
  %137 = vmatprep.subr.mxu0 0.0
  %138 = vmatpush2.msra.mxu0 %v74
  %139 = vmatprep.subr.mxu0 0.0
  %140 = vmatpush2.msra.mxu0 %v73
  %141 = vmatprep.subr.mxu0 0.0
  %142 = vmatpush2.msra.mxu0 %v72
  %143 = vmatprep.subr.mxu0 0.0
  %144 = vmatpush2.msra.mxu0 %v71
  %145 = vmatprep.subr.mxu0 0.0
  %146 = vmatpush2.msra.mxu0 %v70
  %147 = vmatprep.subr.mxu0 0.0
  %148 = vmatpush2.msra.mxu0 %v69
  %149 = vmatprep.mubr.f32.mxu0 %v22
  %150 = vmatmul.mubr.f32.gmra.mxu0 %v21
  %v151 = vpop.f32.mrf.mxu0
  %v152 = vadd.f32 0.0, %v151
  %v153 = vpop.f32.mrf.mxu0
  %154 = vmatprep.mubr.f32.mxu0 %v24
  %155 = vmatmul.mubr.f32.gmra.mxu0 %v23
  %v156 = vpop.f32.mrf.mxu0
  %v157 = vadd.f32 0.0, %v156
  %v158 = vpop.f32.mrf.mxu0
  %159 = vmatprep.mubr.f32.mxu0 %v26
  %160 = vmatmul.mubr.f32.gmra.mxu0 %v25
  %v161 = vpop.f32.mrf.mxu0
  %v162 = vadd.f32 0.0, %v161
  %v163 = vpop.f32.mrf.mxu0
  %164 = vmatprep.mubr.f32.mxu0 %v28
  %165 = vmatmul.mubr.f32.gmra.mxu0 %v27
  %v166 = vpop.f32.mrf.mxu0
  %v167 = vadd.f32 0.0, %v166
  %v168 = vpop.f32.mrf.mxu0
  %169 = vmatprep.mubr.f32.mxu0 %v30
  %170 = vmatmul.mubr.f32.gmra.mxu0 %v29
  %v171 = vpop.f32.mrf.mxu0
  %v172 = vadd.f32 0.0, %v171
  %v173 = vpop.f32.mrf.mxu0
  %174 = vmatprep.mubr.f32.mxu0 %v32
  %175 = vmatmul.mubr.f32.gmra.mxu0 %v31
  %v176 = vpop.f32.mrf.mxu0
  %v177 = vadd.f32 0.0, %v176
  %v178 = vpop.f32.mrf.mxu0
  %179 = vmatprep.mubr.f32.mxu0 %v34
  %180 = vmatmul.mubr.f32.gmra.mxu0 %v33
  %v181 = vpop.f32.mrf.mxu0
  %v182 = vadd.f32 0.0, %v181
  %v183 = vpop.f32.mrf.mxu0
  %184 = vmatprep.mubr.f32.mxu0 %v36
  %185 = vmatmul.mubr.f32.gmra.mxu0 %v35
  %v186 = vpop.f32.mrf.mxu0
  %v187 = vadd.f32 0.0, %v186
  %v188 = vpop.f32.mrf.mxu0
  %189 = vmatprep.mubr.f32.mxu0 %v38
  %190 = vmatmul.mubr.f32.gmra.mxu0 %v37
  %v191 = vpop.f32.mrf.mxu0
  %v192 = vadd.f32 0.0, %v191
  %v193 = vpop.f32.mrf.mxu0
  %194 = vmatprep.mubr.f32.mxu0 %v40
  %195 = vmatmul.mubr.f32.gmra.mxu0 %v39
  %v196 = vpop.f32.mrf.mxu0
  %v197 = vadd.f32 0.0, %v196
  %v198 = vpop.f32.mrf.mxu0
  %199 = vmatprep.mubr.f32.mxu0 %v42
  %200 = vmatmul.mubr.f32.gmra.mxu0 %v41
  %v201 = vpop.f32.mrf.mxu0
  %v202 = vadd.f32 0.0, %v201
  %v203 = vpop.f32.mrf.mxu0
  %204 = vmatprep.mubr.f32.mxu0 %v44
  %205 = vmatmul.mubr.f32.gmra.mxu0 %v43
  %v206 = vpop.f32.mrf.mxu0
  %v207 = vadd.f32 0.0, %v206
  %v208 = vpop.f32.mrf.mxu0
  %209 = vmatprep.mubr.f32.mxu0 %v46
  %210 = vmatmul.mubr.f32.gmra.mxu0 %v45
  %v211 = vpop.f32.mrf.mxu0
  %v212 = vadd.f32 0.0, %v211
  %v213 = vpop.f32.mrf.mxu0
  %214 = vmatprep.mubr.f32.mxu0 %v48
  %215 = vmatmul.mubr.f32.gmra.mxu0 %v47
  %v216 = vpop.f32.mrf.mxu0
  %v217 = vadd.f32 0.0, %v216
  %v218 = vpop.f32.mrf.mxu0
  %219 = vmatprep.mubr.f32.mxu0 %v50
  %220 = vmatmul.mubr.f32.gmra.mxu0 %v49
  %v221 = vpop.f32.mrf.mxu0
  %v222 = vadd.f32 0.0, %v221
  %v223 = vpop.f32.mrf.mxu0
  %224 = vmatprep.mubr.f32.mxu0 %v52
  %225 = vmatmul.mubr.f32.gmra.mxu0 %v51
  %v226 = vpop.f32.mrf.mxu0
  %v227 = vadd.f32 0.0, %v226
  %v228 = vpop.f32.mrf.mxu0
  %229 = vdwg.mxu0
  %v230 = vld [vmem:[#allocation2] sm:$0x1]
  %v232 = vlaneseq
  %v233 = vshrl.u32 %v232, 7
  %v234 = vsub.s32 0, %v233
  %v235 = vrot.slane %v230, %v234
  %v237 = vmul.f32 %v152, %v235
  %v238 = vmul.f32 %v157, %v235
  %v239 = vmul.f32 %v162, %v235
  %v240 = vmul.f32 %v167, %v235
  %v241 = vmul.f32 %v172, %v235
  %v242 = vmul.f32 %v177, %v235
  %v243 = vmul.f32 %v182, %v235
  %v244 = vmul.f32 %v187, %v235
  %v245 = vmul.f32 %v192, %v235
  %v246 = vmul.f32 %v197, %v235
  %v247 = vmul.f32 %v202, %v235
  %v248 = vmul.f32 %v207, %v235
  %v249 = vmul.f32 %v212, %v235
  %v250 = vmul.f32 %v217, %v235
  %v251 = vmul.f32 %v222, %v235
  %v252 = vmul.f32 %v227, %v235
  %v253 = vld [vmem:[#allocation3] sm:$0x1]
  %v255 = vlaneseq
  %v256 = vshrl.u32 %v255, 7
  %v257 = vsub.s32 0, %v256
  %v258 = vrot.slane %v253, %v257
  %v260 = vadd.f32 %v237, %v258
  %v261 = vadd.f32 %v238, %v258
  %v262 = vadd.f32 %v239, %v258
  %v263 = vadd.f32 %v240, %v258
  %v264 = vadd.f32 %v241, %v258
  %v265 = vadd.f32 %v242, %v258
  %v266 = vadd.f32 %v243, %v258
  %v267 = vadd.f32 %v244, %v258
  %v268 = vadd.f32 %v245, %v258
  %v269 = vadd.f32 %v246, %v258
  %v270 = vadd.f32 %v247, %v258
  %v271 = vadd.f32 %v248, %v258
  %v272 = vadd.f32 %v249, %v258
  %v273 = vadd.f32 %v250, %v258
  %v274 = vadd.f32 %v251, %v258
  %v275 = vadd.f32 %v252, %v258
  %v276 = vmax.f32 %v260, 0.0
  %v277 = vmax.f32 %v261, 0.0
  %v278 = vmax.f32 %v262, 0.0
  %v279 = vmax.f32 %v263, 0.0
  %v280 = vmax.f32 %v264, 0.0
  %v281 = vmax.f32 %v265, 0.0
  %v282 = vmax.f32 %v266, 0.0
  %v283 = vmax.f32 %v267, 0.0
  %v284 = vmax.f32 %v268, 0.0
  %v285 = vmax.f32 %v269, 0.0
  %v286 = vmax.f32 %v270, 0.0
  %v287 = vmax.f32 %v271, 0.0
  %v288 = vmax.f32 %v272, 0.0
  %v289 = vmax.f32 %v273, 0.0
  %v290 = vmax.f32 %v274, 0.0
  %v291 = vmax.f32 %v275, 0.0
  %vm292 = vcmask 7168
  %293 = vst.msk [vmem:[%s4] sm:$0xff] %vm292, %v276
  %294 = vst.msk [vmem:[%s4 + $0x8] sm:$0xff] %vm292, %v277
  %295 = vst.msk [vmem:[%s4 + $0x10] sm:$0xff] %vm292, %v278
  %296 = vst.msk [vmem:[%s4 + $0x18] sm:$0xff] %vm292, %v279
  %297 = vst.msk [vmem:[%s4 + $0x20] sm:$0xff] %vm292, %v280
  %298 = vst.msk [vmem:[%s4 + $0x28] sm:$0xff] %vm292, %v281
  %299 = vst.msk [vmem:[%s4 + $0x30] sm:$0xff] %vm292, %v282
  %300 = vst.msk [vmem:[%s4 + $0x38] sm:$0xff] %vm292, %v283
  %301 = vst.msk [vmem:[%s4 + $0x40] sm:$0xff] %vm292, %v284
  %302 = vst.msk [vmem:[%s4 + $0x48] sm:$0xff] %vm292, %v285
  %303 = vst.msk [vmem:[%s4 + $0x50] sm:$0xff] %vm292, %v286
  %304 = vst.msk [vmem:[%s4 + $0x58] sm:$0xff] %vm292, %v287
  %305 = vst.msk [vmem:[%s4 + $0x60] sm:$0xff] %vm292, %v288
  %306 = vst.msk [vmem:[%s4 + $0x68] sm:$0xff] %vm292, %v289
  %307 = vst.msk [vmem:[%s4 + $0x70] sm:$0xff] %vm292, %v290
  %308 = vst.msk [vmem:[%s4 + $0x78] sm:$0xff] %vm292, %v291
  // Predicated region
  $region18: #{chessnet_forward.11} parent=0 // pred_check
    _
  $region19: #{chessnet_forward.11} parent=0 // pred_check_branch
    %310 = sbr.rel (0) target = $region21
  $region20: #{chessnet_forward.11} parent=0 // pred_region
    _
  $region21: #{chessnet_forward.11} parent=0 // pred_fallthru
    _
  // Predicated region
  $region22: #{chessnet_forward.11} parent=0 // pred_check
    _
  $region23: #{chessnet_forward.11} parent=0 // pred_check_branch
    %312 = sbr.rel (0) target = $region25
  $region24: #{chessnet_forward.11} parent=0 // pred_region
    _
  $region25: #{chessnet_forward.11} parent=0 // pred_fallthru
    _

// kernel: closed_call.21
$region0: #{closed_call.21}
  #allocation0 [shape = 'u32[]', space=smem, size = 0x4, offset = 0x4, fixed_abs, tag = 'smem constant byte address 0x4 - core index']
  #allocation1 [shape = 'u32[144,128]{1,0:T(1,128)}', space=vmem, size = 0x12000, scoped, tag = 'internal scratch']
  %s0 = inlined_call_operand.vmem [shape: f32[2,64,256], index: 0, kind: input, shape index: {}]
  %s1 = inlined_call_operand.vmem [shape: f32[2,64,256], index: 1, kind: input, shape index: {}]
  %s2 = inlined_call_operand.vmem [shape: f32[256,16], index: 2, kind: input, shape index: {}]
  %s3 = inlined_call_operand.vmem [shape: f32[16,256], index: 3, kind: input, shape index: {}]
  %s4 = inlined_call_operand.vmem [shape: f32[2,64,256], index: 4, kind: output, shape index: {}]
  %s5 = sld [smem:[#allocation0]]
  $region26: #{closed_call.21} parent=0
    _
  %s7 = ssub.s32 1, %s5
  %s8 = scalar_select 0, %s7, %s5
  // Predicated region
  $region2: #{closed_call.21} parent=0 // pred_check
    _
  $region3: #{closed_call.21} parent=0 // pred_check_branch
    %10 = sbr.rel (0) target = $region5
  $region4: #{closed_call.21} parent=0 // pred_region
    _
  $region5: #{closed_call.21} parent=0 // pred_fallthru
    _
  // Predicated region
  $region6: #{closed_call.21} parent=0 // pred_check
    _
  $region7: #{closed_call.21} parent=0 // pred_check_branch
    %12 = sbr.rel (0) target = $region9
  $region8: #{closed_call.21} parent=0 // pred_region
    _
  $region9: #{closed_call.21} parent=0 // pred_fallthru
    _
  // Predicated region
  $region10: #{closed_call.21} parent=0 // pred_check
    _
  $region11: #{closed_call.21} parent=0 // pred_check_branch
    %14 = sbr.rel (0) target = $region13
  $region12: #{closed_call.21} parent=0 // pred_region
    _
  $region13: #{closed_call.21} parent=0 // pred_fallthru
    _
  // Predicated region
  $region14: #{closed_call.21} parent=0 // pred_check
    _
  $region15: #{closed_call.21} parent=0 // pred_check_branch
    %16 = sbr.rel (0) target = $region17
  $region16: #{closed_call.21} parent=0 // pred_region
    _
  $region17: #{closed_call.21} parent=0 // pred_fallthru
    _
  %v17 = vld [vmem:[%s0] sm:$0xff]
  %v18 = vld [vmem:[%s0 + $0x8] sm:$0xff]
  %v19 = vld [vmem:[%s0 + $0x10] sm:$0xff]
  %v20 = vld [vmem:[%s0 + $0x18] sm:$0xff]
  %v21 = vld [vmem:[%s0 + $0x20] sm:$0xff]
  %v22 = vld [vmem:[%s0 + $0x28] sm:$0xff]
  %v23 = vld [vmem:[%s0 + $0x30] sm:$0xff]
  %v24 = vld [vmem:[%s0 + $0x38] sm:$0xff]
  %v25 = vld [vmem:[%s0 + $0x40] sm:$0xff]
  %v26 = vld [vmem:[%s0 + $0x48] sm:$0xff]
  %v27 = vld [vmem:[%s0 + $0x50] sm:$0xff]
  %v28 = vld [vmem:[%s0 + $0x58] sm:$0xff]
  %v29 = vld [vmem:[%s0 + $0x60] sm:$0xff]
  %v30 = vld [vmem:[%s0 + $0x68] sm:$0xff]
  %v31 = vld [vmem:[%s0 + $0x70] sm:$0xff]
  %v32 = vld [vmem:[%s0 + $0x78] sm:$0xff]
  %v33 = vld [vmem:[%s0 + $0x80] sm:$0xff]
  %v34 = vld [vmem:[%s0 + $0x88] sm:$0xff]
  %v35 = vld [vmem:[%s0 + $0x90] sm:$0xff]
  %v36 = vld [vmem:[%s0 + $0x98] sm:$0xff]
  %v37 = vld [vmem:[%s0 + $0xa0] sm:$0xff]
  %v38 = vld [vmem:[%s0 + $0xa8] sm:$0xff]
  %v39 = vld [vmem:[%s0 + $0xb0] sm:$0xff]
  %v40 = vld [vmem:[%s0 + $0xb8] sm:$0xff]
  %v41 = vld [vmem:[%s0 + $0xc0] sm:$0xff]
  %v42 = vld [vmem:[%s0 + $0xc8] sm:$0xff]
  %v43 = vld [vmem:[%s0 + $0xd0] sm:$0xff]
  %v44 = vld [vmem:[%s0 + $0xd8] sm:$0xff]
  %v45 = vld [vmem:[%s0 + $0xe0] sm:$0xff]
  %v46 = vld [vmem:[%s0 + $0xe8] sm:$0xff]
  %v47 = vld [vmem:[%s0 + $0xf0] sm:$0xff]
  %v48 = vld [vmem:[%s0 + $0xf8] sm:$0xff]
  %v49 = vadd.f32 %v17, %v19
  %v50 = vadd.f32 %v49, %v21
  %v51 = vadd.f32 %v50, %v23
  %v52 = vadd.f32 %v51, %v25
  %v53 = vadd.f32 %v52, %v27
  %v54 = vadd.f32 %v53, %v29
  %v55 = vadd.f32 %v54, %v31
  %v56 = vrot.slane %v55, 4
  %v57 = vadd.f32 %v55, %v56
  %v58 = vrot.slane %v57, 2
  %v59 = vadd.f32 %v57, %v58
  %v60 = vrot.slane %v59, 1
  %v61 = vadd.f32 %v59, %v60
  %v62 = vadd.f32 %v18, %v20
  %v63 = vadd.f32 %v62, %v22
  %v64 = vadd.f32 %v63, %v24
  %v65 = vadd.f32 %v64, %v26
  %v66 = vadd.f32 %v65, %v28
  %v67 = vadd.f32 %v66, %v30
  %v68 = vadd.f32 %v67, %v32
  %v69 = vrot.slane %v68, 4
  %v70 = vadd.f32 %v68, %v69
  %v71 = vrot.slane %v70, 2
  %v72 = vadd.f32 %v70, %v71
  %v73 = vrot.slane %v72, 1
  %v74 = vadd.f32 %v72, %v73
  %v75 = vadd.f32 %v33, %v35
  %v76 = vadd.f32 %v75, %v37
  %v77 = vadd.f32 %v76, %v39
  %v78 = vadd.f32 %v77, %v41
  %v79 = vadd.f32 %v78, %v43
  %v80 = vadd.f32 %v79, %v45
  %v81 = vadd.f32 %v80, %v47
  %v82 = vrot.slane %v81, 4
  %v83 = vadd.f32 %v81, %v82
  %v84 = vrot.slane %v83, 2
  %v85 = vadd.f32 %v83, %v84
  %v86 = vrot.slane %v85, 1
  %v87 = vadd.f32 %v85, %v86
  %v88 = vadd.f32 %v34, %v36
  %v89 = vadd.f32 %v88, %v38
  %v90 = vadd.f32 %v89, %v40
  %v91 = vadd.f32 %v90, %v42
  %v92 = vadd.f32 %v91, %v44
  %v93 = vadd.f32 %v92, %v46
  %v94 = vadd.f32 %v93, %v48
  %v95 = vrot.slane %v94, 4
  %v96 = vadd.f32 %v94, %v95
  %v97 = vrot.slane %v96, 2
  %v98 = vadd.f32 %v96, %v97
  %v99 = vrot.slane %v98, 1
  %v100 = vadd.f32 %v98, %v99
  %v101 = vrcp.pop 64.0
  %v102 = vmul.f32 %v61, %v101
  %v103 = vmul.f32 %v74, %v101
  %v104 = vmul.f32 %v87, %v101
  %v105 = vmul.f32 %v100, %v101
  %v106 = vld [vmem:[%s2] sm:$0xff]
  %v107 = vld [vmem:[%s2 + $0x8] sm:$0xff]
  %v108 = vld [vmem:[%s2 + $0x10] sm:$0xff]
  %v109 = vld [vmem:[%s2 + $0x18] sm:$0xff]
  %v110 = vld [vmem:[%s2 + $0x20] sm:$0xff]
  %v111 = vld [vmem:[%s2 + $0x28] sm:$0xff]
  %v112 = vld [vmem:[%s2 + $0x30] sm:$0xff]
  %v113 = vld [vmem:[%s2 + $0x38] sm:$0xff]
  %v114 = vld [vmem:[%s2 + $0x40] sm:$0xff]
  %v115 = vld [vmem:[%s2 + $0x48] sm:$0xff]
  %v116 = vld [vmem:[%s2 + $0x50] sm:$0xff]
  %v117 = vld [vmem:[%s2 + $0x58] sm:$0xff]
  %v118 = vld [vmem:[%s2 + $0x60] sm:$0xff]
  %v119 = vld [vmem:[%s2 + $0x68] sm:$0xff]
  %v120 = vld [vmem:[%s2 + $0x70] sm:$0xff]
  %v121 = vld [vmem:[%s2 + $0x78] sm:$0xff]
  %v122 = vld [vmem:[%s2 + $0x80] sm:$0xff]
  %v123 = vld [vmem:[%s2 + $0x88] sm:$0xff]
  %v124 = vld [vmem:[%s2 + $0x90] sm:$0xff]
  %v125 = vld [vmem:[%s2 + $0x98] sm:$0xff]
  %v126 = vld [vmem:[%s2 + $0xa0] sm:$0xff]
  %v127 = vld [vmem:[%s2 + $0xa8] sm:$0xff]
  %v128 = vld [vmem:[%s2 + $0xb0] sm:$0xff]
  %v129 = vld [vmem:[%s2 + $0xb8] sm:$0xff]
  %v130 = vld [vmem:[%s2 + $0xc0] sm:$0xff]
  %v131 = vld [vmem:[%s2 + $0xc8] sm:$0xff]
  %v132 = vld [vmem:[%s2 + $0xd0] sm:$0xff]
  %v133 = vld [vmem:[%s2 + $0xd8] sm:$0xff]
  %v134 = vld [vmem:[%s2 + $0xe0] sm:$0xff]
  %v135 = vld [vmem:[%s2 + $0xe8] sm:$0xff]
  %v136 = vld [vmem:[%s2 + $0xf0] sm:$0xff]
  %v137 = vld [vmem:[%s2 + $0xf8] sm:$0xff]
  %vm142 = vcmask 1041409
  %v143 = vsel %vm142, %v104, %v102
  %v144 = vsel %vm142, %v105, %v103
  %147 = vmatprep.subr.mxu0 0.0
  %148 = vmatpush1.msra.mxu0 %v121
  %149 = vmatprep.subr.mxu0 0.0
  %150 = vmatpush1.msra.mxu0 %v120
  %151 = vmatprep.subr.mxu0 0.0
  %152 = vmatpush1.msra.mxu0 %v119
  %153 = vmatprep.subr.mxu0 0.0
  %154 = vmatpush1.msra.mxu0 %v118
  %155 = vmatprep.subr.mxu0 0.0
  %156 = vmatpush1.msra.mxu0 %v117
  %157 = vmatprep.subr.mxu0 0.0
  %158 = vmatpush1.msra.mxu0 %v116
  %159 = vmatprep.subr.mxu0 0.0
  %160 = vmatpush1.msra.mxu0 %v115
  %161 = vmatprep.subr.mxu0 0.0
  %162 = vmatpush1.msra.mxu0 %v114
  %163 = vmatprep.subr.mxu0 0.0
  %164 = vmatpush1.msra.mxu0 %v113
  %165 = vmatprep.subr.mxu0 0.0
  %166 = vmatpush1.msra.mxu0 %v112
  %167 = vmatprep.subr.mxu0 0.0
  %168 = vmatpush1.msra.mxu0 %v111
  %169 = vmatprep.subr.mxu0 0.0
  %170 = vmatpush1.msra.mxu0 %v110
  %171 = vmatprep.subr.mxu0 0.0
  %172 = vmatpush1.msra.mxu0 %v109
  %173 = vmatprep.subr.mxu0 0.0
  %174 = vmatpush1.msra.mxu0 %v108
  %175 = vmatprep.subr.mxu0 0.0
  %176 = vmatpush1.msra.mxu0 %v107
  %177 = vmatprep.subr.mxu0 0.0
  %178 = vmatpush1.msra.mxu0 %v106
  %179 = vmatprep.subr.mxu0 0.0
  %180 = vmatpush2.msra.mxu0 %v137
  %181 = vmatprep.subr.mxu0 0.0
  %182 = vmatpush2.msra.mxu0 %v136
  %183 = vmatprep.subr.mxu0 0.0
  %184 = vmatpush2.msra.mxu0 %v135
  %185 = vmatprep.subr.mxu0 0.0
  %186 = vmatpush2.msra.mxu0 %v134
  %187 = vmatprep.subr.mxu0 0.0
  %188 = vmatpush2.msra.mxu0 %v133
  %189 = vmatprep.subr.mxu0 0.0
  %190 = vmatpush2.msra.mxu0 %v132
  %191 = vmatprep.subr.mxu0 0.0
  %192 = vmatpush2.msra.mxu0 %v131
  %193 = vmatprep.subr.mxu0 0.0
  %194 = vmatpush2.msra.mxu0 %v130
  %195 = vmatprep.subr.mxu0 0.0
  %196 = vmatpush2.msra.mxu0 %v129
  %197 = vmatprep.subr.mxu0 0.0
  %198 = vmatpush2.msra.mxu0 %v128
  %199 = vmatprep.subr.mxu0 0.0
  %200 = vmatpush2.msra.mxu0 %v127
  %201 = vmatprep.subr.mxu0 0.0
  %202 = vmatpush2.msra.mxu0 %v126
  %203 = vmatprep.subr.mxu0 0.0
  %204 = vmatpush2.msra.mxu0 %v125
  %205 = vmatprep.subr.mxu0 0.0
  %206 = vmatpush2.msra.mxu0 %v124
  %207 = vmatprep.subr.mxu0 0.0
  %208 = vmatpush2.msra.mxu0 %v123
  %209 = vmatprep.subr.mxu0 0.0
  %210 = vmatpush2.msra.mxu0 %v122
  %211 = vmatprep.mubr.f32.mxu0 %v144
  %212 = vmatmul.mubr.f32.gmra.mxu0 %v143
  %v213 = vpop.f32.mrf.mxu0
  %v214 = vadd.f32 0.0, %v213
  %v215 = vpop.f32.mrf.mxu0
  %216 = vdwg.mxu0
  %v217 = vmax.f32 %v214, 0.0
  %v218 = vld [vmem:[%s3] sm:$0xff]
  %v219 = vld [vmem:[%s3 + $0x8] sm:$0xff]
  %v220 = vld [vmem:[%s3 + $0x10] sm:$0xff]
  %v221 = vld [vmem:[%s3 + $0x18] sm:$0xff]
  %vm222 = vcmask 130048
  %v224 = vsel %vm222, %v217, 0
  %226 = vmatprep.subr.mxu0 0.0
  %227 = vmatpush1.msra.mxu0 0.0
  %228 = vmatprep.subr.mxu0 0.0
  %229 = vmatpush1.msra.mxu0 0.0
  %230 = vmatprep.subr.mxu0 0.0
  %231 = vmatpush1.msra.mxu0 0.0
  %232 = vmatprep.subr.mxu0 0.0
  %233 = vmatpush1.msra.mxu0 0.0
  %234 = vmatprep.subr.mxu0 0.0
  %235 = vmatpush1.msra.mxu0 0.0
  %236 = vmatprep.subr.mxu0 0.0
  %237 = vmatpush1.msra.mxu0 0.0
  %238 = vmatprep.subr.mxu0 0.0
  %239 = vmatpush1.msra.mxu0 0.0
  %240 = vmatprep.subr.mxu0 0.0
  %241 = vmatpush1.msra.mxu0 0.0
  %242 = vmatprep.subr.mxu0 0.0
  %243 = vmatpush1.msra.mxu0 0.0
  %244 = vmatprep.subr.mxu0 0.0
  %245 = vmatpush1.msra.mxu0 0.0
  %246 = vmatprep.subr.mxu0 0.0
  %247 = vmatpush1.msra.mxu0 0.0
  %248 = vmatprep.subr.mxu0 0.0
  %249 = vmatpush1.msra.mxu0 0.0
  %250 = vmatprep.subr.mxu0 0.0
  %251 = vmatpush1.msra.mxu0 0.0
  %252 = vmatprep.subr.mxu0 0.0
  %253 = vmatpush1.msra.mxu0 0.0
  %254 = vmatprep.subr.mxu0 %v221
  %255 = vmatpush1.msra.mxu0 %v220
  %256 = vmatprep.subr.mxu0 %v219
  %257 = vmatpush1.msra.mxu0 %v218
  %258 = vmatprep.subr.mxu0 0.0
  %259 = vmatpush2.msra.mxu0 0.0
  %260 = vmatprep.subr.mxu0 0.0
  %261 = vmatpush2.msra.mxu0 0.0
  %262 = vmatprep.subr.mxu0 0.0
  %263 = vmatpush2.msra.mxu0 0.0
  %264 = vmatprep.subr.mxu0 0.0
  %265 = vmatpush2.msra.mxu0 0.0
  %266 = vmatprep.subr.mxu0 0.0
  %267 = vmatpush2.msra.mxu0 0.0
  %268 = vmatprep.subr.mxu0 0.0
  %269 = vmatpush2.msra.mxu0 0.0
  %270 = vmatprep.subr.mxu0 0.0
  %271 = vmatpush2.msra.mxu0 0.0
  %272 = vmatprep.subr.mxu0 0.0
  %273 = vmatpush2.msra.mxu0 0.0
  %274 = vmatprep.subr.mxu0 0.0
  %275 = vmatpush2.msra.mxu0 0.0
  %276 = vmatprep.subr.mxu0 0.0
  %277 = vmatpush2.msra.mxu0 0.0
  %278 = vmatprep.subr.mxu0 0.0
  %279 = vmatpush2.msra.mxu0 0.0
  %280 = vmatprep.subr.mxu0 0.0
  %281 = vmatpush2.msra.mxu0 0.0
  %282 = vmatprep.subr.mxu0 0.0
  %283 = vmatpush2.msra.mxu0 0.0
  %284 = vmatprep.subr.mxu0 0.0
  %285 = vmatpush2.msra.mxu0 0.0
  %286 = vmatprep.subr.mxu0 0.0
  %287 = vmatpush2.msra.mxu0 0.0
  %288 = vmatprep.subr.mxu0 0.0
  %289 = vmatpush2.msra.mxu0 0.0
  %290 = vmatprep.mubr.f32.mxu0 0.0
  %291 = vmatmul.mubr.f32.gmra.mxu0 %v224
  %v292 = vpop.f32.mrf.mxu0
  %v293 = vadd.f32 0.0, %v292
  %v294 = vpop.f32.mrf.mxu0
  %v295 = vadd.f32 0.0, %v294
  %296 = vdwg.mxu0
  %v297 = vsub.f32 0.0, %v293
  %v298 = vsub.f32 0.0, %v295
  %v299 = vmul.f32 %v297, 1.442695
  %v300 = vpow.pop %v299
  %v301 = vmul.f32 %v298, 1.442695
  %v302 = vpow.pop %v301
  %v303 = vadd.f32 %v300, 1.0
  %v304 = vadd.f32 %v302, 1.0
  %v305 = vrcp.pop %v303
  %v306 = vmul.f32 1.0, %v305
  %v307 = vrcp.pop %v304
  %v308 = vmul.f32 1.0, %v307
  %v311 = vcombine.low %v306, %v308
  %v313 = vunpack.c.l.s4 1966171168
  %v314 = vunpack.c.0.s8 %v313
  %v315 = vlaneseq
  %v316 = vshrl.u32 %v315, 7
  %v317 = vsub.s32 %v314, %v316
  %v318 = vrot.slane %v311, %v317
  %v319 = vcombine.high %v318, %v318
  %v321 = vunpack.c.l.s4 1966171168
  %v322 = vunpack.c.0.s8 %v321
  %v323 = vlaneseq
  %v324 = vshrl.u32 %v323, 7
  %v325 = vsub.s32 %v322, %v324
  %v326 = vrot.slane %v318, %v325
  %v328 = vunpack.c.l.s4 1966171168
  %v329 = vunpack.c.0.s8 %v328
  %v330 = vlaneseq
  %v331 = vshrl.u32 %v330, 7
  %v332 = vsub.s32 %v329, %v331
  %v333 = vrot.slane %v319, %v332
  %v334 = vlaneseq
  %v335 = vshrl.u32 %v334, 7
  %v336 = vsub.s32 0, %v335
  %v337 = vrot.slane %v326, %v336
  %v338 = vlaneseq
  %v339 = vshrl.u32 %v338, 7
  %v340 = vsub.s32 1, %v339
  %v341 = vrot.slane %v326, %v340
  %v342 = vlaneseq
  %v343 = vshrl.u32 %v342, 7
  %v344 = vsub.s32 0, %v343
  %v345 = vrot.slane %v333, %v344
  %v346 = vlaneseq
  %v347 = vshrl.u32 %v346, 7
  %v348 = vsub.s32 1, %v347
  %v349 = vrot.slane %v333, %v348
  %v354 = vmul.f32 %v17, %v337
  %v355 = vmul.f32 %v18, %v341
  %v356 = vmul.f32 %v19, %v337
  %v357 = vmul.f32 %v20, %v341
  %v358 = vmul.f32 %v21, %v337
  %v359 = vmul.f32 %v22, %v341
  %v360 = vmul.f32 %v23, %v337
  %v361 = vmul.f32 %v24, %v341
  %v362 = vmul.f32 %v25, %v337
  %v363 = vmul.f32 %v26, %v341
  %v364 = vmul.f32 %v27, %v337
  %v365 = vmul.f32 %v28, %v341
  %v366 = vmul.f32 %v29, %v337
  %v367 = vmul.f32 %v30, %v341
  %v368 = vmul.f32 %v31, %v337
  %v369 = vmul.f32 %v32, %v341
  %v370 = vmul.f32 %v33, %v345
  %v371 = vmul.f32 %v34, %v349
  %v372 = vmul.f32 %v35, %v345
  %v373 = vmul.f32 %v36, %v349
  %v374 = vmul.f32 %v37, %v345
  %v375 = vmul.f32 %v38, %v349
  %v376 = vmul.f32 %v39, %v345
  %v377 = vmul.f32 %v40, %v349
  %v378 = vmul.f32 %v41, %v345
  %v379 = vmul.f32 %v42, %v349
  %v380 = vmul.f32 %v43, %v345
  %v381 = vmul.f32 %v44, %v349
  %v382 = vmul.f32 %v45, %v345
  %v383 = vmul.f32 %v46, %v349
  %v384 = vmul.f32 %v47, %v345
  %v385 = vmul.f32 %v48, %v349
  %v386 = vld [vmem:[%s1] sm:$0xff]
  %v387 = vld [vmem:[%s1 + $0x8] sm:$0xff]
  %v388 = vld [vmem:[%s1 + $0x10] sm:$0xff]
  %v389 = vld [vmem:[%s1 + $0x18] sm:$0xff]
  %v390 = vld [vmem:[%s1 + $0x20] sm:$0xff]
  %v391 = vld [vmem:[%s1 + $0x28] sm:$0xff]
  %v392 = vld [vmem:[%s1 + $0x30] sm:$0xff]
  %v393 = vld [vmem:[%s1 + $0x38] sm:$0xff]
  %v394 = vld [vmem:[%s1 + $0x40] sm:$0xff]
  %v395 = vld [vmem:[%s1 + $0x48] sm:$0xff]
  %v396 = vld [vmem:[%s1 + $0x50] sm:$0xff]
  %v397 = vld [vmem:[%s1 + $0x58] sm:$0xff]
  %v398 = vld [vmem:[%s1 + $0x60] sm:$0xff]
  %v399 = vld [vmem:[%s1 + $0x68] sm:$0xff]
  %v400 = vld [vmem:[%s1 + $0x70] sm:$0xff]
  %v401 = vld [vmem:[%s1 + $0x78] sm:$0xff]
  %v402 = vld [vmem:[%s1 + $0x80] sm:$0xff]
  %v403 = vld [vmem:[%s1 + $0x88] sm:$0xff]
  %v404 = vld [vmem:[%s1 + $0x90] sm:$0xff]
  %v405 = vld [vmem:[%s1 + $0x98] sm:$0xff]
  %v406 = vld [vmem:[%s1 + $0xa0] sm:$0xff]
  %v407 = vld [vmem:[%s1 + $0xa8] sm:$0xff]
  %v408 = vld [vmem:[%s1 + $0xb0] sm:$0xff]
  %v409 = vld [vmem:[%s1 + $0xb8] sm:$0xff]
  %v410 = vld [vmem:[%s1 + $0xc0] sm:$0xff]
  %v411 = vld [vmem:[%s1 + $0xc8] sm:$0xff]
  %v412 = vld [vmem:[%s1 + $0xd0] sm:$0xff]
  %v413 = vld [vmem:[%s1 + $0xd8] sm:$0xff]
  %v414 = vld [vmem:[%s1 + $0xe0] sm:$0xff]
  %v415 = vld [vmem:[%s1 + $0xe8] sm:$0xff]
  %v416 = vld [vmem:[%s1 + $0xf0] sm:$0xff]
  %v417 = vld [vmem:[%s1 + $0xf8] sm:$0xff]
  %v418 = vadd.f32 %v354, %v386
  %v419 = vadd.f32 %v355, %v387
  %v420 = vadd.f32 %v356, %v388
  %v421 = vadd.f32 %v357, %v389
  %v422 = vadd.f32 %v358, %v390
  %v423 = vadd.f32 %v359, %v391
  %v424 = vadd.f32 %v360, %v392
  %v425 = vadd.f32 %v361, %v393
  %v426 = vadd.f32 %v362, %v394
  %v427 = vadd.f32 %v363, %v395
  %v428 = vadd.f32 %v364, %v396
  %v429 = vadd.f32 %v365, %v397
  %v430 = vadd.f32 %v366, %v398
  %v431 = vadd.f32 %v367, %v399
  %v432 = vadd.f32 %v368, %v400
  %v433 = vadd.f32 %v369, %v401
  %v434 = vadd.f32 %v370, %v402
  %v435 = vadd.f32 %v371, %v403
  %v436 = vadd.f32 %v372, %v404
  %v437 = vadd.f32 %v373, %v405
  %v438 = vadd.f32 %v374, %v406
  %v439 = vadd.f32 %v375, %v407
  %v440 = vadd.f32 %v376, %v408
  %v441 = vadd.f32 %v377, %v409
  %v442 = vadd.f32 %v378, %v410
  %v443 = vadd.f32 %v379, %v411
  %v444 = vadd.f32 %v380, %v412
  %v445 = vadd.f32 %v381, %v413
  %v446 = vadd.f32 %v382, %v414
  %v447 = vadd.f32 %v383, %v415
  %v448 = vadd.f32 %v384, %v416
  %v449 = vadd.f32 %v385, %v417
  %v450 = vmax.f32 %v418, 0.0
  %v451 = vmax.f32 %v419, 0.0
  %v452 = vmax.f32 %v420, 0.0
  %v453 = vmax.f32 %v421, 0.0
  %v454 = vmax.f32 %v422, 0.0
  %v455 = vmax.f32 %v423, 0.0
  %v456 = vmax.f32 %v424, 0.0
  %v457 = vmax.f32 %v425, 0.0
  %v458 = vmax.f32 %v426, 0.0
  %v459 = vmax.f32 %v427, 0.0
  %v460 = vmax.f32 %v428, 0.0
  %v461 = vmax.f32 %v429, 0.0
  %v462 = vmax.f32 %v430, 0.0
  %v463 = vmax.f32 %v431, 0.0
  %v464 = vmax.f32 %v432, 0.0
  %v465 = vmax.f32 %v433, 0.0
  %v466 = vmax.f32 %v434, 0.0
  %v467 = vmax.f32 %v435, 0.0
  %v468 = vmax.f32 %v436, 0.0
  %v469 = vmax.f32 %v437, 0.0
  %v470 = vmax.f32 %v438, 0.0
  %v471 = vmax.f32 %v439, 0.0
  %v472 = vmax.f32 %v440, 0.0
  %v473 = vmax.f32 %v441, 0.0
  %v474 = vmax.f32 %v442, 0.0
  %v475 = vmax.f32 %v443, 0.0
  %v476 = vmax.f32 %v444, 0.0
  %v477 = vmax.f32 %v445, 0.0
  %v478 = vmax.f32 %v446, 0.0
  %v479 = vmax.f32 %v447, 0.0
  %v480 = vmax.f32 %v448, 0.0
  %v481 = vmax.f32 %v449, 0.0
  %482 = vst [vmem:[%s4] sm:$0xff] %v450
  %483 = vst [vmem:[%s4 + $0x8] sm:$0xff] %v451
  %484 = vst [vmem:[%s4 + $0x10] sm:$0xff] %v452
  %485 = vst [vmem:[%s4 + $0x18] sm:$0xff] %v453
  %486 = vst [vmem:[%s4 + $0x20] sm:$0xff] %v454
  %487 = vst [vmem:[%s4 + $0x28] sm:$0xff] %v455
  %488 = vst [vmem:[%s4 + $0x30] sm:$0xff] %v456
  %489 = vst [vmem:[%s4 + $0x38] sm:$0xff] %v457
  %490 = vst [vmem:[%s4 + $0x40] sm:$0xff] %v458
  %491 = vst [vmem:[%s4 + $0x48] sm:$0xff] %v459
  %492 = vst [vmem:[%s4 + $0x50] sm:$0xff] %v460
  %493 = vst [vmem:[%s4 + $0x58] sm:$0xff] %v461
  %494 = vst [vmem:[%s4 + $0x60] sm:$0xff] %v462
  %495 = vst [vmem:[%s4 + $0x68] sm:$0xff] %v463
  %496 = vst [vmem:[%s4 + $0x70] sm:$0xff] %v464
  %497 = vst [vmem:[%s4 + $0x78] sm:$0xff] %v465
  %498 = vst [vmem:[%s4 + $0x80] sm:$0xff] %v466
  %499 = vst [vmem:[%s4 + $0x88] sm:$0xff] %v467
  %500 = vst [vmem:[%s4 + $0x90] sm:$0xff] %v468
  %501 = vst [vmem:[%s4 + $0x98] sm:$0xff] %v469
  %502 = vst [vmem:[%s4 + $0xa0] sm:$0xff] %v470
  %503 = vst [vmem:[%s4 + $0xa8] sm:$0xff] %v471
  %504 = vst [vmem:[%s4 + $0xb0] sm:$0xff] %v472
  %505 = vst [vmem:[%s4 + $0xb8] sm:$0xff] %v473
  %506 = vst [vmem:[%s4 + $0xc0] sm:$0xff] %v474
  %507 = vst [vmem:[%s4 + $0xc8] sm:$0xff] %v475
  %508 = vst [vmem:[%s4 + $0xd0] sm:$0xff] %v476
  %509 = vst [vmem:[%s4 + $0xd8] sm:$0xff] %v477
  %510 = vst [vmem:[%s4 + $0xe0] sm:$0xff] %v478
  %511 = vst [vmem:[%s4 + $0xe8] sm:$0xff] %v479
  %512 = vst [vmem:[%s4 + $0xf0] sm:$0xff] %v480
  %513 = vst [vmem:[%s4 + $0xf8] sm:$0xff] %v481
  // Predicated region
  $region18: #{closed_call.21} parent=0 // pred_check
    _
  $region19: #{closed_call.21} parent=0 // pred_check_branch
    %515 = sbr.rel (0) target = $region21
  $region20: #{closed_call.21} parent=0 // pred_region
    _
  $region21: #{closed_call.21} parent=0 // pred_fallthru
    _
  // Predicated region
  $region22: #{closed_call.21} parent=0 // pred_check
    _
  $region23: #{closed_call.21} parent=0 // pred_check_branch
    %517 = sbr.rel (0) target = $region25
  $region24: #{closed_call.21} parent=0 // pred_region
    _
  $region25: #{closed_call.21} parent=0 // pred_fallthru
    _

// kernel: chessnet_forward.10
$region0: #{chessnet_forward.10}
  #allocation0 [shape = 'u32[]', space=smem, size = 0x4, offset = 0x4, fixed_abs, tag = 'smem constant byte address 0x4 - core index']
  #allocation1 [shape = 'u32[144,128]{1,0:T(1,128)}', space=vmem, size = 0x12000, scoped, tag = 'internal scratch']
  %s0 = inlined_call_operand.vmem [shape: f32[128,2304], index: 0, kind: input, shape index: {}]
  %s1 = inlined_call_operand.vmem [shape: f32[2304,256], index: 1, kind: input, shape index: {}]
  %s2 = inlined_call_operand.vmem [shape: f32[1,256], index: 2, kind: input, shape index: {}]
  %s3 = inlined_call_operand.vmem [shape: f32[1,256], index: 3, kind: input, shape index: {}]
  %s4 = inlined_call_operand.vmem [shape: f32[128,256], index: 4, kind: input, shape index: {}]
  %s5 = inlined_call_operand.vmem [shape: f32[128,256], index: 5, kind: output, shape index: {}]
  %s6 = sld [smem:[#allocation0]]
  $region30: #{chessnet_forward.10} parent=0
    _
  %s8 = ssub.s32 1, %s6
  %s9 = scalar_select 0, %s8, %s6
  // Predicated region
  $region2: #{chessnet_forward.10} parent=0 // pred_check
    _
  $region3: #{chessnet_forward.10} parent=0 // pred_check_branch
    %11 = sbr.rel (0) target = $region5
  $region4: #{chessnet_forward.10} parent=0 // pred_region
    _
  $region5: #{chessnet_forward.10} parent=0 // pred_fallthru
    _
  // Predicated region
  $region6: #{chessnet_forward.10} parent=0 // pred_check
    _
  $region7: #{chessnet_forward.10} parent=0 // pred_check_branch
    %13 = sbr.rel (0) target = $region9
  $region8: #{chessnet_forward.10} parent=0 // pred_region
    _
  $region9: #{chessnet_forward.10} parent=0 // pred_fallthru
    _
  // Predicated region
  $region10: #{chessnet_forward.10} parent=0 // pred_check
    _
  $region11: #{chessnet_forward.10} parent=0 // pred_check_branch
    %15 = sbr.rel (0) target = $region13
  $region12: #{chessnet_forward.10} parent=0 // pred_region
    _
  $region13: #{chessnet_forward.10} parent=0 // pred_fallthru
    _
  // Predicated region
  $region14: #{chessnet_forward.10} parent=0 // pred_check
    _
  $region15: #{chessnet_forward.10} parent=0 // pred_check_branch
    %17 = sbr.rel (0) target = $region17
  $region16: #{chessnet_forward.10} parent=0 // pred_region
    _
  $region17: #{chessnet_forward.10} parent=0 // pred_fallthru
    _
  // Predicated region
  $region18: #{chessnet_forward.10} parent=0 // pred_check
    _
  $region19: #{chessnet_forward.10} parent=0 // pred_check_branch
    %19 = sbr.rel (0) target = $region21
  $region20: #{chessnet_forward.10} parent=0 // pred_region
    _
  $region21: #{chessnet_forward.10} parent=0 // pred_fallthru
    _
  %v20 = vld [vmem:[%s0] sm:$0xff]
  %v21 = vld [vmem:[%s0 + $0x8] sm:$0xff]
  %v22 = vld [vmem:[%s0 + $0x10] sm:$0xff]
  %v23 = vld [vmem:[%s0 + $0x18] sm:$0xff]
  %v24 = vld [vmem:[%s0 + $0x20] sm:$0xff]
  %v25 = vld [vmem:[%s0 + $0x28] sm:$0xff]
  %v26 = vld [vmem:[%s0 + $0x30] sm:$0xff]
  %v27 = vld [vmem:[%s0 + $0x38] sm:$0xff]
  %v28 = vld [vmem:[%s0 + $0x40] sm:$0xff]
  %v29 = vld [vmem:[%s0 + $0x48] sm:$0xff]
  %v30 = vld [vmem:[%s0 + $0x50] sm:$0xff]
  %v31 = vld [vmem:[%s0 + $0x58] sm:$0xff]
  %v32 = vld [vmem:[%s0 + $0x60] sm:$0xff]
  %v33 = vld [vmem:[%s0 + $0x68] sm:$0xff]
  %v34 = vld [vmem:[%s0 + $0x70] sm:$0xff]
  %v35 = vld [vmem:[%s0 + $0x78] sm:$0xff]
  %v36 = vld [vmem:[%s0 + $0x80] sm:$0xff]
  %v37 = vld [vmem:[%s0 + $0x88] sm:$0xff]
  %v38 = vld [vmem:[%s0 + $0x90] sm:$0xff]
  %v39 = vld [vmem:[%s0 + $0x98] sm:$0xff]
  %v40 = vld [vmem:[%s0 + $0xa0] sm:$0xff]
  %v41 = vld [vmem:[%s0 + $0xa8] sm:$0xff]
  %v42 = vld [vmem:[%s0 + $0xb0] sm:$0xff]
  %v43 = vld [vmem:[%s0 + $0xb8] sm:$0xff]
  %v44 = vld [vmem:[%s0 + $0xc0] sm:$0xff]
  %v45 = vld [vmem:[%s0 + $0xc8] sm:$0xff]
  %v46 = vld [vmem:[%s0 + $0xd0] sm:$0xff]
  %v47 = vld [vmem:[%s0 + $0xd8] sm:$0xff]
  %v48 = vld [vmem:[%s0 + $0xe0] sm:$0xff]
  %v49 = vld [vmem:[%s0 + $0xe8] sm:$0xff]
  %v50 = vld [vmem:[%s0 + $0xf0] sm:$0xff]
  %v51 = vld [vmem:[%s0 + $0xf8] sm:$0xff]
  %v52 = vld [vmem:[%s0 + $0x100] sm:$0xff]
  %v53 = vld [vmem:[%s0 + $0x108] sm:$0xff]
  %v54 = vld [vmem:[%s0 + $0x110] sm:$0xff]
  %v55 = vld [vmem:[%s0 + $0x118] sm:$0xff]
  %v56 = vld [vmem:[%s0 + $0x120] sm:$0xff]
  %v57 = vld [vmem:[%s0 + $0x128] sm:$0xff]
  %v58 = vld [vmem:[%s0 + $0x130] sm:$0xff]
  %v59 = vld [vmem:[%s0 + $0x138] sm:$0xff]
  %v60 = vld [vmem:[%s0 + $0x140] sm:$0xff]
  %v61 = vld [vmem:[%s0 + $0x148] sm:$0xff]
  %v62 = vld [vmem:[%s0 + $0x150] sm:$0xff]
  %v63 = vld [vmem:[%s0 + $0x158] sm:$0xff]
  %v64 = vld [vmem:[%s0 + $0x160] sm:$0xff]
  %v65 = vld [vmem:[%s0 + $0x168] sm:$0xff]
  %v66 = vld [vmem:[%s0 + $0x170] sm:$0xff]
  %v67 = vld [vmem:[%s0 + $0x178] sm:$0xff]
  %v68 = vld [vmem:[%s0 + $0x180] sm:$0xff]
  %v69 = vld [vmem:[%s0 + $0x188] sm:$0xff]
  %v70 = vld [vmem:[%s0 + $0x190] sm:$0xff]
  %v71 = vld [vmem:[%s0 + $0x198] sm:$0xff]
  %v72 = vld [vmem:[%s0 + $0x1a0] sm:$0xff]
  %v73 = vld [vmem:[%s0 + $0x1a8] sm:$0xff]
  %v74 = vld [vmem:[%s0 + $0x1b0] sm:$0xff]
  %v75 = vld [vmem:[%s0 + $0x1b8] sm:$0xff]
  %v76 = vld [vmem:[%s0 + $0x1c0] sm:$0xff]
  %v77 = vld [vmem:[%s0 + $0x1c8] sm:$0xff]
  %v78 = vld [vmem:[%s0 + $0x1d0] sm:$0xff]
  %v79 = vld [vmem:[%s0 + $0x1d8] sm:$0xff]
  %v80 = vld [vmem:[%s0 + $0x1e0] sm:$0xff]
  %v81 = vld [vmem:[%s0 + $0x1e8] sm:$0xff]
  %v82 = vld [vmem:[%s0 + $0x1f0] sm:$0xff]
  %v83 = vld [vmem:[%s0 + $0x1f8] sm:$0xff]
  %v84 = vld [vmem:[%s0 + $0x200] sm:$0xff]
  %v85 = vld [vmem:[%s0 + $0x208] sm:$0xff]
  %v86 = vld [vmem:[%s0 + $0x210] sm:$0xff]
  %v87 = vld [vmem:[%s0 + $0x218] sm:$0xff]
  %v88 = vld [vmem:[%s0 + $0x220] sm:$0xff]
  %v89 = vld [vmem:[%s0 + $0x228] sm:$0xff]
  %v90 = vld [vmem:[%s0 + $0x230] sm:$0xff]
  %v91 = vld [vmem:[%s0 + $0x238] sm:$0xff]
  %v92 = vld [vmem:[%s0 + $0x240] sm:$0xff]
  %v93 = vld [vmem:[%s0 + $0x248] sm:$0xff]
  %v94 = vld [vmem:[%s0 + $0x250] sm:$0xff]
  %v95 = vld [vmem:[%s0 + $0x258] sm:$0xff]
  %v96 = vld [vmem:[%s0 + $0x260] sm:$0xff]
  %v97 = vld [vmem:[%s0 + $0x268] sm:$0xff]
  %v98 = vld [vmem:[%s0 + $0x270] sm:$0xff]
  %v99 = vld [vmem:[%s0 + $0x278] sm:$0xff]
  %v100 = vld [vmem:[%s0 + $0x280] sm:$0xff]
  %v101 = vld [vmem:[%s0 + $0x288] sm:$0xff]
  %v102 = vld [vmem:[%s0 + $0x290] sm:$0xff]
  %v103 = vld [vmem:[%s0 + $0x298] sm:$0xff]
  %v104 = vld [vmem:[%s0 + $0x2a0] sm:$0xff]
  %v105 = vld [vmem:[%s0 + $0x2a8] sm:$0xff]
  %v106 = vld [vmem:[%s0 + $0x2b0] sm:$0xff]
  %v107 = vld [vmem:[%s0 + $0x2b8] sm:$0xff]
  %v108 = vld [vmem:[%s0 + $0x2c0] sm:$0xff]
  %v109 = vld [vmem:[%s0 + $0x2c8] sm:$0xff]
  %v110 = vld [vmem:[%s0 + $0x2d0] sm:$0xff]
  %v111 = vld [vmem:[%s0 + $0x2d8] sm:$0xff]
  %v112 = vld [vmem:[%s0 + $0x2e0] sm:$0xff]
  %v113 = vld [vmem:[%s0 + $0x2e8] sm:$0xff]
  %v114 = vld [vmem:[%s0 + $0x2f0] sm:$0xff]
  %v115 = vld [vmem:[%s0 + $0x2f8] sm:$0xff]
  %v116 = vld [vmem:[%s0 + $0x300] sm:$0xff]
  %v117 = vld [vmem:[%s0 + $0x308] sm:$0xff]
  %v118 = vld [vmem:[%s0 + $0x310] sm:$0xff]
  %v119 = vld [vmem:[%s0 + $0x318] sm:$0xff]
  %v120 = vld [vmem:[%s0 + $0x320] sm:$0xff]
  %v121 = vld [vmem:[%s0 + $0x328] sm:$0xff]
  %v122 = vld [vmem:[%s0 + $0x330] sm:$0xff]
  %v123 = vld [vmem:[%s0 + $0x338] sm:$0xff]
  %v124 = vld [vmem:[%s0 + $0x340] sm:$0xff]
  %v125 = vld [vmem:[%s0 + $0x348] sm:$0xff]
  %v126 = vld [vmem:[%s0 + $0x350] sm:$0xff]
  %v127 = vld [vmem:[%s0 + $0x358] sm:$0xff]
  %v128 = vld [vmem:[%s0 + $0x360] sm:$0xff]
  %v129 = vld [vmem:[%s0 + $0x368] sm:$0xff]
  %v130 = vld [vmem:[%s0 + $0x370] sm:$0xff]
  %v131 = vld [vmem:[%s0 + $0x378] sm:$0xff]
  %v132 = vld [vmem:[%s0 + $0x380] sm:$0xff]
  %v133 = vld [vmem:[%s0 + $0x388] sm:$0xff]
  %v134 = vld [vmem:[%s0 + $0x390] sm:$0xff]
  %v135 = vld [vmem:[%s0 + $0x398] sm:$0xff]
  %v136 = vld [vmem:[%s0 + $0x3a0] sm:$0xff]
  %v137 = vld [vmem:[%s0 + $0x3a8] sm:$0xff]
  %v138 = vld [vmem:[%s0 + $0x3b0] sm:$0xff]
  %v139 = vld [vmem:[%s0 + $0x3b8] sm:$0xff]
  %v140 = vld [vmem:[%s0 + $0x3c0] sm:$0xff]
  %v141 = vld [vmem:[%s0 + $0x3c8] sm:$0xff]
  %v142 = vld [vmem:[%s0 + $0x3d0] sm:$0xff]
  %v143 = vld [vmem:[%s0 + $0x3d8] sm:$0xff]
  %v144 = vld [vmem:[%s0 + $0x3e0] sm:$0xff]
  %v145 = vld [vmem:[%s0 + $0x3e8] sm:$0xff]
  %v146 = vld [vmem:[%s0 + $0x3f0] sm:$0xff]
  %v147 = vld [vmem:[%s0 + $0x3f8] sm:$0xff]
  %v148 = vld [vmem:[%s0 + $0x400] sm:$0xff]
  %v149 = vld [vmem:[%s0 + $0x408] sm:$0xff]
  %v150 = vld [vmem:[%s0 + $0x410] sm:$0xff]
  %v151 = vld [vmem:[%s0 + $0x418] sm:$0xff]
  %v152 = vld [vmem:[%s0 + $0x420] sm:$0xff]
  %v153 = vld [vmem:[%s0 + $0x428] sm:$0xff]
  %v154 = vld [vmem:[%s0 + $0x430] sm:$0xff]
  %v155 = vld [vmem:[%s0 + $0x438] sm:$0xff]
  %v156 = vld [vmem:[%s0 + $0x440] sm:$0xff]
  %v157 = vld [vmem:[%s0 + $0x448] sm:$0xff]
  %v158 = vld [vmem:[%s0 + $0x450] sm:$0xff]
  %v159 = vld [vmem:[%s0 + $0x458] sm:$0xff]
  %v160 = vld [vmem:[%s0 + $0x460] sm:$0xff]
  %v161 = vld [vmem:[%s0 + $0x468] sm:$0xff]
  %v162 = vld [vmem:[%s0 + $0x470] sm:$0xff]
  %v163 = vld [vmem:[%s0 + $0x478] sm:$0xff]
  %v164 = vld [vmem:[%s0 + $0x480] sm:$0xff]
  %v165 = vld [vmem:[%s0 + $0x488] sm:$0xff]
  %v166 = vld [vmem:[%s0 + $0x490] sm:$0xff]
  %v167 = vld [vmem:[%s0 + $0x498] sm:$0xff]
  %v168 = vld [vmem:[%s0 + $0x4a0] sm:$0xff]
  %v169 = vld [vmem:[%s0 + $0x4a8] sm:$0xff]
  %v170 = vld [vmem:[%s0 + $0x4b0] sm:$0xff]
  %v171 = vld [vmem:[%s0 + $0x4b8] sm:$0xff]
  %v172 = vld [vmem:[%s0 + $0x4c0] sm:$0xff]
  %v173 = vld [vmem:[%s0 + $0x4c8] sm:$0xff]
  %v174 = vld [vmem:[%s0 + $0x4d0] sm:$0xff]
  %v175 = vld [vmem:[%s0 + $0x4d8] sm:$0xff]
  %v176 = vld [vmem:[%s0 + $0x4e0] sm:$0xff]
  %v177 = vld [vmem:[%s0 + $0x4e8] sm:$0xff]
  %v178 = vld [vmem:[%s0 + $0x4f0] sm:$0xff]
  %v179 = vld [vmem:[%s0 + $0x4f8] sm:$0xff]
  %v180 = vld [vmem:[%s0 + $0x500] sm:$0xff]
  %v181 = vld [vmem:[%s0 + $0x508] sm:$0xff]
  %v182 = vld [vmem:[%s0 + $0x510] sm:$0xff]
  %v183 = vld [vmem:[%s0 + $0x518] sm:$0xff]
  %v184 = vld [vmem:[%s0 + $0x520] sm:$0xff]
  %v185 = vld [vmem:[%s0 + $0x528] sm:$0xff]
  %v186 = vld [vmem:[%s0 + $0x530] sm:$0xff]
  %v187 = vld [vmem:[%s0 + $0x538] sm:$0xff]
  %v188 = vld [vmem:[%s0 + $0x540] sm:$0xff]
  %v189 = vld [vmem:[%s0 + $0x548] sm:$0xff]
  %v190 = vld [vmem:[%s0 + $0x550] sm:$0xff]
  %v191 = vld [vmem:[%s0 + $0x558] sm:$0xff]
  %v192 = vld [vmem:[%s0 + $0x560] sm:$0xff]
  %v193 = vld [vmem:[%s0 + $0x568] sm:$0xff]
  %v194 = vld [vmem:[%s0 + $0x570] sm:$0xff]
  %v195 = vld [vmem:[%s0 + $0x578] sm:$0xff]
  %v196 = vld [vmem:[%s0 + $0x580] sm:$0xff]
  %v197 = vld [vmem:[%s0 + $0x588] sm:$0xff]
  %v198 = vld [vmem:[%s0 + $0x590] sm:$0xff]
  %v199 = vld [vmem:[%s0 + $0x598] sm:$0xff]
  %v200 = vld [vmem:[%s0 + $0x5a0] sm:$0xff]
  %v201 = vld [vmem:[%s0 + $0x5a8] sm:$0xff]
  %v202 = vld [vmem:[%s0 + $0x5b0] sm:$0xff]
  %v203 = vld [vmem:[%s0 + $0x5b8] sm:$0xff]
  %v204 = vld [vmem:[%s0 + $0x5c0] sm:$0xff]
  %v205 = vld [vmem:[%s0 + $0x5c8] sm:$0xff]
  %v206 = vld [vmem:[%s0 + $0x5d0] sm:$0xff]
  %v207 = vld [vmem:[%s0 + $0x5d8] sm:$0xff]
  %v208 = vld [vmem:[%s0 + $0x5e0] sm:$0xff]
  %v209 = vld [vmem:[%s0 + $0x5e8] sm:$0xff]
  %v210 = vld [vmem:[%s0 + $0x5f0] sm:$0xff]
  %v211 = vld [vmem:[%s0 + $0x5f8] sm:$0xff]
  %v212 = vld [vmem:[%s0 + $0x600] sm:$0xff]
  %v213 = vld [vmem:[%s0 + $0x608] sm:$0xff]
  %v214 = vld [vmem:[%s0 + $0x610] sm:$0xff]
  %v215 = vld [vmem:[%s0 + $0x618] sm:$0xff]
  %v216 = vld [vmem:[%s0 + $0x620] sm:$0xff]
  %v217 = vld [vmem:[%s0 + $0x628] sm:$0xff]
  %v218 = vld [vmem:[%s0 + $0x630] sm:$0xff]
  %v219 = vld [vmem:[%s0 + $0x638] sm:$0xff]
  %v220 = vld [vmem:[%s0 + $0x640] sm:$0xff]
  %v221 = vld [vmem:[%s0 + $0x648] sm:$0xff]
  %v222 = vld [vmem:[%s0 + $0x650] sm:$0xff]
  %v223 = vld [vmem:[%s0 + $0x658] sm:$0xff]
  %v224 = vld [vmem:[%s0 + $0x660] sm:$0xff]
  %v225 = vld [vmem:[%s0 + $0x668] sm:$0xff]
  %v226 = vld [vmem:[%s0 + $0x670] sm:$0xff]
  %v227 = vld [vmem:[%s0 + $0x678] sm:$0xff]
  %v228 = vld [vmem:[%s0 + $0x680] sm:$0xff]
  %v229 = vld [vmem:[%s0 + $0x688] sm:$0xff]
  %v230 = vld [vmem:[%s0 + $0x690] sm:$0xff]
  %v231 = vld [vmem:[%s0 + $0x698] sm:$0xff]
  %v232 = vld [vmem:[%s0 + $0x6a0] sm:$0xff]
  %v233 = vld [vmem:[%s0 + $0x6a8] sm:$0xff]
  %v234 = vld [vmem:[%s0 + $0x6b0] sm:$0xff]
  %v235 = vld [vmem:[%s0 + $0x6b8] sm:$0xff]
  %v236 = vld [vmem:[%s0 + $0x6c0] sm:$0xff]
  %v237 = vld [vmem:[%s0 + $0x6c8] sm:$0xff]
  %v238 = vld [vmem:[%s0 + $0x6d0] sm:$0xff]
  %v239 = vld [vmem:[%s0 + $0x6d8] sm:$0xff]
  %v240 = vld [vmem:[%s0 + $0x6e0] sm:$0xff]
  %v241 = vld [vmem:[%s0 + $0x6e8] sm:$0xff]
  %v242 = vld [vmem:[%s0 + $0x6f0] sm:$0xff]
  %v243 = vld [vmem:[%s0 + $0x6f8] sm:$0xff]
  %v244 = vld [vmem:[%s0 + $0x700] sm:$0xff]
  %v245 = vld [vmem:[%s0 + $0x708] sm:$0xff]
  %v246 = vld [vmem:[%s0 + $0x710] sm:$0xff]
  %v247 = vld [vmem:[%s0 + $0x718] sm:$0xff]
  %v248 = vld [vmem:[%s0 + $0x720] sm:$0xff]
  %v249 = vld [vmem:[%s0 + $0x728] sm:$0xff]
  %v250 = vld [vmem:[%s0 + $0x730] sm:$0xff]
  %v251 = vld [vmem:[%s0 + $0x738] sm:$0xff]
  %v252 = vld [vmem:[%s0 + $0x740] sm:$0xff]
  %v253 = vld [vmem:[%s0 + $0x748] sm:$0xff]
  %v254 = vld [vmem:[%s0 + $0x750] sm:$0xff]
  %v255 = vld [vmem:[%s0 + $0x758] sm:$0xff]
  %v256 = vld [vmem:[%s0 + $0x760] sm:$0xff]
  %v257 = vld [vmem:[%s0 + $0x768] sm:$0xff]
  %v258 = vld [vmem:[%s0 + $0x770] sm:$0xff]
  %v259 = vld [vmem:[%s0 + $0x778] sm:$0xff]
  %v260 = vld [vmem:[%s0 + $0x780] sm:$0xff]
  %v261 = vld [vmem:[%s0 + $0x788] sm:$0xff]
  %v262 = vld [vmem:[%s0 + $0x790] sm:$0xff]
  %v263 = vld [vmem:[%s0 + $0x798] sm:$0xff]
  %v264 = vld [vmem:[%s0 + $0x7a0] sm:$0xff]
  %v265 = vld [vmem:[%s0 + $0x7a8] sm:$0xff]
  %v266 = vld [vmem:[%s0 + $0x7b0] sm:$0xff]
  %v267 = vld [vmem:[%s0 + $0x7b8] sm:$0xff]
  %v268 = vld [vmem:[%s0 + $0x7c0] sm:$0xff]
  %v269 = vld [vmem:[%s0 + $0x7c8] sm:$0xff]
  %v270 = vld [vmem:[%s0 + $0x7d0] sm:$0xff]
  %v271 = vld [vmem:[%s0 + $0x7d8] sm:$0xff]
  %v272 = vld [vmem:[%s0 + $0x7e0] sm:$0xff]
  %v273 = vld [vmem:[%s0 + $0x7e8] sm:$0xff]
  %v274 = vld [vmem:[%s0 + $0x7f0] sm:$0xff]
  %v275 = vld [vmem:[%s0 + $0x7f8] sm:$0xff]
  %v276 = vld [vmem:[%s0 + $0x800] sm:$0xff]
  %v277 = vld [vmem:[%s0 + $0x808] sm:$0xff]
  %v278 = vld [vmem:[%s0 + $0x810] sm:$0xff]
  %v279 = vld [vmem:[%s0 + $0x818] sm:$0xff]
  %v280 = vld [vmem:[%s0 + $0x820] sm:$0xff]
  %v281 = vld [vmem:[%s0 + $0x828] sm:$0xff]
  %v282 = vld [vmem:[%s0 + $0x830] sm:$0xff]
  %v283 = vld [vmem:[%s0 + $0x838] sm:$0xff]
  %v284 = vld [vmem:[%s0 + $0x840] sm:$0xff]
  %v285 = vld [vmem:[%s0 + $0x848] sm:$0xff]
  %v286 = vld [vmem:[%s0 + $0x850] sm:$0xff]
  %v287 = vld [vmem:[%s0 + $0x858] sm:$0xff]
  %v288 = vld [vmem:[%s0 + $0x860] sm:$0xff]
  %v289 = vld [vmem:[%s0 + $0x868] sm:$0xff]
  %v290 = vld [vmem:[%s0 + $0x870] sm:$0xff]
  %v291 = vld [vmem:[%s0 + $0x878] sm:$0xff]
  %v292 = vld [vmem:[%s0 + $0x880] sm:$0xff]
  %v293 = vld [vmem:[%s0 + $0x888] sm:$0xff]
  %v294 = vld [vmem:[%s0 + $0x890] sm:$0xff]
  %v295 = vld [vmem:[%s0 + $0x898] sm:$0xff]
  %v296 = vld [vmem:[%s0 + $0x8a0] sm:$0xff]
  %v297 = vld [vmem:[%s0 + $0x8a8] sm:$0xff]
  %v298 = vld [vmem:[%s0 + $0x8b0] sm:$0xff]
  %v299 = vld [vmem:[%s0 + $0x8b8] sm:$0xff]
  %v300 = vld [vmem:[%s0 + $0x8c0] sm:$0xff]
  %v301 = vld [vmem:[%s0 + $0x8c8] sm:$0xff]
  %v302 = vld [vmem:[%s0 + $0x8d0] sm:$0xff]
  %v303 = vld [vmem:[%s0 + $0x8d8] sm:$0xff]
  %v304 = vld [vmem:[%s0 + $0x8e0] sm:$0xff]
  %v305 = vld [vmem:[%s0 + $0x8e8] sm:$0xff]
  %v306 = vld [vmem:[%s0 + $0x8f0] sm:$0xff]
  %v307 = vld [vmem:[%s0 + $0x8f8] sm:$0xff]
  %v308 = vld [vmem:[%s1] sm:$0xff]
  %v309 = vld [vmem:[%s1 + $0x8] sm:$0xff]
  %v310 = vld [vmem:[%s1 + $0x10] sm:$0xff]
  %v311 = vld [vmem:[%s1 + $0x18] sm:$0xff]
  %v312 = vld [vmem:[%s1 + $0x20] sm:$0xff]
  %v313 = vld [vmem:[%s1 + $0x28] sm:$0xff]
  %v314 = vld [vmem:[%s1 + $0x30] sm:$0xff]
  %v315 = vld [vmem:[%s1 + $0x38] sm:$0xff]
  %v316 = vld [vmem:[%s1 + $0x40] sm:$0xff]
  %v317 = vld [vmem:[%s1 + $0x48] sm:$0xff]
  %v318 = vld [vmem:[%s1 + $0x50] sm:$0xff]
  %v319 = vld [vmem:[%s1 + $0x58] sm:$0xff]
  %v320 = vld [vmem:[%s1 + $0x60] sm:$0xff]
  %v321 = vld [vmem:[%s1 + $0x68] sm:$0xff]
  %v322 = vld [vmem:[%s1 + $0x70] sm:$0xff]
  %v323 = vld [vmem:[%s1 + $0x78] sm:$0xff]
  %v324 = vld [vmem:[%s1 + $0x80] sm:$0xff]
  %v325 = vld [vmem:[%s1 + $0x88] sm:$0xff]
  %v326 = vld [vmem:[%s1 + $0x90] sm:$0xff]
  %v327 = vld [vmem:[%s1 + $0x98] sm:$0xff]
  %v328 = vld [vmem:[%s1 + $0xa0] sm:$0xff]
  %v329 = vld [vmem:[%s1 + $0xa8] sm:$0xff]
  %v330 = vld [vmem:[%s1 + $0xb0] sm:$0xff]
  %v331 = vld [vmem:[%s1 + $0xb8] sm:$0xff]
  %v332 = vld [vmem:[%s1 + $0xc0] sm:$0xff]
  %v333 = vld [vmem:[%s1 + $0xc8] sm:$0xff]
  %v334 = vld [vmem:[%s1 + $0xd0] sm:$0xff]
  %v335 = vld [vmem:[%s1 + $0xd8] sm:$0xff]
  %v336 = vld [vmem:[%s1 + $0xe0] sm:$0xff]
  %v337 = vld [vmem:[%s1 + $0xe8] sm:$0xff]
  %v338 = vld [vmem:[%s1 + $0xf0] sm:$0xff]
  %v339 = vld [vmem:[%s1 + $0xf8] sm:$0xff]
  %v340 = vld [vmem:[%s1 + $0x100] sm:$0xff]
  %v341 = vld [vmem:[%s1 + $0x108] sm:$0xff]
  %v342 = vld [vmem:[%s1 + $0x110] sm:$0xff]
  %v343 = vld [vmem:[%s1 + $0x118] sm:$0xff]
  %v344 = vld [vmem:[%s1 + $0x120] sm:$0xff]
  %v345 = vld [vmem:[%s1 + $0x128] sm:$0xff]
  %v346 = vld [vmem:[%s1 + $0x130] sm:$0xff]
  %v347 = vld [vmem:[%s1 + $0x138] sm:$0xff]
  %v348 = vld [vmem:[%s1 + $0x140] sm:$0xff]
  %v349 = vld [vmem:[%s1 + $0x148] sm:$0xff]
  %v350 = vld [vmem:[%s1 + $0x150] sm:$0xff]
  %v351 = vld [vmem:[%s1 + $0x158] sm:$0xff]
  %v352 = vld [vmem:[%s1 + $0x160] sm:$0xff]
  %v353 = vld [vmem:[%s1 + $0x168] sm:$0xff]
  %v354 = vld [vmem:[%s1 + $0x170] sm:$0xff]
  %v355 = vld [vmem:[%s1 + $0x178] sm:$0xff]
  %v356 = vld [vmem:[%s1 + $0x180] sm:$0xff]
  %v357 = vld [vmem:[%s1 + $0x188] sm:$0xff]
  %v358 = vld [vmem:[%s1 + $0x190] sm:$0xff]
  %v359 = vld [vmem:[%s1 + $0x198] sm:$0xff]
  %v360 = vld [vmem:[%s1 + $0x1a0] sm:$0xff]
  %v361 = vld [vmem:[%s1 + $0x1a8] sm:$0xff]
  %v362 = vld [vmem:[%s1 + $0x1b0] sm:$0xff]
  %v363 = vld [vmem:[%s1 + $0x1b8] sm:$0xff]
  %v364 = vld [vmem:[%s1 + $0x1c0] sm:$0xff]
  %v365 = vld [vmem:[%s1 + $0x1c8] sm:$0xff]
  %v366 = vld [vmem:[%s1 + $0x1d0] sm:$0xff]
  %v367 = vld [vmem:[%s1 + $0x1d8] sm:$0xff]
  %v368 = vld [vmem:[%s1 + $0x1e0] sm:$0xff]
  %v369 = vld [vmem:[%s1 + $0x1e8] sm:$0xff]
  %v370 = vld [vmem:[%s1 + $0x1f0] sm:$0xff]
  %v371 = vld [vmem:[%s1 + $0x1f8] sm:$0xff]
  %v372 = vld [vmem:[%s1 + $0x200] sm:$0xff]
  %v373 = vld [vmem:[%s1 + $0x208] sm:$0xff]
  %v374 = vld [vmem:[%s1 + $0x210] sm:$0xff]
  %v375 = vld [vmem:[%s1 + $0x218] sm:$0xff]
  %v376 = vld [vmem:[%s1 + $0x220] sm:$0xff]
  %v377 = vld [vmem:[%s1 + $0x228] sm:$0xff]
  %v378 = vld [vmem:[%s1 + $0x230] sm:$0xff]
  %v379 = vld [vmem:[%s1 + $0x238] sm:$0xff]
  %v380 = vld [vmem:[%s1 + $0x240] sm:$0xff]
  %v381 = vld [vmem:[%s1 + $0x248] sm:$0xff]
  %v382 = vld [vmem:[%s1 + $0x250] sm:$0xff]
  %v383 = vld [vmem:[%s1 + $0x258] sm:$0xff]
  %v384 = vld [vmem:[%s1 + $0x260] sm:$0xff]
  %v385 = vld [vmem:[%s1 + $0x268] sm:$0xff]
  %v386 = vld [vmem:[%s1 + $0x270] sm:$0xff]
  %v387 = vld [vmem:[%s1 + $0x278] sm:$0xff]
  %v388 = vld [vmem:[%s1 + $0x280] sm:$0xff]
  %v389 = vld [vmem:[%s1 + $0x288] sm:$0xff]
  %v390 = vld [vmem:[%s1 + $0x290] sm:$0xff]
  %v391 = vld [vmem:[%s1 + $0x298] sm:$0xff]
  %v392 = vld [vmem:[%s1 + $0x2a0] sm:$0xff]
  %v393 = vld [vmem:[%s1 + $0x2a8] sm:$0xff]
  %v394 = vld [vmem:[%s1 + $0x2b0] sm:$0xff]
  %v395 = vld [vmem:[%s1 + $0x2b8] sm:$0xff]
  %v396 = vld [vmem:[%s1 + $0x2c0] sm:$0xff]
  %v397 = vld [vmem:[%s1 + $0x2c8] sm:$0xff]
  %v398 = vld [vmem:[%s1 + $0x2d0] sm:$0xff]
  %v399 = vld [vmem:[%s1 + $0x2d8] sm:$0xff]
  %v400 = vld [vmem:[%s1 + $0x2e0] sm:$0xff]
  %v401 = vld [vmem:[%s1 + $0x2e8] sm:$0xff]
  %v402 = vld [vmem:[%s1 + $0x2f0] sm:$0xff]
  %v403 = vld [vmem:[%s1 + $0x2f8] sm:$0xff]
  %v404 = vld [vmem:[%s1 + $0x300] sm:$0xff]
  %v405 = vld [vmem:[%s1 + $0x308] sm:$0xff]
  %v406 = vld [vmem:[%s1 + $0x310] sm:$0xff]
  %v407 = vld [vmem:[%s1 + $0x318] sm:$0xff]
  %v408 = vld [vmem:[%s1 + $0x320] sm:$0xff]
  %v409 = vld [vmem:[%s1 + $0x328] sm:$0xff]
  %v410 = vld [vmem:[%s1 + $0x330] sm:$0xff]
  %v411 = vld [vmem:[%s1 + $0x338] sm:$0xff]
  %v412 = vld [vmem:[%s1 + $0x340] sm:$0xff]
  %v413 = vld [vmem:[%s1 + $0x348] sm:$0xff]
  %v414 = vld [vmem:[%s1 + $0x350] sm:$0xff]
  %v415 = vld [vmem:[%s1 + $0x358] sm:$0xff]
  %v416 = vld [vmem:[%s1 + $0x360] sm:$0xff]
  %v417 = vld [vmem:[%s1 + $0x368] sm:$0xff]
  %v418 = vld [vmem:[%s1 + $0x370] sm:$0xff]
  %v419 = vld [vmem:[%s1 + $0x378] sm:$0xff]
  %v420 = vld [vmem:[%s1 + $0x380] sm:$0xff]
  %v421 = vld [vmem:[%s1 + $0x388] sm:$0xff]
  %v422 = vld [vmem:[%s1 + $0x390] sm:$0xff]
  %v423 = vld [vmem:[%s1 + $0x398] sm:$0xff]
  %v424 = vld [vmem:[%s1 + $0x3a0] sm:$0xff]
  %v425 = vld [vmem:[%s1 + $0x3a8] sm:$0xff]
  %v426 = vld [vmem:[%s1 + $0x3b0] sm:$0xff]
  %v427 = vld [vmem:[%s1 + $0x3b8] sm:$0xff]
  %v428 = vld [vmem:[%s1 + $0x3c0] sm:$0xff]
  %v429 = vld [vmem:[%s1 + $0x3c8] sm:$0xff]
  %v430 = vld [vmem:[%s1 + $0x3d0] sm:$0xff]
  %v431 = vld [vmem:[%s1 + $0x3d8] sm:$0xff]
  %v432 = vld [vmem:[%s1 + $0x3e0] sm:$0xff]
  %v433 = vld [vmem:[%s1 + $0x3e8] sm:$0xff]
  %v434 = vld [vmem:[%s1 + $0x3f0] sm:$0xff]
  %v435 = vld [vmem:[%s1 + $0x3f8] sm:$0xff]
  %v436 = vld [vmem:[%s1 + $0x400] sm:$0xff]
  %v437 = vld [vmem:[%s1 + $0x408] sm:$0xff]
  %v438 = vld [vmem:[%s1 + $0x410] sm:$0xff]
  %v439 = vld [vmem:[%s1 + $0x418] sm:$0xff]
  %v440 = vld [vmem:[%s1 + $0x420] sm:$0xff]
  %v441 = vld [vmem:[%s1 + $0x428] sm:$0xff]
  %v442 = vld [vmem:[%s1 + $0x430] sm:$0xff]
  %v443 = vld [vmem:[%s1 + $0x438] sm:$0xff]
  %v444 = vld [vmem:[%s1 + $0x440] sm:$0xff]
  %v445 = vld [vmem:[%s1 + $0x448] sm:$0xff]
  %v446 = vld [vmem:[%s1 + $0x450] sm:$0xff]
  %v447 = vld [vmem:[%s1 + $0x458] sm:$0xff]
  %v448 = vld [vmem:[%s1 + $0x460] sm:$0xff]
  %v449 = vld [vmem:[%s1 + $0x468] sm:$0xff]
  %v450 = vld [vmem:[%s1 + $0x470] sm:$0xff]
  %v451 = vld [vmem:[%s1 + $0x478] sm:$0xff]
  %v452 = vld [vmem:[%s1 + $0x480] sm:$0xff]
  %v453 = vld [vmem:[%s1 + $0x488] sm:$0xff]
  %v454 = vld [vmem:[%s1 + $0x490] sm:$0xff]
  %v455 = vld [vmem:[%s1 + $0x498] sm:$0xff]
  %v456 = vld [vmem:[%s1 + $0x4a0] sm:$0xff]
  %v457 = vld [vmem:[%s1 + $0x4a8] sm:$0xff]
  %v458 = vld [vmem:[%s1 + $0x4b0] sm:$0xff]
  %v459 = vld [vmem:[%s1 + $0x4b8] sm:$0xff]
  %v460 = vld [vmem:[%s1 + $0x4c0] sm:$0xff]
  %v461 = vld [vmem:[%s1 + $0x4c8] sm:$0xff]
  %v462 = vld [vmem:[%s1 + $0x4d0] sm:$0xff]
  %v463 = vld [vmem:[%s1 + $0x4d8] sm:$0xff]
  %v464 = vld [vmem:[%s1 + $0x4e0] sm:$0xff]
  %v465 = vld [vmem:[%s1 + $0x4e8] sm:$0xff]
  %v466 = vld [vmem:[%s1 + $0x4f0] sm:$0xff]
  %v467 = vld [vmem:[%s1 + $0x4f8] sm:$0xff]
  %v468 = vld [vmem:[%s1 + $0x500] sm:$0xff]
  %v469 = vld [vmem:[%s1 + $0x508] sm:$0xff]
  %v470 = vld [vmem:[%s1 + $0x510] sm:$0xff]
  %v471 = vld [vmem:[%s1 + $0x518] sm:$0xff]
  %v472 = vld [vmem:[%s1 + $0x520] sm:$0xff]
  %v473 = vld [vmem:[%s1 + $0x528] sm:$0xff]
  %v474 = vld [vmem:[%s1 + $0x530] sm:$0xff]
  %v475 = vld [vmem:[%s1 + $0x538] sm:$0xff]
  %v476 = vld [vmem:[%s1 + $0x540] sm:$0xff]
  %v477 = vld [vmem:[%s1 + $0x548] sm:$0xff]
  %v478 = vld [vmem:[%s1 + $0x550] sm:$0xff]
  %v479 = vld [vmem:[%s1 + $0x558] sm:$0xff]
  %v480 = vld [vmem:[%s1 + $0x560] sm:$0xff]
  %v481 = vld [vmem:[%s1 + $0x568] sm:$0xff]
  %v482 = vld [vmem:[%s1 + $0x570] sm:$0xff]
  %v483 = vld [vmem:[%s1 + $0x578] sm:$0xff]
  %v484 = vld [vmem:[%s1 + $0x580] sm:$0xff]
  %v485 = vld [vmem:[%s1 + $0x588] sm:$0xff]
  %v486 = vld [vmem:[%s1 + $0x590] sm:$0xff]
  %v487 = vld [vmem:[%s1 + $0x598] sm:$0xff]
  %v488 = vld [vmem:[%s1 + $0x5a0] sm:$0xff]
  %v489 = vld [vmem:[%s1 + $0x5a8] sm:$0xff]
  %v490 = vld [vmem:[%s1 + $0x5b0] sm:$0xff]
  %v491 = vld [vmem:[%s1 + $0x5b8] sm:$0xff]
  %v492 = vld [vmem:[%s1 + $0x5c0] sm:$0xff]
  %v493 = vld [vmem:[%s1 + $0x5c8] sm:$0xff]
  %v494 = vld [vmem:[%s1 + $0x5d0] sm:$0xff]
  %v495 = vld [vmem:[%s1 + $0x5d8] sm:$0xff]
  %v496 = vld [vmem:[%s1 + $0x5e0] sm:$0xff]
  %v497 = vld [vmem:[%s1 + $0x5e8] sm:$0xff]
  %v498 = vld [vmem:[%s1 + $0x5f0] sm:$0xff]
  %v499 = vld [vmem:[%s1 + $0x5f8] sm:$0xff]
  %v500 = vld [vmem:[%s1 + $0x600] sm:$0xff]
  %v501 = vld [vmem:[%s1 + $0x608] sm:$0xff]
  %v502 = vld [vmem:[%s1 + $0x610] sm:$0xff]
  %v503 = vld [vmem:[%s1 + $0x618] sm:$0xff]
  %v504 = vld [vmem:[%s1 + $0x620] sm:$0xff]
  %v505 = vld [vmem:[%s1 + $0x628] sm:$0xff]
  %v506 = vld [vmem:[%s1 + $0x630] sm:$0xff]
  %v507 = vld [vmem:[%s1 + $0x638] sm:$0xff]
  %v508 = vld [vmem:[%s1 + $0x640] sm:$0xff]
  %v509 = vld [vmem:[%s1 + $0x648] sm:$0xff]
  %v510 = vld [vmem:[%s1 + $0x650] sm:$0xff]
  %v511 = vld [vmem:[%s1 + $0x658] sm:$0xff]
  %v512 = vld [vmem:[%s1 + $0x660] sm:$0xff]
  %v513 = vld [vmem:[%s1 + $0x668] sm:$0xff]
  %v514 = vld [vmem:[%s1 + $0x670] sm:$0xff]
  %v515 = vld [vmem:[%s1 + $0x678] sm:$0xff]
  %v516 = vld [vmem:[%s1 + $0x680] sm:$0xff]
  %v517 = vld [vmem:[%s1 + $0x688] sm:$0xff]
  %v518 = vld [vmem:[%s1 + $0x690] sm:$0xff]
  %v519 = vld [vmem:[%s1 + $0x698] sm:$0xff]
  %v520 = vld [vmem:[%s1 + $0x6a0] sm:$0xff]
  %v521 = vld [vmem:[%s1 + $0x6a8] sm:$0xff]
  %v522 = vld [vmem:[%s1 + $0x6b0] sm:$0xff]
  %v523 = vld [vmem:[%s1 + $0x6b8] sm:$0xff]
  %v524 = vld [vmem:[%s1 + $0x6c0] sm:$0xff]
  %v525 = vld [vmem:[%s1 + $0x6c8] sm:$0xff]
  %v526 = vld [vmem:[%s1 + $0x6d0] sm:$0xff]
  %v527 = vld [vmem:[%s1 + $0x6d8] sm:$0xff]
  %v528 = vld [vmem:[%s1 + $0x6e0] sm:$0xff]
  %v529 = vld [vmem:[%s1 + $0x6e8] sm:$0xff]
  %v530 = vld [vmem:[%s1 + $0x6f0] sm:$0xff]
  %v531 = vld [vmem:[%s1 + $0x6f8] sm:$0xff]
  %v532 = vld [vmem:[%s1 + $0x700] sm:$0xff]
  %v533 = vld [vmem:[%s1 + $0x708] sm:$0xff]
  %v534 = vld [vmem:[%s1 + $0x710] sm:$0xff]
  %v535 = vld [vmem:[%s1 + $0x718] sm:$0xff]
  %v536 = vld [vmem:[%s1 + $0x720] sm:$0xff]
  %v537 = vld [vmem:[%s1 + $0x728] sm:$0xff]
  %v538 = vld [vmem:[%s1 + $0x730] sm:$0xff]
  %v539 = vld [vmem:[%s1 + $0x738] sm:$0xff]
  %v540 = vld [vmem:[%s1 + $0x740] sm:$0xff]
  %v541 = vld [vmem:[%s1 + $0x748] sm:$0xff]
  %v542 = vld [vmem:[%s1 + $0x750] sm:$0xff]
  %v543 = vld [vmem:[%s1 + $0x758] sm:$0xff]
  %v544 = vld [vmem:[%s1 + $0x760] sm:$0xff]
  %v545 = vld [vmem:[%s1 + $0x768] sm:$0xff]
  %v546 = vld [vmem:[%s1 + $0x770] sm:$0xff]
  %v547 = vld [vmem:[%s1 + $0x778] sm:$0xff]
  %v548 = vld [vmem:[%s1 + $0x780] sm:$0xff]
  %v549 = vld [vmem:[%s1 + $0x788] sm:$0xff]
  %v550 = vld [vmem:[%s1 + $0x790] sm:$0xff]
  %v551 = vld [vmem:[%s1 + $0x798] sm:$0xff]
  %v552 = vld [vmem:[%s1 + $0x7a0] sm:$0xff]
  %v553 = vld [vmem:[%s1 + $0x7a8] sm:$0xff]
  %v554 = vld [vmem:[%s1 + $0x7b0] sm:$0xff]
  %v555 = vld [vmem:[%s1 + $0x7b8] sm:$0xff]
  %v556 = vld [vmem:[%s1 + $0x7c0] sm:$0xff]
  %v557 = vld [vmem:[%s1 + $0x7c8] sm:$0xff]
  %v558 = vld [vmem:[%s1 + $0x7d0] sm:$0xff]
  %v559 = vld [vmem:[%s1 + $0x7d8] sm:$0xff]
  %v560 = vld [vmem:[%s1 + $0x7e0] sm:$0xff]
  %v561 = vld [vmem:[%s1 + $0x7e8] sm:$0xff]
  %v562 = vld [vmem:[%s1 + $0x7f0] sm:$0xff]
  %v563 = vld [vmem:[%s1 + $0x7f8] sm:$0xff]
  %v564 = vld [vmem:[%s1 + $0x800] sm:$0xff]
  %v565 = vld [vmem:[%s1 + $0x808] sm:$0xff]
  %v566 = vld [vmem:[%s1 + $0x810] sm:$0xff]
  %v567 = vld [vmem:[%s1 + $0x818] sm:$0xff]
  %v568 = vld [vmem:[%s1 + $0x820] sm:$0xff]
  %v569 = vld [vmem:[%s1 + $0x828] sm:$0xff]
  %v570 = vld [vmem:[%s1 + $0x830] sm:$0xff]
  %v571 = vld [vmem:[%s1 + $0x838] sm:$0xff]
  %v572 = vld [vmem:[%s1 + $0x840] sm:$0xff]
  %v573 = vld [vmem:[%s1 + $0x848] sm:$0xff]
  %v574 = vld [vmem:[%s1 + $0x850] sm:$0xff]
  %v575 = vld [vmem:[%s1 + $0x858] sm:$0xff]
  %v576 = vld [vmem:[%s1 + $0x860] sm:$0xff]
  %v577 = vld [vmem:[%s1 + $0x868] sm:$0xff]
  %v578 = vld [vmem:[%s1 + $0x870] sm:$0xff]
  %v579 = vld [vmem:[%s1 + $0x878] sm:$0xff]
  %v580 = vld [vmem:[%s1 + $0x880] sm:$0xff]
  %v581 = vld [vmem:[%s1 + $0x888] sm:$0xff]
  %v582 = vld [vmem:[%s1 + $0x890] sm:$0xff]
  %v583 = vld [vmem:[%s1 + $0x898] sm:$0xff]
  %v584 = vld [vmem:[%s1 + $0x8a0] sm:$0xff]
  %v585 = vld [vmem:[%s1 + $0x8a8] sm:$0xff]
  %v586 = vld [vmem:[%s1 + $0x8b0] sm:$0xff]
  %v587 = vld [vmem:[%s1 + $0x8b8] sm:$0xff]
  %v588 = vld [vmem:[%s1 + $0x8c0] sm:$0xff]
  %v589 = vld [vmem:[%s1 + $0x8c8] sm:$0xff]
  %v590 = vld [vmem:[%s1 + $0x8d0] sm:$0xff]
  %v591 = vld [vmem:[%s1 + $0x8d8] sm:$0xff]
  %v592 = vld [vmem:[%s1 + $0x8e0] sm:$0xff]
  %v593 = vld [vmem:[%s1 + $0x8e8] sm:$0xff]
  %v594 = vld [vmem:[%s1 + $0x8f0] sm:$0xff]
  %v595 = vld [vmem:[%s1 + $0x8f8] sm:$0xff]
  %v596 = vld [vmem:[%s1 + $0x900] sm:$0xff]
  %v597 = vld [vmem:[%s1 + $0x908] sm:$0xff]
  %v598 = vld [vmem:[%s1 + $0x910] sm:$0xff]
  %v599 = vld [vmem:[%s1 + $0x918] sm:$0xff]
  %v600 = vld [vmem:[%s1 + $0x920] sm:$0xff]
  %v601 = vld [vmem:[%s1 + $0x928] sm:$0xff]
  %v602 = vld [vmem:[%s1 + $0x930] sm:$0xff]
  %v603 = vld [vmem:[%s1 + $0x938] sm:$0xff]
  %v604 = vld [vmem:[%s1 + $0x940] sm:$0xff]
  %v605 = vld [vmem:[%s1 + $0x948] sm:$0xff]
  %v606 = vld [vmem:[%s1 + $0x950] sm:$0xff]
  %v607 = vld [vmem:[%s1 + $0x958] sm:$0xff]
  %v608 = vld [vmem:[%s1 + $0x960] sm:$0xff]
  %v609 = vld [vmem:[%s1 + $0x968] sm:$0xff]
  %v610 = vld [vmem:[%s1 + $0x970] sm:$0xff]
  %v611 = vld [vmem:[%s1 + $0x978] sm:$0xff]
  %v612 = vld [vmem:[%s1 + $0x980] sm:$0xff]
  %v613 = vld [vmem:[%s1 + $0x988] sm:$0xff]
  %v614 = vld [vmem:[%s1 + $0x990] sm:$0xff]
  %v615 = vld [vmem:[%s1 + $0x998] sm:$0xff]
  %v616 = vld [vmem:[%s1 + $0x9a0] sm:$0xff]
  %v617 = vld [vmem:[%s1 + $0x9a8] sm:$0xff]
  %v618 = vld [vmem:[%s1 + $0x9b0] sm:$0xff]
  %v619 = vld [vmem:[%s1 + $0x9b8] sm:$0xff]
  %v620 = vld [vmem:[%s1 + $0x9c0] sm:$0xff]
  %v621 = vld [vmem:[%s1 + $0x9c8] sm:$0xff]
  %v622 = vld [vmem:[%s1 + $0x9d0] sm:$0xff]
  %v623 = vld [vmem:[%s1 + $0x9d8] sm:$0xff]
  %v624 = vld [vmem:[%s1 + $0x9e0] sm:$0xff]
  %v625 = vld [vmem:[%s1 + $0x9e8] sm:$0xff]
  %v626 = vld [vmem:[%s1 + $0x9f0] sm:$0xff]
  %v627 = vld [vmem:[%s1 + $0x9f8] sm:$0xff]
  %v628 = vld [vmem:[%s1 + $0xa00] sm:$0xff]
  %v629 = vld [vmem:[%s1 + $0xa08] sm:$0xff]
  %v630 = vld [vmem:[%s1 + $0xa10] sm:$0xff]
  %v631 = vld [vmem:[%s1 + $0xa18] sm:$0xff]
  %v632 = vld [vmem:[%s1 + $0xa20] sm:$0xff]
  %v633 = vld [vmem:[%s1 + $0xa28] sm:$0xff]
  %v634 = vld [vmem:[%s1 + $0xa30] sm:$0xff]
  %v635 = vld [vmem:[%s1 + $0xa38] sm:$0xff]
  %v636 = vld [vmem:[%s1 + $0xa40] sm:$0xff]
  %v637 = vld [vmem:[%s1 + $0xa48] sm:$0xff]
  %v638 = vld [vmem:[%s1 + $0xa50] sm:$0xff]
  %v639 = vld [vmem:[%s1 + $0xa58] sm:$0xff]
  %v640 = vld [vmem:[%s1 + $0xa60] sm:$0xff]
  %v641 = vld [vmem:[%s1 + $0xa68] sm:$0xff]
  %v642 = vld [vmem:[%s1 + $0xa70] sm:$0xff]
  %v643 = vld [vmem:[%s1 + $0xa78] sm:$0xff]
  %v644 = vld [vmem:[%s1 + $0xa80] sm:$0xff]
  %v645 = vld [vmem:[%s1 + $0xa88] sm:$0xff]
  %v646 = vld [vmem:[%s1 + $0xa90] sm:$0xff]
  %v647 = vld [vmem:[%s1 + $0xa98] sm:$0xff]
  %v648 = vld [vmem:[%s1 + $0xaa0] sm:$0xff]
  %v649 = vld [vmem:[%s1 + $0xaa8] sm:$0xff]
  %v650 = vld [vmem:[%s1 + $0xab0] sm:$0xff]
  %v651 = vld [vmem:[%s1 + $0xab8] sm:$0xff]
  %v652 = vld [vmem:[%s1 + $0xac0] sm:$0xff]
  %v653 = vld [vmem:[%s1 + $0xac8] sm:$0xff]
  %v654 = vld [vmem:[%s1 + $0xad0] sm:$0xff]
  %v655 = vld [vmem:[%s1 + $0xad8] sm:$0xff]
  %v656 = vld [vmem:[%s1 + $0xae0] sm:$0xff]
  %v657 = vld [vmem:[%s1 + $0xae8] sm:$0xff]
  %v658 = vld [vmem:[%s1 + $0xaf0] sm:$0xff]
  %v659 = vld [vmem:[%s1 + $0xaf8] sm:$0xff]
  %v660 = vld [vmem:[%s1 + $0xb00] sm:$0xff]
  %v661 = vld [vmem:[%s1 + $0xb08] sm:$0xff]
  %v662 = vld [vmem:[%s1 + $0xb10] sm:$0xff]
  %v663 = vld [vmem:[%s1 + $0xb18] sm:$0xff]
  %v664 = vld [vmem:[%s1 + $0xb20] sm:$0xff]
  %v665 = vld [vmem:[%s1 + $0xb28] sm:$0xff]
  %v666 = vld [vmem:[%s1 + $0xb30] sm:$0xff]
  %v667 = vld [vmem:[%s1 + $0xb38] sm:$0xff]
  %v668 = vld [vmem:[%s1 + $0xb40] sm:$0xff]
  %v669 = vld [vmem:[%s1 + $0xb48] sm:$0xff]
  %v670 = vld [vmem:[%s1 + $0xb50] sm:$0xff]
  %v671 = vld [vmem:[%s1 + $0xb58] sm:$0xff]
  %v672 = vld [vmem:[%s1 + $0xb60] sm:$0xff]
  %v673 = vld [vmem:[%s1 + $0xb68] sm:$0xff]
  %v674 = vld [vmem:[%s1 + $0xb70] sm:$0xff]
  %v675 = vld [vmem:[%s1 + $0xb78] sm:$0xff]
  %v676 = vld [vmem:[%s1 + $0xb80] sm:$0xff]
  %v677 = vld [vmem:[%s1 + $0xb88] sm:$0xff]
  %v678 = vld [vmem:[%s1 + $0xb90] sm:$0xff]
  %v679 = vld [vmem:[%s1 + $0xb98] sm:$0xff]
  %v680 = vld [vmem:[%s1 + $0xba0] sm:$0xff]
  %v681 = vld [vmem:[%s1 + $0xba8] sm:$0xff]
  %v682 = vld [vmem:[%s1 + $0xbb0] sm:$0xff]
  %v683 = vld [vmem:[%s1 + $0xbb8] sm:$0xff]
  %v684 = vld [vmem:[%s1 + $0xbc0] sm:$0xff]
  %v685 = vld [vmem:[%s1 + $0xbc8] sm:$0xff]
  %v686 = vld [vmem:[%s1 + $0xbd0] sm:$0xff]
  %v687 = vld [vmem:[%s1 + $0xbd8] sm:$0xff]
  %v688 = vld [vmem:[%s1 + $0xbe0] sm:$0xff]
  %v689 = vld [vmem:[%s1 + $0xbe8] sm:$0xff]
  %v690 = vld [vmem:[%s1 + $0xbf0] sm:$0xff]
  %v691 = vld [vmem:[%s1 + $0xbf8] sm:$0xff]
  %v692 = vld [vmem:[%s1 + $0xc00] sm:$0xff]
  %v693 = vld [vmem:[%s1 + $0xc08] sm:$0xff]
  %v694 = vld [vmem:[%s1 + $0xc10] sm:$0xff]
  %v695 = vld [vmem:[%s1 + $0xc18] sm:$0xff]
  %v696 = vld [vmem:[%s1 + $0xc20] sm:$0xff]
  %v697 = vld [vmem:[%s1 + $0xc28] sm:$0xff]
  %v698 = vld [vmem:[%s1 + $0xc30] sm:$0xff]
  %v699 = vld [vmem:[%s1 + $0xc38] sm:$0xff]
  %v700 = vld [vmem:[%s1 + $0xc40] sm:$0xff]
  %v701 = vld [vmem:[%s1 + $0xc48] sm:$0xff]
  %v702 = vld [vmem:[%s1 + $0xc50] sm:$0xff]
  %v703 = vld [vmem:[%s1 + $0xc58] sm:$0xff]
  %v704 = vld [vmem:[%s1 + $0xc60] sm:$0xff]
  %v705 = vld [vmem:[%s1 + $0xc68] sm:$0xff]
  %v706 = vld [vmem:[%s1 + $0xc70] sm:$0xff]
  %v707 = vld [vmem:[%s1 + $0xc78] sm:$0xff]
  %v708 = vld [vmem:[%s1 + $0xc80] sm:$0xff]
  %v709 = vld [vmem:[%s1 + $0xc88] sm:$0xff]
  %v710 = vld [vmem:[%s1 + $0xc90] sm:$0xff]
  %v711 = vld [vmem:[%s1 + $0xc98] sm:$0xff]
  %v712 = vld [vmem:[%s1 + $0xca0] sm:$0xff]
  %v713 = vld [vmem:[%s1 + $0xca8] sm:$0xff]
  %v714 = vld [vmem:[%s1 + $0xcb0] sm:$0xff]
  %v715 = vld [vmem:[%s1 + $0xcb8] sm:$0xff]
  %v716 = vld [vmem:[%s1 + $0xcc0] sm:$0xff]
  %v717 = vld [vmem:[%s1 + $0xcc8] sm:$0xff]
  %v718 = vld [vmem:[%s1 + $0xcd0] sm:$0xff]
  %v719 = vld [vmem:[%s1 + $0xcd8] sm:$0xff]
  %v720 = vld [vmem:[%s1 + $0xce0] sm:$0xff]
  %v721 = vld [vmem:[%s1 + $0xce8] sm:$0xff]
  %v722 = vld [vmem:[%s1 + $0xcf0] sm:$0xff]
  %v723 = vld [vmem:[%s1 + $0xcf8] sm:$0xff]
  %v724 = vld [vmem:[%s1 + $0xd00] sm:$0xff]
  %v725 = vld [vmem:[%s1 + $0xd08] sm:$0xff]
  %v726 = vld [vmem:[%s1 + $0xd10] sm:$0xff]
  %v727 = vld [vmem:[%s1 + $0xd18] sm:$0xff]
  %v728 = vld [vmem:[%s1 + $0xd20] sm:$0xff]
  %v729 = vld [vmem:[%s1 + $0xd28] sm:$0xff]
  %v730 = vld [vmem:[%s1 + $0xd30] sm:$0xff]
  %v731 = vld [vmem:[%s1 + $0xd38] sm:$0xff]
  %v732 = vld [vmem:[%s1 + $0xd40] sm:$0xff]
  %v733 = vld [vmem:[%s1 + $0xd48] sm:$0xff]
  %v734 = vld [vmem:[%s1 + $0xd50] sm:$0xff]
  %v735 = vld [vmem:[%s1 + $0xd58] sm:$0xff]
  %v736 = vld [vmem:[%s1 + $0xd60] sm:$0xff]
  %v737 = vld [vmem:[%s1 + $0xd68] sm:$0xff]
  %v738 = vld [vmem:[%s1 + $0xd70] sm:$0xff]
  %v739 = vld [vmem:[%s1 + $0xd78] sm:$0xff]
  %v740 = vld [vmem:[%s1 + $0xd80] sm:$0xff]
  %v741 = vld [vmem:[%s1 + $0xd88] sm:$0xff]
  %v742 = vld [vmem:[%s1 + $0xd90] sm:$0xff]
  %v743 = vld [vmem:[%s1 + $0xd98] sm:$0xff]
  %v744 = vld [vmem:[%s1 + $0xda0] sm:$0xff]
  %v745 = vld [vmem:[%s1 + $0xda8] sm:$0xff]
  %v746 = vld [vmem:[%s1 + $0xdb0] sm:$0xff]
  %v747 = vld [vmem:[%s1 + $0xdb8] sm:$0xff]
  %v748 = vld [vmem:[%s1 + $0xdc0] sm:$0xff]
  %v749 = vld [vmem:[%s1 + $0xdc8] sm:$0xff]
  %v750 = vld [vmem:[%s1 + $0xdd0] sm:$0xff]
  %v751 = vld [vmem:[%s1 + $0xdd8] sm:$0xff]
  %v752 = vld [vmem:[%s1 + $0xde0] sm:$0xff]
  %v753 = vld [vmem:[%s1 + $0xde8] sm:$0xff]
  %v754 = vld [vmem:[%s1 + $0xdf0] sm:$0xff]
  %v755 = vld [vmem:[%s1 + $0xdf8] sm:$0xff]
  %v756 = vld [vmem:[%s1 + $0xe00] sm:$0xff]
  %v757 = vld [vmem:[%s1 + $0xe08] sm:$0xff]
  %v758 = vld [vmem:[%s1 + $0xe10] sm:$0xff]
  %v759 = vld [vmem:[%s1 + $0xe18] sm:$0xff]
  %v760 = vld [vmem:[%s1 + $0xe20] sm:$0xff]
  %v761 = vld [vmem:[%s1 + $0xe28] sm:$0xff]
  %v762 = vld [vmem:[%s1 + $0xe30] sm:$0xff]
  %v763 = vld [vmem:[%s1 + $0xe38] sm:$0xff]
  %v764 = vld [vmem:[%s1 + $0xe40] sm:$0xff]
  %v765 = vld [vmem:[%s1 + $0xe48] sm:$0xff]
  %v766 = vld [vmem:[%s1 + $0xe50] sm:$0xff]
  %v767 = vld [vmem:[%s1 + $0xe58] sm:$0xff]
  %v768 = vld [vmem:[%s1 + $0xe60] sm:$0xff]
  %v769 = vld [vmem:[%s1 + $0xe68] sm:$0xff]
  %v770 = vld [vmem:[%s1 + $0xe70] sm:$0xff]
  %v771 = vld [vmem:[%s1 + $0xe78] sm:$0xff]
  %v772 = vld [vmem:[%s1 + $0xe80] sm:$0xff]
  %v773 = vld [vmem:[%s1 + $0xe88] sm:$0xff]
  %v774 = vld [vmem:[%s1 + $0xe90] sm:$0xff]
  %v775 = vld [vmem:[%s1 + $0xe98] sm:$0xff]
  %v776 = vld [vmem:[%s1 + $0xea0] sm:$0xff]
  %v777 = vld [vmem:[%s1 + $0xea8] sm:$0xff]
  %v778 = vld [vmem:[%s1 + $0xeb0] sm:$0xff]
  %v779 = vld [vmem:[%s1 + $0xeb8] sm:$0xff]
  %v780 = vld [vmem:[%s1 + $0xec0] sm:$0xff]
  %v781 = vld [vmem:[%s1 + $0xec8] sm:$0xff]
  %v782 = vld [vmem:[%s1 + $0xed0] sm:$0xff]
  %v783 = vld [vmem:[%s1 + $0xed8] sm:$0xff]
  %v784 = vld [vmem:[%s1 + $0xee0] sm:$0xff]
  %v785 = vld [vmem:[%s1 + $0xee8] sm:$0xff]
  %v786 = vld [vmem:[%s1 + $0xef0] sm:$0xff]
  %v787 = vld [vmem:[%s1 + $0xef8] sm:$0xff]
  %v788 = vld [vmem:[%s1 + $0xf00] sm:$0xff]
  %v789 = vld [vmem:[%s1 + $0xf08] sm:$0xff]
  %v790 = vld [vmem:[%s1 + $0xf10] sm:$0xff]
  %v791 = vld [vmem:[%s1 + $0xf18] sm:$0xff]
  %v792 = vld [vmem:[%s1 + $0xf20] sm:$0xff]
  %v793 = vld [vmem:[%s1 + $0xf28] sm:$0xff]
  %v794 = vld [vmem:[%s1 + $0xf30] sm:$0xff]
  %v795 = vld [vmem:[%s1 + $0xf38] sm:$0xff]
  %v796 = vld [vmem:[%s1 + $0xf40] sm:$0xff]
  %v797 = vld [vmem:[%s1 + $0xf48] sm:$0xff]
  %v798 = vld [vmem:[%s1 + $0xf50] sm:$0xff]
  %v799 = vld [vmem:[%s1 + $0xf58] sm:$0xff]
  %v800 = vld [vmem:[%s1 + $0xf60] sm:$0xff]
  %v801 = vld [vmem:[%s1 + $0xf68] sm:$0xff]
  %v802 = vld [vmem:[%s1 + $0xf70] sm:$0xff]
  %v803 = vld [vmem:[%s1 + $0xf78] sm:$0xff]
  %v804 = vld [vmem:[%s1 + $0xf80] sm:$0xff]
  %v805 = vld [vmem:[%s1 + $0xf88] sm:$0xff]
  %v806 = vld [vmem:[%s1 + $0xf90] sm:$0xff]
  %v807 = vld [vmem:[%s1 + $0xf98] sm:$0xff]
  %v808 = vld [vmem:[%s1 + $0xfa0] sm:$0xff]
  %v809 = vld [vmem:[%s1 + $0xfa8] sm:$0xff]
  %v810 = vld [vmem:[%s1 + $0xfb0] sm:$0xff]
  %v811 = vld [vmem:[%s1 + $0xfb8] sm:$0xff]
  %v812 = vld [vmem:[%s1 + $0xfc0] sm:$0xff]
  %v813 = vld [vmem:[%s1 + $0xfc8] sm:$0xff]
  %v814 = vld [vmem:[%s1 + $0xfd0] sm:$0xff]
  %v815 = vld [vmem:[%s1 + $0xfd8] sm:$0xff]
  %v816 = vld [vmem:[%s1 + $0xfe0] sm:$0xff]
  %v817 = vld [vmem:[%s1 + $0xfe8] sm:$0xff]
  %v818 = vld [vmem:[%s1 + $0xff0] sm:$0xff]
  %v819 = vld [vmem:[%s1 + $0xff8] sm:$0xff]
  %v820 = vld [vmem:[%s1 + $0x1000] sm:$0xff]
  %v821 = vld [vmem:[%s1 + $0x1008] sm:$0xff]
  %v822 = vld [vmem:[%s1 + $0x1010] sm:$0xff]
  %v823 = vld [vmem:[%s1 + $0x1018] sm:$0xff]
  %v824 = vld [vmem:[%s1 + $0x1020] sm:$0xff]
  %v825 = vld [vmem:[%s1 + $0x1028] sm:$0xff]
  %v826 = vld [vmem:[%s1 + $0x1030] sm:$0xff]
  %v827 = vld [vmem:[%s1 + $0x1038] sm:$0xff]
  %v828 = vld [vmem:[%s1 + $0x1040] sm:$0xff]
  %v829 = vld [vmem:[%s1 + $0x1048] sm:$0xff]
  %v830 = vld [vmem:[%s1 + $0x1050] sm:$0xff]
  %v831 = vld [vmem:[%s1 + $0x1058] sm:$0xff]
  %v832 = vld [vmem:[%s1 + $0x1060] sm:$0xff]
  %v833 = vld [vmem:[%s1 + $0x1068] sm:$0xff]
  %v834 = vld [vmem:[%s1 + $0x1070] sm:$0xff]
  %v835 = vld [vmem:[%s1 + $0x1078] sm:$0xff]
  %v836 = vld [vmem:[%s1 + $0x1080] sm:$0xff]
  %v837 = vld [vmem:[%s1 + $0x1088] sm:$0xff]
  %v838 = vld [vmem:[%s1 + $0x1090] sm:$0xff]
  %v839 = vld [vmem:[%s1 + $0x1098] sm:$0xff]
  %v840 = vld [vmem:[%s1 + $0x10a0] sm:$0xff]
  %v841 = vld [vmem:[%s1 + $0x10a8] sm:$0xff]
  %v842 = vld [vmem:[%s1 + $0x10b0] sm:$0xff]
  %v843 = vld [vmem:[%s1 + $0x10b8] sm:$0xff]
  %v844 = vld [vmem:[%s1 + $0x10c0] sm:$0xff]
  %v845 = vld [vmem:[%s1 + $0x10c8] sm:$0xff]
  %v846 = vld [vmem:[%s1 + $0x10d0] sm:$0xff]
  %v847 = vld [vmem:[%s1 + $0x10d8] sm:$0xff]
  %v848 = vld [vmem:[%s1 + $0x10e0] sm:$0xff]
  %v849 = vld [vmem:[%s1 + $0x10e8] sm:$0xff]
  %v850 = vld [vmem:[%s1 + $0x10f0] sm:$0xff]
  %v851 = vld [vmem:[%s1 + $0x10f8] sm:$0xff]
  %v852 = vld [vmem:[%s1 + $0x1100] sm:$0xff]
  %v853 = vld [vmem:[%s1 + $0x1108] sm:$0xff]
  %v854 = vld [vmem:[%s1 + $0x1110] sm:$0xff]
  %v855 = vld [vmem:[%s1 + $0x1118] sm:$0xff]
  %v856 = vld [vmem:[%s1 + $0x1120] sm:$0xff]
  %v857 = vld [vmem:[%s1 + $0x1128] sm:$0xff]
  %v858 = vld [vmem:[%s1 + $0x1130] sm:$0xff]
  %v859 = vld [vmem:[%s1 + $0x1138] sm:$0xff]
  %v860 = vld [vmem:[%s1 + $0x1140] sm:$0xff]
  %v861 = vld [vmem:[%s1 + $0x1148] sm:$0xff]
  %v862 = vld [vmem:[%s1 + $0x1150] sm:$0xff]
  %v863 = vld [vmem:[%s1 + $0x1158] sm:$0xff]
  %v864 = vld [vmem:[%s1 + $0x1160] sm:$0xff]
  %v865 = vld [vmem:[%s1 + $0x1168] sm:$0xff]
  %v866 = vld [vmem:[%s1 + $0x1170] sm:$0xff]
  %v867 = vld [vmem:[%s1 + $0x1178] sm:$0xff]
  %v868 = vld [vmem:[%s1 + $0x1180] sm:$0xff]
  %v869 = vld [vmem:[%s1 + $0x1188] sm:$0xff]
  %v870 = vld [vmem:[%s1 + $0x1190] sm:$0xff]
  %v871 = vld [vmem:[%s1 + $0x1198] sm:$0xff]
  %v872 = vld [vmem:[%s1 + $0x11a0] sm:$0xff]
  %v873 = vld [vmem:[%s1 + $0x11a8] sm:$0xff]
  %v874 = vld [vmem:[%s1 + $0x11b0] sm:$0xff]
  %v875 = vld [vmem:[%s1 + $0x11b8] sm:$0xff]
  %v876 = vld [vmem:[%s1 + $0x11c0] sm:$0xff]
  %v877 = vld [vmem:[%s1 + $0x11c8] sm:$0xff]
  %v878 = vld [vmem:[%s1 + $0x11d0] sm:$0xff]
  %v879 = vld [vmem:[%s1 + $0x11d8] sm:$0xff]
  %v880 = vld [vmem:[%s1 + $0x11e0] sm:$0xff]
  %v881 = vld [vmem:[%s1 + $0x11e8] sm:$0xff]
  %v882 = vld [vmem:[%s1 + $0x11f0] sm:$0xff]
  %v883 = vld [vmem:[%s1 + $0x11f8] sm:$0xff]
  %884 = vmatprep.subr.mxu0 %v339
  %885 = vmatpush1.msra.mxu0 %v338
  %886 = vmatprep.subr.mxu0 %v337
  %887 = vmatpush1.msra.mxu0 %v336
  %888 = vmatprep.subr.mxu0 %v335
  %889 = vmatpush1.msra.mxu0 %v334
  %890 = vmatprep.subr.mxu0 %v333
  %891 = vmatpush1.msra.mxu0 %v332
  %892 = vmatprep.subr.mxu0 %v331
  %893 = vmatpush1.msra.mxu0 %v330
  %894 = vmatprep.subr.mxu0 %v329
  %895 = vmatpush1.msra.mxu0 %v328
  %896 = vmatprep.subr.mxu0 %v327
  %897 = vmatpush1.msra.mxu0 %v326
  %898 = vmatprep.subr.mxu0 %v325
  %899 = vmatpush1.msra.mxu0 %v324
  %900 = vmatprep.subr.mxu0 %v323
  %901 = vmatpush1.msra.mxu0 %v322
  %902 = vmatprep.subr.mxu0 %v321
  %903 = vmatpush1.msra.mxu0 %v320
  %904 = vmatprep.subr.mxu0 %v319
  %905 = vmatpush1.msra.mxu0 %v318
  %906 = vmatprep.subr.mxu0 %v317
  %907 = vmatpush1.msra.mxu0 %v316
  %908 = vmatprep.subr.mxu0 %v315
  %909 = vmatpush1.msra.mxu0 %v314
  %910 = vmatprep.subr.mxu0 %v313
  %911 = vmatpush1.msra.mxu0 %v312
  %912 = vmatprep.subr.mxu0 %v311
  %913 = vmatpush1.msra.mxu0 %v310
  %914 = vmatprep.subr.mxu0 %v309
  %915 = vmatpush1.msra.mxu0 %v308
  %916 = vmatprep.subr.mxu0 %v371
  %917 = vmatpush2.msra.mxu0 %v370
  %918 = vmatprep.subr.mxu0 %v369
  %919 = vmatpush2.msra.mxu0 %v368
  %920 = vmatprep.subr.mxu0 %v367
  %921 = vmatpush2.msra.mxu0 %v366
  %922 = vmatprep.subr.mxu0 %v365
  %923 = vmatpush2.msra.mxu0 %v364
  %924 = vmatprep.subr.mxu0 %v363
  %925 = vmatpush2.msra.mxu0 %v362
  %926 = vmatprep.subr.mxu0 %v361
  %927 = vmatpush2.msra.mxu0 %v360
  %928 = vmatprep.subr.mxu0 %v359
  %929 = vmatpush2.msra.mxu0 %v358
  %930 = vmatprep.subr.mxu0 %v357
  %931 = vmatpush2.msra.mxu0 %v356
  %932 = vmatprep.subr.mxu0 %v355
  %933 = vmatpush2.msra.mxu0 %v354
  %934 = vmatprep.subr.mxu0 %v353
  %935 = vmatpush2.msra.mxu0 %v352
  %936 = vmatprep.subr.mxu0 %v351
  %937 = vmatpush2.msra.mxu0 %v350
  %938 = vmatprep.subr.mxu0 %v349
  %939 = vmatpush2.msra.mxu0 %v348
  %940 = vmatprep.subr.mxu0 %v347
  %941 = vmatpush2.msra.mxu0 %v346
  %942 = vmatprep.subr.mxu0 %v345
  %943 = vmatpush2.msra.mxu0 %v344
  %944 = vmatprep.subr.mxu0 %v343
  %945 = vmatpush2.msra.mxu0 %v342
  %946 = vmatprep.subr.mxu0 %v341
  %947 = vmatpush2.msra.mxu0 %v340
  %948 = vmatprep.mubr.f32.mxu0 %v21
  %949 = vmatmul.mubr.f32.gmra.mxu0 %v20
  %v950 = vpop.f32.mrf.mxu0
  %v951 = vadd.f32 0.0, %v950
  %v952 = vpop.f32.mrf.mxu0
  %v953 = vadd.f32 0.0, %v952
  %954 = vmatprep.mubr.f32.mxu0 %v39
  %955 = vmatmul.mubr.f32.gmra.mxu0 %v38
  %v956 = vpop.f32.mrf.mxu0
  %v957 = vadd.f32 0.0, %v956
  %v958 = vpop.f32.mrf.mxu0
  %v959 = vadd.f32 0.0, %v958
  %960 = vmatprep.mubr.f32.mxu0 %v57
  %961 = vmatmul.mubr.f32.gmra.mxu0 %v56
  %v962 = vpop.f32.mrf.mxu0
  %v963 = vadd.f32 0.0, %v962
  %v964 = vpop.f32.mrf.mxu0
  %v965 = vadd.f32 0.0, %v964
  %966 = vmatprep.mubr.f32.mxu0 %v75
  %967 = vmatmul.mubr.f32.gmra.mxu0 %v74
  %v968 = vpop.f32.mrf.mxu0
  %v969 = vadd.f32 0.0, %v968
  %v970 = vpop.f32.mrf.mxu0
  %v971 = vadd.f32 0.0, %v970
  %972 = vmatprep.mubr.f32.mxu0 %v93
  %973 = vmatmul.mubr.f32.gmra.mxu0 %v92
  %v974 = vpop.f32.mrf.mxu0
  %v975 = vadd.f32 0.0, %v974
  %v976 = vpop.f32.mrf.mxu0
  %v977 = vadd.f32 0.0, %v976
  %978 = vmatprep.mubr.f32.mxu0 %v111
  %979 = vmatmul.mubr.f32.gmra.mxu0 %v110
  %v980 = vpop.f32.mrf.mxu0
  %v981 = vadd.f32 0.0, %v980
  %v982 = vpop.f32.mrf.mxu0
  %v983 = vadd.f32 0.0, %v982
  %984 = vmatprep.mubr.f32.mxu0 %v129
  %985 = vmatmul.mubr.f32.gmra.mxu0 %v128
  %v986 = vpop.f32.mrf.mxu0
  %v987 = vadd.f32 0.0, %v986
  %v988 = vpop.f32.mrf.mxu0
  %v989 = vadd.f32 0.0, %v988
  %990 = vmatprep.mubr.f32.mxu0 %v147
  %991 = vmatmul.mubr.f32.gmra.mxu0 %v146
  %v992 = vpop.f32.mrf.mxu0
  %v993 = vadd.f32 0.0, %v992
  %v994 = vpop.f32.mrf.mxu0
  %v995 = vadd.f32 0.0, %v994
  %996 = vmatprep.mubr.f32.mxu0 %v165
  %997 = vmatmul.mubr.f32.gmra.mxu0 %v164
  %v998 = vpop.f32.mrf.mxu0
  %v999 = vadd.f32 0.0, %v998
  %v1000 = vpop.f32.mrf.mxu0
  %v1001 = vadd.f32 0.0, %v1000
  %1002 = vmatprep.mubr.f32.mxu0 %v183
  %1003 = vmatmul.mubr.f32.gmra.mxu0 %v182
  %v1004 = vpop.f32.mrf.mxu0
  %v1005 = vadd.f32 0.0, %v1004
  %v1006 = vpop.f32.mrf.mxu0
  %v1007 = vadd.f32 0.0, %v1006
  %1008 = vmatprep.mubr.f32.mxu0 %v201
  %1009 = vmatmul.mubr.f32.gmra.mxu0 %v200
  %v1010 = vpop.f32.mrf.mxu0
  %v1011 = vadd.f32 0.0, %v1010
  %v1012 = vpop.f32.mrf.mxu0
  %v1013 = vadd.f32 0.0, %v1012
  %1014 = vmatprep.mubr.f32.mxu0 %v219
  %1015 = vmatmul.mubr.f32.gmra.mxu0 %v218
  %v1016 = vpop.f32.mrf.mxu0
  %v1017 = vadd.f32 0.0, %v1016
  %v1018 = vpop.f32.mrf.mxu0
  %v1019 = vadd.f32 0.0, %v1018
  %1020 = vmatprep.mubr.f32.mxu0 %v237
  %1021 = vmatmul.mubr.f32.gmra.mxu0 %v236
  %v1022 = vpop.f32.mrf.mxu0
  %v1023 = vadd.f32 0.0, %v1022
  %v1024 = vpop.f32.mrf.mxu0
  %v1025 = vadd.f32 0.0, %v1024
  %1026 = vmatprep.mubr.f32.mxu0 %v255
  %1027 = vmatmul.mubr.f32.gmra.mxu0 %v254
  %v1028 = vpop.f32.mrf.mxu0
  %v1029 = vadd.f32 0.0, %v1028
  %v1030 = vpop.f32.mrf.mxu0
  %v1031 = vadd.f32 0.0, %v1030
  %1032 = vmatprep.mubr.f32.mxu0 %v273
  %1033 = vmatmul.mubr.f32.gmra.mxu0 %v272
  %v1034 = vpop.f32.mrf.mxu0
  %v1035 = vadd.f32 0.0, %v1034
  %v1036 = vpop.f32.mrf.mxu0
  %v1037 = vadd.f32 0.0, %v1036
  %1038 = vmatprep.mubr.f32.mxu0 %v291
  %1039 = vmatmul.mubr.f32.gmra.mxu0 %v290
  %v1040 = vpop.f32.mrf.mxu0
  %v1041 = vadd.f32 0.0, %v1040
  %v1042 = vpop.f32.mrf.mxu0
  %v1043 = vadd.f32 0.0, %v1042
  %1044 = vdwg.mxu0
  %1045 = vmatprep.subr.mxu0 %v403
  %1046 = vmatpush1.msra.mxu0 %v402
  %1047 = vmatprep.subr.mxu0 %v401
  %1048 = vmatpush1.msra.mxu0 %v400
  %1049 = vmatprep.subr.mxu0 %v399
  %1050 = vmatpush1.msra.mxu0 %v398
  %1051 = vmatprep.subr.mxu0 %v397
  %1052 = vmatpush1.msra.mxu0 %v396
  %1053 = vmatprep.subr.mxu0 %v395
  %1054 = vmatpush1.msra.mxu0 %v394
  %1055 = vmatprep.subr.mxu0 %v393
  %1056 = vmatpush1.msra.mxu0 %v392
  %1057 = vmatprep.subr.mxu0 %v391
  %1058 = vmatpush1.msra.mxu0 %v390
  %1059 = vmatprep.subr.mxu0 %v389
  %1060 = vmatpush1.msra.mxu0 %v388
  %1061 = vmatprep.subr.mxu0 %v387
  %1062 = vmatpush1.msra.mxu0 %v386
  %1063 = vmatprep.subr.mxu0 %v385
  %1064 = vmatpush1.msra.mxu0 %v384
  %1065 = vmatprep.subr.mxu0 %v383
  %1066 = vmatpush1.msra.mxu0 %v382
  %1067 = vmatprep.subr.mxu0 %v381
  %1068 = vmatpush1.msra.mxu0 %v380
  %1069 = vmatprep.subr.mxu0 %v379
  %1070 = vmatpush1.msra.mxu0 %v378
  %1071 = vmatprep.subr.mxu0 %v377
  %1072 = vmatpush1.msra.mxu0 %v376
  %1073 = vmatprep.subr.mxu0 %v375
  %1074 = vmatpush1.msra.mxu0 %v374
  %1075 = vmatprep.subr.mxu0 %v373
  %1076 = vmatpush1.msra.mxu0 %v372
  %1077 = vmatprep.subr.mxu0 %v435
  %1078 = vmatpush2.msra.mxu0 %v434
  %1079 = vmatprep.subr.mxu0 %v433
  %1080 = vmatpush2.msra.mxu0 %v432
  %1081 = vmatprep.subr.mxu0 %v431
  %1082 = vmatpush2.msra.mxu0 %v430
  %1083 = vmatprep.subr.mxu0 %v429
  %1084 = vmatpush2.msra.mxu0 %v428
  %1085 = vmatprep.subr.mxu0 %v427
  %1086 = vmatpush2.msra.mxu0 %v426
  %1087 = vmatprep.subr.mxu0 %v425
  %1088 = vmatpush2.msra.mxu0 %v424
  %1089 = vmatprep.subr.mxu0 %v423
  %1090 = vmatpush2.msra.mxu0 %v422
  %1091 = vmatprep.subr.mxu0 %v421
  %1092 = vmatpush2.msra.mxu0 %v420
  %1093 = vmatprep.subr.mxu0 %v419
  %1094 = vmatpush2.msra.mxu0 %v418
  %1095 = vmatprep.subr.mxu0 %v417
  %1096 = vmatpush2.msra.mxu0 %v416
  %1097 = vmatprep.subr.mxu0 %v415
  %1098 = vmatpush2.msra.mxu0 %v414
  %1099 = vmatprep.subr.mxu0 %v413
  %1100 = vmatpush2.msra.mxu0 %v412
  %1101 = vmatprep.subr.mxu0 %v411
  %1102 = vmatpush2.msra.mxu0 %v410
  %1103 = vmatprep.subr.mxu0 %v409
  %1104 = vmatpush2.msra.mxu0 %v408
  %1105 = vmatprep.subr.mxu0 %v407
  %1106 = vmatpush2.msra.mxu0 %v406
  %1107 = vmatprep.subr.mxu0 %v405
  %1108 = vmatpush2.msra.mxu0 %v404
  %1109 = vmatprep.mubr.f32.mxu0 %v23
  %1110 = vmatmul.mubr.f32.gmra.mxu0 %v22
  %v1111 = vpop.f32.mrf.mxu0
  %v1112 = vadd.f32 %v951, %v1111
  %v1113 = vpop.f32.mrf.mxu0
  %v1114 = vadd.f32 %v953, %v1113
  %1115 = vmatprep.mubr.f32.mxu0 %v41
  %1116 = vmatmul.mubr.f32.gmra.mxu0 %v40
  %v1117 = vpop.f32.mrf.mxu0
  %v1118 = vadd.f32 %v957, %v1117
  %v1119 = vpop.f32.mrf.mxu0
  %v1120 = vadd.f32 %v959, %v1119
  %1121 = vmatprep.mubr.f32.mxu0 %v59
  %1122 = vmatmul.mubr.f32.gmra.mxu0 %v58
  %v1123 = vpop.f32.mrf.mxu0
  %v1124 = vadd.f32 %v963, %v1123
  %v1125 = vpop.f32.mrf.mxu0
  %v1126 = vadd.f32 %v965, %v1125
  %1127 = vmatprep.mubr.f32.mxu0 %v77
  %1128 = vmatmul.mubr.f32.gmra.mxu0 %v76
  %v1129 = vpop.f32.mrf.mxu0
  %v1130 = vadd.f32 %v969, %v1129
  %v1131 = vpop.f32.mrf.mxu0
  %v1132 = vadd.f32 %v971, %v1131
  %1133 = vmatprep.mubr.f32.mxu0 %v95
  %1134 = vmatmul.mubr.f32.gmra.mxu0 %v94
  %v1135 = vpop.f32.mrf.mxu0
  %v1136 = vadd.f32 %v975, %v1135
  %v1137 = vpop.f32.mrf.mxu0
  %v1138 = vadd.f32 %v977, %v1137
  %1139 = vmatprep.mubr.f32.mxu0 %v113
  %1140 = vmatmul.mubr.f32.gmra.mxu0 %v112
  %v1141 = vpop.f32.mrf.mxu0
  %v1142 = vadd.f32 %v981, %v1141
  %v1143 = vpop.f32.mrf.mxu0
  %v1144 = vadd.f32 %v983, %v1143
  %1145 = vmatprep.mubr.f32.mxu0 %v131
  %1146 = vmatmul.mubr.f32.gmra.mxu0 %v130
  %v1147 = vpop.f32.mrf.mxu0
  %v1148 = vadd.f32 %v987, %v1147
  %v1149 = vpop.f32.mrf.mxu0
  %v1150 = vadd.f32 %v989, %v1149
  %1151 = vmatprep.mubr.f32.mxu0 %v149
  %1152 = vmatmul.mubr.f32.gmra.mxu0 %v148
  %v1153 = vpop.f32.mrf.mxu0
  %v1154 = vadd.f32 %v993, %v1153
  %v1155 = vpop.f32.mrf.mxu0
  %v1156 = vadd.f32 %v995, %v1155
  %1157 = vmatprep.mubr.f32.mxu0 %v167
  %1158 = vmatmul.mubr.f32.gmra.mxu0 %v166
  %v1159 = vpop.f32.mrf.mxu0
  %v1160 = vadd.f32 %v999, %v1159
  %v1161 = vpop.f32.mrf.mxu0
  %v1162 = vadd.f32 %v1001, %v1161
  %1163 = vmatprep.mubr.f32.mxu0 %v185
  %1164 = vmatmul.mubr.f32.gmra.mxu0 %v184
  %v1165 = vpop.f32.mrf.mxu0
  %v1166 = vadd.f32 %v1005, %v1165
  %v1167 = vpop.f32.mrf.mxu0
  %v1168 = vadd.f32 %v1007, %v1167
  %1169 = vmatprep.mubr.f32.mxu0 %v203
  %1170 = vmatmul.mubr.f32.gmra.mxu0 %v202
  %v1171 = vpop.f32.mrf.mxu0
  %v1172 = vadd.f32 %v1011, %v1171
  %v1173 = vpop.f32.mrf.mxu0
  %v1174 = vadd.f32 %v1013, %v1173
  %1175 = vmatprep.mubr.f32.mxu0 %v221
  %1176 = vmatmul.mubr.f32.gmra.mxu0 %v220
  %v1177 = vpop.f32.mrf.mxu0
  %v1178 = vadd.f32 %v1017, %v1177
  %v1179 = vpop.f32.mrf.mxu0
  %v1180 = vadd.f32 %v1019, %v1179
  %1181 = vmatprep.mubr.f32.mxu0 %v239
  %1182 = vmatmul.mubr.f32.gmra.mxu0 %v238
  %v1183 = vpop.f32.mrf.mxu0
  %v1184 = vadd.f32 %v1023, %v1183
  %v1185 = vpop.f32.mrf.mxu0
  %v1186 = vadd.f32 %v1025, %v1185
  %1187 = vmatprep.mubr.f32.mxu0 %v257
  %1188 = vmatmul.mubr.f32.gmra.mxu0 %v256
  %v1189 = vpop.f32.mrf.mxu0
  %v1190 = vadd.f32 %v1029, %v1189
  %v1191 = vpop.f32.mrf.mxu0
  %v1192 = vadd.f32 %v1031, %v1191
  %1193 = vmatprep.mubr.f32.mxu0 %v275
  %1194 = vmatmul.mubr.f32.gmra.mxu0 %v274
  %v1195 = vpop.f32.mrf.mxu0
  %v1196 = vadd.f32 %v1035, %v1195
  %v1197 = vpop.f32.mrf.mxu0
  %v1198 = vadd.f32 %v1037, %v1197
  %1199 = vmatprep.mubr.f32.mxu0 %v293
  %1200 = vmatmul.mubr.f32.gmra.mxu0 %v292
  %v1201 = vpop.f32.mrf.mxu0
  %v1202 = vadd.f32 %v1041, %v1201
  %v1203 = vpop.f32.mrf.mxu0
  %v1204 = vadd.f32 %v1043, %v1203
  %1205 = vdwg.mxu0
  %1206 = vmatprep.subr.mxu0 %v467
  %1207 = vmatpush1.msra.mxu0 %v466
  %1208 = vmatprep.subr.mxu0 %v465
  %1209 = vmatpush1.msra.mxu0 %v464
  %1210 = vmatprep.subr.mxu0 %v463
  %1211 = vmatpush1.msra.mxu0 %v462
  %1212 = vmatprep.subr.mxu0 %v461
  %1213 = vmatpush1.msra.mxu0 %v460
  %1214 = vmatprep.subr.mxu0 %v459
  %1215 = vmatpush1.msra.mxu0 %v458
  %1216 = vmatprep.subr.mxu0 %v457
  %1217 = vmatpush1.msra.mxu0 %v456
  %1218 = vmatprep.subr.mxu0 %v455
  %1219 = vmatpush1.msra.mxu0 %v454
  %1220 = vmatprep.subr.mxu0 %v453
  %1221 = vmatpush1.msra.mxu0 %v452
  %1222 = vmatprep.subr.mxu0 %v451
  %1223 = vmatpush1.msra.mxu0 %v450
  %1224 = vmatprep.subr.mxu0 %v449
  %1225 = vmatpush1.msra.mxu0 %v448
  %1226 = vmatprep.subr.mxu0 %v447
  %1227 = vmatpush1.msra.mxu0 %v446
  %1228 = vmatprep.subr.mxu0 %v445
  %1229 = vmatpush1.msra.mxu0 %v444
  %1230 = vmatprep.subr.mxu0 %v443
  %1231 = vmatpush1.msra.mxu0 %v442
  %1232 = vmatprep.subr.mxu0 %v441
  %1233 = vmatpush1.msra.mxu0 %v440
  %1234 = vmatprep.subr.mxu0 %v439
  %1235 = vmatpush1.msra.mxu0 %v438
  %1236 = vmatprep.subr.mxu0 %v437
  %1237 = vmatpush1.msra.mxu0 %v436
  %1238 = vmatprep.subr.mxu0 %v499
  %1239 = vmatpush2.msra.mxu0 %v498
  %1240 = vmatprep.subr.mxu0 %v497
  %1241 = vmatpush2.msra.mxu0 %v496
  %1242 = vmatprep.subr.mxu0 %v495
  %1243 = vmatpush2.msra.mxu0 %v494
  %1244 = vmatprep.subr.mxu0 %v493
  %1245 = vmatpush2.msra.mxu0 %v492
  %1246 = vmatprep.subr.mxu0 %v491
  %1247 = vmatpush2.msra.mxu0 %v490
  %1248 = vmatprep.subr.mxu0 %v489
  %1249 = vmatpush2.msra.mxu0 %v488
  %1250 = vmatprep.subr.mxu0 %v487
  %1251 = vmatpush2.msra.mxu0 %v486
  %1252 = vmatprep.subr.mxu0 %v485
  %1253 = vmatpush2.msra.mxu0 %v484
  %1254 = vmatprep.subr.mxu0 %v483
  %1255 = vmatpush2.msra.mxu0 %v482
  %1256 = vmatprep.subr.mxu0 %v481
  %1257 = vmatpush2.msra.mxu0 %v480
  %1258 = vmatprep.subr.mxu0 %v479
  %1259 = vmatpush2.msra.mxu0 %v478
  %1260 = vmatprep.subr.mxu0 %v477
  %1261 = vmatpush2.msra.mxu0 %v476
  %1262 = vmatprep.subr.mxu0 %v475
  %1263 = vmatpush2.msra.mxu0 %v474
  %1264 = vmatprep.subr.mxu0 %v473
  %1265 = vmatpush2.msra.mxu0 %v472
  %1266 = vmatprep.subr.mxu0 %v471
  %1267 = vmatpush2.msra.mxu0 %v470
  %1268 = vmatprep.subr.mxu0 %v469
  %1269 = vmatpush2.msra.mxu0 %v468
  %1270 = vmatprep.mubr.f32.mxu0 %v25
  %1271 = vmatmul.mubr.f32.gmra.mxu0 %v24
  %v1272 = vpop.f32.mrf.mxu0
  %v1273 = vadd.f32 %v1112, %v1272
  %v1274 = vpop.f32.mrf.mxu0
  %v1275 = vadd.f32 %v1114, %v1274
  %1276 = vmatprep.mubr.f32.mxu0 %v43
  %1277 = vmatmul.mubr.f32.gmra.mxu0 %v42
  %v1278 = vpop.f32.mrf.mxu0
  %v1279 = vadd.f32 %v1118, %v1278
  %v1280 = vpop.f32.mrf.mxu0
  %v1281 = vadd.f32 %v1120, %v1280
  %1282 = vmatprep.mubr.f32.mxu0 %v61
  %1283 = vmatmul.mubr.f32.gmra.mxu0 %v60
  %v1284 = vpop.f32.mrf.mxu0
  %v1285 = vadd.f32 %v1124, %v1284
  %v1286 = vpop.f32.mrf.mxu0
  %v1287 = vadd.f32 %v1126, %v1286
  %1288 = vmatprep.mubr.f32.mxu0 %v79
  %1289 = vmatmul.mubr.f32.gmra.mxu0 %v78
  %v1290 = vpop.f32.mrf.mxu0
  %v1291 = vadd.f32 %v1130, %v1290
  %v1292 = vpop.f32.mrf.mxu0
  %v1293 = vadd.f32 %v1132, %v1292
  %1294 = vmatprep.mubr.f32.mxu0 %v97
  %1295 = vmatmul.mubr.f32.gmra.mxu0 %v96
  %v1296 = vpop.f32.mrf.mxu0
  %v1297 = vadd.f32 %v1136, %v1296
  %v1298 = vpop.f32.mrf.mxu0
  %v1299 = vadd.f32 %v1138, %v1298
  %1300 = vmatprep.mubr.f32.mxu0 %v115
  %1301 = vmatmul.mubr.f32.gmra.mxu0 %v114
  %v1302 = vpop.f32.mrf.mxu0
  %v1303 = vadd.f32 %v1142, %v1302
  %v1304 = vpop.f32.mrf.mxu0
  %v1305 = vadd.f32 %v1144, %v1304
  %1306 = vmatprep.mubr.f32.mxu0 %v133
  %1307 = vmatmul.mubr.f32.gmra.mxu0 %v132
  %v1308 = vpop.f32.mrf.mxu0
  %v1309 = vadd.f32 %v1148, %v1308
  %v1310 = vpop.f32.mrf.mxu0
  %v1311 = vadd.f32 %v1150, %v1310
  %1312 = vmatprep.mubr.f32.mxu0 %v151
  %1313 = vmatmul.mubr.f32.gmra.mxu0 %v150
  %v1314 = vpop.f32.mrf.mxu0
  %v1315 = vadd.f32 %v1154, %v1314
  %v1316 = vpop.f32.mrf.mxu0
  %v1317 = vadd.f32 %v1156, %v1316
  %1318 = vmatprep.mubr.f32.mxu0 %v169
  %1319 = vmatmul.mubr.f32.gmra.mxu0 %v168
  %v1320 = vpop.f32.mrf.mxu0
  %v1321 = vadd.f32 %v1160, %v1320
  %v1322 = vpop.f32.mrf.mxu0
  %v1323 = vadd.f32 %v1162, %v1322
  %1324 = vmatprep.mubr.f32.mxu0 %v187
  %1325 = vmatmul.mubr.f32.gmra.mxu0 %v186
  %v1326 = vpop.f32.mrf.mxu0
  %v1327 = vadd.f32 %v1166, %v1326
  %v1328 = vpop.f32.mrf.mxu0
  %v1329 = vadd.f32 %v1168, %v1328
  %1330 = vmatprep.mubr.f32.mxu0 %v205
  %1331 = vmatmul.mubr.f32.gmra.mxu0 %v204
  %v1332 = vpop.f32.mrf.mxu0
  %v1333 = vadd.f32 %v1172, %v1332
  %v1334 = vpop.f32.mrf.mxu0
  %v1335 = vadd.f32 %v1174, %v1334
  %1336 = vmatprep.mubr.f32.mxu0 %v223
  %1337 = vmatmul.mubr.f32.gmra.mxu0 %v222
  %v1338 = vpop.f32.mrf.mxu0
  %v1339 = vadd.f32 %v1178, %v1338
  %v1340 = vpop.f32.mrf.mxu0
  %v1341 = vadd.f32 %v1180, %v1340
  %1342 = vmatprep.mubr.f32.mxu0 %v241
  %1343 = vmatmul.mubr.f32.gmra.mxu0 %v240
  %v1344 = vpop.f32.mrf.mxu0
  %v1345 = vadd.f32 %v1184, %v1344
  %v1346 = vpop.f32.mrf.mxu0
  %v1347 = vadd.f32 %v1186, %v1346
  %1348 = vmatprep.mubr.f32.mxu0 %v259
  %1349 = vmatmul.mubr.f32.gmra.mxu0 %v258
  %v1350 = vpop.f32.mrf.mxu0
  %v1351 = vadd.f32 %v1190, %v1350
  %v1352 = vpop.f32.mrf.mxu0
  %v1353 = vadd.f32 %v1192, %v1352
  %1354 = vmatprep.mubr.f32.mxu0 %v277
  %1355 = vmatmul.mubr.f32.gmra.mxu0 %v276
  %v1356 = vpop.f32.mrf.mxu0
  %v1357 = vadd.f32 %v1196, %v1356
  %v1358 = vpop.f32.mrf.mxu0
  %v1359 = vadd.f32 %v1198, %v1358
  %1360 = vmatprep.mubr.f32.mxu0 %v295
  %1361 = vmatmul.mubr.f32.gmra.mxu0 %v294
  %v1362 = vpop.f32.mrf.mxu0
  %v1363 = vadd.f32 %v1202, %v1362
  %v1364 = vpop.f32.mrf.mxu0
  %v1365 = vadd.f32 %v1204, %v1364
  %1366 = vdwg.mxu0
  %1367 = vmatprep.subr.mxu0 %v531
  %1368 = vmatpush1.msra.mxu0 %v530
  %1369 = vmatprep.subr.mxu0 %v529
  %1370 = vmatpush1.msra.mxu0 %v528
  %1371 = vmatprep.subr.mxu0 %v527
  %1372 = vmatpush1.msra.mxu0 %v526
  %1373 = vmatprep.subr.mxu0 %v525
  %1374 = vmatpush1.msra.mxu0 %v524
  %1375 = vmatprep.subr.mxu0 %v523
  %1376 = vmatpush1.msra.mxu0 %v522
  %1377 = vmatprep.subr.mxu0 %v521
  %1378 = vmatpush1.msra.mxu0 %v520
  %1379 = vmatprep.subr.mxu0 %v519
  %1380 = vmatpush1.msra.mxu0 %v518
  %1381 = vmatprep.subr.mxu0 %v517
  %1382 = vmatpush1.msra.mxu0 %v516
  %1383 = vmatprep.subr.mxu0 %v515
  %1384 = vmatpush1.msra.mxu0 %v514
  %1385 = vmatprep.subr.mxu0 %v513
  %1386 = vmatpush1.msra.mxu0 %v512
  %1387 = vmatprep.subr.mxu0 %v511
  %1388 = vmatpush1.msra.mxu0 %v510
  %1389 = vmatprep.subr.mxu0 %v509
  %1390 = vmatpush1.msra.mxu0 %v508
  %1391 = vmatprep.subr.mxu0 %v507
  %1392 = vmatpush1.msra.mxu0 %v506
  %1393 = vmatprep.subr.mxu0 %v505
  %1394 = vmatpush1.msra.mxu0 %v504
  %1395 = vmatprep.subr.mxu0 %v503
  %1396 = vmatpush1.msra.mxu0 %v502
  %1397 = vmatprep.subr.mxu0 %v501
  %1398 = vmatpush1.msra.mxu0 %v500
  %1399 = vmatprep.subr.mxu0 %v563
  %1400 = vmatpush2.msra.mxu0 %v562
  %1401 = vmatprep.subr.mxu0 %v561
  %1402 = vmatpush2.msra.mxu0 %v560
  %1403 = vmatprep.subr.mxu0 %v559
  %1404 = vmatpush2.msra.mxu0 %v558
  %1405 = vmatprep.subr.mxu0 %v557
  %1406 = vmatpush2.msra.mxu0 %v556
  %1407 = vmatprep.subr.mxu0 %v555
  %1408 = vmatpush2.msra.mxu0 %v554
  %1409 = vmatprep.subr.mxu0 %v553
  %1410 = vmatpush2.msra.mxu0 %v552
  %1411 = vmatprep.subr.mxu0 %v551
  %1412 = vmatpush2.msra.mxu0 %v550
  %1413 = vmatprep.subr.mxu0 %v549
  %1414 = vmatpush2.msra.mxu0 %v548
  %1415 = vmatprep.subr.mxu0 %v547
  %1416 = vmatpush2.msra.mxu0 %v546
  %1417 = vmatprep.subr.mxu0 %v545
  %1418 = vmatpush2.msra.mxu0 %v544
  %1419 = vmatprep.subr.mxu0 %v543
  %1420 = vmatpush2.msra.mxu0 %v542
  %1421 = vmatprep.subr.mxu0 %v541
  %1422 = vmatpush2.msra.mxu0 %v540
  %1423 = vmatprep.subr.mxu0 %v539
  %1424 = vmatpush2.msra.mxu0 %v538
  %1425 = vmatprep.subr.mxu0 %v537
  %1426 = vmatpush2.msra.mxu0 %v536
  %1427 = vmatprep.subr.mxu0 %v535
  %1428 = vmatpush2.msra.mxu0 %v534
  %1429 = vmatprep.subr.mxu0 %v533
  %1430 = vmatpush2.msra.mxu0 %v532
  %1431 = vmatprep.mubr.f32.mxu0 %v27
  %1432 = vmatmul.mubr.f32.gmra.mxu0 %v26
  %v1433 = vpop.f32.mrf.mxu0
  %v1434 = vadd.f32 %v1273, %v1433
  %v1435 = vpop.f32.mrf.mxu0
  %v1436 = vadd.f32 %v1275, %v1435
  %1437 = vmatprep.mubr.f32.mxu0 %v45
  %1438 = vmatmul.mubr.f32.gmra.mxu0 %v44
  %v1439 = vpop.f32.mrf.mxu0
  %v1440 = vadd.f32 %v1279, %v1439
  %v1441 = vpop.f32.mrf.mxu0
  %v1442 = vadd.f32 %v1281, %v1441
  %1443 = vmatprep.mubr.f32.mxu0 %v63
  %1444 = vmatmul.mubr.f32.gmra.mxu0 %v62
  %v1445 = vpop.f32.mrf.mxu0
  %v1446 = vadd.f32 %v1285, %v1445
  %v1447 = vpop.f32.mrf.mxu0
  %v1448 = vadd.f32 %v1287, %v1447
  %1449 = vmatprep.mubr.f32.mxu0 %v81
  %1450 = vmatmul.mubr.f32.gmra.mxu0 %v80
  %v1451 = vpop.f32.mrf.mxu0
  %v1452 = vadd.f32 %v1291, %v1451
  %v1453 = vpop.f32.mrf.mxu0
  %v1454 = vadd.f32 %v1293, %v1453
  %1455 = vmatprep.mubr.f32.mxu0 %v99
  %1456 = vmatmul.mubr.f32.gmra.mxu0 %v98
  %v1457 = vpop.f32.mrf.mxu0
  %v1458 = vadd.f32 %v1297, %v1457
  %v1459 = vpop.f32.mrf.mxu0
  %v1460 = vadd.f32 %v1299, %v1459
  %1461 = vmatprep.mubr.f32.mxu0 %v117
  %1462 = vmatmul.mubr.f32.gmra.mxu0 %v116
  %v1463 = vpop.f32.mrf.mxu0
  %v1464 = vadd.f32 %v1303, %v1463
  %v1465 = vpop.f32.mrf.mxu0
  %v1466 = vadd.f32 %v1305, %v1465
  %1467 = vmatprep.mubr.f32.mxu0 %v135
  %1468 = vmatmul.mubr.f32.gmra.mxu0 %v134
  %v1469 = vpop.f32.mrf.mxu0
  %v1470 = vadd.f32 %v1309, %v1469
  %v1471 = vpop.f32.mrf.mxu0
  %v1472 = vadd.f32 %v1311, %v1471
  %1473 = vmatprep.mubr.f32.mxu0 %v153
  %1474 = vmatmul.mubr.f32.gmra.mxu0 %v152
  %v1475 = vpop.f32.mrf.mxu0
  %v1476 = vadd.f32 %v1315, %v1475
  %v1477 = vpop.f32.mrf.mxu0
  %v1478 = vadd.f32 %v1317, %v1477
  %1479 = vmatprep.mubr.f32.mxu0 %v171
  %1480 = vmatmul.mubr.f32.gmra.mxu0 %v170
  %v1481 = vpop.f32.mrf.mxu0
  %v1482 = vadd.f32 %v1321, %v1481
  %v1483 = vpop.f32.mrf.mxu0
  %v1484 = vadd.f32 %v1323, %v1483
  %1485 = vmatprep.mubr.f32.mxu0 %v189
  %1486 = vmatmul.mubr.f32.gmra.mxu0 %v188
  %v1487 = vpop.f32.mrf.mxu0
  %v1488 = vadd.f32 %v1327, %v1487
  %v1489 = vpop.f32.mrf.mxu0
  %v1490 = vadd.f32 %v1329, %v1489
  %1491 = vmatprep.mubr.f32.mxu0 %v207
  %1492 = vmatmul.mubr.f32.gmra.mxu0 %v206
  %v1493 = vpop.f32.mrf.mxu0
  %v1494 = vadd.f32 %v1333, %v1493
  %v1495 = vpop.f32.mrf.mxu0
  %v1496 = vadd.f32 %v1335, %v1495
  %1497 = vmatprep.mubr.f32.mxu0 %v225
  %1498 = vmatmul.mubr.f32.gmra.mxu0 %v224
  %v1499 = vpop.f32.mrf.mxu0
  %v1500 = vadd.f32 %v1339, %v1499
  %v1501 = vpop.f32.mrf.mxu0
  %v1502 = vadd.f32 %v1341, %v1501
  %1503 = vmatprep.mubr.f32.mxu0 %v243
  %1504 = vmatmul.mubr.f32.gmra.mxu0 %v242
  %v1505 = vpop.f32.mrf.mxu0
  %v1506 = vadd.f32 %v1345, %v1505
  %v1507 = vpop.f32.mrf.mxu0
  %v1508 = vadd.f32 %v1347, %v1507
  %1509 = vmatprep.mubr.f32.mxu0 %v261
  %1510 = vmatmul.mubr.f32.gmra.mxu0 %v260
  %v1511 = vpop.f32.mrf.mxu0
  %v1512 = vadd.f32 %v1351, %v1511
  %v1513 = vpop.f32.mrf.mxu0
  %v1514 = vadd.f32 %v1353, %v1513
  %1515 = vmatprep.mubr.f32.mxu0 %v279
  %1516 = vmatmul.mubr.f32.gmra.mxu0 %v278
  %v1517 = vpop.f32.mrf.mxu0
  %v1518 = vadd.f32 %v1357, %v1517
  %v1519 = vpop.f32.mrf.mxu0
  %v1520 = vadd.f32 %v1359, %v1519
  %1521 = vmatprep.mubr.f32.mxu0 %v297
  %1522 = vmatmul.mubr.f32.gmra.mxu0 %v296
  %v1523 = vpop.f32.mrf.mxu0
  %v1524 = vadd.f32 %v1363, %v1523
  %v1525 = vpop.f32.mrf.mxu0
  %v1526 = vadd.f32 %v1365, %v1525
  %1527 = vdwg.mxu0
  %1528 = vmatprep.subr.mxu0 %v595
  %1529 = vmatpush1.msra.mxu0 %v594
  %1530 = vmatprep.subr.mxu0 %v593
  %1531 = vmatpush1.msra.mxu0 %v592
  %1532 = vmatprep.subr.mxu0 %v591
  %1533 = vmatpush1.msra.mxu0 %v590
  %1534 = vmatprep.subr.mxu0 %v589
  %1535 = vmatpush1.msra.mxu0 %v588
  %1536 = vmatprep.subr.mxu0 %v587
  %1537 = vmatpush1.msra.mxu0 %v586
  %1538 = vmatprep.subr.mxu0 %v585
  %1539 = vmatpush1.msra.mxu0 %v584
  %1540 = vmatprep.subr.mxu0 %v583
  %1541 = vmatpush1.msra.mxu0 %v582
  %1542 = vmatprep.subr.mxu0 %v581
  %1543 = vmatpush1.msra.mxu0 %v580
  %1544 = vmatprep.subr.mxu0 %v579
  %1545 = vmatpush1.msra.mxu0 %v578
  %1546 = vmatprep.subr.mxu0 %v577
  %1547 = vmatpush1.msra.mxu0 %v576
  %1548 = vmatprep.subr.mxu0 %v575
  %1549 = vmatpush1.msra.mxu0 %v574
  %1550 = vmatprep.subr.mxu0 %v573
  %1551 = vmatpush1.msra.mxu0 %v572
  %1552 = vmatprep.subr.mxu0 %v571
  %1553 = vmatpush1.msra.mxu0 %v570
  %1554 = vmatprep.subr.mxu0 %v569
  %1555 = vmatpush1.msra.mxu0 %v568
  %1556 = vmatprep.subr.mxu0 %v567
  %1557 = vmatpush1.msra.mxu0 %v566
  %1558 = vmatprep.subr.mxu0 %v565
  %1559 = vmatpush1.msra.mxu0 %v564
  %1560 = vmatprep.subr.mxu0 %v627
  %1561 = vmatpush2.msra.mxu0 %v626
  %1562 = vmatprep.subr.mxu0 %v625
  %1563 = vmatpush2.msra.mxu0 %v624
  %1564 = vmatprep.subr.mxu0 %v623
  %1565 = vmatpush2.msra.mxu0 %v622
  %1566 = vmatprep.subr.mxu0 %v621
  %1567 = vmatpush2.msra.mxu0 %v620
  %1568 = vmatprep.subr.mxu0 %v619
  %1569 = vmatpush2.msra.mxu0 %v618
  %1570 = vmatprep.subr.mxu0 %v617
  %1571 = vmatpush2.msra.mxu0 %v616
  %1572 = vmatprep.subr.mxu0 %v615
  %1573 = vmatpush2.msra.mxu0 %v614
  %1574 = vmatprep.subr.mxu0 %v613
  %1575 = vmatpush2.msra.mxu0 %v612
  %1576 = vmatprep.subr.mxu0 %v611
  %1577 = vmatpush2.msra.mxu0 %v610
  %1578 = vmatprep.subr.mxu0 %v609
  %1579 = vmatpush2.msra.mxu0 %v608
  %1580 = vmatprep.subr.mxu0 %v607
  %1581 = vmatpush2.msra.mxu0 %v606
  %1582 = vmatprep.subr.mxu0 %v605
  %1583 = vmatpush2.msra.mxu0 %v604
  %1584 = vmatprep.subr.mxu0 %v603
  %1585 = vmatpush2.msra.mxu0 %v602
  %1586 = vmatprep.subr.mxu0 %v601
  %1587 = vmatpush2.msra.mxu0 %v600
  %1588 = vmatprep.subr.mxu0 %v599
  %1589 = vmatpush2.msra.mxu0 %v598
  %1590 = vmatprep.subr.mxu0 %v597
  %1591 = vmatpush2.msra.mxu0 %v596
  %1592 = vmatprep.mubr.f32.mxu0 %v29
  %1593 = vmatmul.mubr.f32.gmra.mxu0 %v28
  %v1594 = vpop.f32.mrf.mxu0
  %v1595 = vadd.f32 %v1434, %v1594
  %v1596 = vpop.f32.mrf.mxu0
  %v1597 = vadd.f32 %v1436, %v1596
  %1598 = vmatprep.mubr.f32.mxu0 %v47
  %1599 = vmatmul.mubr.f32.gmra.mxu0 %v46
  %v1600 = vpop.f32.mrf.mxu0
  %v1601 = vadd.f32 %v1440, %v1600
  %v1602 = vpop.f32.mrf.mxu0
  %v1603 = vadd.f32 %v1442, %v1602
  %1604 = vmatprep.mubr.f32.mxu0 %v65
  %1605 = vmatmul.mubr.f32.gmra.mxu0 %v64
  %v1606 = vpop.f32.mrf.mxu0
  %v1607 = vadd.f32 %v1446, %v1606
  %v1608 = vpop.f32.mrf.mxu0
  %v1609 = vadd.f32 %v1448, %v1608
  %1610 = vmatprep.mubr.f32.mxu0 %v83
  %1611 = vmatmul.mubr.f32.gmra.mxu0 %v82
  %v1612 = vpop.f32.mrf.mxu0
  %v1613 = vadd.f32 %v1452, %v1612
  %v1614 = vpop.f32.mrf.mxu0
  %v1615 = vadd.f32 %v1454, %v1614
  %1616 = vmatprep.mubr.f32.mxu0 %v101
  %1617 = vmatmul.mubr.f32.gmra.mxu0 %v100
  %v1618 = vpop.f32.mrf.mxu0
  %v1619 = vadd.f32 %v1458, %v1618
  %v1620 = vpop.f32.mrf.mxu0
  %v1621 = vadd.f32 %v1460, %v1620
  %1622 = vmatprep.mubr.f32.mxu0 %v119
  %1623 = vmatmul.mubr.f32.gmra.mxu0 %v118
  %v1624 = vpop.f32.mrf.mxu0
  %v1625 = vadd.f32 %v1464, %v1624
  %v1626 = vpop.f32.mrf.mxu0
  %v1627 = vadd.f32 %v1466, %v1626
  %1628 = vmatprep.mubr.f32.mxu0 %v137
  %1629 = vmatmul.mubr.f32.gmra.mxu0 %v136
  %v1630 = vpop.f32.mrf.mxu0
  %v1631 = vadd.f32 %v1470, %v1630
  %v1632 = vpop.f32.mrf.mxu0
  %v1633 = vadd.f32 %v1472, %v1632
  %1634 = vmatprep.mubr.f32.mxu0 %v155
  %1635 = vmatmul.mubr.f32.gmra.mxu0 %v154
  %v1636 = vpop.f32.mrf.mxu0
  %v1637 = vadd.f32 %v1476, %v1636
  %v1638 = vpop.f32.mrf.mxu0
  %v1639 = vadd.f32 %v1478, %v1638
  %1640 = vmatprep.mubr.f32.mxu0 %v173
  %1641 = vmatmul.mubr.f32.gmra.mxu0 %v172
  %v1642 = vpop.f32.mrf.mxu0
  %v1643 = vadd.f32 %v1482, %v1642
  %v1644 = vpop.f32.mrf.mxu0
  %v1645 = vadd.f32 %v1484, %v1644
  %1646 = vmatprep.mubr.f32.mxu0 %v191
  %1647 = vmatmul.mubr.f32.gmra.mxu0 %v190
  %v1648 = vpop.f32.mrf.mxu0
  %v1649 = vadd.f32 %v1488, %v1648
  %v1650 = vpop.f32.mrf.mxu0
  %v1651 = vadd.f32 %v1490, %v1650
  %1652 = vmatprep.mubr.f32.mxu0 %v209
  %1653 = vmatmul.mubr.f32.gmra.mxu0 %v208
  %v1654 = vpop.f32.mrf.mxu0
  %v1655 = vadd.f32 %v1494, %v1654
  %v1656 = vpop.f32.mrf.mxu0
  %v1657 = vadd.f32 %v1496, %v1656
  %1658 = vmatprep.mubr.f32.mxu0 %v227
  %1659 = vmatmul.mubr.f32.gmra.mxu0 %v226
  %v1660 = vpop.f32.mrf.mxu0
  %v1661 = vadd.f32 %v1500, %v1660
  %v1662 = vpop.f32.mrf.mxu0
  %v1663 = vadd.f32 %v1502, %v1662
  %1664 = vmatprep.mubr.f32.mxu0 %v245
  %1665 = vmatmul.mubr.f32.gmra.mxu0 %v244
  %v1666 = vpop.f32.mrf.mxu0
  %v1667 = vadd.f32 %v1506, %v1666
  %v1668 = vpop.f32.mrf.mxu0
  %v1669 = vadd.f32 %v1508, %v1668
  %1670 = vmatprep.mubr.f32.mxu0 %v263
  %1671 = vmatmul.mubr.f32.gmra.mxu0 %v262
  %v1672 = vpop.f32.mrf.mxu0
  %v1673 = vadd.f32 %v1512, %v1672
  %v1674 = vpop.f32.mrf.mxu0
  %v1675 = vadd.f32 %v1514, %v1674
  %1676 = vmatprep.mubr.f32.mxu0 %v281
  %1677 = vmatmul.mubr.f32.gmra.mxu0 %v280
  %v1678 = vpop.f32.mrf.mxu0
  %v1679 = vadd.f32 %v1518, %v1678
  %v1680 = vpop.f32.mrf.mxu0
  %v1681 = vadd.f32 %v1520, %v1680
  %1682 = vmatprep.mubr.f32.mxu0 %v299
  %1683 = vmatmul.mubr.f32.gmra.mxu0 %v298
  %v1684 = vpop.f32.mrf.mxu0
  %v1685 = vadd.f32 %v1524, %v1684
  %v1686 = vpop.f32.mrf.mxu0
  %v1687 = vadd.f32 %v1526, %v1686
  %1688 = vdwg.mxu0
  %1689 = vmatprep.subr.mxu0 %v659
  %1690 = vmatpush1.msra.mxu0 %v658
  %1691 = vmatprep.subr.mxu0 %v657
  %1692 = vmatpush1.msra.mxu0 %v656
  %1693 = vmatprep.subr.mxu0 %v655
  %1694 = vmatpush1.msra.mxu0 %v654
  %1695 = vmatprep.subr.mxu0 %v653
  %1696 = vmatpush1.msra.mxu0 %v652
  %1697 = vmatprep.subr.mxu0 %v651
  %1698 = vmatpush1.msra.mxu0 %v650
  %1699 = vmatprep.subr.mxu0 %v649
  %1700 = vmatpush1.msra.mxu0 %v648
  %1701 = vmatprep.subr.mxu0 %v647
  %1702 = vmatpush1.msra.mxu0 %v646
  %1703 = vmatprep.subr.mxu0 %v645
  %1704 = vmatpush1.msra.mxu0 %v644
  %1705 = vmatprep.subr.mxu0 %v643
  %1706 = vmatpush1.msra.mxu0 %v642
  %1707 = vmatprep.subr.mxu0 %v641
  %1708 = vmatpush1.msra.mxu0 %v640
  %1709 = vmatprep.subr.mxu0 %v639
  %1710 = vmatpush1.msra.mxu0 %v638
  %1711 = vmatprep.subr.mxu0 %v637
  %1712 = vmatpush1.msra.mxu0 %v636
  %1713 = vmatprep.subr.mxu0 %v635
  %1714 = vmatpush1.msra.mxu0 %v634
  %1715 = vmatprep.subr.mxu0 %v633
  %1716 = vmatpush1.msra.mxu0 %v632
  %1717 = vmatprep.subr.mxu0 %v631
  %1718 = vmatpush1.msra.mxu0 %v630
  %1719 = vmatprep.subr.mxu0 %v629
  %1720 = vmatpush1.msra.mxu0 %v628
  %1721 = vmatprep.subr.mxu0 %v691
  %1722 = vmatpush2.msra.mxu0 %v690
  %1723 = vmatprep.subr.mxu0 %v689
  %1724 = vmatpush2.msra.mxu0 %v688
  %1725 = vmatprep.subr.mxu0 %v687
  %1726 = vmatpush2.msra.mxu0 %v686
  %1727 = vmatprep.subr.mxu0 %v685
  %1728 = vmatpush2.msra.mxu0 %v684
  %1729 = vmatprep.subr.mxu0 %v683
  %1730 = vmatpush2.msra.mxu0 %v682
  %1731 = vmatprep.subr.mxu0 %v681
  %1732 = vmatpush2.msra.mxu0 %v680
  %1733 = vmatprep.subr.mxu0 %v679
  %1734 = vmatpush2.msra.mxu0 %v678
  %1735 = vmatprep.subr.mxu0 %v677
  %1736 = vmatpush2.msra.mxu0 %v676
  %1737 = vmatprep.subr.mxu0 %v675
  %1738 = vmatpush2.msra.mxu0 %v674
  %1739 = vmatprep.subr.mxu0 %v673
  %1740 = vmatpush2.msra.mxu0 %v672
  %1741 = vmatprep.subr.mxu0 %v671
  %1742 = vmatpush2.msra.mxu0 %v670
  %1743 = vmatprep.subr.mxu0 %v669
  %1744 = vmatpush2.msra.mxu0 %v668
  %1745 = vmatprep.subr.mxu0 %v667
  %1746 = vmatpush2.msra.mxu0 %v666
  %1747 = vmatprep.subr.mxu0 %v665
  %1748 = vmatpush2.msra.mxu0 %v664
  %1749 = vmatprep.subr.mxu0 %v663
  %1750 = vmatpush2.msra.mxu0 %v662
  %1751 = vmatprep.subr.mxu0 %v661
  %1752 = vmatpush2.msra.mxu0 %v660
  %1753 = vmatprep.mubr.f32.mxu0 %v31
  %1754 = vmatmul.mubr.f32.gmra.mxu0 %v30
  %v1755 = vpop.f32.mrf.mxu0
  %v1756 = vadd.f32 %v1595, %v1755
  %v1757 = vpop.f32.mrf.mxu0
  %v1758 = vadd.f32 %v1597, %v1757
  %1759 = vmatprep.mubr.f32.mxu0 %v49
  %1760 = vmatmul.mubr.f32.gmra.mxu0 %v48
  %v1761 = vpop.f32.mrf.mxu0
  %v1762 = vadd.f32 %v1601, %v1761
  %v1763 = vpop.f32.mrf.mxu0
  %v1764 = vadd.f32 %v1603, %v1763
  %1765 = vmatprep.mubr.f32.mxu0 %v67
  %1766 = vmatmul.mubr.f32.gmra.mxu0 %v66
  %v1767 = vpop.f32.mrf.mxu0
  %v1768 = vadd.f32 %v1607, %v1767
  %v1769 = vpop.f32.mrf.mxu0
  %v1770 = vadd.f32 %v1609, %v1769
  %1771 = vmatprep.mubr.f32.mxu0 %v85
  %1772 = vmatmul.mubr.f32.gmra.mxu0 %v84
  %v1773 = vpop.f32.mrf.mxu0
  %v1774 = vadd.f32 %v1613, %v1773
  %v1775 = vpop.f32.mrf.mxu0
  %v1776 = vadd.f32 %v1615, %v1775
  %1777 = vmatprep.mubr.f32.mxu0 %v103
  %1778 = vmatmul.mubr.f32.gmra.mxu0 %v102
  %v1779 = vpop.f32.mrf.mxu0
  %v1780 = vadd.f32 %v1619, %v1779
  %v1781 = vpop.f32.mrf.mxu0
  %v1782 = vadd.f32 %v1621, %v1781
  %1783 = vmatprep.mubr.f32.mxu0 %v121
  %1784 = vmatmul.mubr.f32.gmra.mxu0 %v120
  %v1785 = vpop.f32.mrf.mxu0
  %v1786 = vadd.f32 %v1625, %v1785
  %v1787 = vpop.f32.mrf.mxu0
  %v1788 = vadd.f32 %v1627, %v1787
  %1789 = vmatprep.mubr.f32.mxu0 %v139
  %1790 = vmatmul.mubr.f32.gmra.mxu0 %v138
  %v1791 = vpop.f32.mrf.mxu0
  %v1792 = vadd.f32 %v1631, %v1791
  %v1793 = vpop.f32.mrf.mxu0
  %v1794 = vadd.f32 %v1633, %v1793
  %1795 = vmatprep.mubr.f32.mxu0 %v157
  %1796 = vmatmul.mubr.f32.gmra.mxu0 %v156
  %v1797 = vpop.f32.mrf.mxu0
  %v1798 = vadd.f32 %v1637, %v1797
  %v1799 = vpop.f32.mrf.mxu0
  %v1800 = vadd.f32 %v1639, %v1799
  %1801 = vmatprep.mubr.f32.mxu0 %v175
  %1802 = vmatmul.mubr.f32.gmra.mxu0 %v174
  %v1803 = vpop.f32.mrf.mxu0
  %v1804 = vadd.f32 %v1643, %v1803
  %v1805 = vpop.f32.mrf.mxu0
  %v1806 = vadd.f32 %v1645, %v1805
  %1807 = vmatprep.mubr.f32.mxu0 %v193
  %1808 = vmatmul.mubr.f32.gmra.mxu0 %v192
  %v1809 = vpop.f32.mrf.mxu0
  %v1810 = vadd.f32 %v1649, %v1809
  %v1811 = vpop.f32.mrf.mxu0
  %v1812 = vadd.f32 %v1651, %v1811
  %1813 = vmatprep.mubr.f32.mxu0 %v211
  %1814 = vmatmul.mubr.f32.gmra.mxu0 %v210
  %v1815 = vpop.f32.mrf.mxu0
  %v1816 = vadd.f32 %v1655, %v1815
  %v1817 = vpop.f32.mrf.mxu0
  %v1818 = vadd.f32 %v1657, %v1817
  %1819 = vmatprep.mubr.f32.mxu0 %v229
  %1820 = vmatmul.mubr.f32.gmra.mxu0 %v228
  %v1821 = vpop.f32.mrf.mxu0
  %v1822 = vadd.f32 %v1661, %v1821
  %v1823 = vpop.f32.mrf.mxu0
  %v1824 = vadd.f32 %v1663, %v1823
  %1825 = vmatprep.mubr.f32.mxu0 %v247
  %1826 = vmatmul.mubr.f32.gmra.mxu0 %v246
  %v1827 = vpop.f32.mrf.mxu0
  %v1828 = vadd.f32 %v1667, %v1827
  %v1829 = vpop.f32.mrf.mxu0
  %v1830 = vadd.f32 %v1669, %v1829
  %1831 = vmatprep.mubr.f32.mxu0 %v265
  %1832 = vmatmul.mubr.f32.gmra.mxu0 %v264
  %v1833 = vpop.f32.mrf.mxu0
  %v1834 = vadd.f32 %v1673, %v1833
  %v1835 = vpop.f32.mrf.mxu0
  %v1836 = vadd.f32 %v1675, %v1835
  %1837 = vmatprep.mubr.f32.mxu0 %v283
  %1838 = vmatmul.mubr.f32.gmra.mxu0 %v282
  %v1839 = vpop.f32.mrf.mxu0
  %v1840 = vadd.f32 %v1679, %v1839
  %v1841 = vpop.f32.mrf.mxu0
  %v1842 = vadd.f32 %v1681, %v1841
  %1843 = vmatprep.mubr.f32.mxu0 %v301
  %1844 = vmatmul.mubr.f32.gmra.mxu0 %v300
  %v1845 = vpop.f32.mrf.mxu0
  %v1846 = vadd.f32 %v1685, %v1845
  %v1847 = vpop.f32.mrf.mxu0
  %v1848 = vadd.f32 %v1687, %v1847
  %1849 = vdwg.mxu0
  %1850 = vmatprep.subr.mxu0 %v723
  %1851 = vmatpush1.msra.mxu0 %v722
  %1852 = vmatprep.subr.mxu0 %v721
  %1853 = vmatpush1.msra.mxu0 %v720
  %1854 = vmatprep.subr.mxu0 %v719
  %1855 = vmatpush1.msra.mxu0 %v718
  %1856 = vmatprep.subr.mxu0 %v717
  %1857 = vmatpush1.msra.mxu0 %v716
  %1858 = vmatprep.subr.mxu0 %v715
  %1859 = vmatpush1.msra.mxu0 %v714
  %1860 = vmatprep.subr.mxu0 %v713
  %1861 = vmatpush1.msra.mxu0 %v712
  %1862 = vmatprep.subr.mxu0 %v711
  %1863 = vmatpush1.msra.mxu0 %v710
  %1864 = vmatprep.subr.mxu0 %v709
  %1865 = vmatpush1.msra.mxu0 %v708
  %1866 = vmatprep.subr.mxu0 %v707
  %1867 = vmatpush1.msra.mxu0 %v706
  %1868 = vmatprep.subr.mxu0 %v705
  %1869 = vmatpush1.msra.mxu0 %v704
  %1870 = vmatprep.subr.mxu0 %v703
  %1871 = vmatpush1.msra.mxu0 %v702
  %1872 = vmatprep.subr.mxu0 %v701
  %1873 = vmatpush1.msra.mxu0 %v700
  %1874 = vmatprep.subr.mxu0 %v699
  %1875 = vmatpush1.msra.mxu0 %v698
  %1876 = vmatprep.subr.mxu0 %v697
  %1877 = vmatpush1.msra.mxu0 %v696
  %1878 = vmatprep.subr.mxu0 %v695
  %1879 = vmatpush1.msra.mxu0 %v694
  %1880 = vmatprep.subr.mxu0 %v693
  %1881 = vmatpush1.msra.mxu0 %v692
  %1882 = vmatprep.subr.mxu0 %v755
  %1883 = vmatpush2.msra.mxu0 %v754
  %1884 = vmatprep.subr.mxu0 %v753
  %1885 = vmatpush2.msra.mxu0 %v752
  %1886 = vmatprep.subr.mxu0 %v751
  %1887 = vmatpush2.msra.mxu0 %v750
  %1888 = vmatprep.subr.mxu0 %v749
  %1889 = vmatpush2.msra.mxu0 %v748
  %1890 = vmatprep.subr.mxu0 %v747
  %1891 = vmatpush2.msra.mxu0 %v746
  %1892 = vmatprep.subr.mxu0 %v745
  %1893 = vmatpush2.msra.mxu0 %v744
  %1894 = vmatprep.subr.mxu0 %v743
  %1895 = vmatpush2.msra.mxu0 %v742
  %1896 = vmatprep.subr.mxu0 %v741
  %1897 = vmatpush2.msra.mxu0 %v740
  %1898 = vmatprep.subr.mxu0 %v739
  %1899 = vmatpush2.msra.mxu0 %v738
  %1900 = vmatprep.subr.mxu0 %v737
  %1901 = vmatpush2.msra.mxu0 %v736
  %1902 = vmatprep.subr.mxu0 %v735
  %1903 = vmatpush2.msra.mxu0 %v734
  %1904 = vmatprep.subr.mxu0 %v733
  %1905 = vmatpush2.msra.mxu0 %v732
  %1906 = vmatprep.subr.mxu0 %v731
  %1907 = vmatpush2.msra.mxu0 %v730
  %1908 = vmatprep.subr.mxu0 %v729
  %1909 = vmatpush2.msra.mxu0 %v728
  %1910 = vmatprep.subr.mxu0 %v727
  %1911 = vmatpush2.msra.mxu0 %v726
  %1912 = vmatprep.subr.mxu0 %v725
  %1913 = vmatpush2.msra.mxu0 %v724
  %1914 = vmatprep.mubr.f32.mxu0 %v33
  %1915 = vmatmul.mubr.f32.gmra.mxu0 %v32
  %v1916 = vpop.f32.mrf.mxu0
  %v1917 = vadd.f32 %v1756, %v1916
  %v1918 = vpop.f32.mrf.mxu0
  %v1919 = vadd.f32 %v1758, %v1918
  %1920 = vmatprep.mubr.f32.mxu0 %v51
  %1921 = vmatmul.mubr.f32.gmra.mxu0 %v50
  %v1922 = vpop.f32.mrf.mxu0
  %v1923 = vadd.f32 %v1762, %v1922
  %v1924 = vpop.f32.mrf.mxu0
  %v1925 = vadd.f32 %v1764, %v1924
  %1926 = vmatprep.mubr.f32.mxu0 %v69
  %1927 = vmatmul.mubr.f32.gmra.mxu0 %v68
  %v1928 = vpop.f32.mrf.mxu0
  %v1929 = vadd.f32 %v1768, %v1928
  %v1930 = vpop.f32.mrf.mxu0
  %v1931 = vadd.f32 %v1770, %v1930
  %1932 = vmatprep.mubr.f32.mxu0 %v87
  %1933 = vmatmul.mubr.f32.gmra.mxu0 %v86
  %v1934 = vpop.f32.mrf.mxu0
  %v1935 = vadd.f32 %v1774, %v1934
  %v1936 = vpop.f32.mrf.mxu0
  %v1937 = vadd.f32 %v1776, %v1936
  %1938 = vmatprep.mubr.f32.mxu0 %v105
  %1939 = vmatmul.mubr.f32.gmra.mxu0 %v104
  %v1940 = vpop.f32.mrf.mxu0
  %v1941 = vadd.f32 %v1780, %v1940
  %v1942 = vpop.f32.mrf.mxu0
  %v1943 = vadd.f32 %v1782, %v1942
  %1944 = vmatprep.mubr.f32.mxu0 %v123
  %1945 = vmatmul.mubr.f32.gmra.mxu0 %v122
  %v1946 = vpop.f32.mrf.mxu0
  %v1947 = vadd.f32 %v1786, %v1946
  %v1948 = vpop.f32.mrf.mxu0
  %v1949 = vadd.f32 %v1788, %v1948
  %1950 = vmatprep.mubr.f32.mxu0 %v141
  %1951 = vmatmul.mubr.f32.gmra.mxu0 %v140
  %v1952 = vpop.f32.mrf.mxu0
  %v1953 = vadd.f32 %v1792, %v1952
  %v1954 = vpop.f32.mrf.mxu0
  %v1955 = vadd.f32 %v1794, %v1954
  %1956 = vmatprep.mubr.f32.mxu0 %v159
  %1957 = vmatmul.mubr.f32.gmra.mxu0 %v158
  %v1958 = vpop.f32.mrf.mxu0
  %v1959 = vadd.f32 %v1798, %v1958
  %v1960 = vpop.f32.mrf.mxu0
  %v1961 = vadd.f32 %v1800, %v1960
  %1962 = vmatprep.mubr.f32.mxu0 %v177
  %1963 = vmatmul.mubr.f32.gmra.mxu0 %v176
  %v1964 = vpop.f32.mrf.mxu0
  %v1965 = vadd.f32 %v1804, %v1964
  %v1966 = vpop.f32.mrf.mxu0
  %v1967 = vadd.f32 %v1806, %v1966
  %1968 = vmatprep.mubr.f32.mxu0 %v195
  %1969 = vmatmul.mubr.f32.gmra.mxu0 %v194
  %v1970 = vpop.f32.mrf.mxu0
  %v1971 = vadd.f32 %v1810, %v1970
  %v1972 = vpop.f32.mrf.mxu0
  %v1973 = vadd.f32 %v1812, %v1972
  %1974 = vmatprep.mubr.f32.mxu0 %v213
  %1975 = vmatmul.mubr.f32.gmra.mxu0 %v212
  %v1976 = vpop.f32.mrf.mxu0
  %v1977 = vadd.f32 %v1816, %v1976
  %v1978 = vpop.f32.mrf.mxu0
  %v1979 = vadd.f32 %v1818, %v1978
  %1980 = vmatprep.mubr.f32.mxu0 %v231
  %1981 = vmatmul.mubr.f32.gmra.mxu0 %v230
  %v1982 = vpop.f32.mrf.mxu0
  %v1983 = vadd.f32 %v1822, %v1982
  %v1984 = vpop.f32.mrf.mxu0
  %v1985 = vadd.f32 %v1824, %v1984
  %1986 = vmatprep.mubr.f32.mxu0 %v249
  %1987 = vmatmul.mubr.f32.gmra.mxu0 %v248
  %v1988 = vpop.f32.mrf.mxu0
  %v1989 = vadd.f32 %v1828, %v1988
  %v1990 = vpop.f32.mrf.mxu0
  %v1991 = vadd.f32 %v1830, %v1990
  %1992 = vmatprep.mubr.f32.mxu0 %v267
  %1993 = vmatmul.mubr.f32.gmra.mxu0 %v266
  %v1994 = vpop.f32.mrf.mxu0
  %v1995 = vadd.f32 %v1834, %v1994
  %v1996 = vpop.f32.mrf.mxu0
  %v1997 = vadd.f32 %v1836, %v1996
  %1998 = vmatprep.mubr.f32.mxu0 %v285
  %1999 = vmatmul.mubr.f32.gmra.mxu0 %v284
  %v2000 = vpop.f32.mrf.mxu0
  %v2001 = vadd.f32 %v1840, %v2000
  %v2002 = vpop.f32.mrf.mxu0
  %v2003 = vadd.f32 %v1842, %v2002
  %2004 = vmatprep.mubr.f32.mxu0 %v303
  %2005 = vmatmul.mubr.f32.gmra.mxu0 %v302
  %v2006 = vpop.f32.mrf.mxu0
  %v2007 = vadd.f32 %v1846, %v2006
  %v2008 = vpop.f32.mrf.mxu0
  %v2009 = vadd.f32 %v1848, %v2008
  %2010 = vdwg.mxu0
  %2011 = vmatprep.subr.mxu0 %v787
  %2012 = vmatpush1.msra.mxu0 %v786
  %2013 = vmatprep.subr.mxu0 %v785
  %2014 = vmatpush1.msra.mxu0 %v784
  %2015 = vmatprep.subr.mxu0 %v783
  %2016 = vmatpush1.msra.mxu0 %v782
  %2017 = vmatprep.subr.mxu0 %v781
  %2018 = vmatpush1.msra.mxu0 %v780
  %2019 = vmatprep.subr.mxu0 %v779
  %2020 = vmatpush1.msra.mxu0 %v778
  %2021 = vmatprep.subr.mxu0 %v777
  %2022 = vmatpush1.msra.mxu0 %v776
  %2023 = vmatprep.subr.mxu0 %v775
  %2024 = vmatpush1.msra.mxu0 %v774
  %2025 = vmatprep.subr.mxu0 %v773
  %2026 = vmatpush1.msra.mxu0 %v772
  %2027 = vmatprep.subr.mxu0 %v771
  %2028 = vmatpush1.msra.mxu0 %v770
  %2029 = vmatprep.subr.mxu0 %v769
  %2030 = vmatpush1.msra.mxu0 %v768
  %2031 = vmatprep.subr.mxu0 %v767
  %2032 = vmatpush1.msra.mxu0 %v766
  %2033 = vmatprep.subr.mxu0 %v765
  %2034 = vmatpush1.msra.mxu0 %v764
  %2035 = vmatprep.subr.mxu0 %v763
  %2036 = vmatpush1.msra.mxu0 %v762
  %2037 = vmatprep.subr.mxu0 %v761
  %2038 = vmatpush1.msra.mxu0 %v760
  %2039 = vmatprep.subr.mxu0 %v759
  %2040 = vmatpush1.msra.mxu0 %v758
  %2041 = vmatprep.subr.mxu0 %v757
  %2042 = vmatpush1.msra.mxu0 %v756
  %2043 = vmatprep.subr.mxu0 %v819
  %2044 = vmatpush2.msra.mxu0 %v818
  %2045 = vmatprep.subr.mxu0 %v817
  %2046 = vmatpush2.msra.mxu0 %v816
  %2047 = vmatprep.subr.mxu0 %v815
  %2048 = vmatpush2.msra.mxu0 %v814
  %2049 = vmatprep.subr.mxu0 %v813
  %2050 = vmatpush2.msra.mxu0 %v812
  %2051 = vmatprep.subr.mxu0 %v811
  %2052 = vmatpush2.msra.mxu0 %v810
  %2053 = vmatprep.subr.mxu0 %v809
  %2054 = vmatpush2.msra.mxu0 %v808
  %2055 = vmatprep.subr.mxu0 %v807
  %2056 = vmatpush2.msra.mxu0 %v806
  %2057 = vmatprep.subr.mxu0 %v805
  %2058 = vmatpush2.msra.mxu0 %v804
  %2059 = vmatprep.subr.mxu0 %v803
  %2060 = vmatpush2.msra.mxu0 %v802
  %2061 = vmatprep.subr.mxu0 %v801
  %2062 = vmatpush2.msra.mxu0 %v800
  %2063 = vmatprep.subr.mxu0 %v799
  %2064 = vmatpush2.msra.mxu0 %v798
  %2065 = vmatprep.subr.mxu0 %v797
  %2066 = vmatpush2.msra.mxu0 %v796
  %2067 = vmatprep.subr.mxu0 %v795
  %2068 = vmatpush2.msra.mxu0 %v794
  %2069 = vmatprep.subr.mxu0 %v793
  %2070 = vmatpush2.msra.mxu0 %v792
  %2071 = vmatprep.subr.mxu0 %v791
  %2072 = vmatpush2.msra.mxu0 %v790
  %2073 = vmatprep.subr.mxu0 %v789
  %2074 = vmatpush2.msra.mxu0 %v788
  %2075 = vmatprep.mubr.f32.mxu0 %v35
  %2076 = vmatmul.mubr.f32.gmra.mxu0 %v34
  %v2077 = vpop.f32.mrf.mxu0
  %v2078 = vadd.f32 %v1917, %v2077
  %v2079 = vpop.f32.mrf.mxu0
  %v2080 = vadd.f32 %v1919, %v2079
  %2081 = vmatprep.mubr.f32.mxu0 %v53
  %2082 = vmatmul.mubr.f32.gmra.mxu0 %v52
  %v2083 = vpop.f32.mrf.mxu0
  %v2084 = vadd.f32 %v1923, %v2083
  %v2085 = vpop.f32.mrf.mxu0
  %v2086 = vadd.f32 %v1925, %v2085
  %2087 = vmatprep.mubr.f32.mxu0 %v71
  %2088 = vmatmul.mubr.f32.gmra.mxu0 %v70
  %v2089 = vpop.f32.mrf.mxu0
  %v2090 = vadd.f32 %v1929, %v2089
  %v2091 = vpop.f32.mrf.mxu0
  %v2092 = vadd.f32 %v1931, %v2091
  %2093 = vmatprep.mubr.f32.mxu0 %v89
  %2094 = vmatmul.mubr.f32.gmra.mxu0 %v88
  %v2095 = vpop.f32.mrf.mxu0
  %v2096 = vadd.f32 %v1935, %v2095
  %v2097 = vpop.f32.mrf.mxu0
  %v2098 = vadd.f32 %v1937, %v2097
  %2099 = vmatprep.mubr.f32.mxu0 %v107
  %2100 = vmatmul.mubr.f32.gmra.mxu0 %v106
  %v2101 = vpop.f32.mrf.mxu0
  %v2102 = vadd.f32 %v1941, %v2101
  %v2103 = vpop.f32.mrf.mxu0
  %v2104 = vadd.f32 %v1943, %v2103
  %2105 = vmatprep.mubr.f32.mxu0 %v125
  %2106 = vmatmul.mubr.f32.gmra.mxu0 %v124
  %v2107 = vpop.f32.mrf.mxu0
  %v2108 = vadd.f32 %v1947, %v2107
  %v2109 = vpop.f32.mrf.mxu0
  %v2110 = vadd.f32 %v1949, %v2109
  %2111 = vmatprep.mubr.f32.mxu0 %v143
  %2112 = vmatmul.mubr.f32.gmra.mxu0 %v142
  %v2113 = vpop.f32.mrf.mxu0
  %v2114 = vadd.f32 %v1953, %v2113
  %v2115 = vpop.f32.mrf.mxu0
  %v2116 = vadd.f32 %v1955, %v2115
  %2117 = vmatprep.mubr.f32.mxu0 %v161
  %2118 = vmatmul.mubr.f32.gmra.mxu0 %v160
  %v2119 = vpop.f32.mrf.mxu0
  %v2120 = vadd.f32 %v1959, %v2119
  %v2121 = vpop.f32.mrf.mxu0
  %v2122 = vadd.f32 %v1961, %v2121
  %2123 = vmatprep.mubr.f32.mxu0 %v179
  %2124 = vmatmul.mubr.f32.gmra.mxu0 %v178
  %v2125 = vpop.f32.mrf.mxu0
  %v2126 = vadd.f32 %v1965, %v2125
  %v2127 = vpop.f32.mrf.mxu0
  %v2128 = vadd.f32 %v1967, %v2127
  %2129 = vmatprep.mubr.f32.mxu0 %v197
  %2130 = vmatmul.mubr.f32.gmra.mxu0 %v196
  %v2131 = vpop.f32.mrf.mxu0
  %v2132 = vadd.f32 %v1971, %v2131
  %v2133 = vpop.f32.mrf.mxu0
  %v2134 = vadd.f32 %v1973, %v2133
  %2135 = vmatprep.mubr.f32.mxu0 %v215
  %2136 = vmatmul.mubr.f32.gmra.mxu0 %v214
  %v2137 = vpop.f32.mrf.mxu0
  %v2138 = vadd.f32 %v1977, %v2137
  %v2139 = vpop.f32.mrf.mxu0
  %v2140 = vadd.f32 %v1979, %v2139
  %2141 = vmatprep.mubr.f32.mxu0 %v233
  %2142 = vmatmul.mubr.f32.gmra.mxu0 %v232
  %v2143 = vpop.f32.mrf.mxu0
  %v2144 = vadd.f32 %v1983, %v2143
  %v2145 = vpop.f32.mrf.mxu0
  %v2146 = vadd.f32 %v1985, %v2145
  %2147 = vmatprep.mubr.f32.mxu0 %v251
  %2148 = vmatmul.mubr.f32.gmra.mxu0 %v250
  %v2149 = vpop.f32.mrf.mxu0
  %v2150 = vadd.f32 %v1989, %v2149
  %v2151 = vpop.f32.mrf.mxu0
  %v2152 = vadd.f32 %v1991, %v2151
  %2153 = vmatprep.mubr.f32.mxu0 %v269
  %2154 = vmatmul.mubr.f32.gmra.mxu0 %v268
  %v2155 = vpop.f32.mrf.mxu0
  %v2156 = vadd.f32 %v1995, %v2155
  %v2157 = vpop.f32.mrf.mxu0
  %v2158 = vadd.f32 %v1997, %v2157
  %2159 = vmatprep.mubr.f32.mxu0 %v287
  %2160 = vmatmul.mubr.f32.gmra.mxu0 %v286
  %v2161 = vpop.f32.mrf.mxu0
  %v2162 = vadd.f32 %v2001, %v2161
  %v2163 = vpop.f32.mrf.mxu0
  %v2164 = vadd.f32 %v2003, %v2163
  %2165 = vmatprep.mubr.f32.mxu0 %v305
  %2166 = vmatmul.mubr.f32.gmra.mxu0 %v304
  %v2167 = vpop.f32.mrf.mxu0
  %v2168 = vadd.f32 %v2007, %v2167
  %v2169 = vpop.f32.mrf.mxu0
  %v2170 = vadd.f32 %v2009, %v2169
  %2171 = vdwg.mxu0
  %2172 = vmatprep.subr.mxu0 %v851
  %2173 = vmatpush1.msra.mxu0 %v850
  %2174 = vmatprep.subr.mxu0 %v849
  %2175 = vmatpush1.msra.mxu0 %v848
  %2176 = vmatprep.subr.mxu0 %v847
  %2177 = vmatpush1.msra.mxu0 %v846
  %2178 = vmatprep.subr.mxu0 %v845
  %2179 = vmatpush1.msra.mxu0 %v844
  %2180 = vmatprep.subr.mxu0 %v843
  %2181 = vmatpush1.msra.mxu0 %v842
  %2182 = vmatprep.subr.mxu0 %v841
  %2183 = vmatpush1.msra.mxu0 %v840
  %2184 = vmatprep.subr.mxu0 %v839
  %2185 = vmatpush1.msra.mxu0 %v838
  %2186 = vmatprep.subr.mxu0 %v837
  %2187 = vmatpush1.msra.mxu0 %v836
  %2188 = vmatprep.subr.mxu0 %v835
  %2189 = vmatpush1.msra.mxu0 %v834
  %2190 = vmatprep.subr.mxu0 %v833
  %2191 = vmatpush1.msra.mxu0 %v832
  %2192 = vmatprep.subr.mxu0 %v831
  %2193 = vmatpush1.msra.mxu0 %v830
  %2194 = vmatprep.subr.mxu0 %v829
  %2195 = vmatpush1.msra.mxu0 %v828
  %2196 = vmatprep.subr.mxu0 %v827
  %2197 = vmatpush1.msra.mxu0 %v826
  %2198 = vmatprep.subr.mxu0 %v825
  %2199 = vmatpush1.msra.mxu0 %v824
  %2200 = vmatprep.subr.mxu0 %v823
  %2201 = vmatpush1.msra.mxu0 %v822
  %2202 = vmatprep.subr.mxu0 %v821
  %2203 = vmatpush1.msra.mxu0 %v820
  %2204 = vmatprep.subr.mxu0 %v883
  %2205 = vmatpush2.msra.mxu0 %v882
  %2206 = vmatprep.subr.mxu0 %v881
  %2207 = vmatpush2.msra.mxu0 %v880
  %2208 = vmatprep.subr.mxu0 %v879
  %2209 = vmatpush2.msra.mxu0 %v878
  %2210 = vmatprep.subr.mxu0 %v877
  %2211 = vmatpush2.msra.mxu0 %v876
  %2212 = vmatprep.subr.mxu0 %v875
  %2213 = vmatpush2.msra.mxu0 %v874
  %2214 = vmatprep.subr.mxu0 %v873
  %2215 = vmatpush2.msra.mxu0 %v872
  %2216 = vmatprep.subr.mxu0 %v871
  %2217 = vmatpush2.msra.mxu0 %v870
  %2218 = vmatprep.subr.mxu0 %v869
  %2219 = vmatpush2.msra.mxu0 %v868
  %2220 = vmatprep.subr.mxu0 %v867
  %2221 = vmatpush2.msra.mxu0 %v866
  %2222 = vmatprep.subr.mxu0 %v865
  %2223 = vmatpush2.msra.mxu0 %v864
  %2224 = vmatprep.subr.mxu0 %v863
  %2225 = vmatpush2.msra.mxu0 %v862
  %2226 = vmatprep.subr.mxu0 %v861
  %2227 = vmatpush2.msra.mxu0 %v860
  %2228 = vmatprep.subr.mxu0 %v859
  %2229 = vmatpush2.msra.mxu0 %v858
  %2230 = vmatprep.subr.mxu0 %v857
  %2231 = vmatpush2.msra.mxu0 %v856
  %2232 = vmatprep.subr.mxu0 %v855
  %2233 = vmatpush2.msra.mxu0 %v854
  %2234 = vmatprep.subr.mxu0 %v853
  %2235 = vmatpush2.msra.mxu0 %v852
  %2236 = vmatprep.mubr.f32.mxu0 %v37
  %2237 = vmatmul.mubr.f32.gmra.mxu0 %v36
  %v2238 = vpop.f32.mrf.mxu0
  %v2239 = vadd.f32 %v2078, %v2238
  %v2240 = vpop.f32.mrf.mxu0
  %v2241 = vadd.f32 %v2080, %v2240
  %2242 = vmatprep.mubr.f32.mxu0 %v55
  %2243 = vmatmul.mubr.f32.gmra.mxu0 %v54
  %v2244 = vpop.f32.mrf.mxu0
  %v2245 = vadd.f32 %v2084, %v2244
  %v2246 = vpop.f32.mrf.mxu0
  %v2247 = vadd.f32 %v2086, %v2246
  %2248 = vmatprep.mubr.f32.mxu0 %v73
  %2249 = vmatmul.mubr.f32.gmra.mxu0 %v72
  %v2250 = vpop.f32.mrf.mxu0
  %v2251 = vadd.f32 %v2090, %v2250
  %v2252 = vpop.f32.mrf.mxu0
  %v2253 = vadd.f32 %v2092, %v2252
  %2254 = vmatprep.mubr.f32.mxu0 %v91
  %2255 = vmatmul.mubr.f32.gmra.mxu0 %v90
  %v2256 = vpop.f32.mrf.mxu0
  %v2257 = vadd.f32 %v2096, %v2256
  %v2258 = vpop.f32.mrf.mxu0
  %v2259 = vadd.f32 %v2098, %v2258
  %2260 = vmatprep.mubr.f32.mxu0 %v109
  %2261 = vmatmul.mubr.f32.gmra.mxu0 %v108
  %v2262 = vpop.f32.mrf.mxu0
  %v2263 = vadd.f32 %v2102, %v2262
  %v2264 = vpop.f32.mrf.mxu0
  %v2265 = vadd.f32 %v2104, %v2264
  %2266 = vmatprep.mubr.f32.mxu0 %v127
  %2267 = vmatmul.mubr.f32.gmra.mxu0 %v126
  %v2268 = vpop.f32.mrf.mxu0
  %v2269 = vadd.f32 %v2108, %v2268
  %v2270 = vpop.f32.mrf.mxu0
  %v2271 = vadd.f32 %v2110, %v2270
  %2272 = vmatprep.mubr.f32.mxu0 %v145
  %2273 = vmatmul.mubr.f32.gmra.mxu0 %v144
  %v2274 = vpop.f32.mrf.mxu0
  %v2275 = vadd.f32 %v2114, %v2274
  %v2276 = vpop.f32.mrf.mxu0
  %v2277 = vadd.f32 %v2116, %v2276
  %2278 = vmatprep.mubr.f32.mxu0 %v163
  %2279 = vmatmul.mubr.f32.gmra.mxu0 %v162
  %v2280 = vpop.f32.mrf.mxu0
  %v2281 = vadd.f32 %v2120, %v2280
  %v2282 = vpop.f32.mrf.mxu0
  %v2283 = vadd.f32 %v2122, %v2282
  %2284 = vmatprep.mubr.f32.mxu0 %v181
  %2285 = vmatmul.mubr.f32.gmra.mxu0 %v180
  %v2286 = vpop.f32.mrf.mxu0
  %v2287 = vadd.f32 %v2126, %v2286
  %v2288 = vpop.f32.mrf.mxu0
  %v2289 = vadd.f32 %v2128, %v2288
  %2290 = vmatprep.mubr.f32.mxu0 %v199
  %2291 = vmatmul.mubr.f32.gmra.mxu0 %v198
  %v2292 = vpop.f32.mrf.mxu0
  %v2293 = vadd.f32 %v2132, %v2292
  %v2294 = vpop.f32.mrf.mxu0
  %v2295 = vadd.f32 %v2134, %v2294
  %2296 = vmatprep.mubr.f32.mxu0 %v217
  %2297 = vmatmul.mubr.f32.gmra.mxu0 %v216
  %v2298 = vpop.f32.mrf.mxu0
  %v2299 = vadd.f32 %v2138, %v2298
  %v2300 = vpop.f32.mrf.mxu0
  %v2301 = vadd.f32 %v2140, %v2300
  %2302 = vmatprep.mubr.f32.mxu0 %v235
  %2303 = vmatmul.mubr.f32.gmra.mxu0 %v234
  %v2304 = vpop.f32.mrf.mxu0
  %v2305 = vadd.f32 %v2144, %v2304
  %v2306 = vpop.f32.mrf.mxu0
  %v2307 = vadd.f32 %v2146, %v2306
  %2308 = vmatprep.mubr.f32.mxu0 %v253
  %2309 = vmatmul.mubr.f32.gmra.mxu0 %v252
  %v2310 = vpop.f32.mrf.mxu0
  %v2311 = vadd.f32 %v2150, %v2310
  %v2312 = vpop.f32.mrf.mxu0
  %v2313 = vadd.f32 %v2152, %v2312
  %2314 = vmatprep.mubr.f32.mxu0 %v271
  %2315 = vmatmul.mubr.f32.gmra.mxu0 %v270
  %v2316 = vpop.f32.mrf.mxu0
  %v2317 = vadd.f32 %v2156, %v2316
  %v2318 = vpop.f32.mrf.mxu0
  %v2319 = vadd.f32 %v2158, %v2318
  %2320 = vmatprep.mubr.f32.mxu0 %v289
  %2321 = vmatmul.mubr.f32.gmra.mxu0 %v288
  %v2322 = vpop.f32.mrf.mxu0
  %v2323 = vadd.f32 %v2162, %v2322
  %v2324 = vpop.f32.mrf.mxu0
  %v2325 = vadd.f32 %v2164, %v2324
  %2326 = vmatprep.mubr.f32.mxu0 %v307
  %2327 = vmatmul.mubr.f32.gmra.mxu0 %v306
  %v2328 = vpop.f32.mrf.mxu0
  %v2329 = vadd.f32 %v2168, %v2328
  %v2330 = vpop.f32.mrf.mxu0
  %v2331 = vadd.f32 %v2170, %v2330
  %2332 = vdwg.mxu0
  %v2333 = vld [vmem:[%s2] sm:$0x3]
  %v2335 = vlaneseq
  %v2336 = vshrl.u32 %v2335, 7
  %v2337 = vsub.s32 0, %v2336
  %v2338 = vrot.slane %v2333, %v2337
  %v2339 = vlaneseq
  %v2340 = vshrl.u32 %v2339, 7
  %v2341 = vsub.s32 1, %v2340
  %v2342 = vrot.slane %v2333, %v2341
  %v2345 = vmul.f32 %v2239, %v2338
  %v2346 = vmul.f32 %v2241, %v2342
  %v2347 = vmul.f32 %v2245, %v2338
  %v2348 = vmul.f32 %v2247, %v2342
  %v2349 = vmul.f32 %v2251, %v2338
  %v2350 = vmul.f32 %v2253, %v2342
  %v2351 = vmul.f32 %v2257, %v2338
  %v2352 = vmul.f32 %v2259, %v2342
  %v2353 = vmul.f32 %v2263, %v2338
  %v2354 = vmul.f32 %v2265, %v2342
  %v2355 = vmul.f32 %v2269, %v2338
  %v2356 = vmul.f32 %v2271, %v2342
  %v2357 = vmul.f32 %v2275, %v2338
  %v2358 = vmul.f32 %v2277, %v2342
  %v2359 = vmul.f32 %v2281, %v2338
  %v2360 = vmul.f32 %v2283, %v2342
  %v2361 = vmul.f32 %v2287, %v2338
  %v2362 = vmul.f32 %v2289, %v2342
  %v2363 = vmul.f32 %v2293, %v2338
  %v2364 = vmul.f32 %v2295, %v2342
  %v2365 = vmul.f32 %v2299, %v2338
  %v2366 = vmul.f32 %v2301, %v2342
  %v2367 = vmul.f32 %v2305, %v2338
  %v2368 = vmul.f32 %v2307, %v2342
  %v2369 = vmul.f32 %v2311, %v2338
  %v2370 = vmul.f32 %v2313, %v2342
  %v2371 = vmul.f32 %v2317, %v2338
  %v2372 = vmul.f32 %v2319, %v2342
  %v2373 = vmul.f32 %v2323, %v2338
  %v2374 = vmul.f32 %v2325, %v2342
  %v2375 = vmul.f32 %v2329, %v2338
  %v2376 = vmul.f32 %v2331, %v2342
  %v2377 = vld [vmem:[%s3] sm:$0x3]
  %v2379 = vlaneseq
  %v2380 = vshrl.u32 %v2379, 7
  %v2381 = vsub.s32 0, %v2380
  %v2382 = vrot.slane %v2377, %v2381
  %v2383 = vlaneseq
  %v2384 = vshrl.u32 %v2383, 7
  %v2385 = vsub.s32 1, %v2384
  %v2386 = vrot.slane %v2377, %v2385
  %v2389 = vadd.f32 %v2345, %v2382
  %v2390 = vadd.f32 %v2346, %v2386
  %v2391 = vadd.f32 %v2347, %v2382
  %v2392 = vadd.f32 %v2348, %v2386
  %v2393 = vadd.f32 %v2349, %v2382
  %v2394 = vadd.f32 %v2350, %v2386
  %v2395 = vadd.f32 %v2351, %v2382
  %v2396 = vadd.f32 %v2352, %v2386
  %v2397 = vadd.f32 %v2353, %v2382
  %v2398 = vadd.f32 %v2354, %v2386
  %v2399 = vadd.f32 %v2355, %v2382
  %v2400 = vadd.f32 %v2356, %v2386
  %v2401 = vadd.f32 %v2357, %v2382
  %v2402 = vadd.f32 %v2358, %v2386
  %v2403 = vadd.f32 %v2359, %v2382
  %v2404 = vadd.f32 %v2360, %v2386
  %v2405 = vadd.f32 %v2361, %v2382
  %v2406 = vadd.f32 %v2362, %v2386
  %v2407 = vadd.f32 %v2363, %v2382
  %v2408 = vadd.f32 %v2364, %v2386
  %v2409 = vadd.f32 %v2365, %v2382
  %v2410 = vadd.f32 %v2366, %v2386
  %v2411 = vadd.f32 %v2367, %v2382
  %v2412 = vadd.f32 %v2368, %v2386
  %v2413 = vadd.f32 %v2369, %v2382
  %v2414 = vadd.f32 %v2370, %v2386
  %v2415 = vadd.f32 %v2371, %v2382
  %v2416 = vadd.f32 %v2372, %v2386
  %v2417 = vadd.f32 %v2373, %v2382
  %v2418 = vadd.f32 %v2374, %v2386
  %v2419 = vadd.f32 %v2375, %v2382
  %v2420 = vadd.f32 %v2376, %v2386
  %v2421 = vld [vmem:[%s4] sm:$0xff]
  %v2422 = vld [vmem:[%s4 + $0x8] sm:$0xff]
  %v2423 = vld [vmem:[%s4 + $0x10] sm:$0xff]
  %v2424 = vld [vmem:[%s4 + $0x18] sm:$0xff]
  %v2425 = vld [vmem:[%s4 + $0x20] sm:$0xff]
  %v2426 = vld [vmem:[%s4 + $0x28] sm:$0xff]
  %v2427 = vld [vmem:[%s4 + $0x30] sm:$0xff]
  %v2428 = vld [vmem:[%s4 + $0x38] sm:$0xff]
  %v2429 = vld [vmem:[%s4 + $0x40] sm:$0xff]
  %v2430 = vld [vmem:[%s4 + $0x48] sm:$0xff]
  %v2431 = vld [vmem:[%s4 + $0x50] sm:$0xff]
  %v2432 = vld [vmem:[%s4 + $0x58] sm:$0xff]
  %v2433 = vld [vmem:[%s4 + $0x60] sm:$0xff]
  %v2434 = vld [vmem:[%s4 + $0x68] sm:$0xff]
  %v2435 = vld [vmem:[%s4 + $0x70] sm:$0xff]
  %v2436 = vld [vmem:[%s4 + $0x78] sm:$0xff]
  %v2437 = vld [vmem:[%s4 + $0x80] sm:$0xff]
  %v2438 = vld [vmem:[%s4 + $0x88] sm:$0xff]
  %v2439 = vld [vmem:[%s4 + $0x90] sm:$0xff]
  %v2440 = vld [vmem:[%s4 + $0x98] sm:$0xff]
  %v2441 = vld [vmem:[%s4 + $0xa0] sm:$0xff]
  %v2442 = vld [vmem:[%s4 + $0xa8] sm:$0xff]
  %v2443 = vld [vmem:[%s4 + $0xb0] sm:$0xff]
  %v2444 = vld [vmem:[%s4 + $0xb8] sm:$0xff]
  %v2445 = vld [vmem:[%s4 + $0xc0] sm:$0xff]
  %v2446 = vld [vmem:[%s4 + $0xc8] sm:$0xff]
  %v2447 = vld [vmem:[%s4 + $0xd0] sm:$0xff]
  %v2448 = vld [vmem:[%s4 + $0xd8] sm:$0xff]
  %v2449 = vld [vmem:[%s4 + $0xe0] sm:$0xff]
  %v2450 = vld [vmem:[%s4 + $0xe8] sm:$0xff]
  %v2451 = vld [vmem:[%s4 + $0xf0] sm:$0xff]
  %v2452 = vld [vmem:[%s4 + $0xf8] sm:$0xff]
  %v2453 = vadd.f32 %v2389, %v2421
  %v2454 = vadd.f32 %v2390, %v2422
  %v2455 = vadd.f32 %v2391, %v2423
  %v2456 = vadd.f32 %v2392, %v2424
  %v2457 = vadd.f32 %v2393, %v2425
  %v2458 = vadd.f32 %v2394, %v2426
  %v2459 = vadd.f32 %v2395, %v2427
  %v2460 = vadd.f32 %v2396, %v2428
  %v2461 = vadd.f32 %v2397, %v2429
  %v2462 = vadd.f32 %v2398, %v2430
  %v2463 = vadd.f32 %v2399, %v2431
  %v2464 = vadd.f32 %v2400, %v2432
  %v2465 = vadd.f32 %v2401, %v2433
  %v2466 = vadd.f32 %v2402, %v2434
  %v2467 = vadd.f32 %v2403, %v2435
  %v2468 = vadd.f32 %v2404, %v2436
  %v2469 = vadd.f32 %v2405, %v2437
  %v2470 = vadd.f32 %v2406, %v2438
  %v2471 = vadd.f32 %v2407, %v2439
  %v2472 = vadd.f32 %v2408, %v2440
  %v2473 = vadd.f32 %v2409, %v2441
  %v2474 = vadd.f32 %v2410, %v2442
  %v2475 = vadd.f32 %v2411, %v2443
  %v2476 = vadd.f32 %v2412, %v2444
  %v2477 = vadd.f32 %v2413, %v2445
  %v2478 = vadd.f32 %v2414, %v2446
  %v2479 = vadd.f32 %v2415, %v2447
  %v2480 = vadd.f32 %v2416, %v2448
  %v2481 = vadd.f32 %v2417, %v2449
  %v2482 = vadd.f32 %v2418, %v2450
  %v2483 = vadd.f32 %v2419, %v2451
  %v2484 = vadd.f32 %v2420, %v2452
  %v2485 = vmax.f32 %v2453, 0.0
  %v2486 = vmax.f32 %v2454, 0.0
  %v2487 = vmax.f32 %v2455, 0.0
  %v2488 = vmax.f32 %v2456, 0.0
  %v2489 = vmax.f32 %v2457, 0.0
  %v2490 = vmax.f32 %v2458, 0.0
  %v2491 = vmax.f32 %v2459, 0.0
  %v2492 = vmax.f32 %v2460, 0.0
  %v2493 = vmax.f32 %v2461, 0.0
  %v2494 = vmax.f32 %v2462, 0.0
  %v2495 = vmax.f32 %v2463, 0.0
  %v2496 = vmax.f32 %v2464, 0.0
  %v2497 = vmax.f32 %v2465, 0.0
  %v2498 = vmax.f32 %v2466, 0.0
  %v2499 = vmax.f32 %v2467, 0.0
  %v2500 = vmax.f32 %v2468, 0.0
  %v2501 = vmax.f32 %v2469, 0.0
  %v2502 = vmax.f32 %v2470, 0.0
  %v2503 = vmax.f32 %v2471, 0.0
  %v2504 = vmax.f32 %v2472, 0.0
  %v2505 = vmax.f32 %v2473, 0.0
  %v2506 = vmax.f32 %v2474, 0.0
  %v2507 = vmax.f32 %v2475, 0.0
  %v2508 = vmax.f32 %v2476, 0.0
  %v2509 = vmax.f32 %v2477, 0.0
  %v2510 = vmax.f32 %v2478, 0.0
  %v2511 = vmax.f32 %v2479, 0.0
  %v2512 = vmax.f32 %v2480, 0.0
  %v2513 = vmax.f32 %v2481, 0.0
  %v2514 = vmax.f32 %v2482, 0.0
  %v2515 = vmax.f32 %v2483, 0.0
  %v2516 = vmax.f32 %v2484, 0.0
  %2517 = vst [vmem:[%s5] sm:$0xff] %v2485
  %2518 = vst [vmem:[%s5 + $0x8] sm:$0xff] %v2486
  %2519 = vst [vmem:[%s5 + $0x10] sm:$0xff] %v2487
  %2520 = vst [vmem:[%s5 + $0x18] sm:$0xff] %v2488
  %2521 = vst [vmem:[%s5 + $0x20] sm:$0xff] %v2489
  %2522 = vst [vmem:[%s5 + $0x28] sm:$0xff] %v2490
  %2523 = vst [vmem:[%s5 + $0x30] sm:$0xff] %v2491
  %2524 = vst [vmem:[%s5 + $0x38] sm:$0xff] %v2492
  %2525 = vst [vmem:[%s5 + $0x40] sm:$0xff] %v2493
  %2526 = vst [vmem:[%s5 + $0x48] sm:$0xff] %v2494
  %2527 = vst [vmem:[%s5 + $0x50] sm:$0xff] %v2495
  %2528 = vst [vmem:[%s5 + $0x58] sm:$0xff] %v2496
  %2529 = vst [vmem:[%s5 + $0x60] sm:$0xff] %v2497
  %2530 = vst [vmem:[%s5 + $0x68] sm:$0xff] %v2498
  %2531 = vst [vmem:[%s5 + $0x70] sm:$0xff] %v2499
  %2532 = vst [vmem:[%s5 + $0x78] sm:$0xff] %v2500
  %2533 = vst [vmem:[%s5 + $0x80] sm:$0xff] %v2501
  %2534 = vst [vmem:[%s5 + $0x88] sm:$0xff] %v2502
  %2535 = vst [vmem:[%s5 + $0x90] sm:$0xff] %v2503
  %2536 = vst [vmem:[%s5 + $0x98] sm:$0xff] %v2504
  %2537 = vst [vmem:[%s5 + $0xa0] sm:$0xff] %v2505
  %2538 = vst [vmem:[%s5 + $0xa8] sm:$0xff] %v2506
  %2539 = vst [vmem:[%s5 + $0xb0] sm:$0xff] %v2507
  %2540 = vst [vmem:[%s5 + $0xb8] sm:$0xff] %v2508
  %2541 = vst [vmem:[%s5 + $0xc0] sm:$0xff] %v2509
  %2542 = vst [vmem:[%s5 + $0xc8] sm:$0xff] %v2510
  %2543 = vst [vmem:[%s5 + $0xd0] sm:$0xff] %v2511
  %2544 = vst [vmem:[%s5 + $0xd8] sm:$0xff] %v2512
  %2545 = vst [vmem:[%s5 + $0xe0] sm:$0xff] %v2513
  %2546 = vst [vmem:[%s5 + $0xe8] sm:$0xff] %v2514
  %2547 = vst [vmem:[%s5 + $0xf0] sm:$0xff] %v2515
  %2548 = vst [vmem:[%s5 + $0xf8] sm:$0xff] %v2516
  // Predicated region
  $region22: #{chessnet_forward.10} parent=0 // pred_check
    _
  $region23: #{chessnet_forward.10} parent=0 // pred_check_branch
    %2550 = sbr.rel (0) target = $region25
  $region24: #{chessnet_forward.10} parent=0 // pred_region
    _
  $region25: #{chessnet_forward.10} parent=0 // pred_fallthru
    _
  // Predicated region
  $region26: #{chessnet_forward.10} parent=0 // pred_check
    _
  $region27: #{chessnet_forward.10} parent=0 // pred_check_branch
    %2552 = sbr.rel (0) target = $region29
  $region28: #{chessnet_forward.10} parent=0 // pred_region
    _
  $region29: #{chessnet_forward.10} parent=0 // pred_fallthru
    _

// kernel: chessnet_forward.14
$region0: #{chessnet_forward.14}
  #allocation0 [shape = 'u32[]', space=smem, size = 0x4, offset = 0x4, fixed_abs, tag = 'smem constant byte address 0x4 - core index']
  #allocation1 [shape = 'u32[144,128]{1,0:T(1,128)}', space=vmem, size = 0x12000, scoped, tag = 'internal scratch']
  %s0 = inlined_call_operand.vmem [shape: f32[128,256], index: 0, kind: input, shape index: {}]
  %s1 = inlined_call_operand.vmem [shape: f32[256,128], index: 1, kind: input, shape index: {}]
  %s2 = inlined_call_operand.vmem [shape: f32[1,128], index: 2, kind: input, shape index: {}]
  %s3 = inlined_call_operand.vmem [shape: f32[1,128], index: 3, kind: input, shape index: {}]
  %s4 = inlined_call_operand.vmem [shape: f32[128,128], index: 4, kind: output, shape index: {}]
  %s5 = sld [smem:[#allocation0]]
  $region26: #{chessnet_forward.14} parent=0
    _
  %s7 = ssub.s32 1, %s5
  %s8 = scalar_select 0, %s7, %s5
  // Predicated region
  $region2: #{chessnet_forward.14} parent=0 // pred_check
    _
  $region3: #{chessnet_forward.14} parent=0 // pred_check_branch
    %10 = sbr.rel (0) target = $region5
  $region4: #{chessnet_forward.14} parent=0 // pred_region
    _
  $region5: #{chessnet_forward.14} parent=0 // pred_fallthru
    _
  // Predicated region
  $region6: #{chessnet_forward.14} parent=0 // pred_check
    _
  $region7: #{chessnet_forward.14} parent=0 // pred_check_branch
    %12 = sbr.rel (0) target = $region9
  $region8: #{chessnet_forward.14} parent=0 // pred_region
    _
  $region9: #{chessnet_forward.14} parent=0 // pred_fallthru
    _
  // Predicated region
  $region10: #{chessnet_forward.14} parent=0 // pred_check
    _
  $region11: #{chessnet_forward.14} parent=0 // pred_check_branch
    %14 = sbr.rel (0) target = $region13
  $region12: #{chessnet_forward.14} parent=0 // pred_region
    _
  $region13: #{chessnet_forward.14} parent=0 // pred_fallthru
    _
  // Predicated region
  $region14: #{chessnet_forward.14} parent=0 // pred_check
    _
  $region15: #{chessnet_forward.14} parent=0 // pred_check_branch
    %16 = sbr.rel (0) target = $region17
  $region16: #{chessnet_forward.14} parent=0 // pred_region
    _
  $region17: #{chessnet_forward.14} parent=0 // pred_fallthru
    _
  %v17 = vld [vmem:[%s0] sm:$0xff]
  %v18 = vld [vmem:[%s0 + $0x8] sm:$0xff]
  %v19 = vld [vmem:[%s0 + $0x10] sm:$0xff]
  %v20 = vld [vmem:[%s0 + $0x18] sm:$0xff]
  %v21 = vld [vmem:[%s0 + $0x20] sm:$0xff]
  %v22 = vld [vmem:[%s0 + $0x28] sm:$0xff]
  %v23 = vld [vmem:[%s0 + $0x30] sm:$0xff]
  %v24 = vld [vmem:[%s0 + $0x38] sm:$0xff]
  %v25 = vld [vmem:[%s0 + $0x40] sm:$0xff]
  %v26 = vld [vmem:[%s0 + $0x48] sm:$0xff]
  %v27 = vld [vmem:[%s0 + $0x50] sm:$0xff]
  %v28 = vld [vmem:[%s0 + $0x58] sm:$0xff]
  %v29 = vld [vmem:[%s0 + $0x60] sm:$0xff]
  %v30 = vld [vmem:[%s0 + $0x68] sm:$0xff]
  %v31 = vld [vmem:[%s0 + $0x70] sm:$0xff]
  %v32 = vld [vmem:[%s0 + $0x78] sm:$0xff]
  %v33 = vld [vmem:[%s0 + $0x80] sm:$0xff]
  %v34 = vld [vmem:[%s0 + $0x88] sm:$0xff]
  %v35 = vld [vmem:[%s0 + $0x90] sm:$0xff]
  %v36 = vld [vmem:[%s0 + $0x98] sm:$0xff]
  %v37 = vld [vmem:[%s0 + $0xa0] sm:$0xff]
  %v38 = vld [vmem:[%s0 + $0xa8] sm:$0xff]
  %v39 = vld [vmem:[%s0 + $0xb0] sm:$0xff]
  %v40 = vld [vmem:[%s0 + $0xb8] sm:$0xff]
  %v41 = vld [vmem:[%s0 + $0xc0] sm:$0xff]
  %v42 = vld [vmem:[%s0 + $0xc8] sm:$0xff]
  %v43 = vld [vmem:[%s0 + $0xd0] sm:$0xff]
  %v44 = vld [vmem:[%s0 + $0xd8] sm:$0xff]
  %v45 = vld [vmem:[%s0 + $0xe0] sm:$0xff]
  %v46 = vld [vmem:[%s0 + $0xe8] sm:$0xff]
  %v47 = vld [vmem:[%s0 + $0xf0] sm:$0xff]
  %v48 = vld [vmem:[%s0 + $0xf8] sm:$0xff]
  %v49 = vld [vmem:[%s1] sm:$0xff]
  %v50 = vld [vmem:[%s1 + $0x8] sm:$0xff]
  %v51 = vld [vmem:[%s1 + $0x10] sm:$0xff]
  %v52 = vld [vmem:[%s1 + $0x18] sm:$0xff]
  %v53 = vld [vmem:[%s1 + $0x20] sm:$0xff]
  %v54 = vld [vmem:[%s1 + $0x28] sm:$0xff]
  %v55 = vld [vmem:[%s1 + $0x30] sm:$0xff]
  %v56 = vld [vmem:[%s1 + $0x38] sm:$0xff]
  %v57 = vld [vmem:[%s1 + $0x40] sm:$0xff]
  %v58 = vld [vmem:[%s1 + $0x48] sm:$0xff]
  %v59 = vld [vmem:[%s1 + $0x50] sm:$0xff]
  %v60 = vld [vmem:[%s1 + $0x58] sm:$0xff]
  %v61 = vld [vmem:[%s1 + $0x60] sm:$0xff]
  %v62 = vld [vmem:[%s1 + $0x68] sm:$0xff]
  %v63 = vld [vmem:[%s1 + $0x70] sm:$0xff]
  %v64 = vld [vmem:[%s1 + $0x78] sm:$0xff]
  %v65 = vld [vmem:[%s1 + $0x80] sm:$0xff]
  %v66 = vld [vmem:[%s1 + $0x88] sm:$0xff]
  %v67 = vld [vmem:[%s1 + $0x90] sm:$0xff]
  %v68 = vld [vmem:[%s1 + $0x98] sm:$0xff]
  %v69 = vld [vmem:[%s1 + $0xa0] sm:$0xff]
  %v70 = vld [vmem:[%s1 + $0xa8] sm:$0xff]
  %v71 = vld [vmem:[%s1 + $0xb0] sm:$0xff]
  %v72 = vld [vmem:[%s1 + $0xb8] sm:$0xff]
  %v73 = vld [vmem:[%s1 + $0xc0] sm:$0xff]
  %v74 = vld [vmem:[%s1 + $0xc8] sm:$0xff]
  %v75 = vld [vmem:[%s1 + $0xd0] sm:$0xff]
  %v76 = vld [vmem:[%s1 + $0xd8] sm:$0xff]
  %v77 = vld [vmem:[%s1 + $0xe0] sm:$0xff]
  %v78 = vld [vmem:[%s1 + $0xe8] sm:$0xff]
  %v79 = vld [vmem:[%s1 + $0xf0] sm:$0xff]
  %v80 = vld [vmem:[%s1 + $0xf8] sm:$0xff]
  %81 = vmatprep.subr.mxu0 0.0
  %82 = vmatpush1.msra.mxu0 %v64
  %83 = vmatprep.subr.mxu0 0.0
  %84 = vmatpush1.msra.mxu0 %v63
  %85 = vmatprep.subr.mxu0 0.0
  %86 = vmatpush1.msra.mxu0 %v62
  %87 = vmatprep.subr.mxu0 0.0
  %88 = vmatpush1.msra.mxu0 %v61
  %89 = vmatprep.subr.mxu0 0.0
  %90 = vmatpush1.msra.mxu0 %v60
  %91 = vmatprep.subr.mxu0 0.0
  %92 = vmatpush1.msra.mxu0 %v59
  %93 = vmatprep.subr.mxu0 0.0
  %94 = vmatpush1.msra.mxu0 %v58
  %95 = vmatprep.subr.mxu0 0.0
  %96 = vmatpush1.msra.mxu0 %v57
  %97 = vmatprep.subr.mxu0 0.0
  %98 = vmatpush1.msra.mxu0 %v56
  %99 = vmatprep.subr.mxu0 0.0
  %100 = vmatpush1.msra.mxu0 %v55
  %101 = vmatprep.subr.mxu0 0.0
  %102 = vmatpush1.msra.mxu0 %v54
  %103 = vmatprep.subr.mxu0 0.0
  %104 = vmatpush1.msra.mxu0 %v53
  %105 = vmatprep.subr.mxu0 0.0
  %106 = vmatpush1.msra.mxu0 %v52
  %107 = vmatprep.subr.mxu0 0.0
  %108 = vmatpush1.msra.mxu0 %v51
  %109 = vmatprep.subr.mxu0 0.0
  %110 = vmatpush1.msra.mxu0 %v50
  %111 = vmatprep.subr.mxu0 0.0
  %112 = vmatpush1.msra.mxu0 %v49
  %113 = vmatprep.subr.mxu0 0.0
  %114 = vmatpush2.msra.mxu0 %v80
  %115 = vmatprep.subr.mxu0 0.0
  %116 = vmatpush2.msra.mxu0 %v79
  %117 = vmatprep.subr.mxu0 0.0
  %118 = vmatpush2.msra.mxu0 %v78
  %119 = vmatprep.subr.mxu0 0.0
  %120 = vmatpush2.msra.mxu0 %v77
  %121 = vmatprep.subr.mxu0 0.0
  %122 = vmatpush2.msra.mxu0 %v76
  %123 = vmatprep.subr.mxu0 0.0
  %124 = vmatpush2.msra.mxu0 %v75
  %125 = vmatprep.subr.mxu0 0.0
  %126 = vmatpush2.msra.mxu0 %v74
  %127 = vmatprep.subr.mxu0 0.0
  %128 = vmatpush2.msra.mxu0 %v73
  %129 = vmatprep.subr.mxu0 0.0
  %130 = vmatpush2.msra.mxu0 %v72
  %131 = vmatprep.subr.mxu0 0.0
  %132 = vmatpush2.msra.mxu0 %v71
  %133 = vmatprep.subr.mxu0 0.0
  %134 = vmatpush2.msra.mxu0 %v70
  %135 = vmatprep.subr.mxu0 0.0
  %136 = vmatpush2.msra.mxu0 %v69
  %137 = vmatprep.subr.mxu0 0.0
  %138 = vmatpush2.msra.mxu0 %v68
  %139 = vmatprep.subr.mxu0 0.0
  %140 = vmatpush2.msra.mxu0 %v67
  %141 = vmatprep.subr.mxu0 0.0
  %142 = vmatpush2.msra.mxu0 %v66
  %143 = vmatprep.subr.mxu0 0.0
  %144 = vmatpush2.msra.mxu0 %v65
  %145 = vmatprep.mubr.f32.mxu0 %v18
  %146 = vmatmul.mubr.f32.gmra.mxu0 %v17
  %v147 = vpop.f32.mrf.mxu0
  %v148 = vadd.f32 0.0, %v147
  %v149 = vpop.f32.mrf.mxu0
  %150 = vmatprep.mubr.f32.mxu0 %v20
  %151 = vmatmul.mubr.f32.gmra.mxu0 %v19
  %v152 = vpop.f32.mrf.mxu0
  %v153 = vadd.f32 0.0, %v152
  %v154 = vpop.f32.mrf.mxu0
  %155 = vmatprep.mubr.f32.mxu0 %v22
  %156 = vmatmul.mubr.f32.gmra.mxu0 %v21
  %v157 = vpop.f32.mrf.mxu0
  %v158 = vadd.f32 0.0, %v157
  %v159 = vpop.f32.mrf.mxu0
  %160 = vmatprep.mubr.f32.mxu0 %v24
  %161 = vmatmul.mubr.f32.gmra.mxu0 %v23
  %v162 = vpop.f32.mrf.mxu0
  %v163 = vadd.f32 0.0, %v162
  %v164 = vpop.f32.mrf.mxu0
  %165 = vmatprep.mubr.f32.mxu0 %v26
  %166 = vmatmul.mubr.f32.gmra.mxu0 %v25
  %v167 = vpop.f32.mrf.mxu0
  %v168 = vadd.f32 0.0, %v167
  %v169 = vpop.f32.mrf.mxu0
  %170 = vmatprep.mubr.f32.mxu0 %v28
  %171 = vmatmul.mubr.f32.gmra.mxu0 %v27
  %v172 = vpop.f32.mrf.mxu0
  %v173 = vadd.f32 0.0, %v172
  %v174 = vpop.f32.mrf.mxu0
  %175 = vmatprep.mubr.f32.mxu0 %v30
  %176 = vmatmul.mubr.f32.gmra.mxu0 %v29
  %v177 = vpop.f32.mrf.mxu0
  %v178 = vadd.f32 0.0, %v177
  %v179 = vpop.f32.mrf.mxu0
  %180 = vmatprep.mubr.f32.mxu0 %v32
  %181 = vmatmul.mubr.f32.gmra.mxu0 %v31
  %v182 = vpop.f32.mrf.mxu0
  %v183 = vadd.f32 0.0, %v182
  %v184 = vpop.f32.mrf.mxu0
  %185 = vmatprep.mubr.f32.mxu0 %v34
  %186 = vmatmul.mubr.f32.gmra.mxu0 %v33
  %v187 = vpop.f32.mrf.mxu0
  %v188 = vadd.f32 0.0, %v187
  %v189 = vpop.f32.mrf.mxu0
  %190 = vmatprep.mubr.f32.mxu0 %v36
  %191 = vmatmul.mubr.f32.gmra.mxu0 %v35
  %v192 = vpop.f32.mrf.mxu0
  %v193 = vadd.f32 0.0, %v192
  %v194 = vpop.f32.mrf.mxu0
  %195 = vmatprep.mubr.f32.mxu0 %v38
  %196 = vmatmul.mubr.f32.gmra.mxu0 %v37
  %v197 = vpop.f32.mrf.mxu0
  %v198 = vadd.f32 0.0, %v197
  %v199 = vpop.f32.mrf.mxu0
  %200 = vmatprep.mubr.f32.mxu0 %v40
  %201 = vmatmul.mubr.f32.gmra.mxu0 %v39
  %v202 = vpop.f32.mrf.mxu0
  %v203 = vadd.f32 0.0, %v202
  %v204 = vpop.f32.mrf.mxu0
  %205 = vmatprep.mubr.f32.mxu0 %v42
  %206 = vmatmul.mubr.f32.gmra.mxu0 %v41
  %v207 = vpop.f32.mrf.mxu0
  %v208 = vadd.f32 0.0, %v207
  %v209 = vpop.f32.mrf.mxu0
  %210 = vmatprep.mubr.f32.mxu0 %v44
  %211 = vmatmul.mubr.f32.gmra.mxu0 %v43
  %v212 = vpop.f32.mrf.mxu0
  %v213 = vadd.f32 0.0, %v212
  %v214 = vpop.f32.mrf.mxu0
  %215 = vmatprep.mubr.f32.mxu0 %v46
  %216 = vmatmul.mubr.f32.gmra.mxu0 %v45
  %v217 = vpop.f32.mrf.mxu0
  %v218 = vadd.f32 0.0, %v217
  %v219 = vpop.f32.mrf.mxu0
  %220 = vmatprep.mubr.f32.mxu0 %v48
  %221 = vmatmul.mubr.f32.gmra.mxu0 %v47
  %v222 = vpop.f32.mrf.mxu0
  %v223 = vadd.f32 0.0, %v222
  %v224 = vpop.f32.mrf.mxu0
  %225 = vdwg.mxu0
  %v226 = vld [vmem:[%s2] sm:$0x1]
  %v228 = vlaneseq
  %v229 = vshrl.u32 %v228, 7
  %v230 = vsub.s32 0, %v229
  %v231 = vrot.slane %v226, %v230
  %v233 = vmul.f32 %v148, %v231
  %v234 = vmul.f32 %v153, %v231
  %v235 = vmul.f32 %v158, %v231
  %v236 = vmul.f32 %v163, %v231
  %v237 = vmul.f32 %v168, %v231
  %v238 = vmul.f32 %v173, %v231
  %v239 = vmul.f32 %v178, %v231
  %v240 = vmul.f32 %v183, %v231
  %v241 = vmul.f32 %v188, %v231
  %v242 = vmul.f32 %v193, %v231
  %v243 = vmul.f32 %v198, %v231
  %v244 = vmul.f32 %v203, %v231
  %v245 = vmul.f32 %v208, %v231
  %v246 = vmul.f32 %v213, %v231
  %v247 = vmul.f32 %v218, %v231
  %v248 = vmul.f32 %v223, %v231
  %v249 = vld [vmem:[%s3] sm:$0x1]
  %v251 = vlaneseq
  %v252 = vshrl.u32 %v251, 7
  %v253 = vsub.s32 0, %v252
  %v254 = vrot.slane %v249, %v253
  %v256 = vadd.f32 %v233, %v254
  %v257 = vadd.f32 %v234, %v254
  %v258 = vadd.f32 %v235, %v254
  %v259 = vadd.f32 %v236, %v254
  %v260 = vadd.f32 %v237, %v254
  %v261 = vadd.f32 %v238, %v254
  %v262 = vadd.f32 %v239, %v254
  %v263 = vadd.f32 %v240, %v254
  %v264 = vadd.f32 %v241, %v254
  %v265 = vadd.f32 %v242, %v254
  %v266 = vadd.f32 %v243, %v254
  %v267 = vadd.f32 %v244, %v254
  %v268 = vadd.f32 %v245, %v254
  %v269 = vadd.f32 %v246, %v254
  %v270 = vadd.f32 %v247, %v254
  %v271 = vadd.f32 %v248, %v254
  %v272 = vmax.f32 %v256, 0.0
  %v273 = vmax.f32 %v257, 0.0
  %v274 = vmax.f32 %v258, 0.0
  %v275 = vmax.f32 %v259, 0.0
  %v276 = vmax.f32 %v260, 0.0
  %v277 = vmax.f32 %v261, 0.0
  %v278 = vmax.f32 %v262, 0.0
  %v279 = vmax.f32 %v263, 0.0
  %v280 = vmax.f32 %v264, 0.0
  %v281 = vmax.f32 %v265, 0.0
  %v282 = vmax.f32 %v266, 0.0
  %v283 = vmax.f32 %v267, 0.0
  %v284 = vmax.f32 %v268, 0.0
  %v285 = vmax.f32 %v269, 0.0
  %v286 = vmax.f32 %v270, 0.0
  %v287 = vmax.f32 %v271, 0.0
  %288 = vst [vmem:[%s4] sm:$0xff] %v272
  %289 = vst [vmem:[%s4 + $0x8] sm:$0xff] %v273
  %290 = vst [vmem:[%s4 + $0x10] sm:$0xff] %v274
  %291 = vst [vmem:[%s4 + $0x18] sm:$0xff] %v275
  %292 = vst [vmem:[%s4 + $0x20] sm:$0xff] %v276
  %293 = vst [vmem:[%s4 + $0x28] sm:$0xff] %v277
  %294 = vst [vmem:[%s4 + $0x30] sm:$0xff] %v278
  %295 = vst [vmem:[%s4 + $0x38] sm:$0xff] %v279
  %296 = vst [vmem:[%s4 + $0x40] sm:$0xff] %v280
  %297 = vst [vmem:[%s4 + $0x48] sm:$0xff] %v281
  %298 = vst [vmem:[%s4 + $0x50] sm:$0xff] %v282
  %299 = vst [vmem:[%s4 + $0x58] sm:$0xff] %v283
  %300 = vst [vmem:[%s4 + $0x60] sm:$0xff] %v284
  %301 = vst [vmem:[%s4 + $0x68] sm:$0xff] %v285
  %302 = vst [vmem:[%s4 + $0x70] sm:$0xff] %v286
  %303 = vst [vmem:[%s4 + $0x78] sm:$0xff] %v287
  // Predicated region
  $region18: #{chessnet_forward.14} parent=0 // pred_check
    _
  $region19: #{chessnet_forward.14} parent=0 // pred_check_branch
    %305 = sbr.rel (0) target = $region21
  $region20: #{chessnet_forward.14} parent=0 // pred_region
    _
  $region21: #{chessnet_forward.14} parent=0 // pred_fallthru
    _
  // Predicated region
  $region22: #{chessnet_forward.14} parent=0 // pred_check
    _
  $region23: #{chessnet_forward.14} parent=0 // pred_check_branch
    %307 = sbr.rel (0) target = $region25
  $region24: #{chessnet_forward.14} parent=0 // pred_region
    _
  $region25: #{chessnet_forward.14} parent=0 // pred_fallthru
    _

// kernel: closed_call.19
$region0: #{closed_call.19}
  #allocation0 [shape = 'u32[]', space=smem, size = 0x4, offset = 0x4, fixed_abs, tag = 'smem constant byte address 0x4 - core index']
  #allocation1 [shape = 'u32[144,128]{1,0:T(1,128)}', space=vmem, size = 0x12000, scoped, tag = 'internal scratch']
  %s0 = inlined_call_operand.vmem [shape: f32[9,128,256], index: 0, kind: input, shape index: {}]
  %s1 = inlined_call_operand.vmem [shape: f32[9,256], index: 1, kind: input, shape index: {}]
  %s2 = inlined_call_operand.vmem [shape: f32[256,256], index: 2, kind: input, shape index: {}]
  %s3 = inlined_call_operand.vmem [shape: f32[1,256], index: 3, kind: input, shape index: {}]
  %s4 = inlined_call_operand.vmem [shape: f32[1,256], index: 4, kind: input, shape index: {}]
  %s5 = inlined_call_operand.vmem [shape: f32[128,256], index: 5, kind: output, shape index: {}]
  %s6 = sld [smem:[#allocation0]]
  $region30: #{closed_call.19} parent=0
    _
  %s8 = ssub.s32 1, %s6
  %s9 = scalar_select 0, %s8, %s6
  // Predicated region
  $region2: #{closed_call.19} parent=0 // pred_check
    _
  $region3: #{closed_call.19} parent=0 // pred_check_branch
    %11 = sbr.rel (0) target = $region5
  $region4: #{closed_call.19} parent=0 // pred_region
    _
  $region5: #{closed_call.19} parent=0 // pred_fallthru
    _
  // Predicated region
  $region6: #{closed_call.19} parent=0 // pred_check
    _
  $region7: #{closed_call.19} parent=0 // pred_check_branch
    %13 = sbr.rel (0) target = $region9
  $region8: #{closed_call.19} parent=0 // pred_region
    _
  $region9: #{closed_call.19} parent=0 // pred_fallthru
    _
  // Predicated region
  $region10: #{closed_call.19} parent=0 // pred_check
    _
  $region11: #{closed_call.19} parent=0 // pred_check_branch
    %15 = sbr.rel (0) target = $region13
  $region12: #{closed_call.19} parent=0 // pred_region
    _
  $region13: #{closed_call.19} parent=0 // pred_fallthru
    _
  // Predicated region
  $region14: #{closed_call.19} parent=0 // pred_check
    _
  $region15: #{closed_call.19} parent=0 // pred_check_branch
    %17 = sbr.rel (0) target = $region17
  $region16: #{closed_call.19} parent=0 // pred_region
    _
  $region17: #{closed_call.19} parent=0 // pred_fallthru
    _
  // Predicated region
  $region18: #{closed_call.19} parent=0 // pred_check
    _
  $region19: #{closed_call.19} parent=0 // pred_check_branch
    %19 = sbr.rel (0) target = $region21
  $region20: #{closed_call.19} parent=0 // pred_region
    _
  $region21: #{closed_call.19} parent=0 // pred_fallthru
    _
  %v20 = vld [vmem:[%s1] sm:$0xff]
  %v21 = vld [vmem:[%s1 + $0x8] sm:$0xff]
  %v22 = vld [vmem:[%s1 + $0x10] sm:$0x1]
  %v23 = vld [vmem:[%s1 + $0x18] sm:$0x1]
  %v24 = vld [vmem:[%s0] sm:$0xff]
  %v25 = vld [vmem:[%s0 + $0x8] sm:$0xff]
  %v26 = vld [vmem:[%s0 + $0x10] sm:$0xff]
  %v27 = vld [vmem:[%s0 + $0x18] sm:$0xff]
  %v28 = vld [vmem:[%s0 + $0x20] sm:$0xff]
  %v29 = vld [vmem:[%s0 + $0x28] sm:$0xff]
  %v30 = vld [vmem:[%s0 + $0x30] sm:$0xff]
  %v31 = vld [vmem:[%s0 + $0x38] sm:$0xff]
  %v32 = vld [vmem:[%s0 + $0x40] sm:$0xff]
  %v33 = vld [vmem:[%s0 + $0x48] sm:$0xff]
  %v34 = vld [vmem:[%s0 + $0x50] sm:$0xff]
  %v35 = vld [vmem:[%s0 + $0x58] sm:$0xff]
  %v36 = vld [vmem:[%s0 + $0x60] sm:$0xff]
  %v37 = vld [vmem:[%s0 + $0x68] sm:$0xff]
  %v38 = vld [vmem:[%s0 + $0x70] sm:$0xff]
  %v39 = vld [vmem:[%s0 + $0x78] sm:$0xff]
  %v40 = vld [vmem:[%s0 + $0x80] sm:$0xff]
  %v41 = vld [vmem:[%s0 + $0x88] sm:$0xff]
  %v42 = vld [vmem:[%s0 + $0x90] sm:$0xff]
  %v43 = vld [vmem:[%s0 + $0x98] sm:$0xff]
  %v44 = vld [vmem:[%s0 + $0xa0] sm:$0xff]
  %v45 = vld [vmem:[%s0 + $0xa8] sm:$0xff]
  %v46 = vld [vmem:[%s0 + $0xb0] sm:$0xff]
  %v47 = vld [vmem:[%s0 + $0xb8] sm:$0xff]
  %v48 = vld [vmem:[%s0 + $0xc0] sm:$0xff]
  %v49 = vld [vmem:[%s0 + $0xc8] sm:$0xff]
  %v50 = vld [vmem:[%s0 + $0xd0] sm:$0xff]
  %v51 = vld [vmem:[%s0 + $0xd8] sm:$0xff]
  %v52 = vld [vmem:[%s0 + $0xe0] sm:$0xff]
  %v53 = vld [vmem:[%s0 + $0xe8] sm:$0xff]
  %v54 = vld [vmem:[%s0 + $0xf0] sm:$0xff]
  %v55 = vld [vmem:[%s0 + $0xf8] sm:$0xff]
  %v56 = vlaneseq
  %v57 = vshrl.u32 %v56, 7
  %v58 = vsub.s32 0, %v57
  %v59 = vrot.slane %v20, %v58
  %v60 = vlaneseq
  %v61 = vshrl.u32 %v60, 7
  %v62 = vsub.s32 0, %v61
  %v63 = vrot.slane %v21, %v62
  %v64 = vmul.f32 %v24, %v59
  %v65 = vmul.f32 %v25, %v63
  %v66 = vmul.f32 %v26, %v59
  %v67 = vmul.f32 %v27, %v63
  %v68 = vmul.f32 %v28, %v59
  %v69 = vmul.f32 %v29, %v63
  %v70 = vmul.f32 %v30, %v59
  %v71 = vmul.f32 %v31, %v63
  %v72 = vmul.f32 %v32, %v59
  %v73 = vmul.f32 %v33, %v63
  %v74 = vmul.f32 %v34, %v59
  %v75 = vmul.f32 %v35, %v63
  %v76 = vmul.f32 %v36, %v59
  %v77 = vmul.f32 %v37, %v63
  %v78 = vmul.f32 %v38, %v59
  %v79 = vmul.f32 %v39, %v63
  %v80 = vmul.f32 %v40, %v59
  %v81 = vmul.f32 %v41, %v63
  %v82 = vmul.f32 %v42, %v59
  %v83 = vmul.f32 %v43, %v63
  %v84 = vmul.f32 %v44, %v59
  %v85 = vmul.f32 %v45, %v63
  %v86 = vmul.f32 %v46, %v59
  %v87 = vmul.f32 %v47, %v63
  %v88 = vmul.f32 %v48, %v59
  %v89 = vmul.f32 %v49, %v63
  %v90 = vmul.f32 %v50, %v59
  %v91 = vmul.f32 %v51, %v63
  %v92 = vmul.f32 %v52, %v59
  %v93 = vmul.f32 %v53, %v63
  %v94 = vmul.f32 %v54, %v59
  %v95 = vmul.f32 %v55, %v63
  %s96 = scalar_lea.vmem %s0, 256
  %v97 = vld [vmem:[%s96] sm:$0xff]
  %v98 = vld [vmem:[%s96 + $0x8] sm:$0xff]
  %v99 = vld [vmem:[%s96 + $0x10] sm:$0xff]
  %v100 = vld [vmem:[%s96 + $0x18] sm:$0xff]
  %v101 = vld [vmem:[%s96 + $0x20] sm:$0xff]
  %v102 = vld [vmem:[%s96 + $0x28] sm:$0xff]
  %v103 = vld [vmem:[%s96 + $0x30] sm:$0xff]
  %v104 = vld [vmem:[%s96 + $0x38] sm:$0xff]
  %v105 = vld [vmem:[%s96 + $0x40] sm:$0xff]
  %v106 = vld [vmem:[%s96 + $0x48] sm:$0xff]
  %v107 = vld [vmem:[%s96 + $0x50] sm:$0xff]
  %v108 = vld [vmem:[%s96 + $0x58] sm:$0xff]
  %v109 = vld [vmem:[%s96 + $0x60] sm:$0xff]
  %v110 = vld [vmem:[%s96 + $0x68] sm:$0xff]
  %v111 = vld [vmem:[%s96 + $0x70] sm:$0xff]
  %v112 = vld [vmem:[%s96 + $0x78] sm:$0xff]
  %v113 = vld [vmem:[%s96 + $0x80] sm:$0xff]
  %v114 = vld [vmem:[%s96 + $0x88] sm:$0xff]
  %v115 = vld [vmem:[%s96 + $0x90] sm:$0xff]
  %v116 = vld [vmem:[%s96 + $0x98] sm:$0xff]
  %v117 = vld [vmem:[%s96 + $0xa0] sm:$0xff]
  %v118 = vld [vmem:[%s96 + $0xa8] sm:$0xff]
  %v119 = vld [vmem:[%s96 + $0xb0] sm:$0xff]
  %v120 = vld [vmem:[%s96 + $0xb8] sm:$0xff]
  %v121 = vld [vmem:[%s96 + $0xc0] sm:$0xff]
  %v122 = vld [vmem:[%s96 + $0xc8] sm:$0xff]
  %v123 = vld [vmem:[%s96 + $0xd0] sm:$0xff]
  %v124 = vld [vmem:[%s96 + $0xd8] sm:$0xff]
  %v125 = vld [vmem:[%s96 + $0xe0] sm:$0xff]
  %v126 = vld [vmem:[%s96 + $0xe8] sm:$0xff]
  %v127 = vld [vmem:[%s96 + $0xf0] sm:$0xff]
  %v128 = vld [vmem:[%s96 + $0xf8] sm:$0xff]
  %v129 = vlaneseq
  %v130 = vshrl.u32 %v129, 7
  %v131 = vsub.s32 1, %v130
  %v132 = vrot.slane %v20, %v131
  %v133 = vlaneseq
  %v134 = vshrl.u32 %v133, 7
  %v135 = vsub.s32 1, %v134
  %v136 = vrot.slane %v21, %v135
  %v137 = vmul.f32 %v97, %v132
  %v138 = vmul.f32 %v98, %v136
  %v139 = vmul.f32 %v99, %v132
  %v140 = vmul.f32 %v100, %v136
  %v141 = vmul.f32 %v101, %v132
  %v142 = vmul.f32 %v102, %v136
  %v143 = vmul.f32 %v103, %v132
  %v144 = vmul.f32 %v104, %v136
  %v145 = vmul.f32 %v105, %v132
  %v146 = vmul.f32 %v106, %v136
  %v147 = vmul.f32 %v107, %v132
  %v148 = vmul.f32 %v108, %v136
  %v149 = vmul.f32 %v109, %v132
  %v150 = vmul.f32 %v110, %v136
  %v151 = vmul.f32 %v111, %v132
  %v152 = vmul.f32 %v112, %v136
  %v153 = vmul.f32 %v113, %v132
  %v154 = vmul.f32 %v114, %v136
  %v155 = vmul.f32 %v115, %v132
  %v156 = vmul.f32 %v116, %v136
  %v157 = vmul.f32 %v117, %v132
  %v158 = vmul.f32 %v118, %v136
  %v159 = vmul.f32 %v119, %v132
  %v160 = vmul.f32 %v120, %v136
  %v161 = vmul.f32 %v121, %v132
  %v162 = vmul.f32 %v122, %v136
  %v163 = vmul.f32 %v123, %v132
  %v164 = vmul.f32 %v124, %v136
  %v165 = vmul.f32 %v125, %v132
  %v166 = vmul.f32 %v126, %v136
  %v167 = vmul.f32 %v127, %v132
  %v168 = vmul.f32 %v128, %v136
  %v169 = vadd.f32 %v64, %v137
  %v170 = vadd.f32 %v65, %v138
  %v171 = vadd.f32 %v66, %v139
  %v172 = vadd.f32 %v67, %v140
  %v173 = vadd.f32 %v68, %v141
  %v174 = vadd.f32 %v69, %v142
  %v175 = vadd.f32 %v70, %v143
  %v176 = vadd.f32 %v71, %v144
  %v177 = vadd.f32 %v72, %v145
  %v178 = vadd.f32 %v73, %v146
  %v179 = vadd.f32 %v74, %v147
  %v180 = vadd.f32 %v75, %v148
  %v181 = vadd.f32 %v76, %v149
  %v182 = vadd.f32 %v77, %v150
  %v183 = vadd.f32 %v78, %v151
  %v184 = vadd.f32 %v79, %v152
  %v185 = vadd.f32 %v80, %v153
  %v186 = vadd.f32 %v81, %v154
  %v187 = vadd.f32 %v82, %v155
  %v188 = vadd.f32 %v83, %v156
  %v189 = vadd.f32 %v84, %v157
  %v190 = vadd.f32 %v85, %v158
  %v191 = vadd.f32 %v86, %v159
  %v192 = vadd.f32 %v87, %v160
  %v193 = vadd.f32 %v88, %v161
  %v194 = vadd.f32 %v89, %v162
  %v195 = vadd.f32 %v90, %v163
  %v196 = vadd.f32 %v91, %v164
  %v197 = vadd.f32 %v92, %v165
  %v198 = vadd.f32 %v93, %v166
  %v199 = vadd.f32 %v94, %v167
  %v200 = vadd.f32 %v95, %v168
  %s201 = scalar_lea.vmem %s0, 512
  %v202 = vld [vmem:[%s201] sm:$0xff]
  %v203 = vld [vmem:[%s201 + $0x8] sm:$0xff]
  %v204 = vld [vmem:[%s201 + $0x10] sm:$0xff]
  %v205 = vld [vmem:[%s201 + $0x18] sm:$0xff]
  %v206 = vld [vmem:[%s201 + $0x20] sm:$0xff]
  %v207 = vld [vmem:[%s201 + $0x28] sm:$0xff]
  %v208 = vld [vmem:[%s201 + $0x30] sm:$0xff]
  %v209 = vld [vmem:[%s201 + $0x38] sm:$0xff]
  %v210 = vld [vmem:[%s201 + $0x40] sm:$0xff]
  %v211 = vld [vmem:[%s201 + $0x48] sm:$0xff]
  %v212 = vld [vmem:[%s201 + $0x50] sm:$0xff]
  %v213 = vld [vmem:[%s201 + $0x58] sm:$0xff]
  %v214 = vld [vmem:[%s201 + $0x60] sm:$0xff]
  %v215 = vld [vmem:[%s201 + $0x68] sm:$0xff]
  %v216 = vld [vmem:[%s201 + $0x70] sm:$0xff]
  %v217 = vld [vmem:[%s201 + $0x78] sm:$0xff]
  %v218 = vld [vmem:[%s201 + $0x80] sm:$0xff]
  %v219 = vld [vmem:[%s201 + $0x88] sm:$0xff]
  %v220 = vld [vmem:[%s201 + $0x90] sm:$0xff]
  %v221 = vld [vmem:[%s201 + $0x98] sm:$0xff]
  %v222 = vld [vmem:[%s201 + $0xa0] sm:$0xff]
  %v223 = vld [vmem:[%s201 + $0xa8] sm:$0xff]
  %v224 = vld [vmem:[%s201 + $0xb0] sm:$0xff]
  %v225 = vld [vmem:[%s201 + $0xb8] sm:$0xff]
  %v226 = vld [vmem:[%s201 + $0xc0] sm:$0xff]
  %v227 = vld [vmem:[%s201 + $0xc8] sm:$0xff]
  %v228 = vld [vmem:[%s201 + $0xd0] sm:$0xff]
  %v229 = vld [vmem:[%s201 + $0xd8] sm:$0xff]
  %v230 = vld [vmem:[%s201 + $0xe0] sm:$0xff]
  %v231 = vld [vmem:[%s201 + $0xe8] sm:$0xff]
  %v232 = vld [vmem:[%s201 + $0xf0] sm:$0xff]
  %v233 = vld [vmem:[%s201 + $0xf8] sm:$0xff]
  %v234 = vlaneseq
  %v235 = vshrl.u32 %v234, 7
  %v236 = vsub.s32 2, %v235
  %v237 = vrot.slane %v20, %v236
  %v238 = vlaneseq
  %v239 = vshrl.u32 %v238, 7
  %v240 = vsub.s32 2, %v239
  %v241 = vrot.slane %v21, %v240
  %v242 = vmul.f32 %v202, %v237
  %v243 = vmul.f32 %v203, %v241
  %v244 = vmul.f32 %v204, %v237
  %v245 = vmul.f32 %v205, %v241
  %v246 = vmul.f32 %v206, %v237
  %v247 = vmul.f32 %v207, %v241
  %v248 = vmul.f32 %v208, %v237
  %v249 = vmul.f32 %v209, %v241
  %v250 = vmul.f32 %v210, %v237
  %v251 = vmul.f32 %v211, %v241
  %v252 = vmul.f32 %v212, %v237
  %v253 = vmul.f32 %v213, %v241
  %v254 = vmul.f32 %v214, %v237
  %v255 = vmul.f32 %v215, %v241
  %v256 = vmul.f32 %v216, %v237
  %v257 = vmul.f32 %v217, %v241
  %v258 = vmul.f32 %v218, %v237
  %v259 = vmul.f32 %v219, %v241
  %v260 = vmul.f32 %v220, %v237
  %v261 = vmul.f32 %v221, %v241
  %v262 = vmul.f32 %v222, %v237
  %v263 = vmul.f32 %v223, %v241
  %v264 = vmul.f32 %v224, %v237
  %v265 = vmul.f32 %v225, %v241
  %v266 = vmul.f32 %v226, %v237
  %v267 = vmul.f32 %v227, %v241
  %v268 = vmul.f32 %v228, %v237
  %v269 = vmul.f32 %v229, %v241
  %v270 = vmul.f32 %v230, %v237
  %v271 = vmul.f32 %v231, %v241
  %v272 = vmul.f32 %v232, %v237
  %v273 = vmul.f32 %v233, %v241
  %v274 = vadd.f32 %v169, %v242
  %v275 = vadd.f32 %v170, %v243
  %v276 = vadd.f32 %v171, %v244
  %v277 = vadd.f32 %v172, %v245
  %v278 = vadd.f32 %v173, %v246
  %v279 = vadd.f32 %v174, %v247
  %v280 = vadd.f32 %v175, %v248
  %v281 = vadd.f32 %v176, %v249
  %v282 = vadd.f32 %v177, %v250
  %v283 = vadd.f32 %v178, %v251
  %v284 = vadd.f32 %v179, %v252
  %v285 = vadd.f32 %v180, %v253
  %v286 = vadd.f32 %v181, %v254
  %v287 = vadd.f32 %v182, %v255
  %v288 = vadd.f32 %v183, %v256
  %v289 = vadd.f32 %v184, %v257
  %v290 = vadd.f32 %v185, %v258
  %v291 = vadd.f32 %v186, %v259
  %v292 = vadd.f32 %v187, %v260
  %v293 = vadd.f32 %v188, %v261
  %v294 = vadd.f32 %v189, %v262
  %v295 = vadd.f32 %v190, %v263
  %v296 = vadd.f32 %v191, %v264
  %v297 = vadd.f32 %v192, %v265
  %v298 = vadd.f32 %v193, %v266
  %v299 = vadd.f32 %v194, %v267
  %v300 = vadd.f32 %v195, %v268
  %v301 = vadd.f32 %v196, %v269
  %v302 = vadd.f32 %v197, %v270
  %v303 = vadd.f32 %v198, %v271
  %v304 = vadd.f32 %v199, %v272
  %v305 = vadd.f32 %v200, %v273
  %s306 = scalar_lea.vmem %s0, 768
  %v307 = vld [vmem:[%s306] sm:$0xff]
  %v308 = vld [vmem:[%s306 + $0x8] sm:$0xff]
  %v309 = vld [vmem:[%s306 + $0x10] sm:$0xff]
  %v310 = vld [vmem:[%s306 + $0x18] sm:$0xff]
  %v311 = vld [vmem:[%s306 + $0x20] sm:$0xff]
  %v312 = vld [vmem:[%s306 + $0x28] sm:$0xff]
  %v313 = vld [vmem:[%s306 + $0x30] sm:$0xff]
  %v314 = vld [vmem:[%s306 + $0x38] sm:$0xff]
  %v315 = vld [vmem:[%s306 + $0x40] sm:$0xff]
  %v316 = vld [vmem:[%s306 + $0x48] sm:$0xff]
  %v317 = vld [vmem:[%s306 + $0x50] sm:$0xff]
  %v318 = vld [vmem:[%s306 + $0x58] sm:$0xff]
  %v319 = vld [vmem:[%s306 + $0x60] sm:$0xff]
  %v320 = vld [vmem:[%s306 + $0x68] sm:$0xff]
  %v321 = vld [vmem:[%s306 + $0x70] sm:$0xff]
  %v322 = vld [vmem:[%s306 + $0x78] sm:$0xff]
  %v323 = vld [vmem:[%s306 + $0x80] sm:$0xff]
  %v324 = vld [vmem:[%s306 + $0x88] sm:$0xff]
  %v325 = vld [vmem:[%s306 + $0x90] sm:$0xff]
  %v326 = vld [vmem:[%s306 + $0x98] sm:$0xff]
  %v327 = vld [vmem:[%s306 + $0xa0] sm:$0xff]
  %v328 = vld [vmem:[%s306 + $0xa8] sm:$0xff]
  %v329 = vld [vmem:[%s306 + $0xb0] sm:$0xff]
  %v330 = vld [vmem:[%s306 + $0xb8] sm:$0xff]
  %v331 = vld [vmem:[%s306 + $0xc0] sm:$0xff]
  %v332 = vld [vmem:[%s306 + $0xc8] sm:$0xff]
  %v333 = vld [vmem:[%s306 + $0xd0] sm:$0xff]
  %v334 = vld [vmem:[%s306 + $0xd8] sm:$0xff]
  %v335 = vld [vmem:[%s306 + $0xe0] sm:$0xff]
  %v336 = vld [vmem:[%s306 + $0xe8] sm:$0xff]
  %v337 = vld [vmem:[%s306 + $0xf0] sm:$0xff]
  %v338 = vld [vmem:[%s306 + $0xf8] sm:$0xff]
  %v339 = vlaneseq
  %v340 = vshrl.u32 %v339, 7
  %v341 = vsub.s32 3, %v340
  %v342 = vrot.slane %v20, %v341
  %v343 = vlaneseq
  %v344 = vshrl.u32 %v343, 7
  %v345 = vsub.s32 3, %v344
  %v346 = vrot.slane %v21, %v345
  %v347 = vmul.f32 %v307, %v342
  %v348 = vmul.f32 %v308, %v346
  %v349 = vmul.f32 %v309, %v342
  %v350 = vmul.f32 %v310, %v346
  %v351 = vmul.f32 %v311, %v342
  %v352 = vmul.f32 %v312, %v346
  %v353 = vmul.f32 %v313, %v342
  %v354 = vmul.f32 %v314, %v346
  %v355 = vmul.f32 %v315, %v342
  %v356 = vmul.f32 %v316, %v346
  %v357 = vmul.f32 %v317, %v342
  %v358 = vmul.f32 %v318, %v346
  %v359 = vmul.f32 %v319, %v342
  %v360 = vmul.f32 %v320, %v346
  %v361 = vmul.f32 %v321, %v342
  %v362 = vmul.f32 %v322, %v346
  %v363 = vmul.f32 %v323, %v342
  %v364 = vmul.f32 %v324, %v346
  %v365 = vmul.f32 %v325, %v342
  %v366 = vmul.f32 %v326, %v346
  %v367 = vmul.f32 %v327, %v342
  %v368 = vmul.f32 %v328, %v346
  %v369 = vmul.f32 %v329, %v342
  %v370 = vmul.f32 %v330, %v346
  %v371 = vmul.f32 %v331, %v342
  %v372 = vmul.f32 %v332, %v346
  %v373 = vmul.f32 %v333, %v342
  %v374 = vmul.f32 %v334, %v346
  %v375 = vmul.f32 %v335, %v342
  %v376 = vmul.f32 %v336, %v346
  %v377 = vmul.f32 %v337, %v342
  %v378 = vmul.f32 %v338, %v346
  %v379 = vadd.f32 %v274, %v347
  %v380 = vadd.f32 %v275, %v348
  %v381 = vadd.f32 %v276, %v349
  %v382 = vadd.f32 %v277, %v350
  %v383 = vadd.f32 %v278, %v351
  %v384 = vadd.f32 %v279, %v352
  %v385 = vadd.f32 %v280, %v353
  %v386 = vadd.f32 %v281, %v354
  %v387 = vadd.f32 %v282, %v355
  %v388 = vadd.f32 %v283, %v356
  %v389 = vadd.f32 %v284, %v357
  %v390 = vadd.f32 %v285, %v358
  %v391 = vadd.f32 %v286, %v359
  %v392 = vadd.f32 %v287, %v360
  %v393 = vadd.f32 %v288, %v361
  %v394 = vadd.f32 %v289, %v362
  %v395 = vadd.f32 %v290, %v363
  %v396 = vadd.f32 %v291, %v364
  %v397 = vadd.f32 %v292, %v365
  %v398 = vadd.f32 %v293, %v366
  %v399 = vadd.f32 %v294, %v367
  %v400 = vadd.f32 %v295, %v368
  %v401 = vadd.f32 %v296, %v369
  %v402 = vadd.f32 %v297, %v370
  %v403 = vadd.f32 %v298, %v371
  %v404 = vadd.f32 %v299, %v372
  %v405 = vadd.f32 %v300, %v373
  %v406 = vadd.f32 %v301, %v374
  %v407 = vadd.f32 %v302, %v375
  %v408 = vadd.f32 %v303, %v376
  %v409 = vadd.f32 %v304, %v377
  %v410 = vadd.f32 %v305, %v378
  %s411 = scalar_lea.vmem %s0, 1024
  %v412 = vld [vmem:[%s411] sm:$0xff]
  %v413 = vld [vmem:[%s411 + $0x8] sm:$0xff]
  %v414 = vld [vmem:[%s411 + $0x10] sm:$0xff]
  %v415 = vld [vmem:[%s411 + $0x18] sm:$0xff]
  %v416 = vld [vmem:[%s411 + $0x20] sm:$0xff]
  %v417 = vld [vmem:[%s411 + $0x28] sm:$0xff]
  %v418 = vld [vmem:[%s411 + $0x30] sm:$0xff]
  %v419 = vld [vmem:[%s411 + $0x38] sm:$0xff]
  %v420 = vld [vmem:[%s411 + $0x40] sm:$0xff]
  %v421 = vld [vmem:[%s411 + $0x48] sm:$0xff]
  %v422 = vld [vmem:[%s411 + $0x50] sm:$0xff]
  %v423 = vld [vmem:[%s411 + $0x58] sm:$0xff]
  %v424 = vld [vmem:[%s411 + $0x60] sm:$0xff]
  %v425 = vld [vmem:[%s411 + $0x68] sm:$0xff]
  %v426 = vld [vmem:[%s411 + $0x70] sm:$0xff]
  %v427 = vld [vmem:[%s411 + $0x78] sm:$0xff]
  %v428 = vld [vmem:[%s411 + $0x80] sm:$0xff]
  %v429 = vld [vmem:[%s411 + $0x88] sm:$0xff]
  %v430 = vld [vmem:[%s411 + $0x90] sm:$0xff]
  %v431 = vld [vmem:[%s411 + $0x98] sm:$0xff]
  %v432 = vld [vmem:[%s411 + $0xa0] sm:$0xff]
  %v433 = vld [vmem:[%s411 + $0xa8] sm:$0xff]
  %v434 = vld [vmem:[%s411 + $0xb0] sm:$0xff]
  %v435 = vld [vmem:[%s411 + $0xb8] sm:$0xff]
  %v436 = vld [vmem:[%s411 + $0xc0] sm:$0xff]
  %v437 = vld [vmem:[%s411 + $0xc8] sm:$0xff]
  %v438 = vld [vmem:[%s411 + $0xd0] sm:$0xff]
  %v439 = vld [vmem:[%s411 + $0xd8] sm:$0xff]
  %v440 = vld [vmem:[%s411 + $0xe0] sm:$0xff]
  %v441 = vld [vmem:[%s411 + $0xe8] sm:$0xff]
  %v442 = vld [vmem:[%s411 + $0xf0] sm:$0xff]
  %v443 = vld [vmem:[%s411 + $0xf8] sm:$0xff]
  %v444 = vlaneseq
  %v445 = vshrl.u32 %v444, 7
  %v446 = vsub.s32 4, %v445
  %v447 = vrot.slane %v20, %v446
  %v448 = vlaneseq
  %v449 = vshrl.u32 %v448, 7
  %v450 = vsub.s32 4, %v449
  %v451 = vrot.slane %v21, %v450
  %v452 = vmul.f32 %v412, %v447
  %v453 = vmul.f32 %v413, %v451
  %v454 = vmul.f32 %v414, %v447
  %v455 = vmul.f32 %v415, %v451
  %v456 = vmul.f32 %v416, %v447
  %v457 = vmul.f32 %v417, %v451
  %v458 = vmul.f32 %v418, %v447
  %v459 = vmul.f32 %v419, %v451
  %v460 = vmul.f32 %v420, %v447
  %v461 = vmul.f32 %v421, %v451
  %v462 = vmul.f32 %v422, %v447
  %v463 = vmul.f32 %v423, %v451
  %v464 = vmul.f32 %v424, %v447
  %v465 = vmul.f32 %v425, %v451
  %v466 = vmul.f32 %v426, %v447
  %v467 = vmul.f32 %v427, %v451
  %v468 = vmul.f32 %v428, %v447
  %v469 = vmul.f32 %v429, %v451
  %v470 = vmul.f32 %v430, %v447
  %v471 = vmul.f32 %v431, %v451
  %v472 = vmul.f32 %v432, %v447
  %v473 = vmul.f32 %v433, %v451
  %v474 = vmul.f32 %v434, %v447
  %v475 = vmul.f32 %v435, %v451
  %v476 = vmul.f32 %v436, %v447
  %v477 = vmul.f32 %v437, %v451
  %v478 = vmul.f32 %v438, %v447
  %v479 = vmul.f32 %v439, %v451
  %v480 = vmul.f32 %v440, %v447
  %v481 = vmul.f32 %v441, %v451
  %v482 = vmul.f32 %v442, %v447
  %v483 = vmul.f32 %v443, %v451
  %v484 = vadd.f32 %v379, %v452
  %v485 = vadd.f32 %v380, %v453
  %v486 = vadd.f32 %v381, %v454
  %v487 = vadd.f32 %v382, %v455
  %v488 = vadd.f32 %v383, %v456
  %v489 = vadd.f32 %v384, %v457
  %v490 = vadd.f32 %v385, %v458
  %v491 = vadd.f32 %v386, %v459
  %v492 = vadd.f32 %v387, %v460
  %v493 = vadd.f32 %v388, %v461
  %v494 = vadd.f32 %v389, %v462
  %v495 = vadd.f32 %v390, %v463
  %v496 = vadd.f32 %v391, %v464
  %v497 = vadd.f32 %v392, %v465
  %v498 = vadd.f32 %v393, %v466
  %v499 = vadd.f32 %v394, %v467
  %v500 = vadd.f32 %v395, %v468
  %v501 = vadd.f32 %v396, %v469
  %v502 = vadd.f32 %v397, %v470
  %v503 = vadd.f32 %v398, %v471
  %v504 = vadd.f32 %v399, %v472
  %v505 = vadd.f32 %v400, %v473
  %v506 = vadd.f32 %v401, %v474
  %v507 = vadd.f32 %v402, %v475
  %v508 = vadd.f32 %v403, %v476
  %v509 = vadd.f32 %v404, %v477
  %v510 = vadd.f32 %v405, %v478
  %v511 = vadd.f32 %v406, %v479
  %v512 = vadd.f32 %v407, %v480
  %v513 = vadd.f32 %v408, %v481
  %v514 = vadd.f32 %v409, %v482
  %v515 = vadd.f32 %v410, %v483
  %s516 = scalar_lea.vmem %s0, 1280
  %v517 = vld [vmem:[%s516] sm:$0xff]
  %v518 = vld [vmem:[%s516 + $0x8] sm:$0xff]
  %v519 = vld [vmem:[%s516 + $0x10] sm:$0xff]
  %v520 = vld [vmem:[%s516 + $0x18] sm:$0xff]
  %v521 = vld [vmem:[%s516 + $0x20] sm:$0xff]
  %v522 = vld [vmem:[%s516 + $0x28] sm:$0xff]
  %v523 = vld [vmem:[%s516 + $0x30] sm:$0xff]
  %v524 = vld [vmem:[%s516 + $0x38] sm:$0xff]
  %v525 = vld [vmem:[%s516 + $0x40] sm:$0xff]
  %v526 = vld [vmem:[%s516 + $0x48] sm:$0xff]
  %v527 = vld [vmem:[%s516 + $0x50] sm:$0xff]
  %v528 = vld [vmem:[%s516 + $0x58] sm:$0xff]
  %v529 = vld [vmem:[%s516 + $0x60] sm:$0xff]
  %v530 = vld [vmem:[%s516 + $0x68] sm:$0xff]
  %v531 = vld [vmem:[%s516 + $0x70] sm:$0xff]
  %v532 = vld [vmem:[%s516 + $0x78] sm:$0xff]
  %v533 = vld [vmem:[%s516 + $0x80] sm:$0xff]
  %v534 = vld [vmem:[%s516 + $0x88] sm:$0xff]
  %v535 = vld [vmem:[%s516 + $0x90] sm:$0xff]
  %v536 = vld [vmem:[%s516 + $0x98] sm:$0xff]
  %v537 = vld [vmem:[%s516 + $0xa0] sm:$0xff]
  %v538 = vld [vmem:[%s516 + $0xa8] sm:$0xff]
  %v539 = vld [vmem:[%s516 + $0xb0] sm:$0xff]
  %v540 = vld [vmem:[%s516 + $0xb8] sm:$0xff]
  %v541 = vld [vmem:[%s516 + $0xc0] sm:$0xff]
  %v542 = vld [vmem:[%s516 + $0xc8] sm:$0xff]
  %v543 = vld [vmem:[%s516 + $0xd0] sm:$0xff]
  %v544 = vld [vmem:[%s516 + $0xd8] sm:$0xff]
  %v545 = vld [vmem:[%s516 + $0xe0] sm:$0xff]
  %v546 = vld [vmem:[%s516 + $0xe8] sm:$0xff]
  %v547 = vld [vmem:[%s516 + $0xf0] sm:$0xff]
  %v548 = vld [vmem:[%s516 + $0xf8] sm:$0xff]
  %v549 = vlaneseq
  %v550 = vshrl.u32 %v549, 7
  %v551 = vsub.s32 5, %v550
  %v552 = vrot.slane %v20, %v551
  %v553 = vlaneseq
  %v554 = vshrl.u32 %v553, 7
  %v555 = vsub.s32 5, %v554
  %v556 = vrot.slane %v21, %v555
  %v557 = vmul.f32 %v517, %v552
  %v558 = vmul.f32 %v518, %v556
  %v559 = vmul.f32 %v519, %v552
  %v560 = vmul.f32 %v520, %v556
  %v561 = vmul.f32 %v521, %v552
  %v562 = vmul.f32 %v522, %v556
  %v563 = vmul.f32 %v523, %v552
  %v564 = vmul.f32 %v524, %v556
  %v565 = vmul.f32 %v525, %v552
  %v566 = vmul.f32 %v526, %v556
  %v567 = vmul.f32 %v527, %v552
  %v568 = vmul.f32 %v528, %v556
  %v569 = vmul.f32 %v529, %v552
  %v570 = vmul.f32 %v530, %v556
  %v571 = vmul.f32 %v531, %v552
  %v572 = vmul.f32 %v532, %v556
  %v573 = vmul.f32 %v533, %v552
  %v574 = vmul.f32 %v534, %v556
  %v575 = vmul.f32 %v535, %v552
  %v576 = vmul.f32 %v536, %v556
  %v577 = vmul.f32 %v537, %v552
  %v578 = vmul.f32 %v538, %v556
  %v579 = vmul.f32 %v539, %v552
  %v580 = vmul.f32 %v540, %v556
  %v581 = vmul.f32 %v541, %v552
  %v582 = vmul.f32 %v542, %v556
  %v583 = vmul.f32 %v543, %v552
  %v584 = vmul.f32 %v544, %v556
  %v585 = vmul.f32 %v545, %v552
  %v586 = vmul.f32 %v546, %v556
  %v587 = vmul.f32 %v547, %v552
  %v588 = vmul.f32 %v548, %v556
  %v589 = vadd.f32 %v484, %v557
  %v590 = vadd.f32 %v485, %v558
  %v591 = vadd.f32 %v486, %v559
  %v592 = vadd.f32 %v487, %v560
  %v593 = vadd.f32 %v488, %v561
  %v594 = vadd.f32 %v489, %v562
  %v595 = vadd.f32 %v490, %v563
  %v596 = vadd.f32 %v491, %v564
  %v597 = vadd.f32 %v492, %v565
  %v598 = vadd.f32 %v493, %v566
  %v599 = vadd.f32 %v494, %v567
  %v600 = vadd.f32 %v495, %v568
  %v601 = vadd.f32 %v496, %v569
  %v602 = vadd.f32 %v497, %v570
  %v603 = vadd.f32 %v498, %v571
  %v604 = vadd.f32 %v499, %v572
  %v605 = vadd.f32 %v500, %v573
  %v606 = vadd.f32 %v501, %v574
  %v607 = vadd.f32 %v502, %v575
  %v608 = vadd.f32 %v503, %v576
  %v609 = vadd.f32 %v504, %v577
  %v610 = vadd.f32 %v505, %v578
  %v611 = vadd.f32 %v506, %v579
  %v612 = vadd.f32 %v507, %v580
  %v613 = vadd.f32 %v508, %v581
  %v614 = vadd.f32 %v509, %v582
  %v615 = vadd.f32 %v510, %v583
  %v616 = vadd.f32 %v511, %v584
  %v617 = vadd.f32 %v512, %v585
  %v618 = vadd.f32 %v513, %v586
  %v619 = vadd.f32 %v514, %v587
  %v620 = vadd.f32 %v515, %v588
  %s621 = scalar_lea.vmem %s0, 1536
  %v622 = vld [vmem:[%s621] sm:$0xff]
  %v623 = vld [vmem:[%s621 + $0x8] sm:$0xff]
  %v624 = vld [vmem:[%s621 + $0x10] sm:$0xff]
  %v625 = vld [vmem:[%s621 + $0x18] sm:$0xff]
  %v626 = vld [vmem:[%s621 + $0x20] sm:$0xff]
  %v627 = vld [vmem:[%s621 + $0x28] sm:$0xff]
  %v628 = vld [vmem:[%s621 + $0x30] sm:$0xff]
  %v629 = vld [vmem:[%s621 + $0x38] sm:$0xff]
  %v630 = vld [vmem:[%s621 + $0x40] sm:$0xff]
  %v631 = vld [vmem:[%s621 + $0x48] sm:$0xff]
  %v632 = vld [vmem:[%s621 + $0x50] sm:$0xff]
  %v633 = vld [vmem:[%s621 + $0x58] sm:$0xff]
  %v634 = vld [vmem:[%s621 + $0x60] sm:$0xff]
  %v635 = vld [vmem:[%s621 + $0x68] sm:$0xff]
  %v636 = vld [vmem:[%s621 + $0x70] sm:$0xff]
  %v637 = vld [vmem:[%s621 + $0x78] sm:$0xff]
  %v638 = vld [vmem:[%s621 + $0x80] sm:$0xff]
  %v639 = vld [vmem:[%s621 + $0x88] sm:$0xff]
  %v640 = vld [vmem:[%s621 + $0x90] sm:$0xff]
  %v641 = vld [vmem:[%s621 + $0x98] sm:$0xff]
  %v642 = vld [vmem:[%s621 + $0xa0] sm:$0xff]
  %v643 = vld [vmem:[%s621 + $0xa8] sm:$0xff]
  %v644 = vld [vmem:[%s621 + $0xb0] sm:$0xff]
  %v645 = vld [vmem:[%s621 + $0xb8] sm:$0xff]
  %v646 = vld [vmem:[%s621 + $0xc0] sm:$0xff]
  %v647 = vld [vmem:[%s621 + $0xc8] sm:$0xff]
  %v648 = vld [vmem:[%s621 + $0xd0] sm:$0xff]
  %v649 = vld [vmem:[%s621 + $0xd8] sm:$0xff]
  %v650 = vld [vmem:[%s621 + $0xe0] sm:$0xff]
  %v651 = vld [vmem:[%s621 + $0xe8] sm:$0xff]
  %v652 = vld [vmem:[%s621 + $0xf0] sm:$0xff]
  %v653 = vld [vmem:[%s621 + $0xf8] sm:$0xff]
  %v654 = vlaneseq
  %v655 = vshrl.u32 %v654, 7
  %v656 = vsub.s32 6, %v655
  %v657 = vrot.slane %v20, %v656
  %v658 = vlaneseq
  %v659 = vshrl.u32 %v658, 7
  %v660 = vsub.s32 6, %v659
  %v661 = vrot.slane %v21, %v660
  %v662 = vmul.f32 %v622, %v657
  %v663 = vmul.f32 %v623, %v661
  %v664 = vmul.f32 %v624, %v657
  %v665 = vmul.f32 %v625, %v661
  %v666 = vmul.f32 %v626, %v657
  %v667 = vmul.f32 %v627, %v661
  %v668 = vmul.f32 %v628, %v657
  %v669 = vmul.f32 %v629, %v661
  %v670 = vmul.f32 %v630, %v657
  %v671 = vmul.f32 %v631, %v661
  %v672 = vmul.f32 %v632, %v657
  %v673 = vmul.f32 %v633, %v661
  %v674 = vmul.f32 %v634, %v657
  %v675 = vmul.f32 %v635, %v661
  %v676 = vmul.f32 %v636, %v657
  %v677 = vmul.f32 %v637, %v661
  %v678 = vmul.f32 %v638, %v657
  %v679 = vmul.f32 %v639, %v661
  %v680 = vmul.f32 %v640, %v657
  %v681 = vmul.f32 %v641, %v661
  %v682 = vmul.f32 %v642, %v657
  %v683 = vmul.f32 %v643, %v661
  %v684 = vmul.f32 %v644, %v657
  %v685 = vmul.f32 %v645, %v661
  %v686 = vmul.f32 %v646, %v657
  %v687 = vmul.f32 %v647, %v661
  %v688 = vmul.f32 %v648, %v657
  %v689 = vmul.f32 %v649, %v661
  %v690 = vmul.f32 %v650, %v657
  %v691 = vmul.f32 %v651, %v661
  %v692 = vmul.f32 %v652, %v657
  %v693 = vmul.f32 %v653, %v661
  %v694 = vadd.f32 %v589, %v662
  %v695 = vadd.f32 %v590, %v663
  %v696 = vadd.f32 %v591, %v664
  %v697 = vadd.f32 %v592, %v665
  %v698 = vadd.f32 %v593, %v666
  %v699 = vadd.f32 %v594, %v667
  %v700 = vadd.f32 %v595, %v668
  %v701 = vadd.f32 %v596, %v669
  %v702 = vadd.f32 %v597, %v670
  %v703 = vadd.f32 %v598, %v671
  %v704 = vadd.f32 %v599, %v672
  %v705 = vadd.f32 %v600, %v673
  %v706 = vadd.f32 %v601, %v674
  %v707 = vadd.f32 %v602, %v675
  %v708 = vadd.f32 %v603, %v676
  %v709 = vadd.f32 %v604, %v677
  %v710 = vadd.f32 %v605, %v678
  %v711 = vadd.f32 %v606, %v679
  %v712 = vadd.f32 %v607, %v680
  %v713 = vadd.f32 %v608, %v681
  %v714 = vadd.f32 %v609, %v682
  %v715 = vadd.f32 %v610, %v683
  %v716 = vadd.f32 %v611, %v684
  %v717 = vadd.f32 %v612, %v685
  %v718 = vadd.f32 %v613, %v686
  %v719 = vadd.f32 %v614, %v687
  %v720 = vadd.f32 %v615, %v688
  %v721 = vadd.f32 %v616, %v689
  %v722 = vadd.f32 %v617, %v690
  %v723 = vadd.f32 %v618, %v691
  %v724 = vadd.f32 %v619, %v692
  %v725 = vadd.f32 %v620, %v693
  %s726 = scalar_lea.vmem %s0, 1792
  %v727 = vld [vmem:[%s726] sm:$0xff]
  %v728 = vld [vmem:[%s726 + $0x8] sm:$0xff]
  %v729 = vld [vmem:[%s726 + $0x10] sm:$0xff]
  %v730 = vld [vmem:[%s726 + $0x18] sm:$0xff]
  %v731 = vld [vmem:[%s726 + $0x20] sm:$0xff]
  %v732 = vld [vmem:[%s726 + $0x28] sm:$0xff]
  %v733 = vld [vmem:[%s726 + $0x30] sm:$0xff]
  %v734 = vld [vmem:[%s726 + $0x38] sm:$0xff]
  %v735 = vld [vmem:[%s726 + $0x40] sm:$0xff]
  %v736 = vld [vmem:[%s726 + $0x48] sm:$0xff]
  %v737 = vld [vmem:[%s726 + $0x50] sm:$0xff]
  %v738 = vld [vmem:[%s726 + $0x58] sm:$0xff]
  %v739 = vld [vmem:[%s726 + $0x60] sm:$0xff]
  %v740 = vld [vmem:[%s726 + $0x68] sm:$0xff]
  %v741 = vld [vmem:[%s726 + $0x70] sm:$0xff]
  %v742 = vld [vmem:[%s726 + $0x78] sm:$0xff]
  %v743 = vld [vmem:[%s726 + $0x80] sm:$0xff]
  %v744 = vld [vmem:[%s726 + $0x88] sm:$0xff]
  %v745 = vld [vmem:[%s726 + $0x90] sm:$0xff]
  %v746 = vld [vmem:[%s726 + $0x98] sm:$0xff]
  %v747 = vld [vmem:[%s726 + $0xa0] sm:$0xff]
  %v748 = vld [vmem:[%s726 + $0xa8] sm:$0xff]
  %v749 = vld [vmem:[%s726 + $0xb0] sm:$0xff]
  %v750 = vld [vmem:[%s726 + $0xb8] sm:$0xff]
  %v751 = vld [vmem:[%s726 + $0xc0] sm:$0xff]
  %v752 = vld [vmem:[%s726 + $0xc8] sm:$0xff]
  %v753 = vld [vmem:[%s726 + $0xd0] sm:$0xff]
  %v754 = vld [vmem:[%s726 + $0xd8] sm:$0xff]
  %v755 = vld [vmem:[%s726 + $0xe0] sm:$0xff]
  %v756 = vld [vmem:[%s726 + $0xe8] sm:$0xff]
  %v757 = vld [vmem:[%s726 + $0xf0] sm:$0xff]
  %v758 = vld [vmem:[%s726 + $0xf8] sm:$0xff]
  %v759 = vlaneseq
  %v760 = vshrl.u32 %v759, 7
  %v761 = vsub.s32 7, %v760
  %v762 = vrot.slane %v20, %v761
  %v763 = vlaneseq
  %v764 = vshrl.u32 %v763, 7
  %v765 = vsub.s32 7, %v764
  %v766 = vrot.slane %v21, %v765
  %v767 = vmul.f32 %v727, %v762
  %v768 = vmul.f32 %v728, %v766
  %v769 = vmul.f32 %v729, %v762
  %v770 = vmul.f32 %v730, %v766
  %v771 = vmul.f32 %v731, %v762
  %v772 = vmul.f32 %v732, %v766
  %v773 = vmul.f32 %v733, %v762
  %v774 = vmul.f32 %v734, %v766
  %v775 = vmul.f32 %v735, %v762
  %v776 = vmul.f32 %v736, %v766
  %v777 = vmul.f32 %v737, %v762
  %v778 = vmul.f32 %v738, %v766
  %v779 = vmul.f32 %v739, %v762
  %v780 = vmul.f32 %v740, %v766
  %v781 = vmul.f32 %v741, %v762
  %v782 = vmul.f32 %v742, %v766
  %v783 = vmul.f32 %v743, %v762
  %v784 = vmul.f32 %v744, %v766
  %v785 = vmul.f32 %v745, %v762
  %v786 = vmul.f32 %v746, %v766
  %v787 = vmul.f32 %v747, %v762
  %v788 = vmul.f32 %v748, %v766
  %v789 = vmul.f32 %v749, %v762
  %v790 = vmul.f32 %v750, %v766
  %v791 = vmul.f32 %v751, %v762
  %v792 = vmul.f32 %v752, %v766
  %v793 = vmul.f32 %v753, %v762
  %v794 = vmul.f32 %v754, %v766
  %v795 = vmul.f32 %v755, %v762
  %v796 = vmul.f32 %v756, %v766
  %v797 = vmul.f32 %v757, %v762
  %v798 = vmul.f32 %v758, %v766
  %v799 = vadd.f32 %v694, %v767
  %v800 = vadd.f32 %v695, %v768
  %v801 = vadd.f32 %v696, %v769
  %v802 = vadd.f32 %v697, %v770
  %v803 = vadd.f32 %v698, %v771
  %v804 = vadd.f32 %v699, %v772
  %v805 = vadd.f32 %v700, %v773
  %v806 = vadd.f32 %v701, %v774
  %v807 = vadd.f32 %v702, %v775
  %v808 = vadd.f32 %v703, %v776
  %v809 = vadd.f32 %v704, %v777
  %v810 = vadd.f32 %v705, %v778
  %v811 = vadd.f32 %v706, %v779
  %v812 = vadd.f32 %v707, %v780
  %v813 = vadd.f32 %v708, %v781
  %v814 = vadd.f32 %v709, %v782
  %v815 = vadd.f32 %v710, %v783
  %v816 = vadd.f32 %v711, %v784
  %v817 = vadd.f32 %v712, %v785
  %v818 = vadd.f32 %v713, %v786
  %v819 = vadd.f32 %v714, %v787
  %v820 = vadd.f32 %v715, %v788
  %v821 = vadd.f32 %v716, %v789
  %v822 = vadd.f32 %v717, %v790
  %v823 = vadd.f32 %v718, %v791
  %v824 = vadd.f32 %v719, %v792
  %v825 = vadd.f32 %v720, %v793
  %v826 = vadd.f32 %v721, %v794
  %v827 = vadd.f32 %v722, %v795
  %v828 = vadd.f32 %v723, %v796
  %v829 = vadd.f32 %v724, %v797
  %v830 = vadd.f32 %v725, %v798
  %s831 = scalar_lea.vmem %s0, 2048
  %v832 = vld [vmem:[%s831] sm:$0xff]
  %v833 = vld [vmem:[%s831 + $0x8] sm:$0xff]
  %v834 = vld [vmem:[%s831 + $0x10] sm:$0xff]
  %v835 = vld [vmem:[%s831 + $0x18] sm:$0xff]
  %v836 = vld [vmem:[%s831 + $0x20] sm:$0xff]
  %v837 = vld [vmem:[%s831 + $0x28] sm:$0xff]
  %v838 = vld [vmem:[%s831 + $0x30] sm:$0xff]
  %v839 = vld [vmem:[%s831 + $0x38] sm:$0xff]
  %v840 = vld [vmem:[%s831 + $0x40] sm:$0xff]
  %v841 = vld [vmem:[%s831 + $0x48] sm:$0xff]
  %v842 = vld [vmem:[%s831 + $0x50] sm:$0xff]
  %v843 = vld [vmem:[%s831 + $0x58] sm:$0xff]
  %v844 = vld [vmem:[%s831 + $0x60] sm:$0xff]
  %v845 = vld [vmem:[%s831 + $0x68] sm:$0xff]
  %v846 = vld [vmem:[%s831 + $0x70] sm:$0xff]
  %v847 = vld [vmem:[%s831 + $0x78] sm:$0xff]
  %v848 = vld [vmem:[%s831 + $0x80] sm:$0xff]
  %v849 = vld [vmem:[%s831 + $0x88] sm:$0xff]
  %v850 = vld [vmem:[%s831 + $0x90] sm:$0xff]
  %v851 = vld [vmem:[%s831 + $0x98] sm:$0xff]
  %v852 = vld [vmem:[%s831 + $0xa0] sm:$0xff]
  %v853 = vld [vmem:[%s831 + $0xa8] sm:$0xff]
  %v854 = vld [vmem:[%s831 + $0xb0] sm:$0xff]
  %v855 = vld [vmem:[%s831 + $0xb8] sm:$0xff]
  %v856 = vld [vmem:[%s831 + $0xc0] sm:$0xff]
  %v857 = vld [vmem:[%s831 + $0xc8] sm:$0xff]
  %v858 = vld [vmem:[%s831 + $0xd0] sm:$0xff]
  %v859 = vld [vmem:[%s831 + $0xd8] sm:$0xff]
  %v860 = vld [vmem:[%s831 + $0xe0] sm:$0xff]
  %v861 = vld [vmem:[%s831 + $0xe8] sm:$0xff]
  %v862 = vld [vmem:[%s831 + $0xf0] sm:$0xff]
  %v863 = vld [vmem:[%s831 + $0xf8] sm:$0xff]
  %v864 = vlaneseq
  %v865 = vshrl.u32 %v864, 7
  %v866 = vsub.s32 0, %v865
  %v867 = vrot.slane %v22, %v866
  %v868 = vlaneseq
  %v869 = vshrl.u32 %v868, 7
  %v870 = vsub.s32 0, %v869
  %v871 = vrot.slane %v23, %v870
  %v872 = vmul.f32 %v832, %v867
  %v873 = vmul.f32 %v833, %v871
  %v874 = vmul.f32 %v834, %v867
  %v875 = vmul.f32 %v835, %v871
  %v876 = vmul.f32 %v836, %v867
  %v877 = vmul.f32 %v837, %v871
  %v878 = vmul.f32 %v838, %v867
  %v879 = vmul.f32 %v839, %v871
  %v880 = vmul.f32 %v840, %v867
  %v881 = vmul.f32 %v841, %v871
  %v882 = vmul.f32 %v842, %v867
  %v883 = vmul.f32 %v843, %v871
  %v884 = vmul.f32 %v844, %v867
  %v885 = vmul.f32 %v845, %v871
  %v886 = vmul.f32 %v846, %v867
  %v887 = vmul.f32 %v847, %v871
  %v888 = vmul.f32 %v848, %v867
  %v889 = vmul.f32 %v849, %v871
  %v890 = vmul.f32 %v850, %v867
  %v891 = vmul.f32 %v851, %v871
  %v892 = vmul.f32 %v852, %v867
  %v893 = vmul.f32 %v853, %v871
  %v894 = vmul.f32 %v854, %v867
  %v895 = vmul.f32 %v855, %v871
  %v896 = vmul.f32 %v856, %v867
  %v897 = vmul.f32 %v857, %v871
  %v898 = vmul.f32 %v858, %v867
  %v899 = vmul.f32 %v859, %v871
  %v900 = vmul.f32 %v860, %v867
  %v901 = vmul.f32 %v861, %v871
  %v902 = vmul.f32 %v862, %v867
  %v903 = vmul.f32 %v863, %v871
  %v904 = vadd.f32 %v799, %v872
  %v905 = vadd.f32 %v800, %v873
  %v906 = vadd.f32 %v801, %v874
  %v907 = vadd.f32 %v802, %v875
  %v908 = vadd.f32 %v803, %v876
  %v909 = vadd.f32 %v804, %v877
  %v910 = vadd.f32 %v805, %v878
  %v911 = vadd.f32 %v806, %v879
  %v912 = vadd.f32 %v807, %v880
  %v913 = vadd.f32 %v808, %v881
  %v914 = vadd.f32 %v809, %v882
  %v915 = vadd.f32 %v810, %v883
  %v916 = vadd.f32 %v811, %v884
  %v917 = vadd.f32 %v812, %v885
  %v918 = vadd.f32 %v813, %v886
  %v919 = vadd.f32 %v814, %v887
  %v920 = vadd.f32 %v815, %v888
  %v921 = vadd.f32 %v816, %v889
  %v922 = vadd.f32 %v817, %v890
  %v923 = vadd.f32 %v818, %v891
  %v924 = vadd.f32 %v819, %v892
  %v925 = vadd.f32 %v820, %v893
  %v926 = vadd.f32 %v821, %v894
  %v927 = vadd.f32 %v822, %v895
  %v928 = vadd.f32 %v823, %v896
  %v929 = vadd.f32 %v824, %v897
  %v930 = vadd.f32 %v825, %v898
  %v931 = vadd.f32 %v826, %v899
  %v932 = vadd.f32 %v827, %v900
  %v933 = vadd.f32 %v828, %v901
  %v934 = vadd.f32 %v829, %v902
  %v935 = vadd.f32 %v830, %v903
  %v936 = vld [vmem:[%s2] sm:$0xff]
  %v937 = vld [vmem:[%s2 + $0x8] sm:$0xff]
  %v938 = vld [vmem:[%s2 + $0x10] sm:$0xff]
  %v939 = vld [vmem:[%s2 + $0x18] sm:$0xff]
  %v940 = vld [vmem:[%s2 + $0x20] sm:$0xff]
  %v941 = vld [vmem:[%s2 + $0x28] sm:$0xff]
  %v942 = vld [vmem:[%s2 + $0x30] sm:$0xff]
  %v943 = vld [vmem:[%s2 + $0x38] sm:$0xff]
  %v944 = vld [vmem:[%s2 + $0x40] sm:$0xff]
  %v945 = vld [vmem:[%s2 + $0x48] sm:$0xff]
  %v946 = vld [vmem:[%s2 + $0x50] sm:$0xff]
  %v947 = vld [vmem:[%s2 + $0x58] sm:$0xff]
  %v948 = vld [vmem:[%s2 + $0x60] sm:$0xff]
  %v949 = vld [vmem:[%s2 + $0x68] sm:$0xff]
  %v950 = vld [vmem:[%s2 + $0x70] sm:$0xff]
  %v951 = vld [vmem:[%s2 + $0x78] sm:$0xff]
  %v952 = vld [vmem:[%s2 + $0x80] sm:$0xff]
  %v953 = vld [vmem:[%s2 + $0x88] sm:$0xff]
  %v954 = vld [vmem:[%s2 + $0x90] sm:$0xff]
  %v955 = vld [vmem:[%s2 + $0x98] sm:$0xff]
  %v956 = vld [vmem:[%s2 + $0xa0] sm:$0xff]
  %v957 = vld [vmem:[%s2 + $0xa8] sm:$0xff]
  %v958 = vld [vmem:[%s2 + $0xb0] sm:$0xff]
  %v959 = vld [vmem:[%s2 + $0xb8] sm:$0xff]
  %v960 = vld [vmem:[%s2 + $0xc0] sm:$0xff]
  %v961 = vld [vmem:[%s2 + $0xc8] sm:$0xff]
  %v962 = vld [vmem:[%s2 + $0xd0] sm:$0xff]
  %v963 = vld [vmem:[%s2 + $0xd8] sm:$0xff]
  %v964 = vld [vmem:[%s2 + $0xe0] sm:$0xff]
  %v965 = vld [vmem:[%s2 + $0xe8] sm:$0xff]
  %v966 = vld [vmem:[%s2 + $0xf0] sm:$0xff]
  %v967 = vld [vmem:[%s2 + $0xf8] sm:$0xff]
  %v968 = vld [vmem:[%s2 + $0x100] sm:$0xff]
  %v969 = vld [vmem:[%s2 + $0x108] sm:$0xff]
  %v970 = vld [vmem:[%s2 + $0x110] sm:$0xff]
  %v971 = vld [vmem:[%s2 + $0x118] sm:$0xff]
  %v972 = vld [vmem:[%s2 + $0x120] sm:$0xff]
  %v973 = vld [vmem:[%s2 + $0x128] sm:$0xff]
  %v974 = vld [vmem:[%s2 + $0x130] sm:$0xff]
  %v975 = vld [vmem:[%s2 + $0x138] sm:$0xff]
  %v976 = vld [vmem:[%s2 + $0x140] sm:$0xff]
  %v977 = vld [vmem:[%s2 + $0x148] sm:$0xff]
  %v978 = vld [vmem:[%s2 + $0x150] sm:$0xff]
  %v979 = vld [vmem:[%s2 + $0x158] sm:$0xff]
  %v980 = vld [vmem:[%s2 + $0x160] sm:$0xff]
  %v981 = vld [vmem:[%s2 + $0x168] sm:$0xff]
  %v982 = vld [vmem:[%s2 + $0x170] sm:$0xff]
  %v983 = vld [vmem:[%s2 + $0x178] sm:$0xff]
  %v984 = vld [vmem:[%s2 + $0x180] sm:$0xff]
  %v985 = vld [vmem:[%s2 + $0x188] sm:$0xff]
  %v986 = vld [vmem:[%s2 + $0x190] sm:$0xff]
  %v987 = vld [vmem:[%s2 + $0x198] sm:$0xff]
  %v988 = vld [vmem:[%s2 + $0x1a0] sm:$0xff]
  %v989 = vld [vmem:[%s2 + $0x1a8] sm:$0xff]
  %v990 = vld [vmem:[%s2 + $0x1b0] sm:$0xff]
  %v991 = vld [vmem:[%s2 + $0x1b8] sm:$0xff]
  %v992 = vld [vmem:[%s2 + $0x1c0] sm:$0xff]
  %v993 = vld [vmem:[%s2 + $0x1c8] sm:$0xff]
  %v994 = vld [vmem:[%s2 + $0x1d0] sm:$0xff]
  %v995 = vld [vmem:[%s2 + $0x1d8] sm:$0xff]
  %v996 = vld [vmem:[%s2 + $0x1e0] sm:$0xff]
  %v997 = vld [vmem:[%s2 + $0x1e8] sm:$0xff]
  %v998 = vld [vmem:[%s2 + $0x1f0] sm:$0xff]
  %v999 = vld [vmem:[%s2 + $0x1f8] sm:$0xff]
  %1000 = vmatprep.subr.mxu0 %v967
  %1001 = vmatpush1.msra.mxu0 %v966
  %1002 = vmatprep.subr.mxu0 %v965
  %1003 = vmatpush1.msra.mxu0 %v964
  %1004 = vmatprep.subr.mxu0 %v963
  %1005 = vmatpush1.msra.mxu0 %v962
  %1006 = vmatprep.subr.mxu0 %v961
  %1007 = vmatpush1.msra.mxu0 %v960
  %1008 = vmatprep.subr.mxu0 %v959
  %1009 = vmatpush1.msra.mxu0 %v958
  %1010 = vmatprep.subr.mxu0 %v957
  %1011 = vmatpush1.msra.mxu0 %v956
  %1012 = vmatprep.subr.mxu0 %v955
  %1013 = vmatpush1.msra.mxu0 %v954
  %1014 = vmatprep.subr.mxu0 %v953
  %1015 = vmatpush1.msra.mxu0 %v952
  %1016 = vmatprep.subr.mxu0 %v951
  %1017 = vmatpush1.msra.mxu0 %v950
  %1018 = vmatprep.subr.mxu0 %v949
  %1019 = vmatpush1.msra.mxu0 %v948
  %1020 = vmatprep.subr.mxu0 %v947
  %1021 = vmatpush1.msra.mxu0 %v946
  %1022 = vmatprep.subr.mxu0 %v945
  %1023 = vmatpush1.msra.mxu0 %v944
  %1024 = vmatprep.subr.mxu0 %v943
  %1025 = vmatpush1.msra.mxu0 %v942
  %1026 = vmatprep.subr.mxu0 %v941
  %1027 = vmatpush1.msra.mxu0 %v940
  %1028 = vmatprep.subr.mxu0 %v939
  %1029 = vmatpush1.msra.mxu0 %v938
  %1030 = vmatprep.subr.mxu0 %v937
  %1031 = vmatpush1.msra.mxu0 %v936
  %1032 = vmatprep.subr.mxu0 %v999
  %1033 = vmatpush2.msra.mxu0 %v998
  %1034 = vmatprep.subr.mxu0 %v997
  %1035 = vmatpush2.msra.mxu0 %v996
  %1036 = vmatprep.subr.mxu0 %v995
  %1037 = vmatpush2.msra.mxu0 %v994
  %1038 = vmatprep.subr.mxu0 %v993
  %1039 = vmatpush2.msra.mxu0 %v992
  %1040 = vmatprep.subr.mxu0 %v991
  %1041 = vmatpush2.msra.mxu0 %v990
  %1042 = vmatprep.subr.mxu0 %v989
  %1043 = vmatpush2.msra.mxu0 %v988
  %1044 = vmatprep.subr.mxu0 %v987
  %1045 = vmatpush2.msra.mxu0 %v986
  %1046 = vmatprep.subr.mxu0 %v985
  %1047 = vmatpush2.msra.mxu0 %v984
  %1048 = vmatprep.subr.mxu0 %v983
  %1049 = vmatpush2.msra.mxu0 %v982
  %1050 = vmatprep.subr.mxu0 %v981
  %1051 = vmatpush2.msra.mxu0 %v980
  %1052 = vmatprep.subr.mxu0 %v979
  %1053 = vmatpush2.msra.mxu0 %v978
  %1054 = vmatprep.subr.mxu0 %v977
  %1055 = vmatpush2.msra.mxu0 %v976
  %1056 = vmatprep.subr.mxu0 %v975
  %1057 = vmatpush2.msra.mxu0 %v974
  %1058 = vmatprep.subr.mxu0 %v973
  %1059 = vmatpush2.msra.mxu0 %v972
  %1060 = vmatprep.subr.mxu0 %v971
  %1061 = vmatpush2.msra.mxu0 %v970
  %1062 = vmatprep.subr.mxu0 %v969
  %1063 = vmatpush2.msra.mxu0 %v968
  %1064 = vmatprep.mubr.f32.mxu0 %v905
  %1065 = vmatmul.mubr.f32.gmra.mxu0 %v904
  %v1066 = vpop.f32.mrf.mxu0
  %v1067 = vadd.f32 0.0, %v1066
  %v1068 = vpop.f32.mrf.mxu0
  %v1069 = vadd.f32 0.0, %v1068
  %1070 = vmatprep.mubr.f32.mxu0 %v907
  %1071 = vmatmul.mubr.f32.gmra.mxu0 %v906
  %v1072 = vpop.f32.mrf.mxu0
  %v1073 = vadd.f32 0.0, %v1072
  %v1074 = vpop.f32.mrf.mxu0
  %v1075 = vadd.f32 0.0, %v1074
  %1076 = vmatprep.mubr.f32.mxu0 %v909
  %1077 = vmatmul.mubr.f32.gmra.mxu0 %v908
  %v1078 = vpop.f32.mrf.mxu0
  %v1079 = vadd.f32 0.0, %v1078
  %v1080 = vpop.f32.mrf.mxu0
  %v1081 = vadd.f32 0.0, %v1080
  %1082 = vmatprep.mubr.f32.mxu0 %v911
  %1083 = vmatmul.mubr.f32.gmra.mxu0 %v910
  %v1084 = vpop.f32.mrf.mxu0
  %v1085 = vadd.f32 0.0, %v1084
  %v1086 = vpop.f32.mrf.mxu0
  %v1087 = vadd.f32 0.0, %v1086
  %1088 = vmatprep.mubr.f32.mxu0 %v913
  %1089 = vmatmul.mubr.f32.gmra.mxu0 %v912
  %v1090 = vpop.f32.mrf.mxu0
  %v1091 = vadd.f32 0.0, %v1090
  %v1092 = vpop.f32.mrf.mxu0
  %v1093 = vadd.f32 0.0, %v1092
  %1094 = vmatprep.mubr.f32.mxu0 %v915
  %1095 = vmatmul.mubr.f32.gmra.mxu0 %v914
  %v1096 = vpop.f32.mrf.mxu0
  %v1097 = vadd.f32 0.0, %v1096
  %v1098 = vpop.f32.mrf.mxu0
  %v1099 = vadd.f32 0.0, %v1098
  %1100 = vmatprep.mubr.f32.mxu0 %v917
  %1101 = vmatmul.mubr.f32.gmra.mxu0 %v916
  %v1102 = vpop.f32.mrf.mxu0
  %v1103 = vadd.f32 0.0, %v1102
  %v1104 = vpop.f32.mrf.mxu0
  %v1105 = vadd.f32 0.0, %v1104
  %1106 = vmatprep.mubr.f32.mxu0 %v919
  %1107 = vmatmul.mubr.f32.gmra.mxu0 %v918
  %v1108 = vpop.f32.mrf.mxu0
  %v1109 = vadd.f32 0.0, %v1108
  %v1110 = vpop.f32.mrf.mxu0
  %v1111 = vadd.f32 0.0, %v1110
  %1112 = vmatprep.mubr.f32.mxu0 %v921
  %1113 = vmatmul.mubr.f32.gmra.mxu0 %v920
  %v1114 = vpop.f32.mrf.mxu0
  %v1115 = vadd.f32 0.0, %v1114
  %v1116 = vpop.f32.mrf.mxu0
  %v1117 = vadd.f32 0.0, %v1116
  %1118 = vmatprep.mubr.f32.mxu0 %v923
  %1119 = vmatmul.mubr.f32.gmra.mxu0 %v922
  %v1120 = vpop.f32.mrf.mxu0
  %v1121 = vadd.f32 0.0, %v1120
  %v1122 = vpop.f32.mrf.mxu0
  %v1123 = vadd.f32 0.0, %v1122
  %1124 = vmatprep.mubr.f32.mxu0 %v925
  %1125 = vmatmul.mubr.f32.gmra.mxu0 %v924
  %v1126 = vpop.f32.mrf.mxu0
  %v1127 = vadd.f32 0.0, %v1126
  %v1128 = vpop.f32.mrf.mxu0
  %v1129 = vadd.f32 0.0, %v1128
  %1130 = vmatprep.mubr.f32.mxu0 %v927
  %1131 = vmatmul.mubr.f32.gmra.mxu0 %v926
  %v1132 = vpop.f32.mrf.mxu0
  %v1133 = vadd.f32 0.0, %v1132
  %v1134 = vpop.f32.mrf.mxu0
  %v1135 = vadd.f32 0.0, %v1134
  %1136 = vmatprep.mubr.f32.mxu0 %v929
  %1137 = vmatmul.mubr.f32.gmra.mxu0 %v928
  %v1138 = vpop.f32.mrf.mxu0
  %v1139 = vadd.f32 0.0, %v1138
  %v1140 = vpop.f32.mrf.mxu0
  %v1141 = vadd.f32 0.0, %v1140
  %1142 = vmatprep.mubr.f32.mxu0 %v931
  %1143 = vmatmul.mubr.f32.gmra.mxu0 %v930
  %v1144 = vpop.f32.mrf.mxu0
  %v1145 = vadd.f32 0.0, %v1144
  %v1146 = vpop.f32.mrf.mxu0
  %v1147 = vadd.f32 0.0, %v1146
  %1148 = vmatprep.mubr.f32.mxu0 %v933
  %1149 = vmatmul.mubr.f32.gmra.mxu0 %v932
  %v1150 = vpop.f32.mrf.mxu0
  %v1151 = vadd.f32 0.0, %v1150
  %v1152 = vpop.f32.mrf.mxu0
  %v1153 = vadd.f32 0.0, %v1152
  %1154 = vmatprep.mubr.f32.mxu0 %v935
  %1155 = vmatmul.mubr.f32.gmra.mxu0 %v934
  %v1156 = vpop.f32.mrf.mxu0
  %v1157 = vadd.f32 0.0, %v1156
  %v1158 = vpop.f32.mrf.mxu0
  %v1159 = vadd.f32 0.0, %v1158
  %1160 = vdwg.mxu0
  %v1161 = vld [vmem:[%s3] sm:$0x3]
  %v1163 = vlaneseq
  %v1164 = vshrl.u32 %v1163, 7
  %v1165 = vsub.s32 0, %v1164
  %v1166 = vrot.slane %v1161, %v1165
  %v1167 = vlaneseq
  %v1168 = vshrl.u32 %v1167, 7
  %v1169 = vsub.s32 1, %v1168
  %v1170 = vrot.slane %v1161, %v1169
  %v1173 = vmul.f32 %v1067, %v1166
  %v1174 = vmul.f32 %v1069, %v1170
  %v1175 = vmul.f32 %v1073, %v1166
  %v1176 = vmul.f32 %v1075, %v1170
  %v1177 = vmul.f32 %v1079, %v1166
  %v1178 = vmul.f32 %v1081, %v1170
  %v1179 = vmul.f32 %v1085, %v1166
  %v1180 = vmul.f32 %v1087, %v1170
  %v1181 = vmul.f32 %v1091, %v1166
  %v1182 = vmul.f32 %v1093, %v1170
  %v1183 = vmul.f32 %v1097, %v1166
  %v1184 = vmul.f32 %v1099, %v1170
  %v1185 = vmul.f32 %v1103, %v1166
  %v1186 = vmul.f32 %v1105, %v1170
  %v1187 = vmul.f32 %v1109, %v1166
  %v1188 = vmul.f32 %v1111, %v1170
  %v1189 = vmul.f32 %v1115, %v1166
  %v1190 = vmul.f32 %v1117, %v1170
  %v1191 = vmul.f32 %v1121, %v1166
  %v1192 = vmul.f32 %v1123, %v1170
  %v1193 = vmul.f32 %v1127, %v1166
  %v1194 = vmul.f32 %v1129, %v1170
  %v1195 = vmul.f32 %v1133, %v1166
  %v1196 = vmul.f32 %v1135, %v1170
  %v1197 = vmul.f32 %v1139, %v1166
  %v1198 = vmul.f32 %v1141, %v1170
  %v1199 = vmul.f32 %v1145, %v1166
  %v1200 = vmul.f32 %v1147, %v1170
  %v1201 = vmul.f32 %v1151, %v1166
  %v1202 = vmul.f32 %v1153, %v1170
  %v1203 = vmul.f32 %v1157, %v1166
  %v1204 = vmul.f32 %v1159, %v1170
  %v1205 = vld [vmem:[%s4] sm:$0x3]
  %v1207 = vlaneseq
  %v1208 = vshrl.u32 %v1207, 7
  %v1209 = vsub.s32 0, %v1208
  %v1210 = vrot.slane %v1205, %v1209
  %v1211 = vlaneseq
  %v1212 = vshrl.u32 %v1211, 7
  %v1213 = vsub.s32 1, %v1212
  %v1214 = vrot.slane %v1205, %v1213
  %v1217 = vadd.f32 %v1173, %v1210
  %v1218 = vadd.f32 %v1174, %v1214
  %v1219 = vadd.f32 %v1175, %v1210
  %v1220 = vadd.f32 %v1176, %v1214
  %v1221 = vadd.f32 %v1177, %v1210
  %v1222 = vadd.f32 %v1178, %v1214
  %v1223 = vadd.f32 %v1179, %v1210
  %v1224 = vadd.f32 %v1180, %v1214
  %v1225 = vadd.f32 %v1181, %v1210
  %v1226 = vadd.f32 %v1182, %v1214
  %v1227 = vadd.f32 %v1183, %v1210
  %v1228 = vadd.f32 %v1184, %v1214
  %v1229 = vadd.f32 %v1185, %v1210
  %v1230 = vadd.f32 %v1186, %v1214
  %v1231 = vadd.f32 %v1187, %v1210
  %v1232 = vadd.f32 %v1188, %v1214
  %v1233 = vadd.f32 %v1189, %v1210
  %v1234 = vadd.f32 %v1190, %v1214
  %v1235 = vadd.f32 %v1191, %v1210
  %v1236 = vadd.f32 %v1192, %v1214
  %v1237 = vadd.f32 %v1193, %v1210
  %v1238 = vadd.f32 %v1194, %v1214
  %v1239 = vadd.f32 %v1195, %v1210
  %v1240 = vadd.f32 %v1196, %v1214
  %v1241 = vadd.f32 %v1197, %v1210
  %v1242 = vadd.f32 %v1198, %v1214
  %v1243 = vadd.f32 %v1199, %v1210
  %v1244 = vadd.f32 %v1200, %v1214
  %v1245 = vadd.f32 %v1201, %v1210
  %v1246 = vadd.f32 %v1202, %v1214
  %v1247 = vadd.f32 %v1203, %v1210
  %v1248 = vadd.f32 %v1204, %v1214
  %v1249 = vmax.f32 %v1217, 0.0
  %v1250 = vmax.f32 %v1218, 0.0
  %v1251 = vmax.f32 %v1219, 0.0
  %v1252 = vmax.f32 %v1220, 0.0
  %v1253 = vmax.f32 %v1221, 0.0
  %v1254 = vmax.f32 %v1222, 0.0
  %v1255 = vmax.f32 %v1223, 0.0
  %v1256 = vmax.f32 %v1224, 0.0
  %v1257 = vmax.f32 %v1225, 0.0
  %v1258 = vmax.f32 %v1226, 0.0
  %v1259 = vmax.f32 %v1227, 0.0
  %v1260 = vmax.f32 %v1228, 0.0
  %v1261 = vmax.f32 %v1229, 0.0
  %v1262 = vmax.f32 %v1230, 0.0
  %v1263 = vmax.f32 %v1231, 0.0
  %v1264 = vmax.f32 %v1232, 0.0
  %v1265 = vmax.f32 %v1233, 0.0
  %v1266 = vmax.f32 %v1234, 0.0
  %v1267 = vmax.f32 %v1235, 0.0
  %v1268 = vmax.f32 %v1236, 0.0
  %v1269 = vmax.f32 %v1237, 0.0
  %v1270 = vmax.f32 %v1238, 0.0
  %v1271 = vmax.f32 %v1239, 0.0
  %v1272 = vmax.f32 %v1240, 0.0
  %v1273 = vmax.f32 %v1241, 0.0
  %v1274 = vmax.f32 %v1242, 0.0
  %v1275 = vmax.f32 %v1243, 0.0
  %v1276 = vmax.f32 %v1244, 0.0
  %v1277 = vmax.f32 %v1245, 0.0
  %v1278 = vmax.f32 %v1246, 0.0
  %v1279 = vmax.f32 %v1247, 0.0
  %v1280 = vmax.f32 %v1248, 0.0
  %1281 = vst [vmem:[%s5] sm:$0xff] %v1249
  %1282 = vst [vmem:[%s5 + $0x8] sm:$0xff] %v1250
  %1283 = vst [vmem:[%s5 + $0x10] sm:$0xff] %v1251
  %1284 = vst [vmem:[%s5 + $0x18] sm:$0xff] %v1252
  %1285 = vst [vmem:[%s5 + $0x20] sm:$0xff] %v1253
  %1286 = vst [vmem:[%s5 + $0x28] sm:$0xff] %v1254
  %1287 = vst [vmem:[%s5 + $0x30] sm:$0xff] %v1255
  %1288 = vst [vmem:[%s5 + $0x38] sm:$0xff] %v1256
  %1289 = vst [vmem:[%s5 + $0x40] sm:$0xff] %v1257
  %1290 = vst [vmem:[%s5 + $0x48] sm:$0xff] %v1258
  %1291 = vst [vmem:[%s5 + $0x50] sm:$0xff] %v1259
  %1292 = vst [vmem:[%s5 + $0x58] sm:$0xff] %v1260
  %1293 = vst [vmem:[%s5 + $0x60] sm:$0xff] %v1261
  %1294 = vst [vmem:[%s5 + $0x68] sm:$0xff] %v1262
  %1295 = vst [vmem:[%s5 + $0x70] sm:$0xff] %v1263
  %1296 = vst [vmem:[%s5 + $0x78] sm:$0xff] %v1264
  %1297 = vst [vmem:[%s5 + $0x80] sm:$0xff] %v1265
  %1298 = vst [vmem:[%s5 + $0x88] sm:$0xff] %v1266
  %1299 = vst [vmem:[%s5 + $0x90] sm:$0xff] %v1267
  %1300 = vst [vmem:[%s5 + $0x98] sm:$0xff] %v1268
  %1301 = vst [vmem:[%s5 + $0xa0] sm:$0xff] %v1269
  %1302 = vst [vmem:[%s5 + $0xa8] sm:$0xff] %v1270
  %1303 = vst [vmem:[%s5 + $0xb0] sm:$0xff] %v1271
  %1304 = vst [vmem:[%s5 + $0xb8] sm:$0xff] %v1272
  %1305 = vst [vmem:[%s5 + $0xc0] sm:$0xff] %v1273
  %1306 = vst [vmem:[%s5 + $0xc8] sm:$0xff] %v1274
  %1307 = vst [vmem:[%s5 + $0xd0] sm:$0xff] %v1275
  %1308 = vst [vmem:[%s5 + $0xd8] sm:$0xff] %v1276
  %1309 = vst [vmem:[%s5 + $0xe0] sm:$0xff] %v1277
  %1310 = vst [vmem:[%s5 + $0xe8] sm:$0xff] %v1278
  %1311 = vst [vmem:[%s5 + $0xf0] sm:$0xff] %v1279
  %1312 = vst [vmem:[%s5 + $0xf8] sm:$0xff] %v1280
  // Predicated region
  $region22: #{closed_call.19} parent=0 // pred_check
    _
  $region23: #{closed_call.19} parent=0 // pred_check_branch
    %1314 = sbr.rel (0) target = $region25
  $region24: #{closed_call.19} parent=0 // pred_region
    _
  $region25: #{closed_call.19} parent=0 // pred_fallthru
    _
  // Predicated region
  $region26: #{closed_call.19} parent=0 // pred_check
    _
  $region27: #{closed_call.19} parent=0 // pred_check_branch
    %1316 = sbr.rel (0) target = $region29
  $region28: #{closed_call.19} parent=0 // pred_region
    _
  $region29: #{closed_call.19} parent=0 // pred_fallthru
    _

// kernel: chessnet_forward.12
$region0: #{chessnet_forward.12}
  #allocation0 [shape = 'u32[]', space=smem, size = 0x4, offset = 0x4, fixed_abs, tag = 'smem constant byte address 0x4 - core index']
  #allocation1 [shape = 'u32[144,128]{1,0:T(1,128)}', space=vmem, size = 0x12000, scoped, tag = 'internal scratch']
  %s0 = inlined_call_operand.vmem [shape: f32[2,64], index: 0, kind: input, shape index: {}]
  %s1 = inlined_call_operand.vmem [shape: f32[64,64], index: 1, kind: input, shape index: {}]
  %s2 = inlined_call_operand.vmem [shape: f32[1,64], index: 2, kind: input, shape index: {}]
  %s3 = inlined_call_operand.vmem [shape: f32[1,64], index: 3, kind: input, shape index: {}]
  %s4 = inlined_call_operand.vmem [shape: f32[2,64], index: 4, kind: output, shape index: {}]
  %s5 = sld [smem:[#allocation0]]
  $region26: #{chessnet_forward.12} parent=0
    _
  %s7 = ssub.s32 1, %s5
  %s8 = scalar_select 0, %s7, %s5
  // Predicated region
  $region2: #{chessnet_forward.12} parent=0 // pred_check
    _
  $region3: #{chessnet_forward.12} parent=0 // pred_check_branch
    %10 = sbr.rel (0) target = $region5
  $region4: #{chessnet_forward.12} parent=0 // pred_region
    _
  $region5: #{chessnet_forward.12} parent=0 // pred_fallthru
    _
  // Predicated region
  $region6: #{chessnet_forward.12} parent=0 // pred_check
    _
  $region7: #{chessnet_forward.12} parent=0 // pred_check_branch
    %12 = sbr.rel (0) target = $region9
  $region8: #{chessnet_forward.12} parent=0 // pred_region
    _
  $region9: #{chessnet_forward.12} parent=0 // pred_fallthru
    _
  // Predicated region
  $region10: #{chessnet_forward.12} parent=0 // pred_check
    _
  $region11: #{chessnet_forward.12} parent=0 // pred_check_branch
    %14 = sbr.rel (0) target = $region13
  $region12: #{chessnet_forward.12} parent=0 // pred_region
    _
  $region13: #{chessnet_forward.12} parent=0 // pred_fallthru
    _
  // Predicated region
  $region14: #{chessnet_forward.12} parent=0 // pred_check
    _
  $region15: #{chessnet_forward.12} parent=0 // pred_check_branch
    %16 = sbr.rel (0) target = $region17
  $region16: #{chessnet_forward.12} parent=0 // pred_region
    _
  $region17: #{chessnet_forward.12} parent=0 // pred_fallthru
    _
  %v17 = vld [vmem:[%s0] sm:$0x3]
  %v18 = vld [vmem:[%s1] sm:$0xff]
  %v19 = vld [vmem:[%s1 + $0x8] sm:$0xff]
  %v20 = vld [vmem:[%s1 + $0x10] sm:$0xff]
  %v21 = vld [vmem:[%s1 + $0x18] sm:$0xff]
  %v22 = vld [vmem:[%s1 + $0x20] sm:$0xff]
  %v23 = vld [vmem:[%s1 + $0x28] sm:$0xff]
  %v24 = vld [vmem:[%s1 + $0x30] sm:$0xff]
  %v25 = vld [vmem:[%s1 + $0x38] sm:$0xff]
  %vm26 = vcmask 523264
  %v28 = vsel %vm26, %v17, 0
  %30 = vmatprep.subr.mxu0 0.0
  %31 = vmatpush1.msra.mxu0 0.0
  %32 = vmatprep.subr.mxu0 0.0
  %33 = vmatpush1.msra.mxu0 0.0
  %34 = vmatprep.subr.mxu0 0.0
  %35 = vmatpush1.msra.mxu0 0.0
  %36 = vmatprep.subr.mxu0 0.0
  %37 = vmatpush1.msra.mxu0 0.0
  %38 = vmatprep.subr.mxu0 0.0
  %39 = vmatpush1.msra.mxu0 0.0
  %40 = vmatprep.subr.mxu0 0.0
  %41 = vmatpush1.msra.mxu0 0.0
  %42 = vmatprep.subr.mxu0 0.0
  %43 = vmatpush1.msra.mxu0 0.0
  %44 = vmatprep.subr.mxu0 0.0
  %45 = vmatpush1.msra.mxu0 0.0
  %46 = vmatprep.subr.mxu0 0.0
  %47 = vmatpush1.msra.mxu0 %v25
  %48 = vmatprep.subr.mxu0 0.0
  %49 = vmatpush1.msra.mxu0 %v24
  %50 = vmatprep.subr.mxu0 0.0
  %51 = vmatpush1.msra.mxu0 %v23
  %52 = vmatprep.subr.mxu0 0.0
  %53 = vmatpush1.msra.mxu0 %v22
  %54 = vmatprep.subr.mxu0 0.0
  %55 = vmatpush1.msra.mxu0 %v21
  %56 = vmatprep.subr.mxu0 0.0
  %57 = vmatpush1.msra.mxu0 %v20
  %58 = vmatprep.subr.mxu0 0.0
  %59 = vmatpush1.msra.mxu0 %v19
  %60 = vmatprep.subr.mxu0 0.0
  %61 = vmatpush1.msra.mxu0 %v18
  %62 = vmatprep.subr.mxu0 0.0
  %63 = vmatpush2.msra.mxu0 0.0
  %64 = vmatprep.subr.mxu0 0.0
  %65 = vmatpush2.msra.mxu0 0.0
  %66 = vmatprep.subr.mxu0 0.0
  %67 = vmatpush2.msra.mxu0 0.0
  %68 = vmatprep.subr.mxu0 0.0
  %69 = vmatpush2.msra.mxu0 0.0
  %70 = vmatprep.subr.mxu0 0.0
  %71 = vmatpush2.msra.mxu0 0.0
  %72 = vmatprep.subr.mxu0 0.0
  %73 = vmatpush2.msra.mxu0 0.0
  %74 = vmatprep.subr.mxu0 0.0
  %75 = vmatpush2.msra.mxu0 0.0
  %76 = vmatprep.subr.mxu0 0.0
  %77 = vmatpush2.msra.mxu0 0.0
  %78 = vmatprep.subr.mxu0 0.0
  %79 = vmatpush2.msra.mxu0 0.0
  %80 = vmatprep.subr.mxu0 0.0
  %81 = vmatpush2.msra.mxu0 0.0
  %82 = vmatprep.subr.mxu0 0.0
  %83 = vmatpush2.msra.mxu0 0.0
  %84 = vmatprep.subr.mxu0 0.0
  %85 = vmatpush2.msra.mxu0 0.0
  %86 = vmatprep.subr.mxu0 0.0
  %87 = vmatpush2.msra.mxu0 0.0
  %88 = vmatprep.subr.mxu0 0.0
  %89 = vmatpush2.msra.mxu0 0.0
  %90 = vmatprep.subr.mxu0 0.0
  %91 = vmatpush2.msra.mxu0 0.0
  %92 = vmatprep.subr.mxu0 0.0
  %93 = vmatpush2.msra.mxu0 0.0
  %94 = vmatprep.mubr.f32.mxu0 0.0
  %95 = vmatmul.mubr.f32.gmra.mxu0 %v28
  %v96 = vpop.f32.mrf.mxu0
  %v97 = vadd.f32 0.0, %v96
  %v98 = vpop.f32.mrf.mxu0
  %99 = vdwg.mxu0
  %v100 = vld [vmem:[%s2] sm:$0x1]
  %v102 = vlaneseq
  %v103 = vshrl.u32 %v102, 7
  %v104 = vsub.s32 0, %v103
  %v105 = vrot.slane %v100, %v104
  %v107 = vmul.f32 %v97, %v105
  %v108 = vld [vmem:[%s3] sm:$0x1]
  %v110 = vlaneseq
  %v111 = vshrl.u32 %v110, 7
  %v112 = vsub.s32 0, %v111
  %v113 = vrot.slane %v108, %v112
  %v115 = vadd.f32 %v107, %v113
  %v116 = vmax.f32 %v115, 0.0
  %vm117 = vcmask 517120
  %118 = vst.msk [vmem:[%s4] sm:$0x3] %vm117, %v116
  // Predicated region
  $region18: #{chessnet_forward.12} parent=0 // pred_check
    _
  $region19: #{chessnet_forward.12} parent=0 // pred_check_branch
    %120 = sbr.rel (0) target = $region21
  $region20: #{chessnet_forward.12} parent=0 // pred_region
    _
  $region21: #{chessnet_forward.12} parent=0 // pred_fallthru
    _
  // Predicated region
  $region22: #{chessnet_forward.12} parent=0 // pred_check
    _
  $region23: #{chessnet_forward.12} parent=0 // pred_check_branch
    %122 = sbr.rel (0) target = $region25
  $region24: #{chessnet_forward.12} parent=0 // pred_region
    _
  $region25: #{chessnet_forward.12} parent=0 // pred_fallthru
    _

// kernel: chessnet_forward.13
$region0: #{chessnet_forward.13}
  #allocation0 [shape = 'u32[]', space=smem, size = 0x4, offset = 0x4, fixed_abs, tag = 'smem constant byte address 0x4 - core index']
  #allocation1 [shape = 'u32[144,128]{1,0:T(1,128)}', space=vmem, size = 0x12000, scoped, tag = 'internal scratch']
  #allocation2 [shape = 'f32[1,1]{1,0:T(1,128)S(1)}', space=vmem, size = 0x200, scoped, tag = 'scoped memory for chessnet_forward.13']
  #allocation3 [shape = 'f32[1,1]{1,0:T(1,128)S(1)}', space=vmem, size = 0x200, scoped, tag = 'scoped memory for chessnet_forward.13']
  %s0 = inlined_call_operand.vmem [shape: f32[2,64], index: 0, kind: input, shape index: {}]
  %s1 = inlined_call_operand.vmem [shape: f32[64,1], index: 1, kind: input, shape index: {}]
  %s2 = inlined_call_operand.<no memory space> [shape: f32[1,1], index: 2, kind: input, shape index: {}]
  %s3 = inlined_call_operand.<no memory space> [shape: f32[1,1], index: 3, kind: input, shape index: {}]
  %s4 = inlined_call_operand.vmem [shape: f32[2,1], index: 4, kind: output, shape index: {}]
  %s5 = sld [smem:[#allocation0]]
  $region26: #{chessnet_forward.13} parent=0
    _
  %s7 = ssub.s32 1, %s5
  %s8 = scalar_select 0, %s7, %s5
  %v9 = vstv %s2
  %10 = vst [vmem:[#allocation2] sm:$0x1] %v9
  %v11 = vstv %s3
  %12 = vst [vmem:[#allocation3] sm:$0x1] %v11
  // Predicated region
  $region2: #{chessnet_forward.13} parent=0 // pred_check
    _
  $region3: #{chessnet_forward.13} parent=0 // pred_check_branch
    %14 = sbr.rel (0) target = $region5
  $region4: #{chessnet_forward.13} parent=0 // pred_region
    _
  $region5: #{chessnet_forward.13} parent=0 // pred_fallthru
    _
  // Predicated region
  $region6: #{chessnet_forward.13} parent=0 // pred_check
    _
  $region7: #{chessnet_forward.13} parent=0 // pred_check_branch
    %16 = sbr.rel (0) target = $region9
  $region8: #{chessnet_forward.13} parent=0 // pred_region
    _
  $region9: #{chessnet_forward.13} parent=0 // pred_fallthru
    _
  // Predicated region
  $region10: #{chessnet_forward.13} parent=0 // pred_check
    _
  $region11: #{chessnet_forward.13} parent=0 // pred_check_branch
    %18 = sbr.rel (0) target = $region13
  $region12: #{chessnet_forward.13} parent=0 // pred_region
    _
  $region13: #{chessnet_forward.13} parent=0 // pred_fallthru
    _
  // Predicated region
  $region14: #{chessnet_forward.13} parent=0 // pred_check
    _
  $region15: #{chessnet_forward.13} parent=0 // pred_check_branch
    %20 = sbr.rel (0) target = $region17
  $region16: #{chessnet_forward.13} parent=0 // pred_region
    _
  $region17: #{chessnet_forward.13} parent=0 // pred_fallthru
    _
  %v21 = vld [vmem:[%s0] sm:$0x3]
  %v22 = vld [vmem:[%s1] sm:$0xff]
  %v23 = vld [vmem:[%s1 + $0x8] sm:$0xff]
  %v24 = vld [vmem:[%s1 + $0x10] sm:$0xff]
  %v25 = vld [vmem:[%s1 + $0x18] sm:$0xff]
  %v26 = vld [vmem:[%s1 + $0x20] sm:$0xff]
  %v27 = vld [vmem:[%s1 + $0x28] sm:$0xff]
  %v28 = vld [vmem:[%s1 + $0x30] sm:$0xff]
  %v29 = vld [vmem:[%s1 + $0x38] sm:$0xff]
  %vm30 = vcmask 523264
  %v32 = vsel %vm30, %v21, 0
  %34 = vmatprep.subr.mxu0 0.0
  %35 = vmatpush1.msra.mxu0 0.0
  %36 = vmatprep.subr.mxu0 0.0
  %37 = vmatpush1.msra.mxu0 0.0
  %38 = vmatprep.subr.mxu0 0.0
  %39 = vmatpush1.msra.mxu0 0.0
  %40 = vmatprep.subr.mxu0 0.0
  %41 = vmatpush1.msra.mxu0 0.0
  %42 = vmatprep.subr.mxu0 0.0
  %43 = vmatpush1.msra.mxu0 0.0
  %44 = vmatprep.subr.mxu0 0.0
  %45 = vmatpush1.msra.mxu0 0.0
  %46 = vmatprep.subr.mxu0 0.0
  %47 = vmatpush1.msra.mxu0 0.0
  %48 = vmatprep.subr.mxu0 0.0
  %49 = vmatpush1.msra.mxu0 0.0
  %50 = vmatprep.subr.mxu0 0.0
  %51 = vmatpush1.msra.mxu0 %v29
  %52 = vmatprep.subr.mxu0 0.0
  %53 = vmatpush1.msra.mxu0 %v28
  %54 = vmatprep.subr.mxu0 0.0
  %55 = vmatpush1.msra.mxu0 %v27
  %56 = vmatprep.subr.mxu0 0.0
  %57 = vmatpush1.msra.mxu0 %v26
  %58 = vmatprep.subr.mxu0 0.0
  %59 = vmatpush1.msra.mxu0 %v25
  %60 = vmatprep.subr.mxu0 0.0
  %61 = vmatpush1.msra.mxu0 %v24
  %62 = vmatprep.subr.mxu0 0.0
  %63 = vmatpush1.msra.mxu0 %v23
  %64 = vmatprep.subr.mxu0 0.0
  %65 = vmatpush1.msra.mxu0 %v22
  %66 = vmatprep.subr.mxu0 0.0
  %67 = vmatpush2.msra.mxu0 0.0
  %68 = vmatprep.subr.mxu0 0.0
  %69 = vmatpush2.msra.mxu0 0.0
  %70 = vmatprep.subr.mxu0 0.0
  %71 = vmatpush2.msra.mxu0 0.0
  %72 = vmatprep.subr.mxu0 0.0
  %73 = vmatpush2.msra.mxu0 0.0
  %74 = vmatprep.subr.mxu0 0.0
  %75 = vmatpush2.msra.mxu0 0.0
  %76 = vmatprep.subr.mxu0 0.0
  %77 = vmatpush2.msra.mxu0 0.0
  %78 = vmatprep.subr.mxu0 0.0
  %79 = vmatpush2.msra.mxu0 0.0
  %80 = vmatprep.subr.mxu0 0.0
  %81 = vmatpush2.msra.mxu0 0.0
  %82 = vmatprep.subr.mxu0 0.0
  %83 = vmatpush2.msra.mxu0 0.0
  %84 = vmatprep.subr.mxu0 0.0
  %85 = vmatpush2.msra.mxu0 0.0
  %86 = vmatprep.subr.mxu0 0.0
  %87 = vmatpush2.msra.mxu0 0.0
  %88 = vmatprep.subr.mxu0 0.0
  %89 = vmatpush2.msra.mxu0 0.0
  %90 = vmatprep.subr.mxu0 0.0
  %91 = vmatpush2.msra.mxu0 0.0
  %92 = vmatprep.subr.mxu0 0.0
  %93 = vmatpush2.msra.mxu0 0.0
  %94 = vmatprep.subr.mxu0 0.0
  %95 = vmatpush2.msra.mxu0 0.0
  %96 = vmatprep.subr.mxu0 0.0
  %97 = vmatpush2.msra.mxu0 0.0
  %98 = vmatprep.mubr.f32.mxu0 0.0
  %99 = vmatmul.mubr.f32.gmra.mxu0 %v32
  %v100 = vpop.f32.mrf.mxu0
  %v101 = vadd.f32 0.0, %v100
  %v102 = vpop.f32.mrf.mxu0
  %103 = vdwg.mxu0
  %v104 = vld [vmem:[#allocation2] sm:$0x1]
  %v106 = vlaneseq
  %v107 = vshrl.u32 %v106, 7
  %v108 = vsub.s32 0, %v107
  %v109 = vrot.slane %v104, %v108
  %v111 = vmul.f32 %v101, %v109
  %v112 = vld [vmem:[#allocation3] sm:$0x1]
  %v114 = vlaneseq
  %v115 = vshrl.u32 %v114, 7
  %v116 = vsub.s32 0, %v115
  %v117 = vrot.slane %v112, %v116
  %v119 = vadd.f32 %v111, %v117
  %v120 = vtanh.pop %v119
  %vm121 = vcmask 1024
  %122 = vst.msk [vmem:[%s4] sm:$0x3] %vm121, %v120
  // Predicated region
  $region18: #{chessnet_forward.13} parent=0 // pred_check
    _
  $region19: #{chessnet_forward.13} parent=0 // pred_check_branch
    %124 = sbr.rel (0) target = $region21
  $region20: #{chessnet_forward.13} parent=0 // pred_region
    _
  $region21: #{chessnet_forward.13} parent=0 // pred_fallthru
    _
  // Predicated region
  $region22: #{chessnet_forward.13} parent=0 // pred_check
    _
  $region23: #{chessnet_forward.13} parent=0 // pred_check_branch
    %126 = sbr.rel (0) target = $region25
  $region24: #{chessnet_forward.13} parent=0 // pred_region
    _
  $region25: #{chessnet_forward.13} parent=0 // pred_fallthru
    _

// kernel: chessnet_forward.15
$region0: #{chessnet_forward.15}
  #allocation0 [shape = 'u32[]', space=smem, size = 0x4, offset = 0x4, fixed_abs, tag = 'smem constant byte address 0x4 - core index']
  #allocation1 [shape = 'u32[144,128]{1,0:T(1,128)}', space=vmem, size = 0x12000, scoped, tag = 'internal scratch']
  #allocation2 [shape = 'f32[2,4672]{1,0:T(2,128)}', space=vmem, size = 0x9400, scoped, tag = 'scratch operand']
  %s0 = inlined_call_operand.vmem [shape: f32[2,8192], index: 0, kind: input, shape index: {}]
  %s1 = inlined_call_operand.hbm [shape: f32[8192,4672], index: 1, kind: input, shape index: {}]
  %s2 = inlined_call_operand.vmem [shape: f32[1,4672], index: 2, kind: input, shape index: {}]
  %s3 = inlined_call_operand.hbm [shape: f32[2,4672], index: 3, kind: output, shape index: {}]
  %s4 = sld [smem:[#allocation0]]
  $region57: #{chessnet_forward.15} parent=0
    _
  %s6 = ssub.s32 1, %s4
  %s7 = scalar_select 0, %s6, %s4
  $region1: #{chessnet_forward.15} parent=0
    #allocation3 [shape = 'u8[9699328]{0}', space=vmem, size = 0x940000, scoped, tag = 'input window, operand 1']
    #allocation4 [shape = 's32[2]{0}', space=sflag, size = 0x8, scoped, tag = 'scoped memory for chessnet_forward.15']
    #allocation5 [shape = 's32[2]{0}', space=sflag, size = 0x8, scoped, tag = 'scoped memory for chessnet_forward.15']
    #allocation6 [shape = 'u8[37888]{0}', space=vmem, size = 0x9400, scoped, tag = 'output window, operand 0, single buffered']
    %8 = vsyncpa [#allocation4], 0
    %s9 = scalar_lea.sflag [#allocation4], 1
    %10 = vsyncpa %s9, 0
    %11 = vsyncpa [#allocation5], 0
    loop: start=0, step=1, limit=34
    $region2: #{chessnet_forward.15} parent=1 // loop_pre_header
      _
    $region3: #{chessnet_forward.15} parent=1 // loop_header
      %s13 = sphi 0, %s17
      %p14 = scmp.ge.s32.totalorder %s13, 34
      %s23 = sphi 0, %s25
      %s26 = sphi 0, %s23
      %s27 = sphi 0, %s26
      %s43 = sphi 0, %s27
      %s49 = sphi 0, %s51
      %s52 = sphi 0, %s49
      %s53 = sphi 0, %s52
      %s69 = sphi 0, %s53
      %s73 = sphi 0, %s73
      %s75 = sphi 0, %s73
      %s76 = sphi 0, %s75
      %s90 = sphi 0, %s76
      %s94 = sphi 0, %s94
      %s96 = sphi 0, %s94
      %s97 = sphi 0, %s96
      %s111 = sphi 0, %s97
    $region4: #{chessnet_forward.15} parent=1 // loop_header_branch
      %16 = sbr.rel (%p14) target = $region8
    $region5: #{chessnet_forward.15} parent=1 // loop_body
      %s18 = ssub.s32 %s13, 1
      %s19 = ssub.s32 %s13, 2
      %s20 = sadd.s32 %s13, 1
      %s21 = ssub.s32 %s13, %s20
      %p22 = scmp.eq.s32.totalorder %s21, 0
      %s24 = sadd.s32 %s23, 1
      %s25 = scalar_select %p22, %s23, %s24
      %p28 = pneg %p22
      %p29 = scmp.eq.s32.totalorder %s13, 31
      %p30 = por %p28, %p29
      %p31 = scmp.ne.s32.totalorder %s23, %s26
      %p32 = scmp.eq.s32.totalorder %s13, 0
      %p33 = por %p31, %p32
      %p34 = scmp.ne.s32.totalorder %s23, %s26
      %p35 = scmp.eq.s32.totalorder %s18, 31
      %p36 = por %p34, %p35
      %p37 = scmp.ne.s32.totalorder %s26, %s27
      %p38 = scmp.eq.s32.totalorder %s18, 0
      %p39 = por %p37, %p38
      %p40 = scmp.ne.s32.totalorder %s26, %s27
      %p41 = scmp.eq.s32.totalorder %s19, 31
      %p42 = por %p40, %p41
      %p44 = scmp.ne.s32.totalorder %s27, %s43
      %p45 = scmp.eq.s32.totalorder %s19, 0
      %p46 = por %p44, %p45
      %s47 = ssub.s32 %s13, %s20
      %p48 = scmp.eq.s32.totalorder %s47, 0
      %s50 = sadd.s32 %s49, 1
      %s51 = scalar_select %p48, %s49, %s50
      %p54 = pneg %p48
      %p55 = scmp.eq.s32.totalorder %s13, 31
      %p56 = por %p54, %p55
      %p57 = scmp.ne.s32.totalorder %s49, %s52
      %p58 = scmp.eq.s32.totalorder %s13, 0
      %p59 = por %p57, %p58
      %p60 = scmp.ne.s32.totalorder %s49, %s52
      %p61 = scmp.eq.s32.totalorder %s18, 31
      %p62 = por %p60, %p61
      %p63 = scmp.ne.s32.totalorder %s52, %s53
      %p64 = scmp.eq.s32.totalorder %s18, 0
      %p65 = por %p63, %p64
      %p66 = scmp.ne.s32.totalorder %s52, %s53
      %p67 = scmp.eq.s32.totalorder %s19, 31
      %p68 = por %p66, %p67
      %p70 = scmp.ne.s32.totalorder %s53, %s69
      %p71 = scmp.eq.s32.totalorder %s19, 0
      %p72 = por %p70, %p71
      %s74 = sadd.s32 %s73, 1
      %p77 = scmp.eq.s32.totalorder %s13, 31
      %p78 = scmp.ne.s32.totalorder %s73, %s75
      %p79 = scmp.eq.s32.totalorder %s13, 0
      %p80 = por %p78, %p79
      %p81 = scmp.ne.s32.totalorder %s73, %s75
      %p82 = scmp.eq.s32.totalorder %s18, 31
      %p83 = por %p81, %p82
      %p84 = scmp.ne.s32.totalorder %s75, %s76
      %p85 = scmp.eq.s32.totalorder %s18, 0
      %p86 = por %p84, %p85
      %p87 = scmp.ne.s32.totalorder %s75, %s76
      %p88 = scmp.eq.s32.totalorder %s19, 31
      %p89 = por %p87, %p88
      %p91 = scmp.ne.s32.totalorder %s76, %s90
      %p92 = scmp.eq.s32.totalorder %s19, 0
      %p93 = por %p91, %p92
      %s95 = sadd.s32 %s94, 1
      %p98 = scmp.eq.s32.totalorder %s13, 31
      %p99 = scmp.ne.s32.totalorder %s94, %s96
      %p100 = scmp.eq.s32.totalorder %s13, 0
      %p101 = por %p99, %p100
      %p102 = scmp.ne.s32.totalorder %s94, %s96
      %p103 = scmp.eq.s32.totalorder %s18, 31
      %p104 = por %p102, %p103
      %p105 = scmp.ne.s32.totalorder %s96, %s97
      %p106 = scmp.eq.s32.totalorder %s18, 0
      %p107 = por %p105, %p106
      %p108 = scmp.ne.s32.totalorder %s96, %s97
      %p109 = scmp.eq.s32.totalorder %s19, 31
      %p110 = por %p108, %p109
      %p112 = scmp.ne.s32.totalorder %s97, %s111
      %p113 = scmp.eq.s32.totalorder %s19, 0
      %p114 = por %p112, %p113
      %p115 = scmp.le.s32.totalorder 1, %s13
      %p116 = scmp.lt.s32.totalorder %s13, 33
      %p117 = pnand %p115, %p116
      %p118 = pneg %p117
      // Predicated region
      $region9: #{chessnet_forward.15} parent=5 // pred_check
        _
      $region10: #{chessnet_forward.15} parent=5 // pred_check_branch
        %120 = sbr.rel (%p117) target = $region12
      $region11: #{chessnet_forward.15} parent=5 // pred_region
        %s121 = ssub.s32 %s13, 1
        // Predicated region
        $region13: #{chessnet_forward.15} parent=11 // pred_check
          %p122 = pneg %p86
        $region14: #{chessnet_forward.15} parent=11 // pred_check_branch
          %124 = sbr.rel (%p122) target = $region16
        $region15: #{chessnet_forward.15} parent=11 // pred_region
          _
        $region16: #{chessnet_forward.15} parent=11 // pred_fallthru
          _
      $region12: #{chessnet_forward.15} parent=5 // pred_fallthru
        _
      %p125 = scmp.lt.s32.totalorder %s13, 32
      // Predicated region
      $region17: #{chessnet_forward.15} parent=5 // pred_check
        %p126 = pneg %p125
      $region18: #{chessnet_forward.15} parent=5 // pred_check_branch
        %128 = sbr.rel (%p126) target = $region20
      $region19: #{chessnet_forward.15} parent=5 // pred_region
        // Predicated region
        $region21: #{chessnet_forward.15} parent=19 // pred_check
          %p129 = pneg %p33
        $region22: #{chessnet_forward.15} parent=19 // pred_check_branch
          %131 = sbr.rel (%p129) target = $region24
        $region23: #{chessnet_forward.15} parent=19 // pred_region
          %s132 = smul.u32 2, %s13
          %p133 = scmp.lt.s32.totalorder %s132, 63
          %s134 = scalar_select %p133, %s132, 63
          %s135 = smul.addr %s134, 2
          %s136 = scalar_lea.vmem %s0, %s135
          %s137 = smul.u32 2, %s13
        $region24: #{chessnet_forward.15} parent=19 // pred_fallthru
          _
        // Predicated region
        $region25: #{chessnet_forward.15} parent=19 // pred_check
          %p138 = pneg %p59
        $region26: #{chessnet_forward.15} parent=19 // pred_check_branch
          %140 = sbr.rel (%p138) target = $region28
        $region27: #{chessnet_forward.15} parent=19 // pred_region
          %s141 = sand.u32 %s49, 1
          %s142 = scalar_lea.sflag [#allocation4], %s141
          %s143 = sand.u32 %s49, 1
          %s144 = smul.addr %s143, 9472
          %s145 = scalar_lea.vmem [#allocation3], %s144
          %s146 = smul.u32 32, %s13
          %s148 = ssub.s32 151552, 151552
          %149 = vsyncadd %s142, %s148
          %s150 = smul.addr %s146, 37
          %s151 = smul.addr %s150, 128
          %s152 = scalar_lea.hbm %s1, %s151
          %s153 = sshll.u32 %s145, 4
          %s154 = int_to_ptr.vmem [resolvable:$true] %s153
          %159 = dma.hbm_to_vmem [thread:$0]  %s152, 151552, %s154, %s142, 4736, 4736, 296
        $region28: #{chessnet_forward.15} parent=19 // pred_fallthru
          _
      $region20: #{chessnet_forward.15} parent=5 // pred_fallthru
        _
      %p160 = scmp.le.s32.totalorder 1, %s13
      %p161 = scmp.lt.s32.totalorder %s13, 33
      %p162 = pnand %p160, %p161
      %p163 = pneg %p162
      // Predicated region
      $region29: #{chessnet_forward.15} parent=5 // pred_check
        _
      $region30: #{chessnet_forward.15} parent=5 // pred_check_branch
        %165 = sbr.rel (%p162) target = $region32
      $region31: #{chessnet_forward.15} parent=5 // pred_region
        %s166 = ssub.s32 %s13, 1
        %s167 = sand.u32 %s52, 1
        %s168 = scalar_lea.sflag [#allocation4], %s167
        %s169 = sand.u32 %s52, 1
        %s170 = smul.addr %s169, 9472
        %s171 = scalar_lea.vmem [#allocation3], %s170
        // Predicated region
        $region33: #{chessnet_forward.15} parent=31 // pred_check
          %p172 = pneg %p65
        $region34: #{chessnet_forward.15} parent=31 // pred_check_branch
          %174 = sbr.rel (%p172) target = $region36
        $region35: #{chessnet_forward.15} parent=31 // pred_region
          %175 = dma.done %s168, 151552
        $region36: #{chessnet_forward.15} parent=31 // pred_fallthru
          _
        %s176 = smul.u32 2, %s18
        %p177 = scmp.lt.s32.totalorder %s176, 63
        %s178 = scalar_select %p177, %s176, 63
        %s179 = smul.addr %s178, 2
        %s180 = scalar_lea.vmem %s0, %s179
        %p181 = pneg %p39
        %p182 = pneg %p36
        %s183 = sand.u32 %s52, 1
        %s184 = scalar_lea.sflag [#allocation4], %s183
        %s185 = sand.u32 %s52, 1
        %s186 = smul.addr %s185, 9472
        %s187 = scalar_lea.vmem [#allocation3], %s186
        %p188 = pneg %p65
        %p189 = pneg %p62
        %p190 = pneg %p86
        %p191 = pneg %p83
        %p192 = pneg %p107
        %p193 = pneg %p104
        %s194 = smul.u32 2, %s18
        %p195 = scmp.lt.s32.totalorder %s194, 63
        %s196 = scalar_select %p195, %s194, 63
        %s197 = smul.addr %s196, 2
        %s198 = scalar_lea.vmem %s0, %s197
        %s199 = smul.u32 2, %s18
        %s200 = smul.u32 32, %s18
        %p201 = scmp.eq.s32.totalorder %s18, 0
        // Predicated region
        $region37: #{chessnet_forward.15} parent=31 // pred_check
          %p202 = pneg %p201
        $region38: #{chessnet_forward.15} parent=31 // pred_check_branch
          %204 = sbr.rel (%p202) target = $region40
        $region39: #{chessnet_forward.15} parent=31 // pred_region
          %205 = vst [vmem:[#allocation2] sm:$0xff] 0.0
          %206 = vst [vmem:[#allocation2 + $0x8] sm:$0xff] 0.0
          %207 = vst [vmem:[#allocation2 + $0x10] sm:$0xff] 0.0
          %208 = vst [vmem:[#allocation2 + $0x18] sm:$0xff] 0.0
          %209 = vst [vmem:[#allocation2 + $0x20] sm:$0xff] 0.0
          %210 = vst [vmem:[#allocation2 + $0x28] sm:$0xff] 0.0
          %211 = vst [vmem:[#allocation2 + $0x30] sm:$0xff] 0.0
          %212 = vst [vmem:[#allocation2 + $0x38] sm:$0xff] 0.0
          %213 = vst [vmem:[#allocation2 + $0x40] sm:$0xff] 0.0
          %vm214 = vcmask 517120
          %215 = vst.msk [vmem:[#allocation2 + $0x48] sm:$0x3] %vm214, 0.0
        $region40: #{chessnet_forward.15} parent=31 // pred_fallthru
          _
        %v216 = vld [vmem:[#allocation2] sm:$0xff]
        %v217 = vld [vmem:[#allocation2 + $0x8] sm:$0xff]
        %v218 = vld [vmem:[#allocation2 + $0x10] sm:$0xff]
        %v219 = vld [vmem:[#allocation2 + $0x18] sm:$0xff]
        %v220 = vld [vmem:[#allocation2 + $0x20] sm:$0xff]
        %v221 = vld [vmem:[#allocation2 + $0x28] sm:$0xff]
        %v222 = vld [vmem:[#allocation2 + $0x30] sm:$0xff]
        %v223 = vld [vmem:[#allocation2 + $0x38] sm:$0xff]
        %v224 = vld [vmem:[#allocation2 + $0x40] sm:$0xff]
        %v225 = vld [vmem:[#allocation2 + $0x48] sm:$0x3]
        %v226 = vld [vmem:[%s198] sm:$0xf]
        %v227 = vld [vmem:[%s171] sm:$0xff]
        %v228 = vld [vmem:[%s171 + $0x8] sm:$0xff]
        %v229 = vld [vmem:[%s171 + $0x10] sm:$0xff]
        %v230 = vld [vmem:[%s171 + $0x18] sm:$0xff]
        %v231 = vld [vmem:[%s171 + $0x20] sm:$0xff]
        %v232 = vld [vmem:[%s171 + $0x28] sm:$0xff]
        %v233 = vld [vmem:[%s171 + $0x30] sm:$0xff]
        %v234 = vld [vmem:[%s171 + $0x38] sm:$0xff]
        %v235 = vld [vmem:[%s171 + $0x40] sm:$0xff]
        %v236 = vld [vmem:[%s171 + $0x48] sm:$0xff]
        %v237 = vld [vmem:[%s171 + $0x50] sm:$0xff]
        %v238 = vld [vmem:[%s171 + $0x58] sm:$0xff]
        %v239 = vld [vmem:[%s171 + $0x60] sm:$0xff]
        %v240 = vld [vmem:[%s171 + $0x68] sm:$0xff]
        %v241 = vld [vmem:[%s171 + $0x70] sm:$0xff]
        %v242 = vld [vmem:[%s171 + $0x78] sm:$0xff]
        %v243 = vld [vmem:[%s171 + $0x80] sm:$0xff]
        %v244 = vld [vmem:[%s171 + $0x88] sm:$0xff]
        %v245 = vld [vmem:[%s171 + $0x90] sm:$0xff]
        %v246 = vld [vmem:[%s171 + $0x98] sm:$0xff]
        %v247 = vld [vmem:[%s171 + $0xa0] sm:$0xff]
        %v248 = vld [vmem:[%s171 + $0xa8] sm:$0xff]
        %v249 = vld [vmem:[%s171 + $0xb0] sm:$0xff]
        %v250 = vld [vmem:[%s171 + $0xb8] sm:$0xff]
        %v251 = vld [vmem:[%s171 + $0xc0] sm:$0xff]
        %v252 = vld [vmem:[%s171 + $0xc8] sm:$0xff]
        %v253 = vld [vmem:[%s171 + $0xd0] sm:$0xff]
        %v254 = vld [vmem:[%s171 + $0xd8] sm:$0xff]
        %v255 = vld [vmem:[%s171 + $0xe0] sm:$0xff]
        %v256 = vld [vmem:[%s171 + $0xe8] sm:$0xff]
        %v257 = vld [vmem:[%s171 + $0xf0] sm:$0xff]
        %v258 = vld [vmem:[%s171 + $0xf8] sm:$0xff]
        %v259 = vld [vmem:[%s171 + $0x100] sm:$0xff]
        %v260 = vld [vmem:[%s171 + $0x108] sm:$0xff]
        %v261 = vld [vmem:[%s171 + $0x110] sm:$0xff]
        %v262 = vld [vmem:[%s171 + $0x118] sm:$0xff]
        %v263 = vld [vmem:[%s171 + $0x120] sm:$0xff]
        %v264 = vld [vmem:[%s171 + $0x128] sm:$0xff]
        %v265 = vld [vmem:[%s171 + $0x130] sm:$0xff]
        %v266 = vld [vmem:[%s171 + $0x138] sm:$0xff]
        %v267 = vld [vmem:[%s171 + $0x140] sm:$0xff]
        %v268 = vld [vmem:[%s171 + $0x148] sm:$0xff]
        %v269 = vld [vmem:[%s171 + $0x150] sm:$0xff]
        %v270 = vld [vmem:[%s171 + $0x158] sm:$0xff]
        %v271 = vld [vmem:[%s171 + $0x160] sm:$0xff]
        %v272 = vld [vmem:[%s171 + $0x168] sm:$0xff]
        %v273 = vld [vmem:[%s171 + $0x170] sm:$0xff]
        %v274 = vld [vmem:[%s171 + $0x178] sm:$0xff]
        %v275 = vld [vmem:[%s171 + $0x180] sm:$0xff]
        %v276 = vld [vmem:[%s171 + $0x188] sm:$0xff]
        %v277 = vld [vmem:[%s171 + $0x190] sm:$0xff]
        %v278 = vld [vmem:[%s171 + $0x198] sm:$0xff]
        %v279 = vld [vmem:[%s171 + $0x1a0] sm:$0xff]
        %v280 = vld [vmem:[%s171 + $0x1a8] sm:$0xff]
        %v281 = vld [vmem:[%s171 + $0x1b0] sm:$0xff]
        %v282 = vld [vmem:[%s171 + $0x1b8] sm:$0xff]
        %v283 = vld [vmem:[%s171 + $0x1c0] sm:$0xff]
        %v284 = vld [vmem:[%s171 + $0x1c8] sm:$0xff]
        %v285 = vld [vmem:[%s171 + $0x1d0] sm:$0xff]
        %v286 = vld [vmem:[%s171 + $0x1d8] sm:$0xff]
        %v287 = vld [vmem:[%s171 + $0x1e0] sm:$0xff]
        %v288 = vld [vmem:[%s171 + $0x1e8] sm:$0xff]
        %v289 = vld [vmem:[%s171 + $0x1f0] sm:$0xff]
        %v290 = vld [vmem:[%s171 + $0x1f8] sm:$0xff]
        %v291 = vld [vmem:[%s171 + $0x200] sm:$0xff]
        %v292 = vld [vmem:[%s171 + $0x208] sm:$0xff]
        %v293 = vld [vmem:[%s171 + $0x210] sm:$0xff]
        %v294 = vld [vmem:[%s171 + $0x218] sm:$0xff]
        %v295 = vld [vmem:[%s171 + $0x220] sm:$0xff]
        %v296 = vld [vmem:[%s171 + $0x228] sm:$0xff]
        %v297 = vld [vmem:[%s171 + $0x230] sm:$0xff]
        %v298 = vld [vmem:[%s171 + $0x238] sm:$0xff]
        %v299 = vld [vmem:[%s171 + $0x240] sm:$0xff]
        %v300 = vld [vmem:[%s171 + $0x248] sm:$0xff]
        %v301 = vld [vmem:[%s171 + $0x250] sm:$0xff]
        %v302 = vld [vmem:[%s171 + $0x258] sm:$0xff]
        %v303 = vld [vmem:[%s171 + $0x260] sm:$0xff]
        %v304 = vld [vmem:[%s171 + $0x268] sm:$0xff]
        %v305 = vld [vmem:[%s171 + $0x270] sm:$0xff]
        %v306 = vld [vmem:[%s171 + $0x278] sm:$0xff]
        %v307 = vld [vmem:[%s171 + $0x280] sm:$0xff]
        %v308 = vld [vmem:[%s171 + $0x288] sm:$0xff]
        %v309 = vld [vmem:[%s171 + $0x290] sm:$0xff]
        %v310 = vld [vmem:[%s171 + $0x298] sm:$0xff]
        %v311 = vld [vmem:[%s171 + $0x2a0] sm:$0xff]
        %v312 = vld [vmem:[%s171 + $0x2a8] sm:$0xff]
        %v313 = vld [vmem:[%s171 + $0x2b0] sm:$0xff]
        %v314 = vld [vmem:[%s171 + $0x2b8] sm:$0xff]
        %v315 = vld [vmem:[%s171 + $0x2c0] sm:$0xff]
        %v316 = vld [vmem:[%s171 + $0x2c8] sm:$0xff]
        %v317 = vld [vmem:[%s171 + $0x2d0] sm:$0xff]
        %v318 = vld [vmem:[%s171 + $0x2d8] sm:$0xff]
        %v319 = vld [vmem:[%s171 + $0x2e0] sm:$0xff]
        %v320 = vld [vmem:[%s171 + $0x2e8] sm:$0xff]
        %v321 = vld [vmem:[%s171 + $0x2f0] sm:$0xff]
        %v322 = vld [vmem:[%s171 + $0x2f8] sm:$0xff]
        %v323 = vld [vmem:[%s171 + $0x300] sm:$0xff]
        %v324 = vld [vmem:[%s171 + $0x308] sm:$0xff]
        %v325 = vld [vmem:[%s171 + $0x310] sm:$0xff]
        %v326 = vld [vmem:[%s171 + $0x318] sm:$0xff]
        %v327 = vld [vmem:[%s171 + $0x320] sm:$0xff]
        %v328 = vld [vmem:[%s171 + $0x328] sm:$0xff]
        %v329 = vld [vmem:[%s171 + $0x330] sm:$0xff]
        %v330 = vld [vmem:[%s171 + $0x338] sm:$0xff]
        %v331 = vld [vmem:[%s171 + $0x340] sm:$0xff]
        %v332 = vld [vmem:[%s171 + $0x348] sm:$0xff]
        %v333 = vld [vmem:[%s171 + $0x350] sm:$0xff]
        %v334 = vld [vmem:[%s171 + $0x358] sm:$0xff]
        %v335 = vld [vmem:[%s171 + $0x360] sm:$0xff]
        %v336 = vld [vmem:[%s171 + $0x368] sm:$0xff]
        %v337 = vld [vmem:[%s171 + $0x370] sm:$0xff]
        %v338 = vld [vmem:[%s171 + $0x378] sm:$0xff]
        %v339 = vld [vmem:[%s171 + $0x380] sm:$0xff]
        %v340 = vld [vmem:[%s171 + $0x388] sm:$0xff]
        %v341 = vld [vmem:[%s171 + $0x390] sm:$0xff]
        %v342 = vld [vmem:[%s171 + $0x398] sm:$0xff]
        %v343 = vld [vmem:[%s171 + $0x3a0] sm:$0xff]
        %v344 = vld [vmem:[%s171 + $0x3a8] sm:$0xff]
        %v345 = vld [vmem:[%s171 + $0x3b0] sm:$0xff]
        %v346 = vld [vmem:[%s171 + $0x3b8] sm:$0xff]
        %v347 = vld [vmem:[%s171 + $0x3c0] sm:$0xff]
        %v348 = vld [vmem:[%s171 + $0x3c8] sm:$0xff]
        %v349 = vld [vmem:[%s171 + $0x3d0] sm:$0xff]
        %v350 = vld [vmem:[%s171 + $0x3d8] sm:$0xff]
        %v351 = vld [vmem:[%s171 + $0x3e0] sm:$0xff]
        %v352 = vld [vmem:[%s171 + $0x3e8] sm:$0xff]
        %v353 = vld [vmem:[%s171 + $0x3f0] sm:$0xff]
        %v354 = vld [vmem:[%s171 + $0x3f8] sm:$0xff]
        %v355 = vld [vmem:[%s171 + $0x400] sm:$0xff]
        %v356 = vld [vmem:[%s171 + $0x408] sm:$0xff]
        %v357 = vld [vmem:[%s171 + $0x410] sm:$0xff]
        %v358 = vld [vmem:[%s171 + $0x418] sm:$0xff]
        %v359 = vld [vmem:[%s171 + $0x420] sm:$0xff]
        %v360 = vld [vmem:[%s171 + $0x428] sm:$0xff]
        %v361 = vld [vmem:[%s171 + $0x430] sm:$0xff]
        %v362 = vld [vmem:[%s171 + $0x438] sm:$0xff]
        %v363 = vld [vmem:[%s171 + $0x440] sm:$0xff]
        %v364 = vld [vmem:[%s171 + $0x448] sm:$0xff]
        %v365 = vld [vmem:[%s171 + $0x450] sm:$0xff]
        %v366 = vld [vmem:[%s171 + $0x458] sm:$0xff]
        %v367 = vld [vmem:[%s171 + $0x460] sm:$0xff]
        %v368 = vld [vmem:[%s171 + $0x468] sm:$0xff]
        %v369 = vld [vmem:[%s171 + $0x470] sm:$0xff]
        %v370 = vld [vmem:[%s171 + $0x478] sm:$0xff]
        %v371 = vld [vmem:[%s171 + $0x480] sm:$0xff]
        %v372 = vld [vmem:[%s171 + $0x488] sm:$0xff]
        %v373 = vld [vmem:[%s171 + $0x490] sm:$0xff]
        %v374 = vld [vmem:[%s171 + $0x498] sm:$0xff]
        %v375 = vld [vmem:[%s171 + $0x4a0] sm:$0xff]
        %v376 = vld [vmem:[%s171 + $0x4a8] sm:$0xff]
        %v377 = vld [vmem:[%s171 + $0x4b0] sm:$0xff]
        %v378 = vld [vmem:[%s171 + $0x4b8] sm:$0xff]
        %v379 = vld [vmem:[%s171 + $0x4c0] sm:$0xff]
        %v380 = vld [vmem:[%s171 + $0x4c8] sm:$0xff]
        %v381 = vld [vmem:[%s171 + $0x4d0] sm:$0xff]
        %v382 = vld [vmem:[%s171 + $0x4d8] sm:$0xff]
        %v383 = vld [vmem:[%s171 + $0x4e0] sm:$0xff]
        %v384 = vld [vmem:[%s171 + $0x4e8] sm:$0xff]
        %v385 = vld [vmem:[%s171 + $0x4f0] sm:$0xff]
        %v386 = vld [vmem:[%s171 + $0x4f8] sm:$0xff]
        %v387 = vld [vmem:[%s171 + $0x500] sm:$0xff]
        %v388 = vld [vmem:[%s171 + $0x508] sm:$0xff]
        %v389 = vld [vmem:[%s171 + $0x510] sm:$0xff]
        %v390 = vld [vmem:[%s171 + $0x518] sm:$0xff]
        %v391 = vld [vmem:[%s171 + $0x520] sm:$0xff]
        %v392 = vld [vmem:[%s171 + $0x528] sm:$0xff]
        %v393 = vld [vmem:[%s171 + $0x530] sm:$0xff]
        %v394 = vld [vmem:[%s171 + $0x538] sm:$0xff]
        %v395 = vld [vmem:[%s171 + $0x540] sm:$0xff]
        %v396 = vld [vmem:[%s171 + $0x548] sm:$0xff]
        %v397 = vld [vmem:[%s171 + $0x550] sm:$0xff]
        %v398 = vld [vmem:[%s171 + $0x558] sm:$0xff]
        %v399 = vld [vmem:[%s171 + $0x560] sm:$0xff]
        %v400 = vld [vmem:[%s171 + $0x568] sm:$0xff]
        %v401 = vld [vmem:[%s171 + $0x570] sm:$0xff]
        %v402 = vld [vmem:[%s171 + $0x578] sm:$0xff]
        %v403 = vld [vmem:[%s171 + $0x580] sm:$0xff]
        %v404 = vld [vmem:[%s171 + $0x588] sm:$0xff]
        %v405 = vld [vmem:[%s171 + $0x590] sm:$0xff]
        %v406 = vld [vmem:[%s171 + $0x598] sm:$0xff]
        %v407 = vld [vmem:[%s171 + $0x5a0] sm:$0xff]
        %v408 = vld [vmem:[%s171 + $0x5a8] sm:$0xff]
        %v409 = vld [vmem:[%s171 + $0x5b0] sm:$0xff]
        %v410 = vld [vmem:[%s171 + $0x5b8] sm:$0xff]
        %v411 = vld [vmem:[%s171 + $0x5c0] sm:$0xff]
        %v412 = vld [vmem:[%s171 + $0x5c8] sm:$0xff]
        %v413 = vld [vmem:[%s171 + $0x5d0] sm:$0xff]
        %v414 = vld [vmem:[%s171 + $0x5d8] sm:$0xff]
        %v415 = vld [vmem:[%s171 + $0x5e0] sm:$0xff]
        %v416 = vld [vmem:[%s171 + $0x5e8] sm:$0xff]
        %v417 = vld [vmem:[%s171 + $0x5f0] sm:$0xff]
        %v418 = vld [vmem:[%s171 + $0x5f8] sm:$0xff]
        %v419 = vld [vmem:[%s171 + $0x600] sm:$0xff]
        %v420 = vld [vmem:[%s171 + $0x608] sm:$0xff]
        %v421 = vld [vmem:[%s171 + $0x610] sm:$0xff]
        %v422 = vld [vmem:[%s171 + $0x618] sm:$0xff]
        %v423 = vld [vmem:[%s171 + $0x620] sm:$0xff]
        %v424 = vld [vmem:[%s171 + $0x628] sm:$0xff]
        %v425 = vld [vmem:[%s171 + $0x630] sm:$0xff]
        %v426 = vld [vmem:[%s171 + $0x638] sm:$0xff]
        %v427 = vld [vmem:[%s171 + $0x640] sm:$0xff]
        %v428 = vld [vmem:[%s171 + $0x648] sm:$0xff]
        %v429 = vld [vmem:[%s171 + $0x650] sm:$0xff]
        %v430 = vld [vmem:[%s171 + $0x658] sm:$0xff]
        %v431 = vld [vmem:[%s171 + $0x660] sm:$0xff]
        %v432 = vld [vmem:[%s171 + $0x668] sm:$0xff]
        %v433 = vld [vmem:[%s171 + $0x670] sm:$0xff]
        %v434 = vld [vmem:[%s171 + $0x678] sm:$0xff]
        %v435 = vld [vmem:[%s171 + $0x680] sm:$0xff]
        %v436 = vld [vmem:[%s171 + $0x688] sm:$0xff]
        %v437 = vld [vmem:[%s171 + $0x690] sm:$0xff]
        %v438 = vld [vmem:[%s171 + $0x698] sm:$0xff]
        %v439 = vld [vmem:[%s171 + $0x6a0] sm:$0xff]
        %v440 = vld [vmem:[%s171 + $0x6a8] sm:$0xff]
        %v441 = vld [vmem:[%s171 + $0x6b0] sm:$0xff]
        %v442 = vld [vmem:[%s171 + $0x6b8] sm:$0xff]
        %v443 = vld [vmem:[%s171 + $0x6c0] sm:$0xff]
        %v444 = vld [vmem:[%s171 + $0x6c8] sm:$0xff]
        %v445 = vld [vmem:[%s171 + $0x6d0] sm:$0xff]
        %v446 = vld [vmem:[%s171 + $0x6d8] sm:$0xff]
        %v447 = vld [vmem:[%s171 + $0x6e0] sm:$0xff]
        %v448 = vld [vmem:[%s171 + $0x6e8] sm:$0xff]
        %v449 = vld [vmem:[%s171 + $0x6f0] sm:$0xff]
        %v450 = vld [vmem:[%s171 + $0x6f8] sm:$0xff]
        %v451 = vld [vmem:[%s171 + $0x700] sm:$0xff]
        %v452 = vld [vmem:[%s171 + $0x708] sm:$0xff]
        %v453 = vld [vmem:[%s171 + $0x710] sm:$0xff]
        %v454 = vld [vmem:[%s171 + $0x718] sm:$0xff]
        %v455 = vld [vmem:[%s171 + $0x720] sm:$0xff]
        %v456 = vld [vmem:[%s171 + $0x728] sm:$0xff]
        %v457 = vld [vmem:[%s171 + $0x730] sm:$0xff]
        %v458 = vld [vmem:[%s171 + $0x738] sm:$0xff]
        %v459 = vld [vmem:[%s171 + $0x740] sm:$0xff]
        %v460 = vld [vmem:[%s171 + $0x748] sm:$0xff]
        %v461 = vld [vmem:[%s171 + $0x750] sm:$0xff]
        %v462 = vld [vmem:[%s171 + $0x758] sm:$0xff]
        %v463 = vld [vmem:[%s171 + $0x760] sm:$0xff]
        %v464 = vld [vmem:[%s171 + $0x768] sm:$0xff]
        %v465 = vld [vmem:[%s171 + $0x770] sm:$0xff]
        %v466 = vld [vmem:[%s171 + $0x778] sm:$0xff]
        %v467 = vld [vmem:[%s171 + $0x780] sm:$0xff]
        %v468 = vld [vmem:[%s171 + $0x788] sm:$0xff]
        %v469 = vld [vmem:[%s171 + $0x790] sm:$0xff]
        %v470 = vld [vmem:[%s171 + $0x798] sm:$0xff]
        %v471 = vld [vmem:[%s171 + $0x7a0] sm:$0xff]
        %v472 = vld [vmem:[%s171 + $0x7a8] sm:$0xff]
        %v473 = vld [vmem:[%s171 + $0x7b0] sm:$0xff]
        %v474 = vld [vmem:[%s171 + $0x7b8] sm:$0xff]
        %v475 = vld [vmem:[%s171 + $0x7c0] sm:$0xff]
        %v476 = vld [vmem:[%s171 + $0x7c8] sm:$0xff]
        %v477 = vld [vmem:[%s171 + $0x7d0] sm:$0xff]
        %v478 = vld [vmem:[%s171 + $0x7d8] sm:$0xff]
        %v479 = vld [vmem:[%s171 + $0x7e0] sm:$0xff]
        %v480 = vld [vmem:[%s171 + $0x7e8] sm:$0xff]
        %v481 = vld [vmem:[%s171 + $0x7f0] sm:$0xff]
        %v482 = vld [vmem:[%s171 + $0x7f8] sm:$0xff]
        %v483 = vld [vmem:[%s171 + $0x800] sm:$0xff]
        %v484 = vld [vmem:[%s171 + $0x808] sm:$0xff]
        %v485 = vld [vmem:[%s171 + $0x810] sm:$0xff]
        %v486 = vld [vmem:[%s171 + $0x818] sm:$0xff]
        %v487 = vld [vmem:[%s171 + $0x820] sm:$0xff]
        %v488 = vld [vmem:[%s171 + $0x828] sm:$0xff]
        %v489 = vld [vmem:[%s171 + $0x830] sm:$0xff]
        %v490 = vld [vmem:[%s171 + $0x838] sm:$0xff]
        %v491 = vld [vmem:[%s171 + $0x840] sm:$0xff]
        %v492 = vld [vmem:[%s171 + $0x848] sm:$0xff]
        %v493 = vld [vmem:[%s171 + $0x850] sm:$0xff]
        %v494 = vld [vmem:[%s171 + $0x858] sm:$0xff]
        %v495 = vld [vmem:[%s171 + $0x860] sm:$0xff]
        %v496 = vld [vmem:[%s171 + $0x868] sm:$0xff]
        %v497 = vld [vmem:[%s171 + $0x870] sm:$0xff]
        %v498 = vld [vmem:[%s171 + $0x878] sm:$0xff]
        %v499 = vld [vmem:[%s171 + $0x880] sm:$0xff]
        %v500 = vld [vmem:[%s171 + $0x888] sm:$0xff]
        %v501 = vld [vmem:[%s171 + $0x890] sm:$0xff]
        %v502 = vld [vmem:[%s171 + $0x898] sm:$0xff]
        %v503 = vld [vmem:[%s171 + $0x8a0] sm:$0xff]
        %v504 = vld [vmem:[%s171 + $0x8a8] sm:$0xff]
        %v505 = vld [vmem:[%s171 + $0x8b0] sm:$0xff]
        %v506 = vld [vmem:[%s171 + $0x8b8] sm:$0xff]
        %v507 = vld [vmem:[%s171 + $0x8c0] sm:$0xff]
        %v508 = vld [vmem:[%s171 + $0x8c8] sm:$0xff]
        %v509 = vld [vmem:[%s171 + $0x8d0] sm:$0xff]
        %v510 = vld [vmem:[%s171 + $0x8d8] sm:$0xff]
        %v511 = vld [vmem:[%s171 + $0x8e0] sm:$0xff]
        %v512 = vld [vmem:[%s171 + $0x8e8] sm:$0xff]
        %v513 = vld [vmem:[%s171 + $0x8f0] sm:$0xff]
        %v514 = vld [vmem:[%s171 + $0x8f8] sm:$0xff]
        %v515 = vld [vmem:[%s171 + $0x900] sm:$0xff]
        %v516 = vld [vmem:[%s171 + $0x908] sm:$0xff]
        %v517 = vld [vmem:[%s171 + $0x910] sm:$0xff]
        %v518 = vld [vmem:[%s171 + $0x918] sm:$0xff]
        %v519 = vld [vmem:[%s171 + $0x920] sm:$0xff]
        %v520 = vld [vmem:[%s171 + $0x928] sm:$0xff]
        %v521 = vld [vmem:[%s171 + $0x930] sm:$0xff]
        %v522 = vld [vmem:[%s171 + $0x938] sm:$0xff]
        %v523 = vld [vmem:[%s171 + $0x940] sm:$0xff]
        %v524 = vld [vmem:[%s171 + $0x948] sm:$0xff]
        %v525 = vld [vmem:[%s171 + $0x950] sm:$0xff]
        %v526 = vld [vmem:[%s171 + $0x958] sm:$0xff]
        %v527 = vld [vmem:[%s171 + $0x960] sm:$0xff]
        %v528 = vld [vmem:[%s171 + $0x968] sm:$0xff]
        %v529 = vld [vmem:[%s171 + $0x970] sm:$0xff]
        %v530 = vld [vmem:[%s171 + $0x978] sm:$0xff]
        %v531 = vld [vmem:[%s171 + $0x980] sm:$0xff]
        %v532 = vld [vmem:[%s171 + $0x988] sm:$0xff]
        %v533 = vld [vmem:[%s171 + $0x990] sm:$0xff]
        %v534 = vld [vmem:[%s171 + $0x998] sm:$0xff]
        %v535 = vld [vmem:[%s171 + $0x9a0] sm:$0xff]
        %v536 = vld [vmem:[%s171 + $0x9a8] sm:$0xff]
        %v537 = vld [vmem:[%s171 + $0x9b0] sm:$0xff]
        %v538 = vld [vmem:[%s171 + $0x9b8] sm:$0xff]
        %v539 = vld [vmem:[%s171 + $0x9c0] sm:$0xff]
        %v540 = vld [vmem:[%s171 + $0x9c8] sm:$0xff]
        %v541 = vld [vmem:[%s171 + $0x9d0] sm:$0xff]
        %v542 = vld [vmem:[%s171 + $0x9d8] sm:$0xff]
        %v543 = vld [vmem:[%s171 + $0x9e0] sm:$0xff]
        %v544 = vld [vmem:[%s171 + $0x9e8] sm:$0xff]
        %v545 = vld [vmem:[%s171 + $0x9f0] sm:$0xff]
        %v546 = vld [vmem:[%s171 + $0x9f8] sm:$0xff]
        %v547 = vld [vmem:[%s171 + $0xa00] sm:$0xff]
        %v548 = vld [vmem:[%s171 + $0xa08] sm:$0xff]
        %v549 = vld [vmem:[%s171 + $0xa10] sm:$0xff]
        %v550 = vld [vmem:[%s171 + $0xa18] sm:$0xff]
        %v551 = vld [vmem:[%s171 + $0xa20] sm:$0xff]
        %v552 = vld [vmem:[%s171 + $0xa28] sm:$0xff]
        %v553 = vld [vmem:[%s171 + $0xa30] sm:$0xff]
        %v554 = vld [vmem:[%s171 + $0xa38] sm:$0xff]
        %v555 = vld [vmem:[%s171 + $0xa40] sm:$0xff]
        %v556 = vld [vmem:[%s171 + $0xa48] sm:$0xff]
        %v557 = vld [vmem:[%s171 + $0xa50] sm:$0xff]
        %v558 = vld [vmem:[%s171 + $0xa58] sm:$0xff]
        %v559 = vld [vmem:[%s171 + $0xa60] sm:$0xff]
        %v560 = vld [vmem:[%s171 + $0xa68] sm:$0xff]
        %v561 = vld [vmem:[%s171 + $0xa70] sm:$0xff]
        %v562 = vld [vmem:[%s171 + $0xa78] sm:$0xff]
        %v563 = vld [vmem:[%s171 + $0xa80] sm:$0xff]
        %v564 = vld [vmem:[%s171 + $0xa88] sm:$0xff]
        %v565 = vld [vmem:[%s171 + $0xa90] sm:$0xff]
        %v566 = vld [vmem:[%s171 + $0xa98] sm:$0xff]
        %v567 = vld [vmem:[%s171 + $0xaa0] sm:$0xff]
        %v568 = vld [vmem:[%s171 + $0xaa8] sm:$0xff]
        %v569 = vld [vmem:[%s171 + $0xab0] sm:$0xff]
        %v570 = vld [vmem:[%s171 + $0xab8] sm:$0xff]
        %v571 = vld [vmem:[%s171 + $0xac0] sm:$0xff]
        %v572 = vld [vmem:[%s171 + $0xac8] sm:$0xff]
        %v573 = vld [vmem:[%s171 + $0xad0] sm:$0xff]
        %v574 = vld [vmem:[%s171 + $0xad8] sm:$0xff]
        %v575 = vld [vmem:[%s171 + $0xae0] sm:$0xff]
        %v576 = vld [vmem:[%s171 + $0xae8] sm:$0xff]
        %v577 = vld [vmem:[%s171 + $0xaf0] sm:$0xff]
        %v578 = vld [vmem:[%s171 + $0xaf8] sm:$0xff]
        %v579 = vld [vmem:[%s171 + $0xb00] sm:$0xff]
        %v580 = vld [vmem:[%s171 + $0xb08] sm:$0xff]
        %v581 = vld [vmem:[%s171 + $0xb10] sm:$0xff]
        %v582 = vld [vmem:[%s171 + $0xb18] sm:$0xff]
        %v583 = vld [vmem:[%s171 + $0xb20] sm:$0xff]
        %v584 = vld [vmem:[%s171 + $0xb28] sm:$0xff]
        %v585 = vld [vmem:[%s171 + $0xb30] sm:$0xff]
        %v586 = vld [vmem:[%s171 + $0xb38] sm:$0xff]
        %v587 = vld [vmem:[%s171 + $0xb40] sm:$0xff]
        %v588 = vld [vmem:[%s171 + $0xb48] sm:$0xff]
        %v589 = vld [vmem:[%s171 + $0xb50] sm:$0xff]
        %v590 = vld [vmem:[%s171 + $0xb58] sm:$0xff]
        %v591 = vld [vmem:[%s171 + $0xb60] sm:$0xff]
        %v592 = vld [vmem:[%s171 + $0xb68] sm:$0xff]
        %v593 = vld [vmem:[%s171 + $0xb70] sm:$0xff]
        %v594 = vld [vmem:[%s171 + $0xb78] sm:$0xff]
        %v595 = vld [vmem:[%s171 + $0xb80] sm:$0xff]
        %v596 = vld [vmem:[%s171 + $0xb88] sm:$0xff]
        %v597 = vld [vmem:[%s171 + $0xb90] sm:$0xff]
        %v598 = vld [vmem:[%s171 + $0xb98] sm:$0xff]
        %v599 = vld [vmem:[%s171 + $0xba0] sm:$0xff]
        %v600 = vld [vmem:[%s171 + $0xba8] sm:$0xff]
        %v601 = vld [vmem:[%s171 + $0xbb0] sm:$0xff]
        %v602 = vld [vmem:[%s171 + $0xbb8] sm:$0xff]
        %v603 = vld [vmem:[%s171 + $0xbc0] sm:$0xff]
        %v604 = vld [vmem:[%s171 + $0xbc8] sm:$0xff]
        %v605 = vld [vmem:[%s171 + $0xbd0] sm:$0xff]
        %v606 = vld [vmem:[%s171 + $0xbd8] sm:$0xff]
        %v607 = vld [vmem:[%s171 + $0xbe0] sm:$0xff]
        %v608 = vld [vmem:[%s171 + $0xbe8] sm:$0xff]
        %v609 = vld [vmem:[%s171 + $0xbf0] sm:$0xff]
        %v610 = vld [vmem:[%s171 + $0xbf8] sm:$0xff]
        %v611 = vld [vmem:[%s171 + $0xc00] sm:$0xff]
        %v612 = vld [vmem:[%s171 + $0xc08] sm:$0xff]
        %v613 = vld [vmem:[%s171 + $0xc10] sm:$0xff]
        %v614 = vld [vmem:[%s171 + $0xc18] sm:$0xff]
        %v615 = vld [vmem:[%s171 + $0xc20] sm:$0xff]
        %v616 = vld [vmem:[%s171 + $0xc28] sm:$0xff]
        %v617 = vld [vmem:[%s171 + $0xc30] sm:$0xff]
        %v618 = vld [vmem:[%s171 + $0xc38] sm:$0xff]
        %v619 = vld [vmem:[%s171 + $0xc40] sm:$0xff]
        %v620 = vld [vmem:[%s171 + $0xc48] sm:$0xff]
        %v621 = vld [vmem:[%s171 + $0xc50] sm:$0xff]
        %v622 = vld [vmem:[%s171 + $0xc58] sm:$0xff]
        %v623 = vld [vmem:[%s171 + $0xc60] sm:$0xff]
        %v624 = vld [vmem:[%s171 + $0xc68] sm:$0xff]
        %v625 = vld [vmem:[%s171 + $0xc70] sm:$0xff]
        %v626 = vld [vmem:[%s171 + $0xc78] sm:$0xff]
        %v627 = vld [vmem:[%s171 + $0xc80] sm:$0xff]
        %v628 = vld [vmem:[%s171 + $0xc88] sm:$0xff]
        %v629 = vld [vmem:[%s171 + $0xc90] sm:$0xff]
        %v630 = vld [vmem:[%s171 + $0xc98] sm:$0xff]
        %v631 = vld [vmem:[%s171 + $0xca0] sm:$0xff]
        %v632 = vld [vmem:[%s171 + $0xca8] sm:$0xff]
        %v633 = vld [vmem:[%s171 + $0xcb0] sm:$0xff]
        %v634 = vld [vmem:[%s171 + $0xcb8] sm:$0xff]
        %v635 = vld [vmem:[%s171 + $0xcc0] sm:$0xff]
        %v636 = vld [vmem:[%s171 + $0xcc8] sm:$0xff]
        %v637 = vld [vmem:[%s171 + $0xcd0] sm:$0xff]
        %v638 = vld [vmem:[%s171 + $0xcd8] sm:$0xff]
        %v639 = vld [vmem:[%s171 + $0xce0] sm:$0xff]
        %v640 = vld [vmem:[%s171 + $0xce8] sm:$0xff]
        %v641 = vld [vmem:[%s171 + $0xcf0] sm:$0xff]
        %v642 = vld [vmem:[%s171 + $0xcf8] sm:$0xff]
        %v643 = vld [vmem:[%s171 + $0xd00] sm:$0xff]
        %v644 = vld [vmem:[%s171 + $0xd08] sm:$0xff]
        %v645 = vld [vmem:[%s171 + $0xd10] sm:$0xff]
        %v646 = vld [vmem:[%s171 + $0xd18] sm:$0xff]
        %v647 = vld [vmem:[%s171 + $0xd20] sm:$0xff]
        %v648 = vld [vmem:[%s171 + $0xd28] sm:$0xff]
        %v649 = vld [vmem:[%s171 + $0xd30] sm:$0xff]
        %v650 = vld [vmem:[%s171 + $0xd38] sm:$0xff]
        %v651 = vld [vmem:[%s171 + $0xd40] sm:$0xff]
        %v652 = vld [vmem:[%s171 + $0xd48] sm:$0xff]
        %v653 = vld [vmem:[%s171 + $0xd50] sm:$0xff]
        %v654 = vld [vmem:[%s171 + $0xd58] sm:$0xff]
        %v655 = vld [vmem:[%s171 + $0xd60] sm:$0xff]
        %v656 = vld [vmem:[%s171 + $0xd68] sm:$0xff]
        %v657 = vld [vmem:[%s171 + $0xd70] sm:$0xff]
        %v658 = vld [vmem:[%s171 + $0xd78] sm:$0xff]
        %v659 = vld [vmem:[%s171 + $0xd80] sm:$0xff]
        %v660 = vld [vmem:[%s171 + $0xd88] sm:$0xff]
        %v661 = vld [vmem:[%s171 + $0xd90] sm:$0xff]
        %v662 = vld [vmem:[%s171 + $0xd98] sm:$0xff]
        %v663 = vld [vmem:[%s171 + $0xda0] sm:$0xff]
        %v664 = vld [vmem:[%s171 + $0xda8] sm:$0xff]
        %v665 = vld [vmem:[%s171 + $0xdb0] sm:$0xff]
        %v666 = vld [vmem:[%s171 + $0xdb8] sm:$0xff]
        %v667 = vld [vmem:[%s171 + $0xdc0] sm:$0xff]
        %v668 = vld [vmem:[%s171 + $0xdc8] sm:$0xff]
        %v669 = vld [vmem:[%s171 + $0xdd0] sm:$0xff]
        %v670 = vld [vmem:[%s171 + $0xdd8] sm:$0xff]
        %v671 = vld [vmem:[%s171 + $0xde0] sm:$0xff]
        %v672 = vld [vmem:[%s171 + $0xde8] sm:$0xff]
        %v673 = vld [vmem:[%s171 + $0xdf0] sm:$0xff]
        %v674 = vld [vmem:[%s171 + $0xdf8] sm:$0xff]
        %v675 = vld [vmem:[%s171 + $0xe00] sm:$0xff]
        %v676 = vld [vmem:[%s171 + $0xe08] sm:$0xff]
        %v677 = vld [vmem:[%s171 + $0xe10] sm:$0xff]
        %v678 = vld [vmem:[%s171 + $0xe18] sm:$0xff]
        %v679 = vld [vmem:[%s171 + $0xe20] sm:$0xff]
        %v680 = vld [vmem:[%s171 + $0xe28] sm:$0xff]
        %v681 = vld [vmem:[%s171 + $0xe30] sm:$0xff]
        %v682 = vld [vmem:[%s171 + $0xe38] sm:$0xff]
        %v683 = vld [vmem:[%s171 + $0xe40] sm:$0xff]
        %v684 = vld [vmem:[%s171 + $0xe48] sm:$0xff]
        %v685 = vld [vmem:[%s171 + $0xe50] sm:$0xff]
        %v686 = vld [vmem:[%s171 + $0xe58] sm:$0xff]
        %v687 = vld [vmem:[%s171 + $0xe60] sm:$0xff]
        %v688 = vld [vmem:[%s171 + $0xe68] sm:$0xff]
        %v689 = vld [vmem:[%s171 + $0xe70] sm:$0xff]
        %v690 = vld [vmem:[%s171 + $0xe78] sm:$0xff]
        %v691 = vld [vmem:[%s171 + $0xe80] sm:$0xff]
        %v692 = vld [vmem:[%s171 + $0xe88] sm:$0xff]
        %v693 = vld [vmem:[%s171 + $0xe90] sm:$0xff]
        %v694 = vld [vmem:[%s171 + $0xe98] sm:$0xff]
        %v695 = vld [vmem:[%s171 + $0xea0] sm:$0xff]
        %v696 = vld [vmem:[%s171 + $0xea8] sm:$0xff]
        %v697 = vld [vmem:[%s171 + $0xeb0] sm:$0xff]
        %v698 = vld [vmem:[%s171 + $0xeb8] sm:$0xff]
        %v699 = vld [vmem:[%s171 + $0xec0] sm:$0xff]
        %v700 = vld [vmem:[%s171 + $0xec8] sm:$0xff]
        %v701 = vld [vmem:[%s171 + $0xed0] sm:$0xff]
        %v702 = vld [vmem:[%s171 + $0xed8] sm:$0xff]
        %v703 = vld [vmem:[%s171 + $0xee0] sm:$0xff]
        %v704 = vld [vmem:[%s171 + $0xee8] sm:$0xff]
        %v705 = vld [vmem:[%s171 + $0xef0] sm:$0xff]
        %v706 = vld [vmem:[%s171 + $0xef8] sm:$0xff]
        %v707 = vld [vmem:[%s171 + $0xf00] sm:$0xff]
        %v708 = vld [vmem:[%s171 + $0xf08] sm:$0xff]
        %v709 = vld [vmem:[%s171 + $0xf10] sm:$0xff]
        %v710 = vld [vmem:[%s171 + $0xf18] sm:$0xff]
        %v711 = vld [vmem:[%s171 + $0xf20] sm:$0xff]
        %v712 = vld [vmem:[%s171 + $0xf28] sm:$0xff]
        %v713 = vld [vmem:[%s171 + $0xf30] sm:$0xff]
        %v714 = vld [vmem:[%s171 + $0xf38] sm:$0xff]
        %v715 = vld [vmem:[%s171 + $0xf40] sm:$0xff]
        %v716 = vld [vmem:[%s171 + $0xf48] sm:$0xff]
        %v717 = vld [vmem:[%s171 + $0xf50] sm:$0xff]
        %v718 = vld [vmem:[%s171 + $0xf58] sm:$0xff]
        %v719 = vld [vmem:[%s171 + $0xf60] sm:$0xff]
        %v720 = vld [vmem:[%s171 + $0xf68] sm:$0xff]
        %v721 = vld [vmem:[%s171 + $0xf70] sm:$0xff]
        %v722 = vld [vmem:[%s171 + $0xf78] sm:$0xff]
        %v723 = vld [vmem:[%s171 + $0xf80] sm:$0xff]
        %v724 = vld [vmem:[%s171 + $0xf88] sm:$0xff]
        %v725 = vld [vmem:[%s171 + $0xf90] sm:$0xff]
        %v726 = vld [vmem:[%s171 + $0xf98] sm:$0xff]
        %v727 = vld [vmem:[%s171 + $0xfa0] sm:$0xff]
        %v728 = vld [vmem:[%s171 + $0xfa8] sm:$0xff]
        %v729 = vld [vmem:[%s171 + $0xfb0] sm:$0xff]
        %v730 = vld [vmem:[%s171 + $0xfb8] sm:$0xff]
        %v731 = vld [vmem:[%s171 + $0xfc0] sm:$0xff]
        %v732 = vld [vmem:[%s171 + $0xfc8] sm:$0xff]
        %v733 = vld [vmem:[%s171 + $0xfd0] sm:$0xff]
        %v734 = vld [vmem:[%s171 + $0xfd8] sm:$0xff]
        %v735 = vld [vmem:[%s171 + $0xfe0] sm:$0xff]
        %v736 = vld [vmem:[%s171 + $0xfe8] sm:$0xff]
        %v737 = vld [vmem:[%s171 + $0xff0] sm:$0xff]
        %v738 = vld [vmem:[%s171 + $0xff8] sm:$0xff]
        %v739 = vld [vmem:[%s171 + $0x1000] sm:$0xff]
        %v740 = vld [vmem:[%s171 + $0x1008] sm:$0xff]
        %v741 = vld [vmem:[%s171 + $0x1010] sm:$0xff]
        %v742 = vld [vmem:[%s171 + $0x1018] sm:$0xff]
        %v743 = vld [vmem:[%s171 + $0x1020] sm:$0xff]
        %v744 = vld [vmem:[%s171 + $0x1028] sm:$0xff]
        %v745 = vld [vmem:[%s171 + $0x1030] sm:$0xff]
        %v746 = vld [vmem:[%s171 + $0x1038] sm:$0xff]
        %v747 = vld [vmem:[%s171 + $0x1040] sm:$0xff]
        %v748 = vld [vmem:[%s171 + $0x1048] sm:$0xff]
        %v749 = vld [vmem:[%s171 + $0x1050] sm:$0xff]
        %v750 = vld [vmem:[%s171 + $0x1058] sm:$0xff]
        %v751 = vld [vmem:[%s171 + $0x1060] sm:$0xff]
        %v752 = vld [vmem:[%s171 + $0x1068] sm:$0xff]
        %v753 = vld [vmem:[%s171 + $0x1070] sm:$0xff]
        %v754 = vld [vmem:[%s171 + $0x1078] sm:$0xff]
        %v755 = vld [vmem:[%s171 + $0x1080] sm:$0xff]
        %v756 = vld [vmem:[%s171 + $0x1088] sm:$0xff]
        %v757 = vld [vmem:[%s171 + $0x1090] sm:$0xff]
        %v758 = vld [vmem:[%s171 + $0x1098] sm:$0xff]
        %v759 = vld [vmem:[%s171 + $0x10a0] sm:$0xff]
        %v760 = vld [vmem:[%s171 + $0x10a8] sm:$0xff]
        %v761 = vld [vmem:[%s171 + $0x10b0] sm:$0xff]
        %v762 = vld [vmem:[%s171 + $0x10b8] sm:$0xff]
        %v763 = vld [vmem:[%s171 + $0x10c0] sm:$0xff]
        %v764 = vld [vmem:[%s171 + $0x10c8] sm:$0xff]
        %v765 = vld [vmem:[%s171 + $0x10d0] sm:$0xff]
        %v766 = vld [vmem:[%s171 + $0x10d8] sm:$0xff]
        %v767 = vld [vmem:[%s171 + $0x10e0] sm:$0xff]
        %v768 = vld [vmem:[%s171 + $0x10e8] sm:$0xff]
        %v769 = vld [vmem:[%s171 + $0x10f0] sm:$0xff]
        %v770 = vld [vmem:[%s171 + $0x10f8] sm:$0xff]
        %v771 = vld [vmem:[%s171 + $0x1100] sm:$0xff]
        %v772 = vld [vmem:[%s171 + $0x1108] sm:$0xff]
        %v773 = vld [vmem:[%s171 + $0x1110] sm:$0xff]
        %v774 = vld [vmem:[%s171 + $0x1118] sm:$0xff]
        %v775 = vld [vmem:[%s171 + $0x1120] sm:$0xff]
        %v776 = vld [vmem:[%s171 + $0x1128] sm:$0xff]
        %v777 = vld [vmem:[%s171 + $0x1130] sm:$0xff]
        %v778 = vld [vmem:[%s171 + $0x1138] sm:$0xff]
        %v779 = vld [vmem:[%s171 + $0x1140] sm:$0xff]
        %v780 = vld [vmem:[%s171 + $0x1148] sm:$0xff]
        %v781 = vld [vmem:[%s171 + $0x1150] sm:$0xff]
        %v782 = vld [vmem:[%s171 + $0x1158] sm:$0xff]
        %v783 = vld [vmem:[%s171 + $0x1160] sm:$0xff]
        %v784 = vld [vmem:[%s171 + $0x1168] sm:$0xff]
        %v785 = vld [vmem:[%s171 + $0x1170] sm:$0xff]
        %v786 = vld [vmem:[%s171 + $0x1178] sm:$0xff]
        %v787 = vld [vmem:[%s171 + $0x1180] sm:$0xff]
        %v788 = vld [vmem:[%s171 + $0x1188] sm:$0xff]
        %v789 = vld [vmem:[%s171 + $0x1190] sm:$0xff]
        %v790 = vld [vmem:[%s171 + $0x1198] sm:$0xff]
        %v791 = vld [vmem:[%s171 + $0x11a0] sm:$0xff]
        %v792 = vld [vmem:[%s171 + $0x11a8] sm:$0xff]
        %v793 = vld [vmem:[%s171 + $0x11b0] sm:$0xff]
        %v794 = vld [vmem:[%s171 + $0x11b8] sm:$0xff]
        %v795 = vld [vmem:[%s171 + $0x11c0] sm:$0xff]
        %v796 = vld [vmem:[%s171 + $0x11c8] sm:$0xff]
        %v797 = vld [vmem:[%s171 + $0x11d0] sm:$0xff]
        %v798 = vld [vmem:[%s171 + $0x11d8] sm:$0xff]
        %v799 = vld [vmem:[%s171 + $0x11e0] sm:$0xff]
        %v800 = vld [vmem:[%s171 + $0x11e8] sm:$0xff]
        %v801 = vld [vmem:[%s171 + $0x11f0] sm:$0xff]
        %v802 = vld [vmem:[%s171 + $0x11f8] sm:$0xff]
        %v803 = vld [vmem:[%s171 + $0x1200] sm:$0xff]
        %v804 = vld [vmem:[%s171 + $0x1208] sm:$0xff]
        %v805 = vld [vmem:[%s171 + $0x1210] sm:$0xff]
        %v806 = vld [vmem:[%s171 + $0x1218] sm:$0xff]
        %v807 = vld [vmem:[%s171 + $0x1220] sm:$0xff]
        %v808 = vld [vmem:[%s171 + $0x1228] sm:$0xff]
        %v809 = vld [vmem:[%s171 + $0x1230] sm:$0xff]
        %v810 = vld [vmem:[%s171 + $0x1238] sm:$0xff]
        %v811 = vld [vmem:[%s171 + $0x1240] sm:$0xff]
        %v812 = vld [vmem:[%s171 + $0x1248] sm:$0xff]
        %v813 = vld [vmem:[%s171 + $0x1250] sm:$0xff]
        %v814 = vld [vmem:[%s171 + $0x1258] sm:$0xff]
        %v815 = vld [vmem:[%s171 + $0x1260] sm:$0xff]
        %v816 = vld [vmem:[%s171 + $0x1268] sm:$0xff]
        %v817 = vld [vmem:[%s171 + $0x1270] sm:$0xff]
        %v818 = vld [vmem:[%s171 + $0x1278] sm:$0xff]
        %v819 = vld [vmem:[%s171 + $0x1280] sm:$0xff]
        %v820 = vld [vmem:[%s171 + $0x1288] sm:$0xff]
        %v821 = vld [vmem:[%s171 + $0x1290] sm:$0xff]
        %v822 = vld [vmem:[%s171 + $0x1298] sm:$0xff]
        %v823 = vld [vmem:[%s171 + $0x12a0] sm:$0xff]
        %v824 = vld [vmem:[%s171 + $0x12a8] sm:$0xff]
        %v825 = vld [vmem:[%s171 + $0x12b0] sm:$0xff]
        %v826 = vld [vmem:[%s171 + $0x12b8] sm:$0xff]
        %v827 = vld [vmem:[%s171 + $0x12c0] sm:$0xff]
        %v828 = vld [vmem:[%s171 + $0x12c8] sm:$0xff]
        %v829 = vld [vmem:[%s171 + $0x12d0] sm:$0xff]
        %v830 = vld [vmem:[%s171 + $0x12d8] sm:$0xff]
        %v831 = vld [vmem:[%s171 + $0x12e0] sm:$0xff]
        %v832 = vld [vmem:[%s171 + $0x12e8] sm:$0xff]
        %v833 = vld [vmem:[%s171 + $0x12f0] sm:$0xff]
        %v834 = vld [vmem:[%s171 + $0x12f8] sm:$0xff]
        %v835 = vld [vmem:[%s171 + $0x1300] sm:$0xff]
        %v836 = vld [vmem:[%s171 + $0x1308] sm:$0xff]
        %v837 = vld [vmem:[%s171 + $0x1310] sm:$0xff]
        %v838 = vld [vmem:[%s171 + $0x1318] sm:$0xff]
        %v839 = vld [vmem:[%s171 + $0x1320] sm:$0xff]
        %v840 = vld [vmem:[%s171 + $0x1328] sm:$0xff]
        %v841 = vld [vmem:[%s171 + $0x1330] sm:$0xff]
        %v842 = vld [vmem:[%s171 + $0x1338] sm:$0xff]
        %v843 = vld [vmem:[%s171 + $0x1340] sm:$0xff]
        %v844 = vld [vmem:[%s171 + $0x1348] sm:$0xff]
        %v845 = vld [vmem:[%s171 + $0x1350] sm:$0xff]
        %v846 = vld [vmem:[%s171 + $0x1358] sm:$0xff]
        %v847 = vld [vmem:[%s171 + $0x1360] sm:$0xff]
        %v848 = vld [vmem:[%s171 + $0x1368] sm:$0xff]
        %v849 = vld [vmem:[%s171 + $0x1370] sm:$0xff]
        %v850 = vld [vmem:[%s171 + $0x1378] sm:$0xff]
        %v851 = vld [vmem:[%s171 + $0x1380] sm:$0xff]
        %v852 = vld [vmem:[%s171 + $0x1388] sm:$0xff]
        %v853 = vld [vmem:[%s171 + $0x1390] sm:$0xff]
        %v854 = vld [vmem:[%s171 + $0x1398] sm:$0xff]
        %v855 = vld [vmem:[%s171 + $0x13a0] sm:$0xff]
        %v856 = vld [vmem:[%s171 + $0x13a8] sm:$0xff]
        %v857 = vld [vmem:[%s171 + $0x13b0] sm:$0xff]
        %v858 = vld [vmem:[%s171 + $0x13b8] sm:$0xff]
        %v859 = vld [vmem:[%s171 + $0x13c0] sm:$0xff]
        %v860 = vld [vmem:[%s171 + $0x13c8] sm:$0xff]
        %v861 = vld [vmem:[%s171 + $0x13d0] sm:$0xff]
        %v862 = vld [vmem:[%s171 + $0x13d8] sm:$0xff]
        %v863 = vld [vmem:[%s171 + $0x13e0] sm:$0xff]
        %v864 = vld [vmem:[%s171 + $0x13e8] sm:$0xff]
        %v865 = vld [vmem:[%s171 + $0x13f0] sm:$0xff]
        %v866 = vld [vmem:[%s171 + $0x13f8] sm:$0xff]
        %v867 = vld [vmem:[%s171 + $0x1400] sm:$0xff]
        %v868 = vld [vmem:[%s171 + $0x1408] sm:$0xff]
        %v869 = vld [vmem:[%s171 + $0x1410] sm:$0xff]
        %v870 = vld [vmem:[%s171 + $0x1418] sm:$0xff]
        %v871 = vld [vmem:[%s171 + $0x1420] sm:$0xff]
        %v872 = vld [vmem:[%s171 + $0x1428] sm:$0xff]
        %v873 = vld [vmem:[%s171 + $0x1430] sm:$0xff]
        %v874 = vld [vmem:[%s171 + $0x1438] sm:$0xff]
        %v875 = vld [vmem:[%s171 + $0x1440] sm:$0xff]
        %v876 = vld [vmem:[%s171 + $0x1448] sm:$0xff]
        %v877 = vld [vmem:[%s171 + $0x1450] sm:$0xff]
        %v878 = vld [vmem:[%s171 + $0x1458] sm:$0xff]
        %v879 = vld [vmem:[%s171 + $0x1460] sm:$0xff]
        %v880 = vld [vmem:[%s171 + $0x1468] sm:$0xff]
        %v881 = vld [vmem:[%s171 + $0x1470] sm:$0xff]
        %v882 = vld [vmem:[%s171 + $0x1478] sm:$0xff]
        %v883 = vld [vmem:[%s171 + $0x1480] sm:$0xff]
        %v884 = vld [vmem:[%s171 + $0x1488] sm:$0xff]
        %v885 = vld [vmem:[%s171 + $0x1490] sm:$0xff]
        %v886 = vld [vmem:[%s171 + $0x1498] sm:$0xff]
        %v887 = vld [vmem:[%s171 + $0x14a0] sm:$0xff]
        %v888 = vld [vmem:[%s171 + $0x14a8] sm:$0xff]
        %v889 = vld [vmem:[%s171 + $0x14b0] sm:$0xff]
        %v890 = vld [vmem:[%s171 + $0x14b8] sm:$0xff]
        %v891 = vld [vmem:[%s171 + $0x14c0] sm:$0xff]
        %v892 = vld [vmem:[%s171 + $0x14c8] sm:$0xff]
        %v893 = vld [vmem:[%s171 + $0x14d0] sm:$0xff]
        %v894 = vld [vmem:[%s171 + $0x14d8] sm:$0xff]
        %v895 = vld [vmem:[%s171 + $0x14e0] sm:$0xff]
        %v896 = vld [vmem:[%s171 + $0x14e8] sm:$0xff]
        %v897 = vld [vmem:[%s171 + $0x14f0] sm:$0xff]
        %v898 = vld [vmem:[%s171 + $0x14f8] sm:$0xff]
        %v899 = vld [vmem:[%s171 + $0x1500] sm:$0xff]
        %v900 = vld [vmem:[%s171 + $0x1508] sm:$0xff]
        %v901 = vld [vmem:[%s171 + $0x1510] sm:$0xff]
        %v902 = vld [vmem:[%s171 + $0x1518] sm:$0xff]
        %v903 = vld [vmem:[%s171 + $0x1520] sm:$0xff]
        %v904 = vld [vmem:[%s171 + $0x1528] sm:$0xff]
        %v905 = vld [vmem:[%s171 + $0x1530] sm:$0xff]
        %v906 = vld [vmem:[%s171 + $0x1538] sm:$0xff]
        %v907 = vld [vmem:[%s171 + $0x1540] sm:$0xff]
        %v908 = vld [vmem:[%s171 + $0x1548] sm:$0xff]
        %v909 = vld [vmem:[%s171 + $0x1550] sm:$0xff]
        %v910 = vld [vmem:[%s171 + $0x1558] sm:$0xff]
        %v911 = vld [vmem:[%s171 + $0x1560] sm:$0xff]
        %v912 = vld [vmem:[%s171 + $0x1568] sm:$0xff]
        %v913 = vld [vmem:[%s171 + $0x1570] sm:$0xff]
        %v914 = vld [vmem:[%s171 + $0x1578] sm:$0xff]
        %v915 = vld [vmem:[%s171 + $0x1580] sm:$0xff]
        %v916 = vld [vmem:[%s171 + $0x1588] sm:$0xff]
        %v917 = vld [vmem:[%s171 + $0x1590] sm:$0xff]
        %v918 = vld [vmem:[%s171 + $0x1598] sm:$0xff]
        %v919 = vld [vmem:[%s171 + $0x15a0] sm:$0xff]
        %v920 = vld [vmem:[%s171 + $0x15a8] sm:$0xff]
        %v921 = vld [vmem:[%s171 + $0x15b0] sm:$0xff]
        %v922 = vld [vmem:[%s171 + $0x15b8] sm:$0xff]
        %v923 = vld [vmem:[%s171 + $0x15c0] sm:$0xff]
        %v924 = vld [vmem:[%s171 + $0x15c8] sm:$0xff]
        %v925 = vld [vmem:[%s171 + $0x15d0] sm:$0xff]
        %v926 = vld [vmem:[%s171 + $0x15d8] sm:$0xff]
        %v927 = vld [vmem:[%s171 + $0x15e0] sm:$0xff]
        %v928 = vld [vmem:[%s171 + $0x15e8] sm:$0xff]
        %v929 = vld [vmem:[%s171 + $0x15f0] sm:$0xff]
        %v930 = vld [vmem:[%s171 + $0x15f8] sm:$0xff]
        %v931 = vld [vmem:[%s171 + $0x1600] sm:$0xff]
        %v932 = vld [vmem:[%s171 + $0x1608] sm:$0xff]
        %v933 = vld [vmem:[%s171 + $0x1610] sm:$0xff]
        %v934 = vld [vmem:[%s171 + $0x1618] sm:$0xff]
        %v935 = vld [vmem:[%s171 + $0x1620] sm:$0xff]
        %v936 = vld [vmem:[%s171 + $0x1628] sm:$0xff]
        %v937 = vld [vmem:[%s171 + $0x1630] sm:$0xff]
        %v938 = vld [vmem:[%s171 + $0x1638] sm:$0xff]
        %v939 = vld [vmem:[%s171 + $0x1640] sm:$0xff]
        %v940 = vld [vmem:[%s171 + $0x1648] sm:$0xff]
        %v941 = vld [vmem:[%s171 + $0x1650] sm:$0xff]
        %v942 = vld [vmem:[%s171 + $0x1658] sm:$0xff]
        %v943 = vld [vmem:[%s171 + $0x1660] sm:$0xff]
        %v944 = vld [vmem:[%s171 + $0x1668] sm:$0xff]
        %v945 = vld [vmem:[%s171 + $0x1670] sm:$0xff]
        %v946 = vld [vmem:[%s171 + $0x1678] sm:$0xff]
        %v947 = vld [vmem:[%s171 + $0x1680] sm:$0xff]
        %v948 = vld [vmem:[%s171 + $0x1688] sm:$0xff]
        %v949 = vld [vmem:[%s171 + $0x1690] sm:$0xff]
        %v950 = vld [vmem:[%s171 + $0x1698] sm:$0xff]
        %v951 = vld [vmem:[%s171 + $0x16a0] sm:$0xff]
        %v952 = vld [vmem:[%s171 + $0x16a8] sm:$0xff]
        %v953 = vld [vmem:[%s171 + $0x16b0] sm:$0xff]
        %v954 = vld [vmem:[%s171 + $0x16b8] sm:$0xff]
        %v955 = vld [vmem:[%s171 + $0x16c0] sm:$0xff]
        %v956 = vld [vmem:[%s171 + $0x16c8] sm:$0xff]
        %v957 = vld [vmem:[%s171 + $0x16d0] sm:$0xff]
        %v958 = vld [vmem:[%s171 + $0x16d8] sm:$0xff]
        %v959 = vld [vmem:[%s171 + $0x16e0] sm:$0xff]
        %v960 = vld [vmem:[%s171 + $0x16e8] sm:$0xff]
        %v961 = vld [vmem:[%s171 + $0x16f0] sm:$0xff]
        %v962 = vld [vmem:[%s171 + $0x16f8] sm:$0xff]
        %v963 = vld [vmem:[%s171 + $0x1700] sm:$0xff]
        %v964 = vld [vmem:[%s171 + $0x1708] sm:$0xff]
        %v965 = vld [vmem:[%s171 + $0x1710] sm:$0xff]
        %v966 = vld [vmem:[%s171 + $0x1718] sm:$0xff]
        %v967 = vld [vmem:[%s171 + $0x1720] sm:$0xff]
        %v968 = vld [vmem:[%s171 + $0x1728] sm:$0xff]
        %v969 = vld [vmem:[%s171 + $0x1730] sm:$0xff]
        %v970 = vld [vmem:[%s171 + $0x1738] sm:$0xff]
        %v971 = vld [vmem:[%s171 + $0x1740] sm:$0xff]
        %v972 = vld [vmem:[%s171 + $0x1748] sm:$0xff]
        %v973 = vld [vmem:[%s171 + $0x1750] sm:$0xff]
        %v974 = vld [vmem:[%s171 + $0x1758] sm:$0xff]
        %v975 = vld [vmem:[%s171 + $0x1760] sm:$0xff]
        %v976 = vld [vmem:[%s171 + $0x1768] sm:$0xff]
        %v977 = vld [vmem:[%s171 + $0x1770] sm:$0xff]
        %v978 = vld [vmem:[%s171 + $0x1778] sm:$0xff]
        %v979 = vld [vmem:[%s171 + $0x1780] sm:$0xff]
        %v980 = vld [vmem:[%s171 + $0x1788] sm:$0xff]
        %v981 = vld [vmem:[%s171 + $0x1790] sm:$0xff]
        %v982 = vld [vmem:[%s171 + $0x1798] sm:$0xff]
        %v983 = vld [vmem:[%s171 + $0x17a0] sm:$0xff]
        %v984 = vld [vmem:[%s171 + $0x17a8] sm:$0xff]
        %v985 = vld [vmem:[%s171 + $0x17b0] sm:$0xff]
        %v986 = vld [vmem:[%s171 + $0x17b8] sm:$0xff]
        %v987 = vld [vmem:[%s171 + $0x17c0] sm:$0xff]
        %v988 = vld [vmem:[%s171 + $0x17c8] sm:$0xff]
        %v989 = vld [vmem:[%s171 + $0x17d0] sm:$0xff]
        %v990 = vld [vmem:[%s171 + $0x17d8] sm:$0xff]
        %v991 = vld [vmem:[%s171 + $0x17e0] sm:$0xff]
        %v992 = vld [vmem:[%s171 + $0x17e8] sm:$0xff]
        %v993 = vld [vmem:[%s171 + $0x17f0] sm:$0xff]
        %v994 = vld [vmem:[%s171 + $0x17f8] sm:$0xff]
        %v995 = vld [vmem:[%s171 + $0x1800] sm:$0xff]
        %v996 = vld [vmem:[%s171 + $0x1808] sm:$0xff]
        %v997 = vld [vmem:[%s171 + $0x1810] sm:$0xff]
        %v998 = vld [vmem:[%s171 + $0x1818] sm:$0xff]
        %v999 = vld [vmem:[%s171 + $0x1820] sm:$0xff]
        %v1000 = vld [vmem:[%s171 + $0x1828] sm:$0xff]
        %v1001 = vld [vmem:[%s171 + $0x1830] sm:$0xff]
        %v1002 = vld [vmem:[%s171 + $0x1838] sm:$0xff]
        %v1003 = vld [vmem:[%s171 + $0x1840] sm:$0xff]
        %v1004 = vld [vmem:[%s171 + $0x1848] sm:$0xff]
        %v1005 = vld [vmem:[%s171 + $0x1850] sm:$0xff]
        %v1006 = vld [vmem:[%s171 + $0x1858] sm:$0xff]
        %v1007 = vld [vmem:[%s171 + $0x1860] sm:$0xff]
        %v1008 = vld [vmem:[%s171 + $0x1868] sm:$0xff]
        %v1009 = vld [vmem:[%s171 + $0x1870] sm:$0xff]
        %v1010 = vld [vmem:[%s171 + $0x1878] sm:$0xff]
        %v1011 = vld [vmem:[%s171 + $0x1880] sm:$0xff]
        %v1012 = vld [vmem:[%s171 + $0x1888] sm:$0xff]
        %v1013 = vld [vmem:[%s171 + $0x1890] sm:$0xff]
        %v1014 = vld [vmem:[%s171 + $0x1898] sm:$0xff]
        %v1015 = vld [vmem:[%s171 + $0x18a0] sm:$0xff]
        %v1016 = vld [vmem:[%s171 + $0x18a8] sm:$0xff]
        %v1017 = vld [vmem:[%s171 + $0x18b0] sm:$0xff]
        %v1018 = vld [vmem:[%s171 + $0x18b8] sm:$0xff]
        %v1019 = vld [vmem:[%s171 + $0x18c0] sm:$0xff]
        %v1020 = vld [vmem:[%s171 + $0x18c8] sm:$0xff]
        %v1021 = vld [vmem:[%s171 + $0x18d0] sm:$0xff]
        %v1022 = vld [vmem:[%s171 + $0x18d8] sm:$0xff]
        %v1023 = vld [vmem:[%s171 + $0x18e0] sm:$0xff]
        %v1024 = vld [vmem:[%s171 + $0x18e8] sm:$0xff]
        %v1025 = vld [vmem:[%s171 + $0x18f0] sm:$0xff]
        %v1026 = vld [vmem:[%s171 + $0x18f8] sm:$0xff]
        %v1027 = vld [vmem:[%s171 + $0x1900] sm:$0xff]
        %v1028 = vld [vmem:[%s171 + $0x1908] sm:$0xff]
        %v1029 = vld [vmem:[%s171 + $0x1910] sm:$0xff]
        %v1030 = vld [vmem:[%s171 + $0x1918] sm:$0xff]
        %v1031 = vld [vmem:[%s171 + $0x1920] sm:$0xff]
        %v1032 = vld [vmem:[%s171 + $0x1928] sm:$0xff]
        %v1033 = vld [vmem:[%s171 + $0x1930] sm:$0xff]
        %v1034 = vld [vmem:[%s171 + $0x1938] sm:$0xff]
        %v1035 = vld [vmem:[%s171 + $0x1940] sm:$0xff]
        %v1036 = vld [vmem:[%s171 + $0x1948] sm:$0xff]
        %v1037 = vld [vmem:[%s171 + $0x1950] sm:$0xff]
        %v1038 = vld [vmem:[%s171 + $0x1958] sm:$0xff]
        %v1039 = vld [vmem:[%s171 + $0x1960] sm:$0xff]
        %v1040 = vld [vmem:[%s171 + $0x1968] sm:$0xff]
        %v1041 = vld [vmem:[%s171 + $0x1970] sm:$0xff]
        %v1042 = vld [vmem:[%s171 + $0x1978] sm:$0xff]
        %v1043 = vld [vmem:[%s171 + $0x1980] sm:$0xff]
        %v1044 = vld [vmem:[%s171 + $0x1988] sm:$0xff]
        %v1045 = vld [vmem:[%s171 + $0x1990] sm:$0xff]
        %v1046 = vld [vmem:[%s171 + $0x1998] sm:$0xff]
        %v1047 = vld [vmem:[%s171 + $0x19a0] sm:$0xff]
        %v1048 = vld [vmem:[%s171 + $0x19a8] sm:$0xff]
        %v1049 = vld [vmem:[%s171 + $0x19b0] sm:$0xff]
        %v1050 = vld [vmem:[%s171 + $0x19b8] sm:$0xff]
        %v1051 = vld [vmem:[%s171 + $0x19c0] sm:$0xff]
        %v1052 = vld [vmem:[%s171 + $0x19c8] sm:$0xff]
        %v1053 = vld [vmem:[%s171 + $0x19d0] sm:$0xff]
        %v1054 = vld [vmem:[%s171 + $0x19d8] sm:$0xff]
        %v1055 = vld [vmem:[%s171 + $0x19e0] sm:$0xff]
        %v1056 = vld [vmem:[%s171 + $0x19e8] sm:$0xff]
        %v1057 = vld [vmem:[%s171 + $0x19f0] sm:$0xff]
        %v1058 = vld [vmem:[%s171 + $0x19f8] sm:$0xff]
        %v1059 = vld [vmem:[%s171 + $0x1a00] sm:$0xff]
        %v1060 = vld [vmem:[%s171 + $0x1a08] sm:$0xff]
        %v1061 = vld [vmem:[%s171 + $0x1a10] sm:$0xff]
        %v1062 = vld [vmem:[%s171 + $0x1a18] sm:$0xff]
        %v1063 = vld [vmem:[%s171 + $0x1a20] sm:$0xff]
        %v1064 = vld [vmem:[%s171 + $0x1a28] sm:$0xff]
        %v1065 = vld [vmem:[%s171 + $0x1a30] sm:$0xff]
        %v1066 = vld [vmem:[%s171 + $0x1a38] sm:$0xff]
        %v1067 = vld [vmem:[%s171 + $0x1a40] sm:$0xff]
        %v1068 = vld [vmem:[%s171 + $0x1a48] sm:$0xff]
        %v1069 = vld [vmem:[%s171 + $0x1a50] sm:$0xff]
        %v1070 = vld [vmem:[%s171 + $0x1a58] sm:$0xff]
        %v1071 = vld [vmem:[%s171 + $0x1a60] sm:$0xff]
        %v1072 = vld [vmem:[%s171 + $0x1a68] sm:$0xff]
        %v1073 = vld [vmem:[%s171 + $0x1a70] sm:$0xff]
        %v1074 = vld [vmem:[%s171 + $0x1a78] sm:$0xff]
        %v1075 = vld [vmem:[%s171 + $0x1a80] sm:$0xff]
        %v1076 = vld [vmem:[%s171 + $0x1a88] sm:$0xff]
        %v1077 = vld [vmem:[%s171 + $0x1a90] sm:$0xff]
        %v1078 = vld [vmem:[%s171 + $0x1a98] sm:$0xff]
        %v1079 = vld [vmem:[%s171 + $0x1aa0] sm:$0xff]
        %v1080 = vld [vmem:[%s171 + $0x1aa8] sm:$0xff]
        %v1081 = vld [vmem:[%s171 + $0x1ab0] sm:$0xff]
        %v1082 = vld [vmem:[%s171 + $0x1ab8] sm:$0xff]
        %v1083 = vld [vmem:[%s171 + $0x1ac0] sm:$0xff]
        %v1084 = vld [vmem:[%s171 + $0x1ac8] sm:$0xff]
        %v1085 = vld [vmem:[%s171 + $0x1ad0] sm:$0xff]
        %v1086 = vld [vmem:[%s171 + $0x1ad8] sm:$0xff]
        %v1087 = vld [vmem:[%s171 + $0x1ae0] sm:$0xff]
        %v1088 = vld [vmem:[%s171 + $0x1ae8] sm:$0xff]
        %v1089 = vld [vmem:[%s171 + $0x1af0] sm:$0xff]
        %v1090 = vld [vmem:[%s171 + $0x1af8] sm:$0xff]
        %v1091 = vld [vmem:[%s171 + $0x1b00] sm:$0xff]
        %v1092 = vld [vmem:[%s171 + $0x1b08] sm:$0xff]
        %v1093 = vld [vmem:[%s171 + $0x1b10] sm:$0xff]
        %v1094 = vld [vmem:[%s171 + $0x1b18] sm:$0xff]
        %v1095 = vld [vmem:[%s171 + $0x1b20] sm:$0xff]
        %v1096 = vld [vmem:[%s171 + $0x1b28] sm:$0xff]
        %v1097 = vld [vmem:[%s171 + $0x1b30] sm:$0xff]
        %v1098 = vld [vmem:[%s171 + $0x1b38] sm:$0xff]
        %v1099 = vld [vmem:[%s171 + $0x1b40] sm:$0xff]
        %v1100 = vld [vmem:[%s171 + $0x1b48] sm:$0xff]
        %v1101 = vld [vmem:[%s171 + $0x1b50] sm:$0xff]
        %v1102 = vld [vmem:[%s171 + $0x1b58] sm:$0xff]
        %v1103 = vld [vmem:[%s171 + $0x1b60] sm:$0xff]
        %v1104 = vld [vmem:[%s171 + $0x1b68] sm:$0xff]
        %v1105 = vld [vmem:[%s171 + $0x1b70] sm:$0xff]
        %v1106 = vld [vmem:[%s171 + $0x1b78] sm:$0xff]
        %v1107 = vld [vmem:[%s171 + $0x1b80] sm:$0xff]
        %v1108 = vld [vmem:[%s171 + $0x1b88] sm:$0xff]
        %v1109 = vld [vmem:[%s171 + $0x1b90] sm:$0xff]
        %v1110 = vld [vmem:[%s171 + $0x1b98] sm:$0xff]
        %v1111 = vld [vmem:[%s171 + $0x1ba0] sm:$0xff]
        %v1112 = vld [vmem:[%s171 + $0x1ba8] sm:$0xff]
        %v1113 = vld [vmem:[%s171 + $0x1bb0] sm:$0xff]
        %v1114 = vld [vmem:[%s171 + $0x1bb8] sm:$0xff]
        %v1115 = vld [vmem:[%s171 + $0x1bc0] sm:$0xff]
        %v1116 = vld [vmem:[%s171 + $0x1bc8] sm:$0xff]
        %v1117 = vld [vmem:[%s171 + $0x1bd0] sm:$0xff]
        %v1118 = vld [vmem:[%s171 + $0x1bd8] sm:$0xff]
        %v1119 = vld [vmem:[%s171 + $0x1be0] sm:$0xff]
        %v1120 = vld [vmem:[%s171 + $0x1be8] sm:$0xff]
        %v1121 = vld [vmem:[%s171 + $0x1bf0] sm:$0xff]
        %v1122 = vld [vmem:[%s171 + $0x1bf8] sm:$0xff]
        %v1123 = vld [vmem:[%s171 + $0x1c00] sm:$0xff]
        %v1124 = vld [vmem:[%s171 + $0x1c08] sm:$0xff]
        %v1125 = vld [vmem:[%s171 + $0x1c10] sm:$0xff]
        %v1126 = vld [vmem:[%s171 + $0x1c18] sm:$0xff]
        %v1127 = vld [vmem:[%s171 + $0x1c20] sm:$0xff]
        %v1128 = vld [vmem:[%s171 + $0x1c28] sm:$0xff]
        %v1129 = vld [vmem:[%s171 + $0x1c30] sm:$0xff]
        %v1130 = vld [vmem:[%s171 + $0x1c38] sm:$0xff]
        %v1131 = vld [vmem:[%s171 + $0x1c40] sm:$0xff]
        %v1132 = vld [vmem:[%s171 + $0x1c48] sm:$0xff]
        %v1133 = vld [vmem:[%s171 + $0x1c50] sm:$0xff]
        %v1134 = vld [vmem:[%s171 + $0x1c58] sm:$0xff]
        %v1135 = vld [vmem:[%s171 + $0x1c60] sm:$0xff]
        %v1136 = vld [vmem:[%s171 + $0x1c68] sm:$0xff]
        %v1137 = vld [vmem:[%s171 + $0x1c70] sm:$0xff]
        %v1138 = vld [vmem:[%s171 + $0x1c78] sm:$0xff]
        %v1139 = vld [vmem:[%s171 + $0x1c80] sm:$0xff]
        %v1140 = vld [vmem:[%s171 + $0x1c88] sm:$0xff]
        %v1141 = vld [vmem:[%s171 + $0x1c90] sm:$0xff]
        %v1142 = vld [vmem:[%s171 + $0x1c98] sm:$0xff]
        %v1143 = vld [vmem:[%s171 + $0x1ca0] sm:$0xff]
        %v1144 = vld [vmem:[%s171 + $0x1ca8] sm:$0xff]
        %v1145 = vld [vmem:[%s171 + $0x1cb0] sm:$0xff]
        %v1146 = vld [vmem:[%s171 + $0x1cb8] sm:$0xff]
        %v1147 = vld [vmem:[%s171 + $0x1cc0] sm:$0xff]
        %v1148 = vld [vmem:[%s171 + $0x1cc8] sm:$0xff]
        %v1149 = vld [vmem:[%s171 + $0x1cd0] sm:$0xff]
        %v1150 = vld [vmem:[%s171 + $0x1cd8] sm:$0xff]
        %v1151 = vld [vmem:[%s171 + $0x1ce0] sm:$0xff]
        %v1152 = vld [vmem:[%s171 + $0x1ce8] sm:$0xff]
        %v1153 = vld [vmem:[%s171 + $0x1cf0] sm:$0xff]
        %v1154 = vld [vmem:[%s171 + $0x1cf8] sm:$0xff]
        %v1155 = vld [vmem:[%s171 + $0x1d00] sm:$0xff]
        %v1156 = vld [vmem:[%s171 + $0x1d08] sm:$0xff]
        %v1157 = vld [vmem:[%s171 + $0x1d10] sm:$0xff]
        %v1158 = vld [vmem:[%s171 + $0x1d18] sm:$0xff]
        %v1159 = vld [vmem:[%s171 + $0x1d20] sm:$0xff]
        %v1160 = vld [vmem:[%s171 + $0x1d28] sm:$0xff]
        %v1161 = vld [vmem:[%s171 + $0x1d30] sm:$0xff]
        %v1162 = vld [vmem:[%s171 + $0x1d38] sm:$0xff]
        %v1163 = vld [vmem:[%s171 + $0x1d40] sm:$0xff]
        %v1164 = vld [vmem:[%s171 + $0x1d48] sm:$0xff]
        %v1165 = vld [vmem:[%s171 + $0x1d50] sm:$0xff]
        %v1166 = vld [vmem:[%s171 + $0x1d58] sm:$0xff]
        %v1167 = vld [vmem:[%s171 + $0x1d60] sm:$0xff]
        %v1168 = vld [vmem:[%s171 + $0x1d68] sm:$0xff]
        %v1169 = vld [vmem:[%s171 + $0x1d70] sm:$0xff]
        %v1170 = vld [vmem:[%s171 + $0x1d78] sm:$0xff]
        %v1171 = vld [vmem:[%s171 + $0x1d80] sm:$0xff]
        %v1172 = vld [vmem:[%s171 + $0x1d88] sm:$0xff]
        %v1173 = vld [vmem:[%s171 + $0x1d90] sm:$0xff]
        %v1174 = vld [vmem:[%s171 + $0x1d98] sm:$0xff]
        %v1175 = vld [vmem:[%s171 + $0x1da0] sm:$0xff]
        %v1176 = vld [vmem:[%s171 + $0x1da8] sm:$0xff]
        %v1177 = vld [vmem:[%s171 + $0x1db0] sm:$0xff]
        %v1178 = vld [vmem:[%s171 + $0x1db8] sm:$0xff]
        %v1179 = vld [vmem:[%s171 + $0x1dc0] sm:$0xff]
        %v1180 = vld [vmem:[%s171 + $0x1dc8] sm:$0xff]
        %v1181 = vld [vmem:[%s171 + $0x1dd0] sm:$0xff]
        %v1182 = vld [vmem:[%s171 + $0x1dd8] sm:$0xff]
        %v1183 = vld [vmem:[%s171 + $0x1de0] sm:$0xff]
        %v1184 = vld [vmem:[%s171 + $0x1de8] sm:$0xff]
        %v1185 = vld [vmem:[%s171 + $0x1df0] sm:$0xff]
        %v1186 = vld [vmem:[%s171 + $0x1df8] sm:$0xff]
        %v1187 = vld [vmem:[%s171 + $0x1e00] sm:$0xff]
        %v1188 = vld [vmem:[%s171 + $0x1e08] sm:$0xff]
        %v1189 = vld [vmem:[%s171 + $0x1e10] sm:$0xff]
        %v1190 = vld [vmem:[%s171 + $0x1e18] sm:$0xff]
        %v1191 = vld [vmem:[%s171 + $0x1e20] sm:$0xff]
        %v1192 = vld [vmem:[%s171 + $0x1e28] sm:$0xff]
        %v1193 = vld [vmem:[%s171 + $0x1e30] sm:$0xff]
        %v1194 = vld [vmem:[%s171 + $0x1e38] sm:$0xff]
        %v1195 = vld [vmem:[%s171 + $0x1e40] sm:$0xff]
        %v1196 = vld [vmem:[%s171 + $0x1e48] sm:$0xff]
        %v1197 = vld [vmem:[%s171 + $0x1e50] sm:$0xff]
        %v1198 = vld [vmem:[%s171 + $0x1e58] sm:$0xff]
        %v1199 = vld [vmem:[%s171 + $0x1e60] sm:$0xff]
        %v1200 = vld [vmem:[%s171 + $0x1e68] sm:$0xff]
        %v1201 = vld [vmem:[%s171 + $0x1e70] sm:$0xff]
        %v1202 = vld [vmem:[%s171 + $0x1e78] sm:$0xff]
        %v1203 = vld [vmem:[%s171 + $0x1e80] sm:$0xff]
        %v1204 = vld [vmem:[%s171 + $0x1e88] sm:$0xff]
        %v1205 = vld [vmem:[%s171 + $0x1e90] sm:$0xff]
        %v1206 = vld [vmem:[%s171 + $0x1e98] sm:$0xff]
        %v1207 = vld [vmem:[%s171 + $0x1ea0] sm:$0xff]
        %v1208 = vld [vmem:[%s171 + $0x1ea8] sm:$0xff]
        %v1209 = vld [vmem:[%s171 + $0x1eb0] sm:$0xff]
        %v1210 = vld [vmem:[%s171 + $0x1eb8] sm:$0xff]
        %v1211 = vld [vmem:[%s171 + $0x1ec0] sm:$0xff]
        %v1212 = vld [vmem:[%s171 + $0x1ec8] sm:$0xff]
        %v1213 = vld [vmem:[%s171 + $0x1ed0] sm:$0xff]
        %v1214 = vld [vmem:[%s171 + $0x1ed8] sm:$0xff]
        %v1215 = vld [vmem:[%s171 + $0x1ee0] sm:$0xff]
        %v1216 = vld [vmem:[%s171 + $0x1ee8] sm:$0xff]
        %v1217 = vld [vmem:[%s171 + $0x1ef0] sm:$0xff]
        %v1218 = vld [vmem:[%s171 + $0x1ef8] sm:$0xff]
        %v1219 = vld [vmem:[%s171 + $0x1f00] sm:$0xff]
        %v1220 = vld [vmem:[%s171 + $0x1f08] sm:$0xff]
        %v1221 = vld [vmem:[%s171 + $0x1f10] sm:$0xff]
        %v1222 = vld [vmem:[%s171 + $0x1f18] sm:$0xff]
        %v1223 = vld [vmem:[%s171 + $0x1f20] sm:$0xff]
        %v1224 = vld [vmem:[%s171 + $0x1f28] sm:$0xff]
        %v1225 = vld [vmem:[%s171 + $0x1f30] sm:$0xff]
        %v1226 = vld [vmem:[%s171 + $0x1f38] sm:$0xff]
        %v1227 = vld [vmem:[%s171 + $0x1f40] sm:$0xff]
        %v1228 = vld [vmem:[%s171 + $0x1f48] sm:$0xff]
        %v1229 = vld [vmem:[%s171 + $0x1f50] sm:$0xff]
        %v1230 = vld [vmem:[%s171 + $0x1f58] sm:$0xff]
        %v1231 = vld [vmem:[%s171 + $0x1f60] sm:$0xff]
        %v1232 = vld [vmem:[%s171 + $0x1f68] sm:$0xff]
        %v1233 = vld [vmem:[%s171 + $0x1f70] sm:$0xff]
        %v1234 = vld [vmem:[%s171 + $0x1f78] sm:$0xff]
        %v1235 = vld [vmem:[%s171 + $0x1f80] sm:$0xff]
        %v1236 = vld [vmem:[%s171 + $0x1f88] sm:$0xff]
        %v1237 = vld [vmem:[%s171 + $0x1f90] sm:$0xff]
        %v1238 = vld [vmem:[%s171 + $0x1f98] sm:$0xff]
        %v1239 = vld [vmem:[%s171 + $0x1fa0] sm:$0xff]
        %v1240 = vld [vmem:[%s171 + $0x1fa8] sm:$0xff]
        %v1241 = vld [vmem:[%s171 + $0x1fb0] sm:$0xff]
        %v1242 = vld [vmem:[%s171 + $0x1fb8] sm:$0xff]
        %v1243 = vld [vmem:[%s171 + $0x1fc0] sm:$0xff]
        %v1244 = vld [vmem:[%s171 + $0x1fc8] sm:$0xff]
        %v1245 = vld [vmem:[%s171 + $0x1fd0] sm:$0xff]
        %v1246 = vld [vmem:[%s171 + $0x1fd8] sm:$0xff]
        %v1247 = vld [vmem:[%s171 + $0x1fe0] sm:$0xff]
        %v1248 = vld [vmem:[%s171 + $0x1fe8] sm:$0xff]
        %v1249 = vld [vmem:[%s171 + $0x1ff0] sm:$0xff]
        %v1250 = vld [vmem:[%s171 + $0x1ff8] sm:$0xff]
        %v1251 = vld [vmem:[%s171 + $0x2000] sm:$0xff]
        %v1252 = vld [vmem:[%s171 + $0x2008] sm:$0xff]
        %v1253 = vld [vmem:[%s171 + $0x2010] sm:$0xff]
        %v1254 = vld [vmem:[%s171 + $0x2018] sm:$0xff]
        %v1255 = vld [vmem:[%s171 + $0x2020] sm:$0xff]
        %v1256 = vld [vmem:[%s171 + $0x2028] sm:$0xff]
        %v1257 = vld [vmem:[%s171 + $0x2030] sm:$0xff]
        %v1258 = vld [vmem:[%s171 + $0x2038] sm:$0xff]
        %v1259 = vld [vmem:[%s171 + $0x2040] sm:$0xff]
        %v1260 = vld [vmem:[%s171 + $0x2048] sm:$0xff]
        %v1261 = vld [vmem:[%s171 + $0x2050] sm:$0xff]
        %v1262 = vld [vmem:[%s171 + $0x2058] sm:$0xff]
        %v1263 = vld [vmem:[%s171 + $0x2060] sm:$0xff]
        %v1264 = vld [vmem:[%s171 + $0x2068] sm:$0xff]
        %v1265 = vld [vmem:[%s171 + $0x2070] sm:$0xff]
        %v1266 = vld [vmem:[%s171 + $0x2078] sm:$0xff]
        %v1267 = vld [vmem:[%s171 + $0x2080] sm:$0xff]
        %v1268 = vld [vmem:[%s171 + $0x2088] sm:$0xff]
        %v1269 = vld [vmem:[%s171 + $0x2090] sm:$0xff]
        %v1270 = vld [vmem:[%s171 + $0x2098] sm:$0xff]
        %v1271 = vld [vmem:[%s171 + $0x20a0] sm:$0xff]
        %v1272 = vld [vmem:[%s171 + $0x20a8] sm:$0xff]
        %v1273 = vld [vmem:[%s171 + $0x20b0] sm:$0xff]
        %v1274 = vld [vmem:[%s171 + $0x20b8] sm:$0xff]
        %v1275 = vld [vmem:[%s171 + $0x20c0] sm:$0xff]
        %v1276 = vld [vmem:[%s171 + $0x20c8] sm:$0xff]
        %v1277 = vld [vmem:[%s171 + $0x20d0] sm:$0xff]
        %v1278 = vld [vmem:[%s171 + $0x20d8] sm:$0xff]
        %v1279 = vld [vmem:[%s171 + $0x20e0] sm:$0xff]
        %v1280 = vld [vmem:[%s171 + $0x20e8] sm:$0xff]
        %v1281 = vld [vmem:[%s171 + $0x20f0] sm:$0xff]
        %v1282 = vld [vmem:[%s171 + $0x20f8] sm:$0xff]
        %v1283 = vld [vmem:[%s171 + $0x2100] sm:$0xff]
        %v1284 = vld [vmem:[%s171 + $0x2108] sm:$0xff]
        %v1285 = vld [vmem:[%s171 + $0x2110] sm:$0xff]
        %v1286 = vld [vmem:[%s171 + $0x2118] sm:$0xff]
        %v1287 = vld [vmem:[%s171 + $0x2120] sm:$0xff]
        %v1288 = vld [vmem:[%s171 + $0x2128] sm:$0xff]
        %v1289 = vld [vmem:[%s171 + $0x2130] sm:$0xff]
        %v1290 = vld [vmem:[%s171 + $0x2138] sm:$0xff]
        %v1291 = vld [vmem:[%s171 + $0x2140] sm:$0xff]
        %v1292 = vld [vmem:[%s171 + $0x2148] sm:$0xff]
        %v1293 = vld [vmem:[%s171 + $0x2150] sm:$0xff]
        %v1294 = vld [vmem:[%s171 + $0x2158] sm:$0xff]
        %v1295 = vld [vmem:[%s171 + $0x2160] sm:$0xff]
        %v1296 = vld [vmem:[%s171 + $0x2168] sm:$0xff]
        %v1297 = vld [vmem:[%s171 + $0x2170] sm:$0xff]
        %v1298 = vld [vmem:[%s171 + $0x2178] sm:$0xff]
        %v1299 = vld [vmem:[%s171 + $0x2180] sm:$0xff]
        %v1300 = vld [vmem:[%s171 + $0x2188] sm:$0xff]
        %v1301 = vld [vmem:[%s171 + $0x2190] sm:$0xff]
        %v1302 = vld [vmem:[%s171 + $0x2198] sm:$0xff]
        %v1303 = vld [vmem:[%s171 + $0x21a0] sm:$0xff]
        %v1304 = vld [vmem:[%s171 + $0x21a8] sm:$0xff]
        %v1305 = vld [vmem:[%s171 + $0x21b0] sm:$0xff]
        %v1306 = vld [vmem:[%s171 + $0x21b8] sm:$0xff]
        %v1307 = vld [vmem:[%s171 + $0x21c0] sm:$0xff]
        %v1308 = vld [vmem:[%s171 + $0x21c8] sm:$0xff]
        %v1309 = vld [vmem:[%s171 + $0x21d0] sm:$0xff]
        %v1310 = vld [vmem:[%s171 + $0x21d8] sm:$0xff]
        %v1311 = vld [vmem:[%s171 + $0x21e0] sm:$0xff]
        %v1312 = vld [vmem:[%s171 + $0x21e8] sm:$0xff]
        %v1313 = vld [vmem:[%s171 + $0x21f0] sm:$0xff]
        %v1314 = vld [vmem:[%s171 + $0x21f8] sm:$0xff]
        %v1315 = vld [vmem:[%s171 + $0x2200] sm:$0xff]
        %v1316 = vld [vmem:[%s171 + $0x2208] sm:$0xff]
        %v1317 = vld [vmem:[%s171 + $0x2210] sm:$0xff]
        %v1318 = vld [vmem:[%s171 + $0x2218] sm:$0xff]
        %v1319 = vld [vmem:[%s171 + $0x2220] sm:$0xff]
        %v1320 = vld [vmem:[%s171 + $0x2228] sm:$0xff]
        %v1321 = vld [vmem:[%s171 + $0x2230] sm:$0xff]
        %v1322 = vld [vmem:[%s171 + $0x2238] sm:$0xff]
        %v1323 = vld [vmem:[%s171 + $0x2240] sm:$0xff]
        %v1324 = vld [vmem:[%s171 + $0x2248] sm:$0xff]
        %v1325 = vld [vmem:[%s171 + $0x2250] sm:$0xff]
        %v1326 = vld [vmem:[%s171 + $0x2258] sm:$0xff]
        %v1327 = vld [vmem:[%s171 + $0x2260] sm:$0xff]
        %v1328 = vld [vmem:[%s171 + $0x2268] sm:$0xff]
        %v1329 = vld [vmem:[%s171 + $0x2270] sm:$0xff]
        %v1330 = vld [vmem:[%s171 + $0x2278] sm:$0xff]
        %v1331 = vld [vmem:[%s171 + $0x2280] sm:$0xff]
        %v1332 = vld [vmem:[%s171 + $0x2288] sm:$0xff]
        %v1333 = vld [vmem:[%s171 + $0x2290] sm:$0xff]
        %v1334 = vld [vmem:[%s171 + $0x2298] sm:$0xff]
        %v1335 = vld [vmem:[%s171 + $0x22a0] sm:$0xff]
        %v1336 = vld [vmem:[%s171 + $0x22a8] sm:$0xff]
        %v1337 = vld [vmem:[%s171 + $0x22b0] sm:$0xff]
        %v1338 = vld [vmem:[%s171 + $0x22b8] sm:$0xff]
        %v1339 = vld [vmem:[%s171 + $0x22c0] sm:$0xff]
        %v1340 = vld [vmem:[%s171 + $0x22c8] sm:$0xff]
        %v1341 = vld [vmem:[%s171 + $0x22d0] sm:$0xff]
        %v1342 = vld [vmem:[%s171 + $0x22d8] sm:$0xff]
        %v1343 = vld [vmem:[%s171 + $0x22e0] sm:$0xff]
        %v1344 = vld [vmem:[%s171 + $0x22e8] sm:$0xff]
        %v1345 = vld [vmem:[%s171 + $0x22f0] sm:$0xff]
        %v1346 = vld [vmem:[%s171 + $0x22f8] sm:$0xff]
        %v1347 = vld [vmem:[%s171 + $0x2300] sm:$0xff]
        %v1348 = vld [vmem:[%s171 + $0x2308] sm:$0xff]
        %v1349 = vld [vmem:[%s171 + $0x2310] sm:$0xff]
        %v1350 = vld [vmem:[%s171 + $0x2318] sm:$0xff]
        %v1351 = vld [vmem:[%s171 + $0x2320] sm:$0xff]
        %v1352 = vld [vmem:[%s171 + $0x2328] sm:$0xff]
        %v1353 = vld [vmem:[%s171 + $0x2330] sm:$0xff]
        %v1354 = vld [vmem:[%s171 + $0x2338] sm:$0xff]
        %v1355 = vld [vmem:[%s171 + $0x2340] sm:$0xff]
        %v1356 = vld [vmem:[%s171 + $0x2348] sm:$0xff]
        %v1357 = vld [vmem:[%s171 + $0x2350] sm:$0xff]
        %v1358 = vld [vmem:[%s171 + $0x2358] sm:$0xff]
        %v1359 = vld [vmem:[%s171 + $0x2360] sm:$0xff]
        %v1360 = vld [vmem:[%s171 + $0x2368] sm:$0xff]
        %v1361 = vld [vmem:[%s171 + $0x2370] sm:$0xff]
        %v1362 = vld [vmem:[%s171 + $0x2378] sm:$0xff]
        %v1363 = vld [vmem:[%s171 + $0x2380] sm:$0xff]
        %v1364 = vld [vmem:[%s171 + $0x2388] sm:$0xff]
        %v1365 = vld [vmem:[%s171 + $0x2390] sm:$0xff]
        %v1366 = vld [vmem:[%s171 + $0x2398] sm:$0xff]
        %v1367 = vld [vmem:[%s171 + $0x23a0] sm:$0xff]
        %v1368 = vld [vmem:[%s171 + $0x23a8] sm:$0xff]
        %v1369 = vld [vmem:[%s171 + $0x23b0] sm:$0xff]
        %v1370 = vld [vmem:[%s171 + $0x23b8] sm:$0xff]
        %v1371 = vld [vmem:[%s171 + $0x23c0] sm:$0xff]
        %v1372 = vld [vmem:[%s171 + $0x23c8] sm:$0xff]
        %v1373 = vld [vmem:[%s171 + $0x23d0] sm:$0xff]
        %v1374 = vld [vmem:[%s171 + $0x23d8] sm:$0xff]
        %v1375 = vld [vmem:[%s171 + $0x23e0] sm:$0xff]
        %v1376 = vld [vmem:[%s171 + $0x23e8] sm:$0xff]
        %v1377 = vld [vmem:[%s171 + $0x23f0] sm:$0xff]
        %v1378 = vld [vmem:[%s171 + $0x23f8] sm:$0xff]
        %v1379 = vld [vmem:[%s171 + $0x2400] sm:$0xff]
        %v1380 = vld [vmem:[%s171 + $0x2408] sm:$0xff]
        %v1381 = vld [vmem:[%s171 + $0x2410] sm:$0xff]
        %v1382 = vld [vmem:[%s171 + $0x2418] sm:$0xff]
        %v1383 = vld [vmem:[%s171 + $0x2420] sm:$0xff]
        %v1384 = vld [vmem:[%s171 + $0x2428] sm:$0xff]
        %v1385 = vld [vmem:[%s171 + $0x2430] sm:$0xff]
        %v1386 = vld [vmem:[%s171 + $0x2438] sm:$0xff]
        %v1387 = vld [vmem:[%s171 + $0x2440] sm:$0xff]
        %v1388 = vld [vmem:[%s171 + $0x2448] sm:$0xff]
        %v1389 = vld [vmem:[%s171 + $0x2450] sm:$0xff]
        %v1390 = vld [vmem:[%s171 + $0x2458] sm:$0xff]
        %v1391 = vld [vmem:[%s171 + $0x2460] sm:$0xff]
        %v1392 = vld [vmem:[%s171 + $0x2468] sm:$0xff]
        %v1393 = vld [vmem:[%s171 + $0x2470] sm:$0xff]
        %v1394 = vld [vmem:[%s171 + $0x2478] sm:$0xff]
        %v1395 = vld [vmem:[%s171 + $0x2480] sm:$0xff]
        %v1396 = vld [vmem:[%s171 + $0x2488] sm:$0xff]
        %v1397 = vld [vmem:[%s171 + $0x2490] sm:$0xff]
        %v1398 = vld [vmem:[%s171 + $0x2498] sm:$0xff]
        %v1399 = vld [vmem:[%s171 + $0x24a0] sm:$0xff]
        %v1400 = vld [vmem:[%s171 + $0x24a8] sm:$0xff]
        %v1401 = vld [vmem:[%s171 + $0x24b0] sm:$0xff]
        %v1402 = vld [vmem:[%s171 + $0x24b8] sm:$0xff]
        %v1403 = vld [vmem:[%s171 + $0x24c0] sm:$0xff]
        %v1404 = vld [vmem:[%s171 + $0x24c8] sm:$0xff]
        %v1405 = vld [vmem:[%s171 + $0x24d0] sm:$0xff]
        %v1406 = vld [vmem:[%s171 + $0x24d8] sm:$0xff]
        %v1407 = vld [vmem:[%s171 + $0x24e0] sm:$0xff]
        %v1408 = vld [vmem:[%s171 + $0x24e8] sm:$0xff]
        %v1409 = vld [vmem:[%s171 + $0x24f0] sm:$0xff]
        %v1410 = vld [vmem:[%s171 + $0x24f8] sm:$0xff]
        %v1413 = vunpack.c.l.s4 1983009808
        %v1414 = vunpack.c.0.s8 %v1413
        %v1415 = vlaneseq
        %v1416 = vshrl.u32 %v1415, 7
        %v1417 = vsub.s32 %v1414, %v1416
        %v1418 = vrot.slane %v226, %v1417
        %v1419 = vcombine.high %v1418, %v1418
        %1422 = vmatprep.subr.mxu0 %v783
        %1423 = vmatpush1.msra.mxu0 %v782
        %1424 = vmatprep.subr.mxu0 %v746
        %1425 = vmatpush1.msra.mxu0 %v745
        %1426 = vmatprep.subr.mxu0 %v709
        %1427 = vmatpush1.msra.mxu0 %v708
        %1428 = vmatprep.subr.mxu0 %v672
        %1429 = vmatpush1.msra.mxu0 %v671
        %1430 = vmatprep.subr.mxu0 %v635
        %1431 = vmatpush1.msra.mxu0 %v634
        %1432 = vmatprep.subr.mxu0 %v598
        %1433 = vmatpush1.msra.mxu0 %v597
        %1434 = vmatprep.subr.mxu0 %v561
        %1435 = vmatpush1.msra.mxu0 %v560
        %1436 = vmatprep.subr.mxu0 %v524
        %1437 = vmatpush1.msra.mxu0 %v523
        %1438 = vmatprep.subr.mxu0 %v487
        %1439 = vmatpush1.msra.mxu0 %v486
        %1440 = vmatprep.subr.mxu0 %v450
        %1441 = vmatpush1.msra.mxu0 %v449
        %1442 = vmatprep.subr.mxu0 %v413
        %1443 = vmatpush1.msra.mxu0 %v412
        %1444 = vmatprep.subr.mxu0 %v376
        %1445 = vmatpush1.msra.mxu0 %v375
        %1446 = vmatprep.subr.mxu0 %v339
        %1447 = vmatpush1.msra.mxu0 %v338
        %1448 = vmatprep.subr.mxu0 %v302
        %1449 = vmatpush1.msra.mxu0 %v301
        %1450 = vmatprep.subr.mxu0 %v265
        %1451 = vmatpush1.msra.mxu0 %v264
        %1452 = vmatprep.subr.mxu0 %v228
        %1453 = vmatpush1.msra.mxu0 %v227
        %1454 = vmatprep.subr.mxu0 %v1375
        %1455 = vmatpush2.msra.mxu0 %v1374
        %1456 = vmatprep.subr.mxu0 %v1338
        %1457 = vmatpush2.msra.mxu0 %v1337
        %1458 = vmatprep.subr.mxu0 %v1301
        %1459 = vmatpush2.msra.mxu0 %v1300
        %1460 = vmatprep.subr.mxu0 %v1264
        %1461 = vmatpush2.msra.mxu0 %v1263
        %1462 = vmatprep.subr.mxu0 %v1227
        %1463 = vmatpush2.msra.mxu0 %v1226
        %1464 = vmatprep.subr.mxu0 %v1190
        %1465 = vmatpush2.msra.mxu0 %v1189
        %1466 = vmatprep.subr.mxu0 %v1153
        %1467 = vmatpush2.msra.mxu0 %v1152
        %1468 = vmatprep.subr.mxu0 %v1116
        %1469 = vmatpush2.msra.mxu0 %v1115
        %1470 = vmatprep.subr.mxu0 %v1079
        %1471 = vmatpush2.msra.mxu0 %v1078
        %1472 = vmatprep.subr.mxu0 %v1042
        %1473 = vmatpush2.msra.mxu0 %v1041
        %1474 = vmatprep.subr.mxu0 %v1005
        %1475 = vmatpush2.msra.mxu0 %v1004
        %1476 = vmatprep.subr.mxu0 %v968
        %1477 = vmatpush2.msra.mxu0 %v967
        %1478 = vmatprep.subr.mxu0 %v931
        %1479 = vmatpush2.msra.mxu0 %v930
        %1480 = vmatprep.subr.mxu0 %v894
        %1481 = vmatpush2.msra.mxu0 %v893
        %1482 = vmatprep.subr.mxu0 %v857
        %1483 = vmatpush2.msra.mxu0 %v856
        %1484 = vmatprep.subr.mxu0 %v820
        %1485 = vmatpush2.msra.mxu0 %v819
        %1486 = vmatprep.mubr.f32.mxu0 %v1419
        %1487 = vmatmul.mubr.f32.gmra.mxu0 %v1418
        %v1488 = vpop.f32.mrf.mxu0
        %v1489 = vadd.f32 0.0, %v1488
        %v1490 = vpop.f32.mrf.mxu0
        %v1491 = vadd.f32 0.0, %v1490
        %1492 = vdwg.mxu0
        %1493 = vmatprep.subr.mxu0 %v785
        %1494 = vmatpush1.msra.mxu0 %v784
        %1495 = vmatprep.subr.mxu0 %v748
        %1496 = vmatpush1.msra.mxu0 %v747
        %1497 = vmatprep.subr.mxu0 %v711
        %1498 = vmatpush1.msra.mxu0 %v710
        %1499 = vmatprep.subr.mxu0 %v674
        %1500 = vmatpush1.msra.mxu0 %v673
        %1501 = vmatprep.subr.mxu0 %v637
        %1502 = vmatpush1.msra.mxu0 %v636
        %1503 = vmatprep.subr.mxu0 %v600
        %1504 = vmatpush1.msra.mxu0 %v599
        %1505 = vmatprep.subr.mxu0 %v563
        %1506 = vmatpush1.msra.mxu0 %v562
        %1507 = vmatprep.subr.mxu0 %v526
        %1508 = vmatpush1.msra.mxu0 %v525
        %1509 = vmatprep.subr.mxu0 %v489
        %1510 = vmatpush1.msra.mxu0 %v488
        %1511 = vmatprep.subr.mxu0 %v452
        %1512 = vmatpush1.msra.mxu0 %v451
        %1513 = vmatprep.subr.mxu0 %v415
        %1514 = vmatpush1.msra.mxu0 %v414
        %1515 = vmatprep.subr.mxu0 %v378
        %1516 = vmatpush1.msra.mxu0 %v377
        %1517 = vmatprep.subr.mxu0 %v341
        %1518 = vmatpush1.msra.mxu0 %v340
        %1519 = vmatprep.subr.mxu0 %v304
        %1520 = vmatpush1.msra.mxu0 %v303
        %1521 = vmatprep.subr.mxu0 %v267
        %1522 = vmatpush1.msra.mxu0 %v266
        %1523 = vmatprep.subr.mxu0 %v230
        %1524 = vmatpush1.msra.mxu0 %v229
        %1525 = vmatprep.subr.mxu0 %v1377
        %1526 = vmatpush2.msra.mxu0 %v1376
        %1527 = vmatprep.subr.mxu0 %v1340
        %1528 = vmatpush2.msra.mxu0 %v1339
        %1529 = vmatprep.subr.mxu0 %v1303
        %1530 = vmatpush2.msra.mxu0 %v1302
        %1531 = vmatprep.subr.mxu0 %v1266
        %1532 = vmatpush2.msra.mxu0 %v1265
        %1533 = vmatprep.subr.mxu0 %v1229
        %1534 = vmatpush2.msra.mxu0 %v1228
        %1535 = vmatprep.subr.mxu0 %v1192
        %1536 = vmatpush2.msra.mxu0 %v1191
        %1537 = vmatprep.subr.mxu0 %v1155
        %1538 = vmatpush2.msra.mxu0 %v1154
        %1539 = vmatprep.subr.mxu0 %v1118
        %1540 = vmatpush2.msra.mxu0 %v1117
        %1541 = vmatprep.subr.mxu0 %v1081
        %1542 = vmatpush2.msra.mxu0 %v1080
        %1543 = vmatprep.subr.mxu0 %v1044
        %1544 = vmatpush2.msra.mxu0 %v1043
        %1545 = vmatprep.subr.mxu0 %v1007
        %1546 = vmatpush2.msra.mxu0 %v1006
        %1547 = vmatprep.subr.mxu0 %v970
        %1548 = vmatpush2.msra.mxu0 %v969
        %1549 = vmatprep.subr.mxu0 %v933
        %1550 = vmatpush2.msra.mxu0 %v932
        %1551 = vmatprep.subr.mxu0 %v896
        %1552 = vmatpush2.msra.mxu0 %v895
        %1553 = vmatprep.subr.mxu0 %v859
        %1554 = vmatpush2.msra.mxu0 %v858
        %1555 = vmatprep.subr.mxu0 %v822
        %1556 = vmatpush2.msra.mxu0 %v821
        %1557 = vmatprep.mubr.f32.mxu0 %v1419
        %1558 = vmatmul.mubr.f32.gmra.mxu0 %v1418
        %v1559 = vpop.f32.mrf.mxu0
        %v1560 = vadd.f32 0.0, %v1559
        %v1561 = vpop.f32.mrf.mxu0
        %v1562 = vadd.f32 0.0, %v1561
        %1563 = vdwg.mxu0
        %1564 = vmatprep.subr.mxu0 %v787
        %1565 = vmatpush1.msra.mxu0 %v786
        %1566 = vmatprep.subr.mxu0 %v750
        %1567 = vmatpush1.msra.mxu0 %v749
        %1568 = vmatprep.subr.mxu0 %v713
        %1569 = vmatpush1.msra.mxu0 %v712
        %1570 = vmatprep.subr.mxu0 %v676
        %1571 = vmatpush1.msra.mxu0 %v675
        %1572 = vmatprep.subr.mxu0 %v639
        %1573 = vmatpush1.msra.mxu0 %v638
        %1574 = vmatprep.subr.mxu0 %v602
        %1575 = vmatpush1.msra.mxu0 %v601
        %1576 = vmatprep.subr.mxu0 %v565
        %1577 = vmatpush1.msra.mxu0 %v564
        %1578 = vmatprep.subr.mxu0 %v528
        %1579 = vmatpush1.msra.mxu0 %v527
        %1580 = vmatprep.subr.mxu0 %v491
        %1581 = vmatpush1.msra.mxu0 %v490
        %1582 = vmatprep.subr.mxu0 %v454
        %1583 = vmatpush1.msra.mxu0 %v453
        %1584 = vmatprep.subr.mxu0 %v417
        %1585 = vmatpush1.msra.mxu0 %v416
        %1586 = vmatprep.subr.mxu0 %v380
        %1587 = vmatpush1.msra.mxu0 %v379
        %1588 = vmatprep.subr.mxu0 %v343
        %1589 = vmatpush1.msra.mxu0 %v342
        %1590 = vmatprep.subr.mxu0 %v306
        %1591 = vmatpush1.msra.mxu0 %v305
        %1592 = vmatprep.subr.mxu0 %v269
        %1593 = vmatpush1.msra.mxu0 %v268
        %1594 = vmatprep.subr.mxu0 %v232
        %1595 = vmatpush1.msra.mxu0 %v231
        %1596 = vmatprep.subr.mxu0 %v1379
        %1597 = vmatpush2.msra.mxu0 %v1378
        %1598 = vmatprep.subr.mxu0 %v1342
        %1599 = vmatpush2.msra.mxu0 %v1341
        %1600 = vmatprep.subr.mxu0 %v1305
        %1601 = vmatpush2.msra.mxu0 %v1304
        %1602 = vmatprep.subr.mxu0 %v1268
        %1603 = vmatpush2.msra.mxu0 %v1267
        %1604 = vmatprep.subr.mxu0 %v1231
        %1605 = vmatpush2.msra.mxu0 %v1230
        %1606 = vmatprep.subr.mxu0 %v1194
        %1607 = vmatpush2.msra.mxu0 %v1193
        %1608 = vmatprep.subr.mxu0 %v1157
        %1609 = vmatpush2.msra.mxu0 %v1156
        %1610 = vmatprep.subr.mxu0 %v1120
        %1611 = vmatpush2.msra.mxu0 %v1119
        %1612 = vmatprep.subr.mxu0 %v1083
        %1613 = vmatpush2.msra.mxu0 %v1082
        %1614 = vmatprep.subr.mxu0 %v1046
        %1615 = vmatpush2.msra.mxu0 %v1045
        %1616 = vmatprep.subr.mxu0 %v1009
        %1617 = vmatpush2.msra.mxu0 %v1008
        %1618 = vmatprep.subr.mxu0 %v972
        %1619 = vmatpush2.msra.mxu0 %v971
        %1620 = vmatprep.subr.mxu0 %v935
        %1621 = vmatpush2.msra.mxu0 %v934
        %1622 = vmatprep.subr.mxu0 %v898
        %1623 = vmatpush2.msra.mxu0 %v897
        %1624 = vmatprep.subr.mxu0 %v861
        %1625 = vmatpush2.msra.mxu0 %v860
        %1626 = vmatprep.subr.mxu0 %v824
        %1627 = vmatpush2.msra.mxu0 %v823
        %1628 = vmatprep.mubr.f32.mxu0 %v1419
        %1629 = vmatmul.mubr.f32.gmra.mxu0 %v1418
        %v1630 = vpop.f32.mrf.mxu0
        %v1631 = vadd.f32 0.0, %v1630
        %v1632 = vpop.f32.mrf.mxu0
        %v1633 = vadd.f32 0.0, %v1632
        %1634 = vdwg.mxu0
        %1635 = vmatprep.subr.mxu0 %v789
        %1636 = vmatpush1.msra.mxu0 %v788
        %1637 = vmatprep.subr.mxu0 %v752
        %1638 = vmatpush1.msra.mxu0 %v751
        %1639 = vmatprep.subr.mxu0 %v715
        %1640 = vmatpush1.msra.mxu0 %v714
        %1641 = vmatprep.subr.mxu0 %v678
        %1642 = vmatpush1.msra.mxu0 %v677
        %1643 = vmatprep.subr.mxu0 %v641
        %1644 = vmatpush1.msra.mxu0 %v640
        %1645 = vmatprep.subr.mxu0 %v604
        %1646 = vmatpush1.msra.mxu0 %v603
        %1647 = vmatprep.subr.mxu0 %v567
        %1648 = vmatpush1.msra.mxu0 %v566
        %1649 = vmatprep.subr.mxu0 %v530
        %1650 = vmatpush1.msra.mxu0 %v529
        %1651 = vmatprep.subr.mxu0 %v493
        %1652 = vmatpush1.msra.mxu0 %v492
        %1653 = vmatprep.subr.mxu0 %v456
        %1654 = vmatpush1.msra.mxu0 %v455
        %1655 = vmatprep.subr.mxu0 %v419
        %1656 = vmatpush1.msra.mxu0 %v418
        %1657 = vmatprep.subr.mxu0 %v382
        %1658 = vmatpush1.msra.mxu0 %v381
        %1659 = vmatprep.subr.mxu0 %v345
        %1660 = vmatpush1.msra.mxu0 %v344
        %1661 = vmatprep.subr.mxu0 %v308
        %1662 = vmatpush1.msra.mxu0 %v307
        %1663 = vmatprep.subr.mxu0 %v271
        %1664 = vmatpush1.msra.mxu0 %v270
        %1665 = vmatprep.subr.mxu0 %v234
        %1666 = vmatpush1.msra.mxu0 %v233
        %1667 = vmatprep.subr.mxu0 %v1381
        %1668 = vmatpush2.msra.mxu0 %v1380
        %1669 = vmatprep.subr.mxu0 %v1344
        %1670 = vmatpush2.msra.mxu0 %v1343
        %1671 = vmatprep.subr.mxu0 %v1307
        %1672 = vmatpush2.msra.mxu0 %v1306
        %1673 = vmatprep.subr.mxu0 %v1270
        %1674 = vmatpush2.msra.mxu0 %v1269
        %1675 = vmatprep.subr.mxu0 %v1233
        %1676 = vmatpush2.msra.mxu0 %v1232
        %1677 = vmatprep.subr.mxu0 %v1196
        %1678 = vmatpush2.msra.mxu0 %v1195
        %1679 = vmatprep.subr.mxu0 %v1159
        %1680 = vmatpush2.msra.mxu0 %v1158
        %1681 = vmatprep.subr.mxu0 %v1122
        %1682 = vmatpush2.msra.mxu0 %v1121
        %1683 = vmatprep.subr.mxu0 %v1085
        %1684 = vmatpush2.msra.mxu0 %v1084
        %1685 = vmatprep.subr.mxu0 %v1048
        %1686 = vmatpush2.msra.mxu0 %v1047
        %1687 = vmatprep.subr.mxu0 %v1011
        %1688 = vmatpush2.msra.mxu0 %v1010
        %1689 = vmatprep.subr.mxu0 %v974
        %1690 = vmatpush2.msra.mxu0 %v973
        %1691 = vmatprep.subr.mxu0 %v937
        %1692 = vmatpush2.msra.mxu0 %v936
        %1693 = vmatprep.subr.mxu0 %v900
        %1694 = vmatpush2.msra.mxu0 %v899
        %1695 = vmatprep.subr.mxu0 %v863
        %1696 = vmatpush2.msra.mxu0 %v862
        %1697 = vmatprep.subr.mxu0 %v826
        %1698 = vmatpush2.msra.mxu0 %v825
        %1699 = vmatprep.mubr.f32.mxu0 %v1419
        %1700 = vmatmul.mubr.f32.gmra.mxu0 %v1418
        %v1701 = vpop.f32.mrf.mxu0
        %v1702 = vadd.f32 0.0, %v1701
        %v1703 = vpop.f32.mrf.mxu0
        %v1704 = vadd.f32 0.0, %v1703
        %1705 = vdwg.mxu0
        %1706 = vmatprep.subr.mxu0 %v791
        %1707 = vmatpush1.msra.mxu0 %v790
        %1708 = vmatprep.subr.mxu0 %v754
        %1709 = vmatpush1.msra.mxu0 %v753
        %1710 = vmatprep.subr.mxu0 %v717
        %1711 = vmatpush1.msra.mxu0 %v716
        %1712 = vmatprep.subr.mxu0 %v680
        %1713 = vmatpush1.msra.mxu0 %v679
        %1714 = vmatprep.subr.mxu0 %v643
        %1715 = vmatpush1.msra.mxu0 %v642
        %1716 = vmatprep.subr.mxu0 %v606
        %1717 = vmatpush1.msra.mxu0 %v605
        %1718 = vmatprep.subr.mxu0 %v569
        %1719 = vmatpush1.msra.mxu0 %v568
        %1720 = vmatprep.subr.mxu0 %v532
        %1721 = vmatpush1.msra.mxu0 %v531
        %1722 = vmatprep.subr.mxu0 %v495
        %1723 = vmatpush1.msra.mxu0 %v494
        %1724 = vmatprep.subr.mxu0 %v458
        %1725 = vmatpush1.msra.mxu0 %v457
        %1726 = vmatprep.subr.mxu0 %v421
        %1727 = vmatpush1.msra.mxu0 %v420
        %1728 = vmatprep.subr.mxu0 %v384
        %1729 = vmatpush1.msra.mxu0 %v383
        %1730 = vmatprep.subr.mxu0 %v347
        %1731 = vmatpush1.msra.mxu0 %v346
        %1732 = vmatprep.subr.mxu0 %v310
        %1733 = vmatpush1.msra.mxu0 %v309
        %1734 = vmatprep.subr.mxu0 %v273
        %1735 = vmatpush1.msra.mxu0 %v272
        %1736 = vmatprep.subr.mxu0 %v236
        %1737 = vmatpush1.msra.mxu0 %v235
        %1738 = vmatprep.subr.mxu0 %v1383
        %1739 = vmatpush2.msra.mxu0 %v1382
        %1740 = vmatprep.subr.mxu0 %v1346
        %1741 = vmatpush2.msra.mxu0 %v1345
        %1742 = vmatprep.subr.mxu0 %v1309
        %1743 = vmatpush2.msra.mxu0 %v1308
        %1744 = vmatprep.subr.mxu0 %v1272
        %1745 = vmatpush2.msra.mxu0 %v1271
        %1746 = vmatprep.subr.mxu0 %v1235
        %1747 = vmatpush2.msra.mxu0 %v1234
        %1748 = vmatprep.subr.mxu0 %v1198
        %1749 = vmatpush2.msra.mxu0 %v1197
        %1750 = vmatprep.subr.mxu0 %v1161
        %1751 = vmatpush2.msra.mxu0 %v1160
        %1752 = vmatprep.subr.mxu0 %v1124
        %1753 = vmatpush2.msra.mxu0 %v1123
        %1754 = vmatprep.subr.mxu0 %v1087
        %1755 = vmatpush2.msra.mxu0 %v1086
        %1756 = vmatprep.subr.mxu0 %v1050
        %1757 = vmatpush2.msra.mxu0 %v1049
        %1758 = vmatprep.subr.mxu0 %v1013
        %1759 = vmatpush2.msra.mxu0 %v1012
        %1760 = vmatprep.subr.mxu0 %v976
        %1761 = vmatpush2.msra.mxu0 %v975
        %1762 = vmatprep.subr.mxu0 %v939
        %1763 = vmatpush2.msra.mxu0 %v938
        %1764 = vmatprep.subr.mxu0 %v902
        %1765 = vmatpush2.msra.mxu0 %v901
        %1766 = vmatprep.subr.mxu0 %v865
        %1767 = vmatpush2.msra.mxu0 %v864
        %1768 = vmatprep.subr.mxu0 %v828
        %1769 = vmatpush2.msra.mxu0 %v827
        %1770 = vmatprep.mubr.f32.mxu0 %v1419
        %1771 = vmatmul.mubr.f32.gmra.mxu0 %v1418
        %v1772 = vpop.f32.mrf.mxu0
        %v1773 = vadd.f32 0.0, %v1772
        %v1774 = vpop.f32.mrf.mxu0
        %v1775 = vadd.f32 0.0, %v1774
        %1776 = vdwg.mxu0
        %1777 = vmatprep.subr.mxu0 %v793
        %1778 = vmatpush1.msra.mxu0 %v792
        %1779 = vmatprep.subr.mxu0 %v756
        %1780 = vmatpush1.msra.mxu0 %v755
        %1781 = vmatprep.subr.mxu0 %v719
        %1782 = vmatpush1.msra.mxu0 %v718
        %1783 = vmatprep.subr.mxu0 %v682
        %1784 = vmatpush1.msra.mxu0 %v681
        %1785 = vmatprep.subr.mxu0 %v645
        %1786 = vmatpush1.msra.mxu0 %v644
        %1787 = vmatprep.subr.mxu0 %v608
        %1788 = vmatpush1.msra.mxu0 %v607
        %1789 = vmatprep.subr.mxu0 %v571
        %1790 = vmatpush1.msra.mxu0 %v570
        %1791 = vmatprep.subr.mxu0 %v534
        %1792 = vmatpush1.msra.mxu0 %v533
        %1793 = vmatprep.subr.mxu0 %v497
        %1794 = vmatpush1.msra.mxu0 %v496
        %1795 = vmatprep.subr.mxu0 %v460
        %1796 = vmatpush1.msra.mxu0 %v459
        %1797 = vmatprep.subr.mxu0 %v423
        %1798 = vmatpush1.msra.mxu0 %v422
        %1799 = vmatprep.subr.mxu0 %v386
        %1800 = vmatpush1.msra.mxu0 %v385
        %1801 = vmatprep.subr.mxu0 %v349
        %1802 = vmatpush1.msra.mxu0 %v348
        %1803 = vmatprep.subr.mxu0 %v312
        %1804 = vmatpush1.msra.mxu0 %v311
        %1805 = vmatprep.subr.mxu0 %v275
        %1806 = vmatpush1.msra.mxu0 %v274
        %1807 = vmatprep.subr.mxu0 %v238
        %1808 = vmatpush1.msra.mxu0 %v237
        %1809 = vmatprep.subr.mxu0 %v1385
        %1810 = vmatpush2.msra.mxu0 %v1384
        %1811 = vmatprep.subr.mxu0 %v1348
        %1812 = vmatpush2.msra.mxu0 %v1347
        %1813 = vmatprep.subr.mxu0 %v1311
        %1814 = vmatpush2.msra.mxu0 %v1310
        %1815 = vmatprep.subr.mxu0 %v1274
        %1816 = vmatpush2.msra.mxu0 %v1273
        %1817 = vmatprep.subr.mxu0 %v1237
        %1818 = vmatpush2.msra.mxu0 %v1236
        %1819 = vmatprep.subr.mxu0 %v1200
        %1820 = vmatpush2.msra.mxu0 %v1199
        %1821 = vmatprep.subr.mxu0 %v1163
        %1822 = vmatpush2.msra.mxu0 %v1162
        %1823 = vmatprep.subr.mxu0 %v1126
        %1824 = vmatpush2.msra.mxu0 %v1125
        %1825 = vmatprep.subr.mxu0 %v1089
        %1826 = vmatpush2.msra.mxu0 %v1088
        %1827 = vmatprep.subr.mxu0 %v1052
        %1828 = vmatpush2.msra.mxu0 %v1051
        %1829 = vmatprep.subr.mxu0 %v1015
        %1830 = vmatpush2.msra.mxu0 %v1014
        %1831 = vmatprep.subr.mxu0 %v978
        %1832 = vmatpush2.msra.mxu0 %v977
        %1833 = vmatprep.subr.mxu0 %v941
        %1834 = vmatpush2.msra.mxu0 %v940
        %1835 = vmatprep.subr.mxu0 %v904
        %1836 = vmatpush2.msra.mxu0 %v903
        %1837 = vmatprep.subr.mxu0 %v867
        %1838 = vmatpush2.msra.mxu0 %v866
        %1839 = vmatprep.subr.mxu0 %v830
        %1840 = vmatpush2.msra.mxu0 %v829
        %1841 = vmatprep.mubr.f32.mxu0 %v1419
        %1842 = vmatmul.mubr.f32.gmra.mxu0 %v1418
        %v1843 = vpop.f32.mrf.mxu0
        %v1844 = vadd.f32 0.0, %v1843
        %v1845 = vpop.f32.mrf.mxu0
        %v1846 = vadd.f32 0.0, %v1845
        %1847 = vdwg.mxu0
        %1848 = vmatprep.subr.mxu0 %v795
        %1849 = vmatpush1.msra.mxu0 %v794
        %1850 = vmatprep.subr.mxu0 %v758
        %1851 = vmatpush1.msra.mxu0 %v757
        %1852 = vmatprep.subr.mxu0 %v721
        %1853 = vmatpush1.msra.mxu0 %v720
        %1854 = vmatprep.subr.mxu0 %v684
        %1855 = vmatpush1.msra.mxu0 %v683
        %1856 = vmatprep.subr.mxu0 %v647
        %1857 = vmatpush1.msra.mxu0 %v646
        %1858 = vmatprep.subr.mxu0 %v610
        %1859 = vmatpush1.msra.mxu0 %v609
        %1860 = vmatprep.subr.mxu0 %v573
        %1861 = vmatpush1.msra.mxu0 %v572
        %1862 = vmatprep.subr.mxu0 %v536
        %1863 = vmatpush1.msra.mxu0 %v535
        %1864 = vmatprep.subr.mxu0 %v499
        %1865 = vmatpush1.msra.mxu0 %v498
        %1866 = vmatprep.subr.mxu0 %v462
        %1867 = vmatpush1.msra.mxu0 %v461
        %1868 = vmatprep.subr.mxu0 %v425
        %1869 = vmatpush1.msra.mxu0 %v424
        %1870 = vmatprep.subr.mxu0 %v388
        %1871 = vmatpush1.msra.mxu0 %v387
        %1872 = vmatprep.subr.mxu0 %v351
        %1873 = vmatpush1.msra.mxu0 %v350
        %1874 = vmatprep.subr.mxu0 %v314
        %1875 = vmatpush1.msra.mxu0 %v313
        %1876 = vmatprep.subr.mxu0 %v277
        %1877 = vmatpush1.msra.mxu0 %v276
        %1878 = vmatprep.subr.mxu0 %v240
        %1879 = vmatpush1.msra.mxu0 %v239
        %1880 = vmatprep.subr.mxu0 %v1387
        %1881 = vmatpush2.msra.mxu0 %v1386
        %1882 = vmatprep.subr.mxu0 %v1350
        %1883 = vmatpush2.msra.mxu0 %v1349
        %1884 = vmatprep.subr.mxu0 %v1313
        %1885 = vmatpush2.msra.mxu0 %v1312
        %1886 = vmatprep.subr.mxu0 %v1276
        %1887 = vmatpush2.msra.mxu0 %v1275
        %1888 = vmatprep.subr.mxu0 %v1239
        %1889 = vmatpush2.msra.mxu0 %v1238
        %1890 = vmatprep.subr.mxu0 %v1202
        %1891 = vmatpush2.msra.mxu0 %v1201
        %1892 = vmatprep.subr.mxu0 %v1165
        %1893 = vmatpush2.msra.mxu0 %v1164
        %1894 = vmatprep.subr.mxu0 %v1128
        %1895 = vmatpush2.msra.mxu0 %v1127
        %1896 = vmatprep.subr.mxu0 %v1091
        %1897 = vmatpush2.msra.mxu0 %v1090
        %1898 = vmatprep.subr.mxu0 %v1054
        %1899 = vmatpush2.msra.mxu0 %v1053
        %1900 = vmatprep.subr.mxu0 %v1017
        %1901 = vmatpush2.msra.mxu0 %v1016
        %1902 = vmatprep.subr.mxu0 %v980
        %1903 = vmatpush2.msra.mxu0 %v979
        %1904 = vmatprep.subr.mxu0 %v943
        %1905 = vmatpush2.msra.mxu0 %v942
        %1906 = vmatprep.subr.mxu0 %v906
        %1907 = vmatpush2.msra.mxu0 %v905
        %1908 = vmatprep.subr.mxu0 %v869
        %1909 = vmatpush2.msra.mxu0 %v868
        %1910 = vmatprep.subr.mxu0 %v832
        %1911 = vmatpush2.msra.mxu0 %v831
        %1912 = vmatprep.mubr.f32.mxu0 %v1419
        %1913 = vmatmul.mubr.f32.gmra.mxu0 %v1418
        %v1914 = vpop.f32.mrf.mxu0
        %v1915 = vadd.f32 0.0, %v1914
        %v1916 = vpop.f32.mrf.mxu0
        %v1917 = vadd.f32 0.0, %v1916
        %1918 = vdwg.mxu0
        %1919 = vmatprep.subr.mxu0 %v797
        %1920 = vmatpush1.msra.mxu0 %v796
        %1921 = vmatprep.subr.mxu0 %v760
        %1922 = vmatpush1.msra.mxu0 %v759
        %1923 = vmatprep.subr.mxu0 %v723
        %1924 = vmatpush1.msra.mxu0 %v722
        %1925 = vmatprep.subr.mxu0 %v686
        %1926 = vmatpush1.msra.mxu0 %v685
        %1927 = vmatprep.subr.mxu0 %v649
        %1928 = vmatpush1.msra.mxu0 %v648
        %1929 = vmatprep.subr.mxu0 %v612
        %1930 = vmatpush1.msra.mxu0 %v611
        %1931 = vmatprep.subr.mxu0 %v575
        %1932 = vmatpush1.msra.mxu0 %v574
        %1933 = vmatprep.subr.mxu0 %v538
        %1934 = vmatpush1.msra.mxu0 %v537
        %1935 = vmatprep.subr.mxu0 %v501
        %1936 = vmatpush1.msra.mxu0 %v500
        %1937 = vmatprep.subr.mxu0 %v464
        %1938 = vmatpush1.msra.mxu0 %v463
        %1939 = vmatprep.subr.mxu0 %v427
        %1940 = vmatpush1.msra.mxu0 %v426
        %1941 = vmatprep.subr.mxu0 %v390
        %1942 = vmatpush1.msra.mxu0 %v389
        %1943 = vmatprep.subr.mxu0 %v353
        %1944 = vmatpush1.msra.mxu0 %v352
        %1945 = vmatprep.subr.mxu0 %v316
        %1946 = vmatpush1.msra.mxu0 %v315
        %1947 = vmatprep.subr.mxu0 %v279
        %1948 = vmatpush1.msra.mxu0 %v278
        %1949 = vmatprep.subr.mxu0 %v242
        %1950 = vmatpush1.msra.mxu0 %v241
        %1951 = vmatprep.subr.mxu0 %v1389
        %1952 = vmatpush2.msra.mxu0 %v1388
        %1953 = vmatprep.subr.mxu0 %v1352
        %1954 = vmatpush2.msra.mxu0 %v1351
        %1955 = vmatprep.subr.mxu0 %v1315
        %1956 = vmatpush2.msra.mxu0 %v1314
        %1957 = vmatprep.subr.mxu0 %v1278
        %1958 = vmatpush2.msra.mxu0 %v1277
        %1959 = vmatprep.subr.mxu0 %v1241
        %1960 = vmatpush2.msra.mxu0 %v1240
        %1961 = vmatprep.subr.mxu0 %v1204
        %1962 = vmatpush2.msra.mxu0 %v1203
        %1963 = vmatprep.subr.mxu0 %v1167
        %1964 = vmatpush2.msra.mxu0 %v1166
        %1965 = vmatprep.subr.mxu0 %v1130
        %1966 = vmatpush2.msra.mxu0 %v1129
        %1967 = vmatprep.subr.mxu0 %v1093
        %1968 = vmatpush2.msra.mxu0 %v1092
        %1969 = vmatprep.subr.mxu0 %v1056
        %1970 = vmatpush2.msra.mxu0 %v1055
        %1971 = vmatprep.subr.mxu0 %v1019
        %1972 = vmatpush2.msra.mxu0 %v1018
        %1973 = vmatprep.subr.mxu0 %v982
        %1974 = vmatpush2.msra.mxu0 %v981
        %1975 = vmatprep.subr.mxu0 %v945
        %1976 = vmatpush2.msra.mxu0 %v944
        %1977 = vmatprep.subr.mxu0 %v908
        %1978 = vmatpush2.msra.mxu0 %v907
        %1979 = vmatprep.subr.mxu0 %v871
        %1980 = vmatpush2.msra.mxu0 %v870
        %1981 = vmatprep.subr.mxu0 %v834
        %1982 = vmatpush2.msra.mxu0 %v833
        %1983 = vmatprep.mubr.f32.mxu0 %v1419
        %1984 = vmatmul.mubr.f32.gmra.mxu0 %v1418
        %v1985 = vpop.f32.mrf.mxu0
        %v1986 = vadd.f32 0.0, %v1985
        %v1987 = vpop.f32.mrf.mxu0
        %v1988 = vadd.f32 0.0, %v1987
        %1989 = vdwg.mxu0
        %1990 = vmatprep.subr.mxu0 %v799
        %1991 = vmatpush1.msra.mxu0 %v798
        %1992 = vmatprep.subr.mxu0 %v762
        %1993 = vmatpush1.msra.mxu0 %v761
        %1994 = vmatprep.subr.mxu0 %v725
        %1995 = vmatpush1.msra.mxu0 %v724
        %1996 = vmatprep.subr.mxu0 %v688
        %1997 = vmatpush1.msra.mxu0 %v687
        %1998 = vmatprep.subr.mxu0 %v651
        %1999 = vmatpush1.msra.mxu0 %v650
        %2000 = vmatprep.subr.mxu0 %v614
        %2001 = vmatpush1.msra.mxu0 %v613
        %2002 = vmatprep.subr.mxu0 %v577
        %2003 = vmatpush1.msra.mxu0 %v576
        %2004 = vmatprep.subr.mxu0 %v540
        %2005 = vmatpush1.msra.mxu0 %v539
        %2006 = vmatprep.subr.mxu0 %v503
        %2007 = vmatpush1.msra.mxu0 %v502
        %2008 = vmatprep.subr.mxu0 %v466
        %2009 = vmatpush1.msra.mxu0 %v465
        %2010 = vmatprep.subr.mxu0 %v429
        %2011 = vmatpush1.msra.mxu0 %v428
        %2012 = vmatprep.subr.mxu0 %v392
        %2013 = vmatpush1.msra.mxu0 %v391
        %2014 = vmatprep.subr.mxu0 %v355
        %2015 = vmatpush1.msra.mxu0 %v354
        %2016 = vmatprep.subr.mxu0 %v318
        %2017 = vmatpush1.msra.mxu0 %v317
        %2018 = vmatprep.subr.mxu0 %v281
        %2019 = vmatpush1.msra.mxu0 %v280
        %2020 = vmatprep.subr.mxu0 %v244
        %2021 = vmatpush1.msra.mxu0 %v243
        %2022 = vmatprep.subr.mxu0 %v1391
        %2023 = vmatpush2.msra.mxu0 %v1390
        %2024 = vmatprep.subr.mxu0 %v1354
        %2025 = vmatpush2.msra.mxu0 %v1353
        %2026 = vmatprep.subr.mxu0 %v1317
        %2027 = vmatpush2.msra.mxu0 %v1316
        %2028 = vmatprep.subr.mxu0 %v1280
        %2029 = vmatpush2.msra.mxu0 %v1279
        %2030 = vmatprep.subr.mxu0 %v1243
        %2031 = vmatpush2.msra.mxu0 %v1242
        %2032 = vmatprep.subr.mxu0 %v1206
        %2033 = vmatpush2.msra.mxu0 %v1205
        %2034 = vmatprep.subr.mxu0 %v1169
        %2035 = vmatpush2.msra.mxu0 %v1168
        %2036 = vmatprep.subr.mxu0 %v1132
        %2037 = vmatpush2.msra.mxu0 %v1131
        %2038 = vmatprep.subr.mxu0 %v1095
        %2039 = vmatpush2.msra.mxu0 %v1094
        %2040 = vmatprep.subr.mxu0 %v1058
        %2041 = vmatpush2.msra.mxu0 %v1057
        %2042 = vmatprep.subr.mxu0 %v1021
        %2043 = vmatpush2.msra.mxu0 %v1020
        %2044 = vmatprep.subr.mxu0 %v984
        %2045 = vmatpush2.msra.mxu0 %v983
        %2046 = vmatprep.subr.mxu0 %v947
        %2047 = vmatpush2.msra.mxu0 %v946
        %2048 = vmatprep.subr.mxu0 %v910
        %2049 = vmatpush2.msra.mxu0 %v909
        %2050 = vmatprep.subr.mxu0 %v873
        %2051 = vmatpush2.msra.mxu0 %v872
        %2052 = vmatprep.subr.mxu0 %v836
        %2053 = vmatpush2.msra.mxu0 %v835
        %2054 = vmatprep.mubr.f32.mxu0 %v1419
        %2055 = vmatmul.mubr.f32.gmra.mxu0 %v1418
        %v2056 = vpop.f32.mrf.mxu0
        %v2057 = vadd.f32 0.0, %v2056
        %v2058 = vpop.f32.mrf.mxu0
        %v2059 = vadd.f32 0.0, %v2058
        %2060 = vdwg.mxu0
        %2061 = vmatprep.subr.mxu0 %v801
        %2062 = vmatpush1.msra.mxu0 %v800
        %2063 = vmatprep.subr.mxu0 %v764
        %2064 = vmatpush1.msra.mxu0 %v763
        %2065 = vmatprep.subr.mxu0 %v727
        %2066 = vmatpush1.msra.mxu0 %v726
        %2067 = vmatprep.subr.mxu0 %v690
        %2068 = vmatpush1.msra.mxu0 %v689
        %2069 = vmatprep.subr.mxu0 %v653
        %2070 = vmatpush1.msra.mxu0 %v652
        %2071 = vmatprep.subr.mxu0 %v616
        %2072 = vmatpush1.msra.mxu0 %v615
        %2073 = vmatprep.subr.mxu0 %v579
        %2074 = vmatpush1.msra.mxu0 %v578
        %2075 = vmatprep.subr.mxu0 %v542
        %2076 = vmatpush1.msra.mxu0 %v541
        %2077 = vmatprep.subr.mxu0 %v505
        %2078 = vmatpush1.msra.mxu0 %v504
        %2079 = vmatprep.subr.mxu0 %v468
        %2080 = vmatpush1.msra.mxu0 %v467
        %2081 = vmatprep.subr.mxu0 %v431
        %2082 = vmatpush1.msra.mxu0 %v430
        %2083 = vmatprep.subr.mxu0 %v394
        %2084 = vmatpush1.msra.mxu0 %v393
        %2085 = vmatprep.subr.mxu0 %v357
        %2086 = vmatpush1.msra.mxu0 %v356
        %2087 = vmatprep.subr.mxu0 %v320
        %2088 = vmatpush1.msra.mxu0 %v319
        %2089 = vmatprep.subr.mxu0 %v283
        %2090 = vmatpush1.msra.mxu0 %v282
        %2091 = vmatprep.subr.mxu0 %v246
        %2092 = vmatpush1.msra.mxu0 %v245
        %2093 = vmatprep.subr.mxu0 %v1393
        %2094 = vmatpush2.msra.mxu0 %v1392
        %2095 = vmatprep.subr.mxu0 %v1356
        %2096 = vmatpush2.msra.mxu0 %v1355
        %2097 = vmatprep.subr.mxu0 %v1319
        %2098 = vmatpush2.msra.mxu0 %v1318
        %2099 = vmatprep.subr.mxu0 %v1282
        %2100 = vmatpush2.msra.mxu0 %v1281
        %2101 = vmatprep.subr.mxu0 %v1245
        %2102 = vmatpush2.msra.mxu0 %v1244
        %2103 = vmatprep.subr.mxu0 %v1208
        %2104 = vmatpush2.msra.mxu0 %v1207
        %2105 = vmatprep.subr.mxu0 %v1171
        %2106 = vmatpush2.msra.mxu0 %v1170
        %2107 = vmatprep.subr.mxu0 %v1134
        %2108 = vmatpush2.msra.mxu0 %v1133
        %2109 = vmatprep.subr.mxu0 %v1097
        %2110 = vmatpush2.msra.mxu0 %v1096
        %2111 = vmatprep.subr.mxu0 %v1060
        %2112 = vmatpush2.msra.mxu0 %v1059
        %2113 = vmatprep.subr.mxu0 %v1023
        %2114 = vmatpush2.msra.mxu0 %v1022
        %2115 = vmatprep.subr.mxu0 %v986
        %2116 = vmatpush2.msra.mxu0 %v985
        %2117 = vmatprep.subr.mxu0 %v949
        %2118 = vmatpush2.msra.mxu0 %v948
        %2119 = vmatprep.subr.mxu0 %v912
        %2120 = vmatpush2.msra.mxu0 %v911
        %2121 = vmatprep.subr.mxu0 %v875
        %2122 = vmatpush2.msra.mxu0 %v874
        %2123 = vmatprep.subr.mxu0 %v838
        %2124 = vmatpush2.msra.mxu0 %v837
        %2125 = vmatprep.mubr.f32.mxu0 %v1419
        %2126 = vmatmul.mubr.f32.gmra.mxu0 %v1418
        %v2127 = vpop.f32.mrf.mxu0
        %v2128 = vadd.f32 0.0, %v2127
        %v2129 = vpop.f32.mrf.mxu0
        %v2130 = vadd.f32 0.0, %v2129
        %2131 = vdwg.mxu0
        %2132 = vmatprep.subr.mxu0 %v803
        %2133 = vmatpush1.msra.mxu0 %v802
        %2134 = vmatprep.subr.mxu0 %v766
        %2135 = vmatpush1.msra.mxu0 %v765
        %2136 = vmatprep.subr.mxu0 %v729
        %2137 = vmatpush1.msra.mxu0 %v728
        %2138 = vmatprep.subr.mxu0 %v692
        %2139 = vmatpush1.msra.mxu0 %v691
        %2140 = vmatprep.subr.mxu0 %v655
        %2141 = vmatpush1.msra.mxu0 %v654
        %2142 = vmatprep.subr.mxu0 %v618
        %2143 = vmatpush1.msra.mxu0 %v617
        %2144 = vmatprep.subr.mxu0 %v581
        %2145 = vmatpush1.msra.mxu0 %v580
        %2146 = vmatprep.subr.mxu0 %v544
        %2147 = vmatpush1.msra.mxu0 %v543
        %2148 = vmatprep.subr.mxu0 %v507
        %2149 = vmatpush1.msra.mxu0 %v506
        %2150 = vmatprep.subr.mxu0 %v470
        %2151 = vmatpush1.msra.mxu0 %v469
        %2152 = vmatprep.subr.mxu0 %v433
        %2153 = vmatpush1.msra.mxu0 %v432
        %2154 = vmatprep.subr.mxu0 %v396
        %2155 = vmatpush1.msra.mxu0 %v395
        %2156 = vmatprep.subr.mxu0 %v359
        %2157 = vmatpush1.msra.mxu0 %v358
        %2158 = vmatprep.subr.mxu0 %v322
        %2159 = vmatpush1.msra.mxu0 %v321
        %2160 = vmatprep.subr.mxu0 %v285
        %2161 = vmatpush1.msra.mxu0 %v284
        %2162 = vmatprep.subr.mxu0 %v248
        %2163 = vmatpush1.msra.mxu0 %v247
        %2164 = vmatprep.subr.mxu0 %v1395
        %2165 = vmatpush2.msra.mxu0 %v1394
        %2166 = vmatprep.subr.mxu0 %v1358
        %2167 = vmatpush2.msra.mxu0 %v1357
        %2168 = vmatprep.subr.mxu0 %v1321
        %2169 = vmatpush2.msra.mxu0 %v1320
        %2170 = vmatprep.subr.mxu0 %v1284
        %2171 = vmatpush2.msra.mxu0 %v1283
        %2172 = vmatprep.subr.mxu0 %v1247
        %2173 = vmatpush2.msra.mxu0 %v1246
        %2174 = vmatprep.subr.mxu0 %v1210
        %2175 = vmatpush2.msra.mxu0 %v1209
        %2176 = vmatprep.subr.mxu0 %v1173
        %2177 = vmatpush2.msra.mxu0 %v1172
        %2178 = vmatprep.subr.mxu0 %v1136
        %2179 = vmatpush2.msra.mxu0 %v1135
        %2180 = vmatprep.subr.mxu0 %v1099
        %2181 = vmatpush2.msra.mxu0 %v1098
        %2182 = vmatprep.subr.mxu0 %v1062
        %2183 = vmatpush2.msra.mxu0 %v1061
        %2184 = vmatprep.subr.mxu0 %v1025
        %2185 = vmatpush2.msra.mxu0 %v1024
        %2186 = vmatprep.subr.mxu0 %v988
        %2187 = vmatpush2.msra.mxu0 %v987
        %2188 = vmatprep.subr.mxu0 %v951
        %2189 = vmatpush2.msra.mxu0 %v950
        %2190 = vmatprep.subr.mxu0 %v914
        %2191 = vmatpush2.msra.mxu0 %v913
        %2192 = vmatprep.subr.mxu0 %v877
        %2193 = vmatpush2.msra.mxu0 %v876
        %2194 = vmatprep.subr.mxu0 %v840
        %2195 = vmatpush2.msra.mxu0 %v839
        %2196 = vmatprep.mubr.f32.mxu0 %v1419
        %2197 = vmatmul.mubr.f32.gmra.mxu0 %v1418
        %v2198 = vpop.f32.mrf.mxu0
        %v2199 = vadd.f32 0.0, %v2198
        %v2200 = vpop.f32.mrf.mxu0
        %v2201 = vadd.f32 0.0, %v2200
        %2202 = vdwg.mxu0
        %2203 = vmatprep.subr.mxu0 %v805
        %2204 = vmatpush1.msra.mxu0 %v804
        %2205 = vmatprep.subr.mxu0 %v768
        %2206 = vmatpush1.msra.mxu0 %v767
        %2207 = vmatprep.subr.mxu0 %v731
        %2208 = vmatpush1.msra.mxu0 %v730
        %2209 = vmatprep.subr.mxu0 %v694
        %2210 = vmatpush1.msra.mxu0 %v693
        %2211 = vmatprep.subr.mxu0 %v657
        %2212 = vmatpush1.msra.mxu0 %v656
        %2213 = vmatprep.subr.mxu0 %v620
        %2214 = vmatpush1.msra.mxu0 %v619
        %2215 = vmatprep.subr.mxu0 %v583
        %2216 = vmatpush1.msra.mxu0 %v582
        %2217 = vmatprep.subr.mxu0 %v546
        %2218 = vmatpush1.msra.mxu0 %v545
        %2219 = vmatprep.subr.mxu0 %v509
        %2220 = vmatpush1.msra.mxu0 %v508
        %2221 = vmatprep.subr.mxu0 %v472
        %2222 = vmatpush1.msra.mxu0 %v471
        %2223 = vmatprep.subr.mxu0 %v435
        %2224 = vmatpush1.msra.mxu0 %v434
        %2225 = vmatprep.subr.mxu0 %v398
        %2226 = vmatpush1.msra.mxu0 %v397
        %2227 = vmatprep.subr.mxu0 %v361
        %2228 = vmatpush1.msra.mxu0 %v360
        %2229 = vmatprep.subr.mxu0 %v324
        %2230 = vmatpush1.msra.mxu0 %v323
        %2231 = vmatprep.subr.mxu0 %v287
        %2232 = vmatpush1.msra.mxu0 %v286
        %2233 = vmatprep.subr.mxu0 %v250
        %2234 = vmatpush1.msra.mxu0 %v249
        %2235 = vmatprep.subr.mxu0 %v1397
        %2236 = vmatpush2.msra.mxu0 %v1396
        %2237 = vmatprep.subr.mxu0 %v1360
        %2238 = vmatpush2.msra.mxu0 %v1359
        %2239 = vmatprep.subr.mxu0 %v1323
        %2240 = vmatpush2.msra.mxu0 %v1322
        %2241 = vmatprep.subr.mxu0 %v1286
        %2242 = vmatpush2.msra.mxu0 %v1285
        %2243 = vmatprep.subr.mxu0 %v1249
        %2244 = vmatpush2.msra.mxu0 %v1248
        %2245 = vmatprep.subr.mxu0 %v1212
        %2246 = vmatpush2.msra.mxu0 %v1211
        %2247 = vmatprep.subr.mxu0 %v1175
        %2248 = vmatpush2.msra.mxu0 %v1174
        %2249 = vmatprep.subr.mxu0 %v1138
        %2250 = vmatpush2.msra.mxu0 %v1137
        %2251 = vmatprep.subr.mxu0 %v1101
        %2252 = vmatpush2.msra.mxu0 %v1100
        %2253 = vmatprep.subr.mxu0 %v1064
        %2254 = vmatpush2.msra.mxu0 %v1063
        %2255 = vmatprep.subr.mxu0 %v1027
        %2256 = vmatpush2.msra.mxu0 %v1026
        %2257 = vmatprep.subr.mxu0 %v990
        %2258 = vmatpush2.msra.mxu0 %v989
        %2259 = vmatprep.subr.mxu0 %v953
        %2260 = vmatpush2.msra.mxu0 %v952
        %2261 = vmatprep.subr.mxu0 %v916
        %2262 = vmatpush2.msra.mxu0 %v915
        %2263 = vmatprep.subr.mxu0 %v879
        %2264 = vmatpush2.msra.mxu0 %v878
        %2265 = vmatprep.subr.mxu0 %v842
        %2266 = vmatpush2.msra.mxu0 %v841
        %2267 = vmatprep.mubr.f32.mxu0 %v1419
        %2268 = vmatmul.mubr.f32.gmra.mxu0 %v1418
        %v2269 = vpop.f32.mrf.mxu0
        %v2270 = vadd.f32 0.0, %v2269
        %v2271 = vpop.f32.mrf.mxu0
        %v2272 = vadd.f32 0.0, %v2271
        %2273 = vdwg.mxu0
        %2274 = vmatprep.subr.mxu0 %v807
        %2275 = vmatpush1.msra.mxu0 %v806
        %2276 = vmatprep.subr.mxu0 %v770
        %2277 = vmatpush1.msra.mxu0 %v769
        %2278 = vmatprep.subr.mxu0 %v733
        %2279 = vmatpush1.msra.mxu0 %v732
        %2280 = vmatprep.subr.mxu0 %v696
        %2281 = vmatpush1.msra.mxu0 %v695
        %2282 = vmatprep.subr.mxu0 %v659
        %2283 = vmatpush1.msra.mxu0 %v658
        %2284 = vmatprep.subr.mxu0 %v622
        %2285 = vmatpush1.msra.mxu0 %v621
        %2286 = vmatprep.subr.mxu0 %v585
        %2287 = vmatpush1.msra.mxu0 %v584
        %2288 = vmatprep.subr.mxu0 %v548
        %2289 = vmatpush1.msra.mxu0 %v547
        %2290 = vmatprep.subr.mxu0 %v511
        %2291 = vmatpush1.msra.mxu0 %v510
        %2292 = vmatprep.subr.mxu0 %v474
        %2293 = vmatpush1.msra.mxu0 %v473
        %2294 = vmatprep.subr.mxu0 %v437
        %2295 = vmatpush1.msra.mxu0 %v436
        %2296 = vmatprep.subr.mxu0 %v400
        %2297 = vmatpush1.msra.mxu0 %v399
        %2298 = vmatprep.subr.mxu0 %v363
        %2299 = vmatpush1.msra.mxu0 %v362
        %2300 = vmatprep.subr.mxu0 %v326
        %2301 = vmatpush1.msra.mxu0 %v325
        %2302 = vmatprep.subr.mxu0 %v289
        %2303 = vmatpush1.msra.mxu0 %v288
        %2304 = vmatprep.subr.mxu0 %v252
        %2305 = vmatpush1.msra.mxu0 %v251
        %2306 = vmatprep.subr.mxu0 %v1399
        %2307 = vmatpush2.msra.mxu0 %v1398
        %2308 = vmatprep.subr.mxu0 %v1362
        %2309 = vmatpush2.msra.mxu0 %v1361
        %2310 = vmatprep.subr.mxu0 %v1325
        %2311 = vmatpush2.msra.mxu0 %v1324
        %2312 = vmatprep.subr.mxu0 %v1288
        %2313 = vmatpush2.msra.mxu0 %v1287
        %2314 = vmatprep.subr.mxu0 %v1251
        %2315 = vmatpush2.msra.mxu0 %v1250
        %2316 = vmatprep.subr.mxu0 %v1214
        %2317 = vmatpush2.msra.mxu0 %v1213
        %2318 = vmatprep.subr.mxu0 %v1177
        %2319 = vmatpush2.msra.mxu0 %v1176
        %2320 = vmatprep.subr.mxu0 %v1140
        %2321 = vmatpush2.msra.mxu0 %v1139
        %2322 = vmatprep.subr.mxu0 %v1103
        %2323 = vmatpush2.msra.mxu0 %v1102
        %2324 = vmatprep.subr.mxu0 %v1066
        %2325 = vmatpush2.msra.mxu0 %v1065
        %2326 = vmatprep.subr.mxu0 %v1029
        %2327 = vmatpush2.msra.mxu0 %v1028
        %2328 = vmatprep.subr.mxu0 %v992
        %2329 = vmatpush2.msra.mxu0 %v991
        %2330 = vmatprep.subr.mxu0 %v955
        %2331 = vmatpush2.msra.mxu0 %v954
        %2332 = vmatprep.subr.mxu0 %v918
        %2333 = vmatpush2.msra.mxu0 %v917
        %2334 = vmatprep.subr.mxu0 %v881
        %2335 = vmatpush2.msra.mxu0 %v880
        %2336 = vmatprep.subr.mxu0 %v844
        %2337 = vmatpush2.msra.mxu0 %v843
        %2338 = vmatprep.mubr.f32.mxu0 %v1419
        %2339 = vmatmul.mubr.f32.gmra.mxu0 %v1418
        %v2340 = vpop.f32.mrf.mxu0
        %v2341 = vadd.f32 0.0, %v2340
        %v2342 = vpop.f32.mrf.mxu0
        %v2343 = vadd.f32 0.0, %v2342
        %2344 = vdwg.mxu0
        %2345 = vmatprep.subr.mxu0 %v809
        %2346 = vmatpush1.msra.mxu0 %v808
        %2347 = vmatprep.subr.mxu0 %v772
        %2348 = vmatpush1.msra.mxu0 %v771
        %2349 = vmatprep.subr.mxu0 %v735
        %2350 = vmatpush1.msra.mxu0 %v734
        %2351 = vmatprep.subr.mxu0 %v698
        %2352 = vmatpush1.msra.mxu0 %v697
        %2353 = vmatprep.subr.mxu0 %v661
        %2354 = vmatpush1.msra.mxu0 %v660
        %2355 = vmatprep.subr.mxu0 %v624
        %2356 = vmatpush1.msra.mxu0 %v623
        %2357 = vmatprep.subr.mxu0 %v587
        %2358 = vmatpush1.msra.mxu0 %v586
        %2359 = vmatprep.subr.mxu0 %v550
        %2360 = vmatpush1.msra.mxu0 %v549
        %2361 = vmatprep.subr.mxu0 %v513
        %2362 = vmatpush1.msra.mxu0 %v512
        %2363 = vmatprep.subr.mxu0 %v476
        %2364 = vmatpush1.msra.mxu0 %v475
        %2365 = vmatprep.subr.mxu0 %v439
        %2366 = vmatpush1.msra.mxu0 %v438
        %2367 = vmatprep.subr.mxu0 %v402
        %2368 = vmatpush1.msra.mxu0 %v401
        %2369 = vmatprep.subr.mxu0 %v365
        %2370 = vmatpush1.msra.mxu0 %v364
        %2371 = vmatprep.subr.mxu0 %v328
        %2372 = vmatpush1.msra.mxu0 %v327
        %2373 = vmatprep.subr.mxu0 %v291
        %2374 = vmatpush1.msra.mxu0 %v290
        %2375 = vmatprep.subr.mxu0 %v254
        %2376 = vmatpush1.msra.mxu0 %v253
        %2377 = vmatprep.subr.mxu0 %v1401
        %2378 = vmatpush2.msra.mxu0 %v1400
        %2379 = vmatprep.subr.mxu0 %v1364
        %2380 = vmatpush2.msra.mxu0 %v1363
        %2381 = vmatprep.subr.mxu0 %v1327
        %2382 = vmatpush2.msra.mxu0 %v1326
        %2383 = vmatprep.subr.mxu0 %v1290
        %2384 = vmatpush2.msra.mxu0 %v1289
        %2385 = vmatprep.subr.mxu0 %v1253
        %2386 = vmatpush2.msra.mxu0 %v1252
        %2387 = vmatprep.subr.mxu0 %v1216
        %2388 = vmatpush2.msra.mxu0 %v1215
        %2389 = vmatprep.subr.mxu0 %v1179
        %2390 = vmatpush2.msra.mxu0 %v1178
        %2391 = vmatprep.subr.mxu0 %v1142
        %2392 = vmatpush2.msra.mxu0 %v1141
        %2393 = vmatprep.subr.mxu0 %v1105
        %2394 = vmatpush2.msra.mxu0 %v1104
        %2395 = vmatprep.subr.mxu0 %v1068
        %2396 = vmatpush2.msra.mxu0 %v1067
        %2397 = vmatprep.subr.mxu0 %v1031
        %2398 = vmatpush2.msra.mxu0 %v1030
        %2399 = vmatprep.subr.mxu0 %v994
        %2400 = vmatpush2.msra.mxu0 %v993
        %2401 = vmatprep.subr.mxu0 %v957
        %2402 = vmatpush2.msra.mxu0 %v956
        %2403 = vmatprep.subr.mxu0 %v920
        %2404 = vmatpush2.msra.mxu0 %v919
        %2405 = vmatprep.subr.mxu0 %v883
        %2406 = vmatpush2.msra.mxu0 %v882
        %2407 = vmatprep.subr.mxu0 %v846
        %2408 = vmatpush2.msra.mxu0 %v845
        %2409 = vmatprep.mubr.f32.mxu0 %v1419
        %2410 = vmatmul.mubr.f32.gmra.mxu0 %v1418
        %v2411 = vpop.f32.mrf.mxu0
        %v2412 = vadd.f32 0.0, %v2411
        %v2413 = vpop.f32.mrf.mxu0
        %v2414 = vadd.f32 0.0, %v2413
        %2415 = vdwg.mxu0
        %2416 = vmatprep.subr.mxu0 %v811
        %2417 = vmatpush1.msra.mxu0 %v810
        %2418 = vmatprep.subr.mxu0 %v774
        %2419 = vmatpush1.msra.mxu0 %v773
        %2420 = vmatprep.subr.mxu0 %v737
        %2421 = vmatpush1.msra.mxu0 %v736
        %2422 = vmatprep.subr.mxu0 %v700
        %2423 = vmatpush1.msra.mxu0 %v699
        %2424 = vmatprep.subr.mxu0 %v663
        %2425 = vmatpush1.msra.mxu0 %v662
        %2426 = vmatprep.subr.mxu0 %v626
        %2427 = vmatpush1.msra.mxu0 %v625
        %2428 = vmatprep.subr.mxu0 %v589
        %2429 = vmatpush1.msra.mxu0 %v588
        %2430 = vmatprep.subr.mxu0 %v552
        %2431 = vmatpush1.msra.mxu0 %v551
        %2432 = vmatprep.subr.mxu0 %v515
        %2433 = vmatpush1.msra.mxu0 %v514
        %2434 = vmatprep.subr.mxu0 %v478
        %2435 = vmatpush1.msra.mxu0 %v477
        %2436 = vmatprep.subr.mxu0 %v441
        %2437 = vmatpush1.msra.mxu0 %v440
        %2438 = vmatprep.subr.mxu0 %v404
        %2439 = vmatpush1.msra.mxu0 %v403
        %2440 = vmatprep.subr.mxu0 %v367
        %2441 = vmatpush1.msra.mxu0 %v366
        %2442 = vmatprep.subr.mxu0 %v330
        %2443 = vmatpush1.msra.mxu0 %v329
        %2444 = vmatprep.subr.mxu0 %v293
        %2445 = vmatpush1.msra.mxu0 %v292
        %2446 = vmatprep.subr.mxu0 %v256
        %2447 = vmatpush1.msra.mxu0 %v255
        %2448 = vmatprep.subr.mxu0 %v1403
        %2449 = vmatpush2.msra.mxu0 %v1402
        %2450 = vmatprep.subr.mxu0 %v1366
        %2451 = vmatpush2.msra.mxu0 %v1365
        %2452 = vmatprep.subr.mxu0 %v1329
        %2453 = vmatpush2.msra.mxu0 %v1328
        %2454 = vmatprep.subr.mxu0 %v1292
        %2455 = vmatpush2.msra.mxu0 %v1291
        %2456 = vmatprep.subr.mxu0 %v1255
        %2457 = vmatpush2.msra.mxu0 %v1254
        %2458 = vmatprep.subr.mxu0 %v1218
        %2459 = vmatpush2.msra.mxu0 %v1217
        %2460 = vmatprep.subr.mxu0 %v1181
        %2461 = vmatpush2.msra.mxu0 %v1180
        %2462 = vmatprep.subr.mxu0 %v1144
        %2463 = vmatpush2.msra.mxu0 %v1143
        %2464 = vmatprep.subr.mxu0 %v1107
        %2465 = vmatpush2.msra.mxu0 %v1106
        %2466 = vmatprep.subr.mxu0 %v1070
        %2467 = vmatpush2.msra.mxu0 %v1069
        %2468 = vmatprep.subr.mxu0 %v1033
        %2469 = vmatpush2.msra.mxu0 %v1032
        %2470 = vmatprep.subr.mxu0 %v996
        %2471 = vmatpush2.msra.mxu0 %v995
        %2472 = vmatprep.subr.mxu0 %v959
        %2473 = vmatpush2.msra.mxu0 %v958
        %2474 = vmatprep.subr.mxu0 %v922
        %2475 = vmatpush2.msra.mxu0 %v921
        %2476 = vmatprep.subr.mxu0 %v885
        %2477 = vmatpush2.msra.mxu0 %v884
        %2478 = vmatprep.subr.mxu0 %v848
        %2479 = vmatpush2.msra.mxu0 %v847
        %2480 = vmatprep.mubr.f32.mxu0 %v1419
        %2481 = vmatmul.mubr.f32.gmra.mxu0 %v1418
        %v2482 = vpop.f32.mrf.mxu0
        %v2483 = vadd.f32 0.0, %v2482
        %v2484 = vpop.f32.mrf.mxu0
        %v2485 = vadd.f32 0.0, %v2484
        %2486 = vdwg.mxu0
        %2487 = vmatprep.subr.mxu0 %v813
        %2488 = vmatpush1.msra.mxu0 %v812
        %2489 = vmatprep.subr.mxu0 %v776
        %2490 = vmatpush1.msra.mxu0 %v775
        %2491 = vmatprep.subr.mxu0 %v739
        %2492 = vmatpush1.msra.mxu0 %v738
        %2493 = vmatprep.subr.mxu0 %v702
        %2494 = vmatpush1.msra.mxu0 %v701
        %2495 = vmatprep.subr.mxu0 %v665
        %2496 = vmatpush1.msra.mxu0 %v664
        %2497 = vmatprep.subr.mxu0 %v628
        %2498 = vmatpush1.msra.mxu0 %v627
        %2499 = vmatprep.subr.mxu0 %v591
        %2500 = vmatpush1.msra.mxu0 %v590
        %2501 = vmatprep.subr.mxu0 %v554
        %2502 = vmatpush1.msra.mxu0 %v553
        %2503 = vmatprep.subr.mxu0 %v517
        %2504 = vmatpush1.msra.mxu0 %v516
        %2505 = vmatprep.subr.mxu0 %v480
        %2506 = vmatpush1.msra.mxu0 %v479
        %2507 = vmatprep.subr.mxu0 %v443
        %2508 = vmatpush1.msra.mxu0 %v442
        %2509 = vmatprep.subr.mxu0 %v406
        %2510 = vmatpush1.msra.mxu0 %v405
        %2511 = vmatprep.subr.mxu0 %v369
        %2512 = vmatpush1.msra.mxu0 %v368
        %2513 = vmatprep.subr.mxu0 %v332
        %2514 = vmatpush1.msra.mxu0 %v331
        %2515 = vmatprep.subr.mxu0 %v295
        %2516 = vmatpush1.msra.mxu0 %v294
        %2517 = vmatprep.subr.mxu0 %v258
        %2518 = vmatpush1.msra.mxu0 %v257
        %2519 = vmatprep.subr.mxu0 %v1405
        %2520 = vmatpush2.msra.mxu0 %v1404
        %2521 = vmatprep.subr.mxu0 %v1368
        %2522 = vmatpush2.msra.mxu0 %v1367
        %2523 = vmatprep.subr.mxu0 %v1331
        %2524 = vmatpush2.msra.mxu0 %v1330
        %2525 = vmatprep.subr.mxu0 %v1294
        %2526 = vmatpush2.msra.mxu0 %v1293
        %2527 = vmatprep.subr.mxu0 %v1257
        %2528 = vmatpush2.msra.mxu0 %v1256
        %2529 = vmatprep.subr.mxu0 %v1220
        %2530 = vmatpush2.msra.mxu0 %v1219
        %2531 = vmatprep.subr.mxu0 %v1183
        %2532 = vmatpush2.msra.mxu0 %v1182
        %2533 = vmatprep.subr.mxu0 %v1146
        %2534 = vmatpush2.msra.mxu0 %v1145
        %2535 = vmatprep.subr.mxu0 %v1109
        %2536 = vmatpush2.msra.mxu0 %v1108
        %2537 = vmatprep.subr.mxu0 %v1072
        %2538 = vmatpush2.msra.mxu0 %v1071
        %2539 = vmatprep.subr.mxu0 %v1035
        %2540 = vmatpush2.msra.mxu0 %v1034
        %2541 = vmatprep.subr.mxu0 %v998
        %2542 = vmatpush2.msra.mxu0 %v997
        %2543 = vmatprep.subr.mxu0 %v961
        %2544 = vmatpush2.msra.mxu0 %v960
        %2545 = vmatprep.subr.mxu0 %v924
        %2546 = vmatpush2.msra.mxu0 %v923
        %2547 = vmatprep.subr.mxu0 %v887
        %2548 = vmatpush2.msra.mxu0 %v886
        %2549 = vmatprep.subr.mxu0 %v850
        %2550 = vmatpush2.msra.mxu0 %v849
        %2551 = vmatprep.mubr.f32.mxu0 %v1419
        %2552 = vmatmul.mubr.f32.gmra.mxu0 %v1418
        %v2553 = vpop.f32.mrf.mxu0
        %v2554 = vadd.f32 0.0, %v2553
        %v2555 = vpop.f32.mrf.mxu0
        %v2556 = vadd.f32 0.0, %v2555
        %2557 = vdwg.mxu0
        %2558 = vmatprep.subr.mxu0 %v815
        %2559 = vmatpush1.msra.mxu0 %v814
        %2560 = vmatprep.subr.mxu0 %v778
        %2561 = vmatpush1.msra.mxu0 %v777
        %2562 = vmatprep.subr.mxu0 %v741
        %2563 = vmatpush1.msra.mxu0 %v740
        %2564 = vmatprep.subr.mxu0 %v704
        %2565 = vmatpush1.msra.mxu0 %v703
        %2566 = vmatprep.subr.mxu0 %v667
        %2567 = vmatpush1.msra.mxu0 %v666
        %2568 = vmatprep.subr.mxu0 %v630
        %2569 = vmatpush1.msra.mxu0 %v629
        %2570 = vmatprep.subr.mxu0 %v593
        %2571 = vmatpush1.msra.mxu0 %v592
        %2572 = vmatprep.subr.mxu0 %v556
        %2573 = vmatpush1.msra.mxu0 %v555
        %2574 = vmatprep.subr.mxu0 %v519
        %2575 = vmatpush1.msra.mxu0 %v518
        %2576 = vmatprep.subr.mxu0 %v482
        %2577 = vmatpush1.msra.mxu0 %v481
        %2578 = vmatprep.subr.mxu0 %v445
        %2579 = vmatpush1.msra.mxu0 %v444
        %2580 = vmatprep.subr.mxu0 %v408
        %2581 = vmatpush1.msra.mxu0 %v407
        %2582 = vmatprep.subr.mxu0 %v371
        %2583 = vmatpush1.msra.mxu0 %v370
        %2584 = vmatprep.subr.mxu0 %v334
        %2585 = vmatpush1.msra.mxu0 %v333
        %2586 = vmatprep.subr.mxu0 %v297
        %2587 = vmatpush1.msra.mxu0 %v296
        %2588 = vmatprep.subr.mxu0 %v260
        %2589 = vmatpush1.msra.mxu0 %v259
        %2590 = vmatprep.subr.mxu0 %v1407
        %2591 = vmatpush2.msra.mxu0 %v1406
        %2592 = vmatprep.subr.mxu0 %v1370
        %2593 = vmatpush2.msra.mxu0 %v1369
        %2594 = vmatprep.subr.mxu0 %v1333
        %2595 = vmatpush2.msra.mxu0 %v1332
        %2596 = vmatprep.subr.mxu0 %v1296
        %2597 = vmatpush2.msra.mxu0 %v1295
        %2598 = vmatprep.subr.mxu0 %v1259
        %2599 = vmatpush2.msra.mxu0 %v1258
        %2600 = vmatprep.subr.mxu0 %v1222
        %2601 = vmatpush2.msra.mxu0 %v1221
        %2602 = vmatprep.subr.mxu0 %v1185
        %2603 = vmatpush2.msra.mxu0 %v1184
        %2604 = vmatprep.subr.mxu0 %v1148
        %2605 = vmatpush2.msra.mxu0 %v1147
        %2606 = vmatprep.subr.mxu0 %v1111
        %2607 = vmatpush2.msra.mxu0 %v1110
        %2608 = vmatprep.subr.mxu0 %v1074
        %2609 = vmatpush2.msra.mxu0 %v1073
        %2610 = vmatprep.subr.mxu0 %v1037
        %2611 = vmatpush2.msra.mxu0 %v1036
        %2612 = vmatprep.subr.mxu0 %v1000
        %2613 = vmatpush2.msra.mxu0 %v999
        %2614 = vmatprep.subr.mxu0 %v963
        %2615 = vmatpush2.msra.mxu0 %v962
        %2616 = vmatprep.subr.mxu0 %v926
        %2617 = vmatpush2.msra.mxu0 %v925
        %2618 = vmatprep.subr.mxu0 %v889
        %2619 = vmatpush2.msra.mxu0 %v888
        %2620 = vmatprep.subr.mxu0 %v852
        %2621 = vmatpush2.msra.mxu0 %v851
        %2622 = vmatprep.mubr.f32.mxu0 %v1419
        %2623 = vmatmul.mubr.f32.gmra.mxu0 %v1418
        %v2624 = vpop.f32.mrf.mxu0
        %v2625 = vadd.f32 0.0, %v2624
        %v2626 = vpop.f32.mrf.mxu0
        %v2627 = vadd.f32 0.0, %v2626
        %2628 = vdwg.mxu0
        %2629 = vmatprep.subr.mxu0 %v817
        %2630 = vmatpush1.msra.mxu0 %v816
        %2631 = vmatprep.subr.mxu0 %v780
        %2632 = vmatpush1.msra.mxu0 %v779
        %2633 = vmatprep.subr.mxu0 %v743
        %2634 = vmatpush1.msra.mxu0 %v742
        %2635 = vmatprep.subr.mxu0 %v706
        %2636 = vmatpush1.msra.mxu0 %v705
        %2637 = vmatprep.subr.mxu0 %v669
        %2638 = vmatpush1.msra.mxu0 %v668
        %2639 = vmatprep.subr.mxu0 %v632
        %2640 = vmatpush1.msra.mxu0 %v631
        %2641 = vmatprep.subr.mxu0 %v595
        %2642 = vmatpush1.msra.mxu0 %v594
        %2643 = vmatprep.subr.mxu0 %v558
        %2644 = vmatpush1.msra.mxu0 %v557
        %2645 = vmatprep.subr.mxu0 %v521
        %2646 = vmatpush1.msra.mxu0 %v520
        %2647 = vmatprep.subr.mxu0 %v484
        %2648 = vmatpush1.msra.mxu0 %v483
        %2649 = vmatprep.subr.mxu0 %v447
        %2650 = vmatpush1.msra.mxu0 %v446
        %2651 = vmatprep.subr.mxu0 %v410
        %2652 = vmatpush1.msra.mxu0 %v409
        %2653 = vmatprep.subr.mxu0 %v373
        %2654 = vmatpush1.msra.mxu0 %v372
        %2655 = vmatprep.subr.mxu0 %v336
        %2656 = vmatpush1.msra.mxu0 %v335
        %2657 = vmatprep.subr.mxu0 %v299
        %2658 = vmatpush1.msra.mxu0 %v298
        %2659 = vmatprep.subr.mxu0 %v262
        %2660 = vmatpush1.msra.mxu0 %v261
        %2661 = vmatprep.subr.mxu0 %v1409
        %2662 = vmatpush2.msra.mxu0 %v1408
        %2663 = vmatprep.subr.mxu0 %v1372
        %2664 = vmatpush2.msra.mxu0 %v1371
        %2665 = vmatprep.subr.mxu0 %v1335
        %2666 = vmatpush2.msra.mxu0 %v1334
        %2667 = vmatprep.subr.mxu0 %v1298
        %2668 = vmatpush2.msra.mxu0 %v1297
        %2669 = vmatprep.subr.mxu0 %v1261
        %2670 = vmatpush2.msra.mxu0 %v1260
        %2671 = vmatprep.subr.mxu0 %v1224
        %2672 = vmatpush2.msra.mxu0 %v1223
        %2673 = vmatprep.subr.mxu0 %v1187
        %2674 = vmatpush2.msra.mxu0 %v1186
        %2675 = vmatprep.subr.mxu0 %v1150
        %2676 = vmatpush2.msra.mxu0 %v1149
        %2677 = vmatprep.subr.mxu0 %v1113
        %2678 = vmatpush2.msra.mxu0 %v1112
        %2679 = vmatprep.subr.mxu0 %v1076
        %2680 = vmatpush2.msra.mxu0 %v1075
        %2681 = vmatprep.subr.mxu0 %v1039
        %2682 = vmatpush2.msra.mxu0 %v1038
        %2683 = vmatprep.subr.mxu0 %v1002
        %2684 = vmatpush2.msra.mxu0 %v1001
        %2685 = vmatprep.subr.mxu0 %v965
        %2686 = vmatpush2.msra.mxu0 %v964
        %2687 = vmatprep.subr.mxu0 %v928
        %2688 = vmatpush2.msra.mxu0 %v927
        %2689 = vmatprep.subr.mxu0 %v891
        %2690 = vmatpush2.msra.mxu0 %v890
        %2691 = vmatprep.subr.mxu0 %v854
        %2692 = vmatpush2.msra.mxu0 %v853
        %2693 = vmatprep.mubr.f32.mxu0 %v1419
        %2694 = vmatmul.mubr.f32.gmra.mxu0 %v1418
        %v2695 = vpop.f32.mrf.mxu0
        %v2696 = vadd.f32 0.0, %v2695
        %v2697 = vpop.f32.mrf.mxu0
        %v2698 = vadd.f32 0.0, %v2697
        %2699 = vdwg.mxu0
        %2700 = vmatprep.subr.mxu0 0.0
        %2701 = vmatpush1.msra.mxu0 %v818
        %2702 = vmatprep.subr.mxu0 0.0
        %2703 = vmatpush1.msra.mxu0 %v781
        %2704 = vmatprep.subr.mxu0 0.0
        %2705 = vmatpush1.msra.mxu0 %v744
        %2706 = vmatprep.subr.mxu0 0.0
        %2707 = vmatpush1.msra.mxu0 %v707
        %2708 = vmatprep.subr.mxu0 0.0
        %2709 = vmatpush1.msra.mxu0 %v670
        %2710 = vmatprep.subr.mxu0 0.0
        %2711 = vmatpush1.msra.mxu0 %v633
        %2712 = vmatprep.subr.mxu0 0.0
        %2713 = vmatpush1.msra.mxu0 %v596
        %2714 = vmatprep.subr.mxu0 0.0
        %2715 = vmatpush1.msra.mxu0 %v559
        %2716 = vmatprep.subr.mxu0 0.0
        %2717 = vmatpush1.msra.mxu0 %v522
        %2718 = vmatprep.subr.mxu0 0.0
        %2719 = vmatpush1.msra.mxu0 %v485
        %2720 = vmatprep.subr.mxu0 0.0
        %2721 = vmatpush1.msra.mxu0 %v448
        %2722 = vmatprep.subr.mxu0 0.0
        %2723 = vmatpush1.msra.mxu0 %v411
        %2724 = vmatprep.subr.mxu0 0.0
        %2725 = vmatpush1.msra.mxu0 %v374
        %2726 = vmatprep.subr.mxu0 0.0
        %2727 = vmatpush1.msra.mxu0 %v337
        %2728 = vmatprep.subr.mxu0 0.0
        %2729 = vmatpush1.msra.mxu0 %v300
        %2730 = vmatprep.subr.mxu0 0.0
        %2731 = vmatpush1.msra.mxu0 %v263
        %2732 = vmatprep.subr.mxu0 0.0
        %2733 = vmatpush2.msra.mxu0 %v1410
        %2734 = vmatprep.subr.mxu0 0.0
        %2735 = vmatpush2.msra.mxu0 %v1373
        %2736 = vmatprep.subr.mxu0 0.0
        %2737 = vmatpush2.msra.mxu0 %v1336
        %2738 = vmatprep.subr.mxu0 0.0
        %2739 = vmatpush2.msra.mxu0 %v1299
        %2740 = vmatprep.subr.mxu0 0.0
        %2741 = vmatpush2.msra.mxu0 %v1262
        %2742 = vmatprep.subr.mxu0 0.0
        %2743 = vmatpush2.msra.mxu0 %v1225
        %2744 = vmatprep.subr.mxu0 0.0
        %2745 = vmatpush2.msra.mxu0 %v1188
        %2746 = vmatprep.subr.mxu0 0.0
        %2747 = vmatpush2.msra.mxu0 %v1151
        %2748 = vmatprep.subr.mxu0 0.0
        %2749 = vmatpush2.msra.mxu0 %v1114
        %2750 = vmatprep.subr.mxu0 0.0
        %2751 = vmatpush2.msra.mxu0 %v1077
        %2752 = vmatprep.subr.mxu0 0.0
        %2753 = vmatpush2.msra.mxu0 %v1040
        %2754 = vmatprep.subr.mxu0 0.0
        %2755 = vmatpush2.msra.mxu0 %v1003
        %2756 = vmatprep.subr.mxu0 0.0
        %2757 = vmatpush2.msra.mxu0 %v966
        %2758 = vmatprep.subr.mxu0 0.0
        %2759 = vmatpush2.msra.mxu0 %v929
        %2760 = vmatprep.subr.mxu0 0.0
        %2761 = vmatpush2.msra.mxu0 %v892
        %2762 = vmatprep.subr.mxu0 0.0
        %2763 = vmatpush2.msra.mxu0 %v855
        %2764 = vmatprep.mubr.f32.mxu0 %v1419
        %2765 = vmatmul.mubr.f32.gmra.mxu0 %v1418
        %v2766 = vpop.f32.mrf.mxu0
        %v2767 = vadd.f32 0.0, %v2766
        %v2768 = vpop.f32.mrf.mxu0
        %2769 = vdwg.mxu0
        %v2807 = vcombine.low %v1489, %v1491
        %v2808 = vcombine.low %v1560, %v1562
        %v2810 = vunpack.c.l.s4 1983009808
        %v2811 = vunpack.c.0.s8 %v2810
        %v2812 = vlaneseq
        %v2813 = vshrl.u32 %v2812, 7
        %v2814 = vsub.s32 %v2811, %v2813
        %v2815 = vrot.slane %v2807, %v2814
        %v2817 = vunpack.c.l.s4 1983009808
        %v2818 = vunpack.c.0.s8 %v2817
        %v2819 = vlaneseq
        %v2820 = vshrl.u32 %v2819, 7
        %v2821 = vsub.s32 %v2818, %v2820
        %v2822 = vrot.slane %v2808, %v2821
        %v2823 = vcombine.low %v2815, %v2822
        %v2824 = vcombine.low %v1631, %v1633
        %v2825 = vcombine.low %v1702, %v1704
        %v2827 = vunpack.c.l.s4 1983009808
        %v2828 = vunpack.c.0.s8 %v2827
        %v2829 = vlaneseq
        %v2830 = vshrl.u32 %v2829, 7
        %v2831 = vsub.s32 %v2828, %v2830
        %v2832 = vrot.slane %v2824, %v2831
        %v2834 = vunpack.c.l.s4 1983009808
        %v2835 = vunpack.c.0.s8 %v2834
        %v2836 = vlaneseq
        %v2837 = vshrl.u32 %v2836, 7
        %v2838 = vsub.s32 %v2835, %v2837
        %v2839 = vrot.slane %v2825, %v2838
        %v2840 = vcombine.low %v2832, %v2839
        %v2841 = vcombine.low %v1773, %v1775
        %v2842 = vcombine.low %v1844, %v1846
        %v2844 = vunpack.c.l.s4 1983009808
        %v2845 = vunpack.c.0.s8 %v2844
        %v2846 = vlaneseq
        %v2847 = vshrl.u32 %v2846, 7
        %v2848 = vsub.s32 %v2845, %v2847
        %v2849 = vrot.slane %v2841, %v2848
        %v2851 = vunpack.c.l.s4 1983009808
        %v2852 = vunpack.c.0.s8 %v2851
        %v2853 = vlaneseq
        %v2854 = vshrl.u32 %v2853, 7
        %v2855 = vsub.s32 %v2852, %v2854
        %v2856 = vrot.slane %v2842, %v2855
        %v2857 = vcombine.low %v2849, %v2856
        %v2858 = vcombine.low %v1915, %v1917
        %v2859 = vcombine.low %v1986, %v1988
        %v2861 = vunpack.c.l.s4 1983009808
        %v2862 = vunpack.c.0.s8 %v2861
        %v2863 = vlaneseq
        %v2864 = vshrl.u32 %v2863, 7
        %v2865 = vsub.s32 %v2862, %v2864
        %v2866 = vrot.slane %v2858, %v2865
        %v2868 = vunpack.c.l.s4 1983009808
        %v2869 = vunpack.c.0.s8 %v2868
        %v2870 = vlaneseq
        %v2871 = vshrl.u32 %v2870, 7
        %v2872 = vsub.s32 %v2869, %v2871
        %v2873 = vrot.slane %v2859, %v2872
        %v2874 = vcombine.low %v2866, %v2873
        %v2875 = vcombine.low %v2057, %v2059
        %v2876 = vcombine.low %v2128, %v2130
        %v2878 = vunpack.c.l.s4 1983009808
        %v2879 = vunpack.c.0.s8 %v2878
        %v2880 = vlaneseq
        %v2881 = vshrl.u32 %v2880, 7
        %v2882 = vsub.s32 %v2879, %v2881
        %v2883 = vrot.slane %v2875, %v2882
        %v2885 = vunpack.c.l.s4 1983009808
        %v2886 = vunpack.c.0.s8 %v2885
        %v2887 = vlaneseq
        %v2888 = vshrl.u32 %v2887, 7
        %v2889 = vsub.s32 %v2886, %v2888
        %v2890 = vrot.slane %v2876, %v2889
        %v2891 = vcombine.low %v2883, %v2890
        %v2892 = vcombine.low %v2199, %v2201
        %v2893 = vcombine.low %v2270, %v2272
        %v2895 = vunpack.c.l.s4 1983009808
        %v2896 = vunpack.c.0.s8 %v2895
        %v2897 = vlaneseq
        %v2898 = vshrl.u32 %v2897, 7
        %v2899 = vsub.s32 %v2896, %v2898
        %v2900 = vrot.slane %v2892, %v2899
        %v2902 = vunpack.c.l.s4 1983009808
        %v2903 = vunpack.c.0.s8 %v2902
        %v2904 = vlaneseq
        %v2905 = vshrl.u32 %v2904, 7
        %v2906 = vsub.s32 %v2903, %v2905
        %v2907 = vrot.slane %v2893, %v2906
        %v2908 = vcombine.low %v2900, %v2907
        %v2909 = vcombine.low %v2341, %v2343
        %v2910 = vcombine.low %v2412, %v2414
        %v2912 = vunpack.c.l.s4 1983009808
        %v2913 = vunpack.c.0.s8 %v2912
        %v2914 = vlaneseq
        %v2915 = vshrl.u32 %v2914, 7
        %v2916 = vsub.s32 %v2913, %v2915
        %v2917 = vrot.slane %v2909, %v2916
        %v2919 = vunpack.c.l.s4 1983009808
        %v2920 = vunpack.c.0.s8 %v2919
        %v2921 = vlaneseq
        %v2922 = vshrl.u32 %v2921, 7
        %v2923 = vsub.s32 %v2920, %v2922
        %v2924 = vrot.slane %v2910, %v2923
        %v2925 = vcombine.low %v2917, %v2924
        %v2926 = vcombine.low %v2483, %v2485
        %v2927 = vcombine.low %v2554, %v2556
        %v2929 = vunpack.c.l.s4 1983009808
        %v2930 = vunpack.c.0.s8 %v2929
        %v2931 = vlaneseq
        %v2932 = vshrl.u32 %v2931, 7
        %v2933 = vsub.s32 %v2930, %v2932
        %v2934 = vrot.slane %v2926, %v2933
        %v2936 = vunpack.c.l.s4 1983009808
        %v2937 = vunpack.c.0.s8 %v2936
        %v2938 = vlaneseq
        %v2939 = vshrl.u32 %v2938, 7
        %v2940 = vsub.s32 %v2937, %v2939
        %v2941 = vrot.slane %v2927, %v2940
        %v2942 = vcombine.low %v2934, %v2941
        %v2943 = vcombine.low %v2625, %v2627
        %v2944 = vcombine.low %v2696, %v2698
        %v2946 = vunpack.c.l.s4 1983009808
        %v2947 = vunpack.c.0.s8 %v2946
        %v2948 = vlaneseq
        %v2949 = vshrl.u32 %v2948, 7
        %v2950 = vsub.s32 %v2947, %v2949
        %v2951 = vrot.slane %v2943, %v2950
        %v2953 = vunpack.c.l.s4 1983009808
        %v2954 = vunpack.c.0.s8 %v2953
        %v2955 = vlaneseq
        %v2956 = vshrl.u32 %v2955, 7
        %v2957 = vsub.s32 %v2954, %v2956
        %v2958 = vrot.slane %v2944, %v2957
        %v2959 = vcombine.low %v2951, %v2958
        %v2961 = vunpack.c.l.s4 1983009808
        %v2962 = vunpack.c.0.s8 %v2961
        %v2963 = vlaneseq
        %v2964 = vshrl.u32 %v2963, 7
        %v2965 = vsub.s32 %v2962, %v2964
        %v2966 = vrot.slane %v2767, %v2965
        %v2977 = vadd.f32 %v216, %v2823
        %v2978 = vadd.f32 %v217, %v2840
        %v2979 = vadd.f32 %v218, %v2857
        %v2980 = vadd.f32 %v219, %v2874
        %v2981 = vadd.f32 %v220, %v2891
        %v2982 = vadd.f32 %v221, %v2908
        %v2983 = vadd.f32 %v222, %v2925
        %v2984 = vadd.f32 %v223, %v2942
        %v2985 = vadd.f32 %v224, %v2959
        %v2986 = vadd.f32 %v225, %v2966
        %2987 = vst [vmem:[#allocation2] sm:$0xff] %v2977
        %2988 = vst [vmem:[#allocation2 + $0x8] sm:$0xff] %v2978
        %2989 = vst [vmem:[#allocation2 + $0x10] sm:$0xff] %v2979
        %2990 = vst [vmem:[#allocation2 + $0x18] sm:$0xff] %v2980
        %2991 = vst [vmem:[#allocation2 + $0x20] sm:$0xff] %v2981
        %2992 = vst [vmem:[#allocation2 + $0x28] sm:$0xff] %v2982
        %2993 = vst [vmem:[#allocation2 + $0x30] sm:$0xff] %v2983
        %2994 = vst [vmem:[#allocation2 + $0x38] sm:$0xff] %v2984
        %2995 = vst [vmem:[#allocation2 + $0x40] sm:$0xff] %v2985
        %vm2996 = vcmask 517120
        %2997 = vst.msk [vmem:[#allocation2 + $0x48] sm:$0x3] %vm2996, %v2986
        %p2998 = scmp.eq.s32.totalorder %s18, 31
        // Predicated region
        $region41: #{chessnet_forward.15} parent=31 // pred_check
          %p2999 = pneg %p2998
        $region42: #{chessnet_forward.15} parent=31 // pred_check_branch
          %3001 = sbr.rel (%p2999) target = $region44
        $region43: #{chessnet_forward.15} parent=31 // pred_region
          %v3002 = vld [vmem:[#allocation2] sm:$0xff]
          %v3003 = vld [vmem:[#allocation2 + $0x8] sm:$0xff]
          %v3004 = vld [vmem:[#allocation2 + $0x10] sm:$0xff]
          %v3005 = vld [vmem:[#allocation2 + $0x18] sm:$0xff]
          %v3006 = vld [vmem:[#allocation2 + $0x20] sm:$0xff]
          %v3007 = vld [vmem:[#allocation2 + $0x28] sm:$0xff]
          %v3008 = vld [vmem:[#allocation2 + $0x30] sm:$0xff]
          %v3009 = vld [vmem:[#allocation2 + $0x38] sm:$0xff]
          %v3010 = vld [vmem:[#allocation2 + $0x40] sm:$0xff]
          %v3011 = vld [vmem:[#allocation2 + $0x48] sm:$0x3]
          %v3012 = vld [vmem:[%s2] sm:$0xff]
          %v3013 = vld [vmem:[%s2 + $0x8] sm:$0xff]
          %v3014 = vld [vmem:[%s2 + $0x10] sm:$0xff]
          %v3015 = vld [vmem:[%s2 + $0x18] sm:$0xff]
          %v3016 = vld [vmem:[%s2 + $0x20] sm:$0x1f]
          %v3022 = vlaneseq
          %v3023 = vshrl.u32 %v3022, 7
          %v3024 = vsub.s32 0, %v3023
          %v3025 = vrot.slane %v3012, %v3024
          %v3026 = vlaneseq
          %v3027 = vshrl.u32 %v3026, 7
          %v3028 = vsub.s32 1, %v3027
          %v3029 = vrot.slane %v3012, %v3028
          %v3030 = vlaneseq
          %v3031 = vshrl.u32 %v3030, 7
          %v3032 = vsub.s32 2, %v3031
          %v3033 = vrot.slane %v3012, %v3032
          %v3034 = vlaneseq
          %v3035 = vshrl.u32 %v3034, 7
          %v3036 = vsub.s32 3, %v3035
          %v3037 = vrot.slane %v3012, %v3036
          %v3038 = vlaneseq
          %v3039 = vshrl.u32 %v3038, 7
          %v3040 = vsub.s32 4, %v3039
          %v3041 = vrot.slane %v3012, %v3040
          %v3042 = vlaneseq
          %v3043 = vshrl.u32 %v3042, 7
          %v3044 = vsub.s32 5, %v3043
          %v3045 = vrot.slane %v3012, %v3044
          %v3046 = vlaneseq
          %v3047 = vshrl.u32 %v3046, 7
          %v3048 = vsub.s32 6, %v3047
          %v3049 = vrot.slane %v3012, %v3048
          %v3050 = vlaneseq
          %v3051 = vshrl.u32 %v3050, 7
          %v3052 = vsub.s32 7, %v3051
          %v3053 = vrot.slane %v3012, %v3052
          %v3054 = vlaneseq
          %v3055 = vshrl.u32 %v3054, 7
          %v3056 = vsub.s32 0, %v3055
          %v3057 = vrot.slane %v3013, %v3056
          %v3058 = vlaneseq
          %v3059 = vshrl.u32 %v3058, 7
          %v3060 = vsub.s32 1, %v3059
          %v3061 = vrot.slane %v3013, %v3060
          %v3062 = vlaneseq
          %v3063 = vshrl.u32 %v3062, 7
          %v3064 = vsub.s32 2, %v3063
          %v3065 = vrot.slane %v3013, %v3064
          %v3066 = vlaneseq
          %v3067 = vshrl.u32 %v3066, 7
          %v3068 = vsub.s32 3, %v3067
          %v3069 = vrot.slane %v3013, %v3068
          %v3070 = vlaneseq
          %v3071 = vshrl.u32 %v3070, 7
          %v3072 = vsub.s32 4, %v3071
          %v3073 = vrot.slane %v3013, %v3072
          %v3074 = vlaneseq
          %v3075 = vshrl.u32 %v3074, 7
          %v3076 = vsub.s32 5, %v3075
          %v3077 = vrot.slane %v3013, %v3076
          %v3078 = vlaneseq
          %v3079 = vshrl.u32 %v3078, 7
          %v3080 = vsub.s32 6, %v3079
          %v3081 = vrot.slane %v3013, %v3080
          %v3082 = vlaneseq
          %v3083 = vshrl.u32 %v3082, 7
          %v3084 = vsub.s32 7, %v3083
          %v3085 = vrot.slane %v3013, %v3084
          %v3086 = vlaneseq
          %v3087 = vshrl.u32 %v3086, 7
          %v3088 = vsub.s32 0, %v3087
          %v3089 = vrot.slane %v3014, %v3088
          %v3090 = vlaneseq
          %v3091 = vshrl.u32 %v3090, 7
          %v3092 = vsub.s32 1, %v3091
          %v3093 = vrot.slane %v3014, %v3092
          %v3094 = vlaneseq
          %v3095 = vshrl.u32 %v3094, 7
          %v3096 = vsub.s32 2, %v3095
          %v3097 = vrot.slane %v3014, %v3096
          %v3098 = vlaneseq
          %v3099 = vshrl.u32 %v3098, 7
          %v3100 = vsub.s32 3, %v3099
          %v3101 = vrot.slane %v3014, %v3100
          %v3102 = vlaneseq
          %v3103 = vshrl.u32 %v3102, 7
          %v3104 = vsub.s32 4, %v3103
          %v3105 = vrot.slane %v3014, %v3104
          %v3106 = vlaneseq
          %v3107 = vshrl.u32 %v3106, 7
          %v3108 = vsub.s32 5, %v3107
          %v3109 = vrot.slane %v3014, %v3108
          %v3110 = vlaneseq
          %v3111 = vshrl.u32 %v3110, 7
          %v3112 = vsub.s32 6, %v3111
          %v3113 = vrot.slane %v3014, %v3112
          %v3114 = vlaneseq
          %v3115 = vshrl.u32 %v3114, 7
          %v3116 = vsub.s32 7, %v3115
          %v3117 = vrot.slane %v3014, %v3116
          %v3118 = vlaneseq
          %v3119 = vshrl.u32 %v3118, 7
          %v3120 = vsub.s32 0, %v3119
          %v3121 = vrot.slane %v3015, %v3120
          %v3122 = vlaneseq
          %v3123 = vshrl.u32 %v3122, 7
          %v3124 = vsub.s32 1, %v3123
          %v3125 = vrot.slane %v3015, %v3124
          %v3126 = vlaneseq
          %v3127 = vshrl.u32 %v3126, 7
          %v3128 = vsub.s32 2, %v3127
          %v3129 = vrot.slane %v3015, %v3128
          %v3130 = vlaneseq
          %v3131 = vshrl.u32 %v3130, 7
          %v3132 = vsub.s32 3, %v3131
          %v3133 = vrot.slane %v3015, %v3132
          %v3134 = vlaneseq
          %v3135 = vshrl.u32 %v3134, 7
          %v3136 = vsub.s32 4, %v3135
          %v3137 = vrot.slane %v3015, %v3136
          %v3138 = vlaneseq
          %v3139 = vshrl.u32 %v3138, 7
          %v3140 = vsub.s32 5, %v3139
          %v3141 = vrot.slane %v3015, %v3140
          %v3142 = vlaneseq
          %v3143 = vshrl.u32 %v3142, 7
          %v3144 = vsub.s32 6, %v3143
          %v3145 = vrot.slane %v3015, %v3144
          %v3146 = vlaneseq
          %v3147 = vshrl.u32 %v3146, 7
          %v3148 = vsub.s32 7, %v3147
          %v3149 = vrot.slane %v3015, %v3148
          %v3150 = vlaneseq
          %v3151 = vshrl.u32 %v3150, 7
          %v3152 = vsub.s32 0, %v3151
          %v3153 = vrot.slane %v3016, %v3152
          %v3154 = vlaneseq
          %v3155 = vshrl.u32 %v3154, 7
          %v3156 = vsub.s32 1, %v3155
          %v3157 = vrot.slane %v3016, %v3156
          %v3158 = vlaneseq
          %v3159 = vshrl.u32 %v3158, 7
          %v3160 = vsub.s32 2, %v3159
          %v3161 = vrot.slane %v3016, %v3160
          %v3162 = vlaneseq
          %v3163 = vshrl.u32 %v3162, 7
          %v3164 = vsub.s32 3, %v3163
          %v3165 = vrot.slane %v3016, %v3164
          %v3166 = vlaneseq
          %v3167 = vshrl.u32 %v3166, 7
          %v3168 = vsub.s32 4, %v3167
          %v3169 = vrot.slane %v3016, %v3168
          %v3170 = vcombine.low %v3025, %v3029
          %v3171 = vcombine.low %v3033, %v3037
          %v3173 = vunpack.c.l.s4 1983009808
          %v3174 = vunpack.c.0.s8 %v3173
          %v3175 = vlaneseq
          %v3176 = vshrl.u32 %v3175, 7
          %v3177 = vsub.s32 %v3174, %v3176
          %v3178 = vrot.slane %v3170, %v3177
          %v3180 = vunpack.c.l.s4 1983009808
          %v3181 = vunpack.c.0.s8 %v3180
          %v3182 = vlaneseq
          %v3183 = vshrl.u32 %v3182, 7
          %v3184 = vsub.s32 %v3181, %v3183
          %v3185 = vrot.slane %v3171, %v3184
          %v3186 = vcombine.low %v3178, %v3185
          %v3187 = vcombine.low %v3041, %v3045
          %v3188 = vcombine.low %v3049, %v3053
          %v3190 = vunpack.c.l.s4 1983009808
          %v3191 = vunpack.c.0.s8 %v3190
          %v3192 = vlaneseq
          %v3193 = vshrl.u32 %v3192, 7
          %v3194 = vsub.s32 %v3191, %v3193
          %v3195 = vrot.slane %v3187, %v3194
          %v3197 = vunpack.c.l.s4 1983009808
          %v3198 = vunpack.c.0.s8 %v3197
          %v3199 = vlaneseq
          %v3200 = vshrl.u32 %v3199, 7
          %v3201 = vsub.s32 %v3198, %v3200
          %v3202 = vrot.slane %v3188, %v3201
          %v3203 = vcombine.low %v3195, %v3202
          %v3204 = vcombine.low %v3057, %v3061
          %v3205 = vcombine.low %v3065, %v3069
          %v3207 = vunpack.c.l.s4 1983009808
          %v3208 = vunpack.c.0.s8 %v3207
          %v3209 = vlaneseq
          %v3210 = vshrl.u32 %v3209, 7
          %v3211 = vsub.s32 %v3208, %v3210
          %v3212 = vrot.slane %v3204, %v3211
          %v3214 = vunpack.c.l.s4 1983009808
          %v3215 = vunpack.c.0.s8 %v3214
          %v3216 = vlaneseq
          %v3217 = vshrl.u32 %v3216, 7
          %v3218 = vsub.s32 %v3215, %v3217
          %v3219 = vrot.slane %v3205, %v3218
          %v3220 = vcombine.low %v3212, %v3219
          %v3221 = vcombine.low %v3073, %v3077
          %v3222 = vcombine.low %v3081, %v3085
          %v3224 = vunpack.c.l.s4 1983009808
          %v3225 = vunpack.c.0.s8 %v3224
          %v3226 = vlaneseq
          %v3227 = vshrl.u32 %v3226, 7
          %v3228 = vsub.s32 %v3225, %v3227
          %v3229 = vrot.slane %v3221, %v3228
          %v3231 = vunpack.c.l.s4 1983009808
          %v3232 = vunpack.c.0.s8 %v3231
          %v3233 = vlaneseq
          %v3234 = vshrl.u32 %v3233, 7
          %v3235 = vsub.s32 %v3232, %v3234
          %v3236 = vrot.slane %v3222, %v3235
          %v3237 = vcombine.low %v3229, %v3236
          %v3238 = vcombine.low %v3089, %v3093
          %v3239 = vcombine.low %v3097, %v3101
          %v3241 = vunpack.c.l.s4 1983009808
          %v3242 = vunpack.c.0.s8 %v3241
          %v3243 = vlaneseq
          %v3244 = vshrl.u32 %v3243, 7
          %v3245 = vsub.s32 %v3242, %v3244
          %v3246 = vrot.slane %v3238, %v3245
          %v3248 = vunpack.c.l.s4 1983009808
          %v3249 = vunpack.c.0.s8 %v3248
          %v3250 = vlaneseq
          %v3251 = vshrl.u32 %v3250, 7
          %v3252 = vsub.s32 %v3249, %v3251
          %v3253 = vrot.slane %v3239, %v3252
          %v3254 = vcombine.low %v3246, %v3253
          %v3255 = vcombine.low %v3105, %v3109
          %v3256 = vcombine.low %v3113, %v3117
          %v3258 = vunpack.c.l.s4 1983009808
          %v3259 = vunpack.c.0.s8 %v3258
          %v3260 = vlaneseq
          %v3261 = vshrl.u32 %v3260, 7
          %v3262 = vsub.s32 %v3259, %v3261
          %v3263 = vrot.slane %v3255, %v3262
          %v3265 = vunpack.c.l.s4 1983009808
          %v3266 = vunpack.c.0.s8 %v3265
          %v3267 = vlaneseq
          %v3268 = vshrl.u32 %v3267, 7
          %v3269 = vsub.s32 %v3266, %v3268
          %v3270 = vrot.slane %v3256, %v3269
          %v3271 = vcombine.low %v3263, %v3270
          %v3272 = vcombine.low %v3121, %v3125
          %v3273 = vcombine.low %v3129, %v3133
          %v3275 = vunpack.c.l.s4 1983009808
          %v3276 = vunpack.c.0.s8 %v3275
          %v3277 = vlaneseq
          %v3278 = vshrl.u32 %v3277, 7
          %v3279 = vsub.s32 %v3276, %v3278
          %v3280 = vrot.slane %v3272, %v3279
          %v3282 = vunpack.c.l.s4 1983009808
          %v3283 = vunpack.c.0.s8 %v3282
          %v3284 = vlaneseq
          %v3285 = vshrl.u32 %v3284, 7
          %v3286 = vsub.s32 %v3283, %v3285
          %v3287 = vrot.slane %v3273, %v3286
          %v3288 = vcombine.low %v3280, %v3287
          %v3289 = vcombine.low %v3137, %v3141
          %v3290 = vcombine.low %v3145, %v3149
          %v3292 = vunpack.c.l.s4 1983009808
          %v3293 = vunpack.c.0.s8 %v3292
          %v3294 = vlaneseq
          %v3295 = vshrl.u32 %v3294, 7
          %v3296 = vsub.s32 %v3293, %v3295
          %v3297 = vrot.slane %v3289, %v3296
          %v3299 = vunpack.c.l.s4 1983009808
          %v3300 = vunpack.c.0.s8 %v3299
          %v3301 = vlaneseq
          %v3302 = vshrl.u32 %v3301, 7
          %v3303 = vsub.s32 %v3300, %v3302
          %v3304 = vrot.slane %v3290, %v3303
          %v3305 = vcombine.low %v3297, %v3304
          %v3306 = vcombine.low %v3153, %v3157
          %v3307 = vcombine.low %v3161, %v3165
          %v3309 = vunpack.c.l.s4 1983009808
          %v3310 = vunpack.c.0.s8 %v3309
          %v3311 = vlaneseq
          %v3312 = vshrl.u32 %v3311, 7
          %v3313 = vsub.s32 %v3310, %v3312
          %v3314 = vrot.slane %v3306, %v3313
          %v3316 = vunpack.c.l.s4 1983009808
          %v3317 = vunpack.c.0.s8 %v3316
          %v3318 = vlaneseq
          %v3319 = vshrl.u32 %v3318, 7
          %v3320 = vsub.s32 %v3317, %v3319
          %v3321 = vrot.slane %v3307, %v3320
          %v3322 = vcombine.low %v3314, %v3321
          %v3324 = vunpack.c.l.s4 1983009808
          %v3325 = vunpack.c.0.s8 %v3324
          %v3326 = vlaneseq
          %v3327 = vshrl.u32 %v3326, 7
          %v3328 = vsub.s32 %v3325, %v3327
          %v3329 = vrot.slane %v3169, %v3328
          %v3340 = vadd.f32 %v3002, %v3186
          %v3341 = vadd.f32 %v3003, %v3203
          %v3342 = vadd.f32 %v3004, %v3220
          %v3343 = vadd.f32 %v3005, %v3237
          %v3344 = vadd.f32 %v3006, %v3254
          %v3345 = vadd.f32 %v3007, %v3271
          %v3346 = vadd.f32 %v3008, %v3288
          %v3347 = vadd.f32 %v3009, %v3305
          %v3348 = vadd.f32 %v3010, %v3322
          %v3349 = vadd.f32 %v3011, %v3329
          %v3360 = vcombine.high %v3340, %v3340
          %v3362 = vunpack.c.l.s4 1983009808
          %v3363 = vunpack.c.0.s8 %v3362
          %v3364 = vlaneseq
          %v3365 = vshrl.u32 %v3364, 7
          %v3366 = vsub.s32 %v3363, %v3365
          %v3367 = vrot.slane %v3340, %v3366
          %v3369 = vunpack.c.l.s4 1983009808
          %v3370 = vunpack.c.0.s8 %v3369
          %v3371 = vlaneseq
          %v3372 = vshrl.u32 %v3371, 7
          %v3373 = vsub.s32 %v3370, %v3372
          %v3374 = vrot.slane %v3360, %v3373
          %v3375 = vcombine.high %v3367, %v3367
          %v3376 = vcombine.high %v3374, %v3374
          %v3377 = vcombine.high %v3341, %v3341
          %v3379 = vunpack.c.l.s4 1983009808
          %v3380 = vunpack.c.0.s8 %v3379
          %v3381 = vlaneseq
          %v3382 = vshrl.u32 %v3381, 7
          %v3383 = vsub.s32 %v3380, %v3382
          %v3384 = vrot.slane %v3341, %v3383
          %v3386 = vunpack.c.l.s4 1983009808
          %v3387 = vunpack.c.0.s8 %v3386
          %v3388 = vlaneseq
          %v3389 = vshrl.u32 %v3388, 7
          %v3390 = vsub.s32 %v3387, %v3389
          %v3391 = vrot.slane %v3377, %v3390
          %v3392 = vcombine.high %v3384, %v3384
          %v3393 = vcombine.high %v3391, %v3391
          %v3394 = vcombine.high %v3342, %v3342
          %v3396 = vunpack.c.l.s4 1983009808
          %v3397 = vunpack.c.0.s8 %v3396
          %v3398 = vlaneseq
          %v3399 = vshrl.u32 %v3398, 7
          %v3400 = vsub.s32 %v3397, %v3399
          %v3401 = vrot.slane %v3342, %v3400
          %v3403 = vunpack.c.l.s4 1983009808
          %v3404 = vunpack.c.0.s8 %v3403
          %v3405 = vlaneseq
          %v3406 = vshrl.u32 %v3405, 7
          %v3407 = vsub.s32 %v3404, %v3406
          %v3408 = vrot.slane %v3394, %v3407
          %v3409 = vcombine.high %v3401, %v3401
          %v3410 = vcombine.high %v3408, %v3408
          %v3411 = vcombine.high %v3343, %v3343
          %v3413 = vunpack.c.l.s4 1983009808
          %v3414 = vunpack.c.0.s8 %v3413
          %v3415 = vlaneseq
          %v3416 = vshrl.u32 %v3415, 7
          %v3417 = vsub.s32 %v3414, %v3416
          %v3418 = vrot.slane %v3343, %v3417
          %v3420 = vunpack.c.l.s4 1983009808
          %v3421 = vunpack.c.0.s8 %v3420
          %v3422 = vlaneseq
          %v3423 = vshrl.u32 %v3422, 7
          %v3424 = vsub.s32 %v3421, %v3423
          %v3425 = vrot.slane %v3411, %v3424
          %v3426 = vcombine.high %v3418, %v3418
          %v3427 = vcombine.high %v3425, %v3425
          %v3428 = vcombine.high %v3344, %v3344
          %v3430 = vunpack.c.l.s4 1983009808
          %v3431 = vunpack.c.0.s8 %v3430
          %v3432 = vlaneseq
          %v3433 = vshrl.u32 %v3432, 7
          %v3434 = vsub.s32 %v3431, %v3433
          %v3435 = vrot.slane %v3344, %v3434
          %v3437 = vunpack.c.l.s4 1983009808
          %v3438 = vunpack.c.0.s8 %v3437
          %v3439 = vlaneseq
          %v3440 = vshrl.u32 %v3439, 7
          %v3441 = vsub.s32 %v3438, %v3440
          %v3442 = vrot.slane %v3428, %v3441
          %v3443 = vcombine.high %v3435, %v3435
          %v3444 = vcombine.high %v3442, %v3442
          %v3445 = vcombine.high %v3345, %v3345
          %v3447 = vunpack.c.l.s4 1983009808
          %v3448 = vunpack.c.0.s8 %v3447
          %v3449 = vlaneseq
          %v3450 = vshrl.u32 %v3449, 7
          %v3451 = vsub.s32 %v3448, %v3450
          %v3452 = vrot.slane %v3345, %v3451
          %v3454 = vunpack.c.l.s4 1983009808
          %v3455 = vunpack.c.0.s8 %v3454
          %v3456 = vlaneseq
          %v3457 = vshrl.u32 %v3456, 7
          %v3458 = vsub.s32 %v3455, %v3457
          %v3459 = vrot.slane %v3445, %v3458
          %v3460 = vcombine.high %v3452, %v3452
          %v3461 = vcombine.high %v3459, %v3459
          %v3462 = vcombine.high %v3346, %v3346
          %v3464 = vunpack.c.l.s4 1983009808
          %v3465 = vunpack.c.0.s8 %v3464
          %v3466 = vlaneseq
          %v3467 = vshrl.u32 %v3466, 7
          %v3468 = vsub.s32 %v3465, %v3467
          %v3469 = vrot.slane %v3346, %v3468
          %v3471 = vunpack.c.l.s4 1983009808
          %v3472 = vunpack.c.0.s8 %v3471
          %v3473 = vlaneseq
          %v3474 = vshrl.u32 %v3473, 7
          %v3475 = vsub.s32 %v3472, %v3474
          %v3476 = vrot.slane %v3462, %v3475
          %v3477 = vcombine.high %v3469, %v3469
          %v3478 = vcombine.high %v3476, %v3476
          %v3479 = vcombine.high %v3347, %v3347
          %v3481 = vunpack.c.l.s4 1983009808
          %v3482 = vunpack.c.0.s8 %v3481
          %v3483 = vlaneseq
          %v3484 = vshrl.u32 %v3483, 7
          %v3485 = vsub.s32 %v3482, %v3484
          %v3486 = vrot.slane %v3347, %v3485
          %v3488 = vunpack.c.l.s4 1983009808
          %v3489 = vunpack.c.0.s8 %v3488
          %v3490 = vlaneseq
          %v3491 = vshrl.u32 %v3490, 7
          %v3492 = vsub.s32 %v3489, %v3491
          %v3493 = vrot.slane %v3479, %v3492
          %v3494 = vcombine.high %v3486, %v3486
          %v3495 = vcombine.high %v3493, %v3493
          %v3496 = vcombine.high %v3348, %v3348
          %v3498 = vunpack.c.l.s4 1983009808
          %v3499 = vunpack.c.0.s8 %v3498
          %v3500 = vlaneseq
          %v3501 = vshrl.u32 %v3500, 7
          %v3502 = vsub.s32 %v3499, %v3501
          %v3503 = vrot.slane %v3348, %v3502
          %v3505 = vunpack.c.l.s4 1983009808
          %v3506 = vunpack.c.0.s8 %v3505
          %v3507 = vlaneseq
          %v3508 = vshrl.u32 %v3507, 7
          %v3509 = vsub.s32 %v3506, %v3508
          %v3510 = vrot.slane %v3496, %v3509
          %v3511 = vcombine.high %v3503, %v3503
          %v3512 = vcombine.high %v3510, %v3510
          %v3514 = vunpack.c.l.s4 1983009808
          %v3515 = vunpack.c.0.s8 %v3514
          %v3516 = vlaneseq
          %v3517 = vshrl.u32 %v3516, 7
          %v3518 = vsub.s32 %v3515, %v3517
          %v3519 = vrot.slane %v3349, %v3518
          %vm3557 = vcmask 1041408
          %v3558 = vsel %vm3557, %v3367, -inf
          %v3559 = vsel %vm3557, %v3375, -inf
          %v3560 = vsel %vm3557, %v3374, -inf
          %v3561 = vsel %vm3557, %v3376, -inf
          %v3562 = vsel %vm3557, %v3384, -inf
          %v3563 = vmax.f32 %v3558, %v3562
          %v3564 = vsel %vm3557, %v3392, -inf
          %v3565 = vmax.f32 %v3559, %v3564
          %v3566 = vsel %vm3557, %v3391, -inf
          %v3567 = vmax.f32 %v3560, %v3566
          %v3568 = vsel %vm3557, %v3393, -inf
          %v3569 = vmax.f32 %v3561, %v3568
          %v3570 = vsel %vm3557, %v3401, -inf
          %v3571 = vmax.f32 %v3563, %v3570
          %v3572 = vsel %vm3557, %v3409, -inf
          %v3573 = vmax.f32 %v3565, %v3572
          %v3574 = vsel %vm3557, %v3408, -inf
          %v3575 = vmax.f32 %v3567, %v3574
          %v3576 = vsel %vm3557, %v3410, -inf
          %v3577 = vmax.f32 %v3569, %v3576
          %v3578 = vsel %vm3557, %v3418, -inf
          %v3579 = vmax.f32 %v3571, %v3578
          %v3580 = vsel %vm3557, %v3426, -inf
          %v3581 = vmax.f32 %v3573, %v3580
          %v3582 = vsel %vm3557, %v3425, -inf
          %v3583 = vmax.f32 %v3575, %v3582
          %v3584 = vsel %vm3557, %v3427, -inf
          %v3585 = vmax.f32 %v3577, %v3584
          %v3586 = vsel %vm3557, %v3435, -inf
          %v3587 = vmax.f32 %v3579, %v3586
          %v3588 = vsel %vm3557, %v3443, -inf
          %v3589 = vmax.f32 %v3581, %v3588
          %v3590 = vsel %vm3557, %v3442, -inf
          %v3591 = vmax.f32 %v3583, %v3590
          %v3592 = vsel %vm3557, %v3444, -inf
          %v3593 = vmax.f32 %v3585, %v3592
          %v3594 = vsel %vm3557, %v3452, -inf
          %v3595 = vmax.f32 %v3587, %v3594
          %v3596 = vsel %vm3557, %v3460, -inf
          %v3597 = vmax.f32 %v3589, %v3596
          %v3598 = vsel %vm3557, %v3459, -inf
          %v3599 = vmax.f32 %v3591, %v3598
          %v3600 = vsel %vm3557, %v3461, -inf
          %v3601 = vmax.f32 %v3593, %v3600
          %v3602 = vsel %vm3557, %v3469, -inf
          %v3603 = vmax.f32 %v3595, %v3602
          %v3604 = vsel %vm3557, %v3477, -inf
          %v3605 = vmax.f32 %v3597, %v3604
          %v3606 = vsel %vm3557, %v3476, -inf
          %v3607 = vmax.f32 %v3599, %v3606
          %v3608 = vsel %vm3557, %v3478, -inf
          %v3609 = vmax.f32 %v3601, %v3608
          %v3610 = vsel %vm3557, %v3486, -inf
          %v3611 = vmax.f32 %v3603, %v3610
          %v3612 = vsel %vm3557, %v3494, -inf
          %v3613 = vmax.f32 %v3605, %v3612
          %v3614 = vsel %vm3557, %v3493, -inf
          %v3615 = vmax.f32 %v3607, %v3614
          %v3616 = vsel %vm3557, %v3495, -inf
          %v3617 = vmax.f32 %v3609, %v3616
          %v3618 = vsel %vm3557, %v3503, -inf
          %v3619 = vmax.f32 %v3611, %v3618
          %v3620 = vsel %vm3557, %v3511, -inf
          %v3621 = vmax.f32 %v3613, %v3620
          %v3622 = vsel %vm3557, %v3510, -inf
          %v3623 = vmax.f32 %v3615, %v3622
          %v3624 = vsel %vm3557, %v3512, -inf
          %v3625 = vmax.f32 %v3617, %v3624
          %v3626 = vsel %vm2996, %v3519, -inf
          %v3627 = vmax.f32 %v3619, %v3626
          %v3628 = vmax.f32 %v3627, %v3621
          %v3629 = vmax.f32 %v3623, %v3625
          %v3630 = vmax.f32 %v3628, %v3629
          %3631 = vmax.xlane.f32.xlu0 %v3630
          %v3632 = vpop.xlane.xlu0 %3631
          %v3635 = vunpack.c.l.s4 269488144
          %v3636 = vunpack.c.0.s8 %v3635
          %v3637 = vlaneseq
          %v3638 = vshrl.u32 %v3637, 7
          %v3639 = vsub.s32 %v3636, %v3638
          %v3640 = vrot.slane %v3632, %v3639
          %v3642 = vsub.f32 %v3340, %v3640
          %v3643 = vsub.f32 %v3341, %v3640
          %v3644 = vsub.f32 %v3342, %v3640
          %v3645 = vsub.f32 %v3343, %v3640
          %v3646 = vsub.f32 %v3344, %v3640
          %v3647 = vsub.f32 %v3345, %v3640
          %v3648 = vsub.f32 %v3346, %v3640
          %v3649 = vsub.f32 %v3347, %v3640
          %v3650 = vsub.f32 %v3348, %v3640
          %v3651 = vsub.f32 %v3349, %v3640
          %v3652 = vmul.f32 %v3642, 1.442695
          %v3653 = vpow.pop %v3652
          %v3654 = vmul.f32 %v3643, 1.442695
          %v3655 = vpow.pop %v3654
          %v3656 = vmul.f32 %v3644, 1.442695
          %v3657 = vpow.pop %v3656
          %v3658 = vmul.f32 %v3645, 1.442695
          %v3659 = vpow.pop %v3658
          %v3660 = vmul.f32 %v3646, 1.442695
          %v3661 = vpow.pop %v3660
          %v3662 = vmul.f32 %v3647, 1.442695
          %v3663 = vpow.pop %v3662
          %v3664 = vmul.f32 %v3648, 1.442695
          %v3665 = vpow.pop %v3664
          %v3666 = vmul.f32 %v3649, 1.442695
          %v3667 = vpow.pop %v3666
          %v3668 = vmul.f32 %v3650, 1.442695
          %v3669 = vpow.pop %v3668
          %v3670 = vmul.f32 %v3651, 1.442695
          %v3671 = vpow.pop %v3670
          %v3682 = vcombine.high %v3653, %v3653
          %v3684 = vunpack.c.l.s4 1983009808
          %v3685 = vunpack.c.0.s8 %v3684
          %v3686 = vlaneseq
          %v3687 = vshrl.u32 %v3686, 7
          %v3688 = vsub.s32 %v3685, %v3687
          %v3689 = vrot.slane %v3653, %v3688
          %v3691 = vunpack.c.l.s4 1983009808
          %v3692 = vunpack.c.0.s8 %v3691
          %v3693 = vlaneseq
          %v3694 = vshrl.u32 %v3693, 7
          %v3695 = vsub.s32 %v3692, %v3694
          %v3696 = vrot.slane %v3682, %v3695
          %v3697 = vcombine.high %v3689, %v3689
          %v3698 = vcombine.high %v3696, %v3696
          %v3699 = vcombine.high %v3655, %v3655
          %v3701 = vunpack.c.l.s4 1983009808
          %v3702 = vunpack.c.0.s8 %v3701
          %v3703 = vlaneseq
          %v3704 = vshrl.u32 %v3703, 7
          %v3705 = vsub.s32 %v3702, %v3704
          %v3706 = vrot.slane %v3655, %v3705
          %v3708 = vunpack.c.l.s4 1983009808
          %v3709 = vunpack.c.0.s8 %v3708
          %v3710 = vlaneseq
          %v3711 = vshrl.u32 %v3710, 7
          %v3712 = vsub.s32 %v3709, %v3711
          %v3713 = vrot.slane %v3699, %v3712
          %v3714 = vcombine.high %v3706, %v3706
          %v3715 = vcombine.high %v3713, %v3713
          %v3716 = vcombine.high %v3657, %v3657
          %v3718 = vunpack.c.l.s4 1983009808
          %v3719 = vunpack.c.0.s8 %v3718
          %v3720 = vlaneseq
          %v3721 = vshrl.u32 %v3720, 7
          %v3722 = vsub.s32 %v3719, %v3721
          %v3723 = vrot.slane %v3657, %v3722
          %v3725 = vunpack.c.l.s4 1983009808
          %v3726 = vunpack.c.0.s8 %v3725
          %v3727 = vlaneseq
          %v3728 = vshrl.u32 %v3727, 7
          %v3729 = vsub.s32 %v3726, %v3728
          %v3730 = vrot.slane %v3716, %v3729
          %v3731 = vcombine.high %v3723, %v3723
          %v3732 = vcombine.high %v3730, %v3730
          %v3733 = vcombine.high %v3659, %v3659
          %v3735 = vunpack.c.l.s4 1983009808
          %v3736 = vunpack.c.0.s8 %v3735
          %v3737 = vlaneseq
          %v3738 = vshrl.u32 %v3737, 7
          %v3739 = vsub.s32 %v3736, %v3738
          %v3740 = vrot.slane %v3659, %v3739
          %v3742 = vunpack.c.l.s4 1983009808
          %v3743 = vunpack.c.0.s8 %v3742
          %v3744 = vlaneseq
          %v3745 = vshrl.u32 %v3744, 7
          %v3746 = vsub.s32 %v3743, %v3745
          %v3747 = vrot.slane %v3733, %v3746
          %v3748 = vcombine.high %v3740, %v3740
          %v3749 = vcombine.high %v3747, %v3747
          %v3750 = vcombine.high %v3661, %v3661
          %v3752 = vunpack.c.l.s4 1983009808
          %v3753 = vunpack.c.0.s8 %v3752
          %v3754 = vlaneseq
          %v3755 = vshrl.u32 %v3754, 7
          %v3756 = vsub.s32 %v3753, %v3755
          %v3757 = vrot.slane %v3661, %v3756
          %v3759 = vunpack.c.l.s4 1983009808
          %v3760 = vunpack.c.0.s8 %v3759
          %v3761 = vlaneseq
          %v3762 = vshrl.u32 %v3761, 7
          %v3763 = vsub.s32 %v3760, %v3762
          %v3764 = vrot.slane %v3750, %v3763
          %v3765 = vcombine.high %v3757, %v3757
          %v3766 = vcombine.high %v3764, %v3764
          %v3767 = vcombine.high %v3663, %v3663
          %v3769 = vunpack.c.l.s4 1983009808
          %v3770 = vunpack.c.0.s8 %v3769
          %v3771 = vlaneseq
          %v3772 = vshrl.u32 %v3771, 7
          %v3773 = vsub.s32 %v3770, %v3772
          %v3774 = vrot.slane %v3663, %v3773
          %v3776 = vunpack.c.l.s4 1983009808
          %v3777 = vunpack.c.0.s8 %v3776
          %v3778 = vlaneseq
          %v3779 = vshrl.u32 %v3778, 7
          %v3780 = vsub.s32 %v3777, %v3779
          %v3781 = vrot.slane %v3767, %v3780
          %v3782 = vcombine.high %v3774, %v3774
          %v3783 = vcombine.high %v3781, %v3781
          %v3784 = vcombine.high %v3665, %v3665
          %v3786 = vunpack.c.l.s4 1983009808
          %v3787 = vunpack.c.0.s8 %v3786
          %v3788 = vlaneseq
          %v3789 = vshrl.u32 %v3788, 7
          %v3790 = vsub.s32 %v3787, %v3789
          %v3791 = vrot.slane %v3665, %v3790
          %v3793 = vunpack.c.l.s4 1983009808
          %v3794 = vunpack.c.0.s8 %v3793
          %v3795 = vlaneseq
          %v3796 = vshrl.u32 %v3795, 7
          %v3797 = vsub.s32 %v3794, %v3796
          %v3798 = vrot.slane %v3784, %v3797
          %v3799 = vcombine.high %v3791, %v3791
          %v3800 = vcombine.high %v3798, %v3798
          %v3801 = vcombine.high %v3667, %v3667
          %v3803 = vunpack.c.l.s4 1983009808
          %v3804 = vunpack.c.0.s8 %v3803
          %v3805 = vlaneseq
          %v3806 = vshrl.u32 %v3805, 7
          %v3807 = vsub.s32 %v3804, %v3806
          %v3808 = vrot.slane %v3667, %v3807
          %v3810 = vunpack.c.l.s4 1983009808
          %v3811 = vunpack.c.0.s8 %v3810
          %v3812 = vlaneseq
          %v3813 = vshrl.u32 %v3812, 7
          %v3814 = vsub.s32 %v3811, %v3813
          %v3815 = vrot.slane %v3801, %v3814
          %v3816 = vcombine.high %v3808, %v3808
          %v3817 = vcombine.high %v3815, %v3815
          %v3818 = vcombine.high %v3669, %v3669
          %v3820 = vunpack.c.l.s4 1983009808
          %v3821 = vunpack.c.0.s8 %v3820
          %v3822 = vlaneseq
          %v3823 = vshrl.u32 %v3822, 7
          %v3824 = vsub.s32 %v3821, %v3823
          %v3825 = vrot.slane %v3669, %v3824
          %v3827 = vunpack.c.l.s4 1983009808
          %v3828 = vunpack.c.0.s8 %v3827
          %v3829 = vlaneseq
          %v3830 = vshrl.u32 %v3829, 7
          %v3831 = vsub.s32 %v3828, %v3830
          %v3832 = vrot.slane %v3818, %v3831
          %v3833 = vcombine.high %v3825, %v3825
          %v3834 = vcombine.high %v3832, %v3832
          %v3836 = vunpack.c.l.s4 1983009808
          %v3837 = vunpack.c.0.s8 %v3836
          %v3838 = vlaneseq
          %v3839 = vshrl.u32 %v3838, 7
          %v3840 = vsub.s32 %v3837, %v3839
          %v3841 = vrot.slane %v3671, %v3840
          %v3879 = vsel %vm3557, %v3689, 0.0
          %v3880 = vsel %vm3557, %v3697, 0.0
          %v3881 = vadd.f32 %v3879, %v3880
          %v3882 = vsel %vm3557, %v3696, 0.0
          %v3883 = vadd.f32 %v3881, %v3882
          %v3884 = vsel %vm3557, %v3698, 0.0
          %v3885 = vadd.f32 %v3883, %v3884
          %v3886 = vsel %vm3557, %v3706, 0.0
          %v3887 = vadd.f32 %v3885, %v3886
          %v3888 = vsel %vm3557, %v3714, 0.0
          %v3889 = vadd.f32 %v3887, %v3888
          %v3890 = vsel %vm3557, %v3713, 0.0
          %v3891 = vadd.f32 %v3889, %v3890
          %v3892 = vsel %vm3557, %v3715, 0.0
          %v3893 = vadd.f32 %v3891, %v3892
          %v3894 = vsel %vm3557, %v3723, 0.0
          %v3895 = vadd.f32 %v3893, %v3894
          %v3896 = vsel %vm3557, %v3731, 0.0
          %v3897 = vadd.f32 %v3895, %v3896
          %v3898 = vsel %vm3557, %v3730, 0.0
          %v3899 = vadd.f32 %v3897, %v3898
          %v3900 = vsel %vm3557, %v3732, 0.0
          %v3901 = vadd.f32 %v3899, %v3900
          %v3902 = vsel %vm3557, %v3740, 0.0
          %v3903 = vadd.f32 %v3901, %v3902
          %v3904 = vsel %vm3557, %v3748, 0.0
          %v3905 = vadd.f32 %v3903, %v3904
          %v3906 = vsel %vm3557, %v3747, 0.0
          %v3907 = vadd.f32 %v3905, %v3906
          %v3908 = vsel %vm3557, %v3749, 0.0
          %v3909 = vadd.f32 %v3907, %v3908
          %v3910 = vsel %vm3557, %v3757, 0.0
          %v3911 = vadd.f32 %v3909, %v3910
          %v3912 = vsel %vm3557, %v3765, 0.0
          %v3913 = vadd.f32 %v3911, %v3912
          %v3914 = vsel %vm3557, %v3764, 0.0
          %v3915 = vadd.f32 %v3913, %v3914
          %v3916 = vsel %vm3557, %v3766, 0.0
          %v3917 = vadd.f32 %v3915, %v3916
          %v3918 = vsel %vm3557, %v3774, 0.0
          %v3919 = vadd.f32 %v3917, %v3918
          %v3920 = vsel %vm3557, %v3782, 0.0
          %v3921 = vadd.f32 %v3919, %v3920
          %v3922 = vsel %vm3557, %v3781, 0.0
          %v3923 = vadd.f32 %v3921, %v3922
          %v3924 = vsel %vm3557, %v3783, 0.0
          %v3925 = vadd.f32 %v3923, %v3924
          %v3926 = vsel %vm3557, %v3791, 0.0
          %v3927 = vadd.f32 %v3925, %v3926
          %v3928 = vsel %vm3557, %v3799, 0.0
          %v3929 = vadd.f32 %v3927, %v3928
          %v3930 = vsel %vm3557, %v3798, 0.0
          %v3931 = vadd.f32 %v3929, %v3930
          %v3932 = vsel %vm3557, %v3800, 0.0
          %v3933 = vadd.f32 %v3931, %v3932
          %v3934 = vsel %vm3557, %v3808, 0.0
          %v3935 = vadd.f32 %v3933, %v3934
          %v3936 = vsel %vm3557, %v3816, 0.0
          %v3937 = vadd.f32 %v3935, %v3936
          %v3938 = vsel %vm3557, %v3815, 0.0
          %v3939 = vadd.f32 %v3937, %v3938
          %v3940 = vsel %vm3557, %v3817, 0.0
          %v3941 = vadd.f32 %v3939, %v3940
          %v3942 = vsel %vm3557, %v3825, 0.0
          %v3943 = vadd.f32 %v3941, %v3942
          %v3944 = vsel %vm3557, %v3833, 0.0
          %v3945 = vadd.f32 %v3943, %v3944
          %v3946 = vsel %vm3557, %v3832, 0.0
          %v3947 = vadd.f32 %v3945, %v3946
          %v3948 = vsel %vm3557, %v3834, 0.0
          %v3949 = vadd.f32 %v3947, %v3948
          %v3950 = vsel %vm2996, %v3841, 0.0
          %v3951 = vadd.f32 %v3949, %v3950
          %3952 = vadd.xlane.f32.xlu0 %v3951
          %v3953 = vpop.xlane.xlu0 %3952
          %v3956 = vunpack.c.l.s4 269488144
          %v3957 = vunpack.c.0.s8 %v3956
          %v3958 = vlaneseq
          %v3959 = vshrl.u32 %v3958, 7
          %v3960 = vsub.s32 %v3957, %v3959
          %v3961 = vrot.slane %v3953, %v3960
          %v3963 = vrcp.pop %v3961
          %v3964 = vmul.f32 %v3653, %v3963
          %v3965 = vmul.f32 %v3655, %v3963
          %v3966 = vmul.f32 %v3657, %v3963
          %v3967 = vmul.f32 %v3659, %v3963
          %v3968 = vmul.f32 %v3661, %v3963
          %v3969 = vmul.f32 %v3663, %v3963
          %v3970 = vmul.f32 %v3665, %v3963
          %v3971 = vmul.f32 %v3667, %v3963
          %v3972 = vmul.f32 %v3669, %v3963
          %v3973 = vmul.f32 %v3671, %v3963
          %3974 = vst [vmem:[#allocation6] sm:$0xff] %v3964
          %3975 = vst [vmem:[#allocation6 + $0x8] sm:$0xff] %v3965
          %3976 = vst [vmem:[#allocation6 + $0x10] sm:$0xff] %v3966
          %3977 = vst [vmem:[#allocation6 + $0x18] sm:$0xff] %v3967
          %3978 = vst [vmem:[#allocation6 + $0x20] sm:$0xff] %v3968
          %3979 = vst [vmem:[#allocation6 + $0x28] sm:$0xff] %v3969
          %3980 = vst [vmem:[#allocation6 + $0x30] sm:$0xff] %v3970
          %3981 = vst [vmem:[#allocation6 + $0x38] sm:$0xff] %v3971
          %3982 = vst [vmem:[#allocation6 + $0x40] sm:$0xff] %v3972
          %3983 = vst.msk [vmem:[#allocation6 + $0x48] sm:$0x3] %vm2996, %v3973
        $region44: #{chessnet_forward.15} parent=31 // pred_fallthru
          _
        // Predicated region
        $region45: #{chessnet_forward.15} parent=31 // pred_check
          %p3984 = pneg %p104
        $region46: #{chessnet_forward.15} parent=31 // pred_check_branch
          %3986 = sbr.rel (%p3984) target = $region48
        $region47: #{chessnet_forward.15} parent=31 // pred_region
          %s3988 = ssub.s32 1184, 1184
          %3989 = vsyncadd [#allocation5], %s3988
          %s3991 = sshll.u32 [#allocation6], 4
          %s3992 = int_to_ptr.vmem [resolvable:$true] %s3991
          %3994 = dma.vmem_to_hbm [thread:$0]  %s3992, 1184, %s3, [#allocation5]
        $region48: #{chessnet_forward.15} parent=31 // pred_fallthru
          _
        // Predicated region
        $region49: #{chessnet_forward.15} parent=31 // pred_check
          %p3995 = pneg %p104
        $region50: #{chessnet_forward.15} parent=31 // pred_check_branch
          %3997 = sbr.rel (%p3995) target = $region52
        $region51: #{chessnet_forward.15} parent=31 // pred_region
          %3998 = dma.done [#allocation5], 1184
        $region52: #{chessnet_forward.15} parent=31 // pred_fallthru
          _
      $region32: #{chessnet_forward.15} parent=5 // pred_fallthru
        _
      %p3999 = scmp.le.s32.totalorder 2, %s13
      // Predicated region
      $region53: #{chessnet_forward.15} parent=5 // pred_check
        %p4000 = pneg %p3999
      $region54: #{chessnet_forward.15} parent=5 // pred_check_branch
        %4002 = sbr.rel (%p4000) target = $region56
      $region55: #{chessnet_forward.15} parent=5 // pred_region
        %s4003 = ssub.s32 %s13, 2
      $region56: #{chessnet_forward.15} parent=5 // pred_fallthru
        _
    $region6: #{chessnet_forward.15} parent=1 // loop_footer
      %s17 = sadd.s32 1, %s13
    $region7: #{chessnet_forward.15} parent=1 // loop_footer_branch
      %12 = sbr.rel target = $region3
    $region8: #{chessnet_forward.15} parent=1 // loop_exit
      _
    %4004 = vsyncpa [#allocation4], 1
    %s4005 = scalar_lea.sflag [#allocation4], 1
    %4006 = vsyncpa %s4005, 1
    %4007 = vsyncpa [#allocation5], 1
    %s4008 = scalar_lea.sflag [#allocation5], 1
    %4009 = vsyncpa %s4008, 1

</llo_original>
